<compile_context>
chip_gen: v7x
topology: tpu7x:2x2x1
jax: 0.10.0
libtpu: 0.0.40
codegen_flags: <defaults>
</compile_context>

<pallas_src>
import functools

import jax
import jax.numpy as jnp
from jax import lax
from jax.experimental import pallas as pl
from jax.experimental.pallas import tpu as pltpu

NEG_SLOPE = 0.2  # DGL GATConv default LeakyReLU negative slope


# --------------------------------------------------------------------------
# helpers
# --------------------------------------------------------------------------
def _pick_row_tile(n, target=128):
    """Largest tile <= target that divides n (keeps >=2 grid steps at N=256)."""
    if n <= target:
        return n
    t = target
    while t >= 8:
        if n % t == 0:
            return t
        t //= 2
    return n


def _vmem_capacity_bytes():
    try:
        return int(pltpu.get_tpu_info().vmem_capacity_bytes)
    except Exception:
        return 64 << 20  # conservative fallback (v7x per-TC VMEM)


def _compiler_params(resident_bytes, tile_bytes, temp_bytes):
    # Generation-aware VMEM limit: resident (constant-index) blocks counted
    # once, per-tile blocks twice (double-buffered), plus working-set estimate.
    cap = _vmem_capacity_bytes()
    need = int(resident_bytes + 2 * tile_bytes + temp_bytes + (2 << 20))
    limit = int(min(max(need, 32 << 20), (cap * 3) // 4))
    return pltpu.CompilerParams(
        dimension_semantics=("parallel",),
        vmem_limit_bytes=limit,
    )


# --------------------------------------------------------------------------
# fused per-layer kernel: projection + attention + aggregation + activation
# --------------------------------------------------------------------------
def _gat_layer_kernel(x_ref, wT_ref, wl_ref, wr_ref, b_ref, adjt_ref, out_ref,
                      *, num_heads, head_dim, row_tile, activation):
    # x_ref    : (N, F_in)   bf16  node features (resident across grid steps)
    # wT_ref   : (F_in, H*D) bf16  fused-heads projection weights
    # wl_ref   : (H, F_in)   bf16  rows = W_h^T a_l_h   (source-side fold)
    # wr_ref   : (F_in, H)   bf16  cols = W_h^T a_r_h   (dest-side fold)
    # b_ref    : (1, H*D)    f32   bias
    # adjt_ref : (TQ, N)     int8  adjt[v, u] != 0 iff edge u -> v
    # out_ref  : (TQ, H*D)         head h occupies columns [h*D, (h+1)*D)
    i = pl.program_id(0)
    x_all = x_ref[...]                                            # (N, F_in) bf16

    # Fused-heads projection of all source nodes (recomputed per destination
    # tile — cheap MXU work that buys a fully fused layer with no z HBM trip).
    z = jnp.dot(x_all, wT_ref[...], preferred_element_type=jnp.float32)
    z_bf = z.astype(jnp.bfloat16)                                 # (N, H*D)

    # Source-side logits for ALL heads in one matmul: el[h, u] = a_l_h . (W_h x_u)
    el = lax.dot_general(wl_ref[...], x_all, (((1,), (1,)), ((), ())),
                         preferred_element_type=jnp.float32)      # (H, N)

    # Destination-side logits for this row tile only — slice the resident x ref.
    r0 = pl.multiple_of(i * row_tile, row_tile)
    x_dst = x_ref[pl.ds(r0, row_tile), :]                         # (TQ, F_in) bf16
    er = jnp.dot(x_dst, wr_ref[...], preferred_element_type=jnp.float32)  # (TQ, H)

    # One additive edge mask shared by every head; masked logits end up at
    # ~ -1e30 so exp underflows to exactly 0 (no post-exp select needed).
    mask_bias = jnp.where(adjt_ref[...].astype(jnp.float32) > 0.0, 0.0, -1e30)

    head_outs = []
    for h in range(num_heads):                                    # H small, unrolled
        lo = h * head_dim
        e = er[:, h:h + 1] + el[h:h + 1, :]                       # (TQ, N)
        e = jnp.where(e > 0, e, NEG_SLOPE * e)                    # LeakyReLU
        e = e + mask_bias
        m = jnp.max(e, axis=-1, keepdims=True)
        p = jnp.exp(e - m)                                        # f32 EUP (v5e-safe)
        s = jnp.sum(p, axis=-1, keepdims=True)
        alpha = (p * pl.reciprocal(s, approx=True)).astype(jnp.bfloat16)
        # out[v] = sum_u alpha[v, u] * z_h[u] : (TQ, N) @ (N, D) on the MXU
        head_outs.append(jnp.dot(alpha, z_bf[:, lo:lo + head_dim],
                                 preferred_element_type=jnp.float32))

    out = jnp.concatenate(head_outs, axis=-1) + b_ref[...]        # (TQ, H*D) f32
    if activation == "relu":
        out = jnp.maximum(out, 0.0)
    elif activation == "sigmoid":
        out = jax.nn.sigmoid(out)
    out_ref[...] = out.astype(out_ref.dtype)                      # single lane-dense store


def gat_layer(x_bf16, adjt_i8, w, attn_l, attn_r, bias, *, activation,
              out_dtype=jnp.float32, row_tile=None):
    n, fin = x_bf16.shape
    heads, d, fin_w = w.shape
    assert fin_w == fin
    hd = heads * d
    tq = row_tile or _pick_row_tile(n)

    # Weight prep (tiny, done once per call in the wrapper):
    wT = jnp.transpose(w.reshape(hd, fin)).astype(jnp.bfloat16)        # (F_in, H*D)
    al = attn_l.reshape(heads, d)
    ar = attn_r.reshape(heads, d)
    wl = jnp.einsum("hdf,hd->hf", w, al).astype(jnp.bfloat16)          # (H, F_in)
    wr = jnp.einsum("hdf,hd->fh", w, ar).astype(jnp.bfloat16)          # (F_in, H)
    b = bias.reshape(1, hd).astype(jnp.float32)

    kernel = functools.partial(_gat_layer_kernel, num_heads=heads, head_dim=d,
                               row_tile=tq, activation=activation)

    out_isize = jnp.dtype(out_dtype).itemsize
    resident = n * fin * 2 + fin * hd * 2 + 2 * heads * fin * 2 + hd * 4
    tile = tq * n * 1 + tq * hd * out_isize
    temp = n * hd * 6 + heads * n * 4 + 4 * tq * n * 4 + 2 * tq * hd * 4

    return pl.pallas_call(
        kernel,
        out_shape=jax.ShapeDtypeStruct((n, hd), out_dtype),
        grid_spec=pltpu.PrefetchScalarGridSpec(
            num_scalar_prefetch=0,
            grid=(n // tq,),
            in_specs=[
                pl.BlockSpec((n, fin), lambda i: (0, 0)),       # x (all nodes), resident
                pl.BlockSpec((fin, hd), lambda i: (0, 0)),      # wT, resident
                pl.BlockSpec((heads, fin), lambda i: (0, 0)),   # wl, resident
                pl.BlockSpec((fin, heads), lambda i: (0, 0)),   # wr, resident
                pl.BlockSpec((1, hd), lambda i: (0, 0)),        # bias, resident
                pl.BlockSpec((tq, n), lambda i: (i, 0)),        # int8 adjacency slab
            ],
            out_specs=pl.BlockSpec((tq, hd), lambda i: (i, 0)),
        ),
        compiler_params=_compiler_params(resident, tile, temp),
    )(x_bf16, wT, wl, wr, b, adjt_i8)


# --------------------------------------------------------------------------
# model wrapper
# --------------------------------------------------------------------------
def gat_2l_forward(adj, x, params, dropout_frac=0.0):
    # dst-major int8 adjacency: adjt[v, u] != 0 iff edge u -> v (softmax over
    # incoming edges); int8 cuts adjacency HBM traffic / VMEM footprint 4x.
    adjt_i8 = (adj.T > 0).astype(jnp.int8)
    x_bf = x.astype(jnp.bfloat16)                    # cast once in the wrapper
    # layer 1: GATConv -> reshape(N, H*hidden) -> relu   (all fused in-kernel,
    # output already laid out (N, H*hidden) and carried in bf16)
    h = gat_layer(x_bf, adjt_i8, params["w1"], params["al1"], params["ar1"],
                  params["b1"], activation="relu", out_dtype=jnp.bfloat16)
    # TODO(synk): F.dropout(p) uses torch RNG; treated as identity (p=0 / eval).
    # layer 2: GATConv -> reshape(N, H*classes) -> sigmoid (fused in-kernel)
    return gat_layer(h, adjt_i8, params["w2"], params["al2"], params["ar2"],
                     params["b2"], activation="sigmoid", out_dtype=jnp.float32)


def init_params(key, in_feats, hidden, classes, heads):
    ks = jax.random.split(key, 6)

    def xavier(k, shape, fan_in, fan_out):
        std = (2.0 / (fan_in + fan_out)) ** 0.5
        return std * jax.random.normal(k, shape, jnp.float32)

    in2 = hidden * heads
    return dict(
        w1=xavier(ks[0], (heads, hidden, in_feats), in_feats, heads * hidden),
        al1=xavier(ks[1], (heads, 1, hidden), hidden, 1),
        ar1=xavier(ks[2], (heads, 1, hidden), hidden, 1),
        b1=jnp.zeros((heads, 1, hidden), jnp.float32),
        w2=xavier(ks[3], (heads, classes, in2), in2, heads * classes),
        al2=xavier(ks[4], (heads, 1, classes), classes, 1),
        ar2=xavier(ks[5], (heads, 1, classes), classes, 1),
        b2=jnp.zeros((heads, 1, classes), jnp.float32),
    )


# --------------------------------------------------------------------------
# pure-JAX reference (bf16_policy=True mirrors the kernel's MXU/dtype policy)
# --------------------------------------------------------------------------
def gat_2l_ref(adj, x, params, *, bf16_policy=False):
    adjt_bias = jnp.where(adj.T > 0, 0.0, -1e30)
    cast = ((lambda a: a.astype(jnp.bfloat16)) if bf16_policy
            else (lambda a: a.astype(jnp.float32)))

    def layer(xx, w, al, ar, b, act):
        heads, d, fin = w.shape
        hd = heads * d
        al = al.reshape(heads, d)
        ar = ar.reshape(heads, d)
        xx_c = cast(xx)
        z = jnp.dot(xx_c, cast(jnp.transpose(w.reshape(hd, fin))),
                    preferred_element_type=jnp.float32)
        z_mm = cast(z)
        el = jnp.dot(cast(jnp.einsum("hdf,hd->hf", w, al)), xx_c.T,
                     preferred_element_type=jnp.float32)               # (H, N)
        er = jnp.dot(xx_c, cast(jnp.einsum("hdf,hd->fh", w, ar)),
                     preferred_element_type=jnp.float32)               # (N, H)
        outs = []
        for h in range(heads):
            e = er[:, h:h + 1] + el[h:h + 1, :]
            e = jnp.where(e > 0, e, NEG_SLOPE * e) + adjt_bias
            m = jnp.max(e, axis=-1, keepdims=True)
            p = jnp.exp(e - m)
            alpha = p / jnp.sum(p, axis=-1, keepdims=True)
            outs.append(jnp.dot(cast(alpha), z_mm[:, h * d:(h + 1) * d],
                                preferred_element_type=jnp.float32))
        out = jnp.concatenate(outs, axis=-1) + b.reshape(1, hd)
        if act == "relu":
            return cast(jnp.maximum(out, 0.0))   # layer-1 output carried bf16
        return jax.nn.sigmoid(out)

    h = layer(x, params["w1"], params["al1"], params["ar1"], params["b1"], "relu")
    h = layer(h, params["w2"], params["al2"], params["ar2"], params["b2"], "sigmoid")
    return h.astype(jnp.float32)


if __name__ == "__main__":
    N, IN_FEATS, HIDDEN, CLASSES, HEADS = 256, 32, 16, 8, 4

    key = jax.random.PRNGKey(0)
    kx, kg, kp = jax.random.split(key, 3)

    x = jax.random.normal(kx, (N, IN_FEATS), jnp.float32)
    # deterministic random directed graph + self loops (dense adjacency)
    adj = (jax.random.uniform(kg, (N, N)) < 0.3).astype(jnp.float32)
    adj = jnp.maximum(adj, jnp.eye(N, dtype=jnp.float32))

    params = init_params(kp, IN_FEATS, HIDDEN, CLASSES, HEADS)

    out = jax.jit(gat_2l_forward)(adj, x, params)
    out = jax.block_until_ready(out)
    assert out.shape == (N, HEADS * CLASSES), out.shape
    assert bool(jnp.all(jnp.isfinite(out)))

    # tight check against a reference mirroring the kernel's bf16/f32 MXU policy
    ref_bf16 = gat_2l_ref(adj, x, params, bf16_policy=True)
    err_bf16 = jnp.max(jnp.abs(out - ref_bf16))
    assert jnp.allclose(out, ref_bf16, atol=1.5e-2, rtol=1.5e-2), \
        f"max abs err vs bf16-mirrored ref {err_bf16}"

    # looser sanity check against the full-f32 module semantics
    ref_f32 = gat_2l_ref(adj, x, params, bf16_policy=False)
    err_f32 = jnp.max(jnp.abs(out - ref_f32))
    assert jnp.allclose(out, ref_f32, atol=5e-2, rtol=5e-2), \
        f"max abs err vs f32 ref {err_f32}"

    print("KERNEL_OK")
</pallas_src>

<mosaic_0001>
module attributes {stable_mosaic.version = 11 : i64} {
  func.func @_gat_layer_kernel(%arg0: i32, %arg1: memref<256x32xbf16, #tpu.memory_space<vmem>>, %arg2: memref<32x64xbf16, #tpu.memory_space<vmem>>, %arg3: memref<4x32xbf16, #tpu.memory_space<vmem>>, %arg4: memref<32x4xbf16, #tpu.memory_space<vmem>>, %arg5: memref<1x64xf32, #tpu.memory_space<vmem>>, %arg6: memref<128x256xi8, #tpu.memory_space<vmem>>, %arg7: memref<128x64xbf16, #tpu.memory_space<vmem>>) attributes {dimension_semantics = [#tpu.dimension_semantics<parallel>], iteration_bounds = array<i64: 2>, scalar_prefetch = 0 : i64, scratch_operands = 0 : i64, tpu.core_type = #tpu.core_type<tc>, window_params = [{pipeline_mode = #tpu.pipeline_mode<synchronous>, transform_indices = @transform_0, window_bounds = array<i64: 256, 32>}, {pipeline_mode = #tpu.pipeline_mode<synchronous>, transform_indices = @transform_1, window_bounds = array<i64: 32, 64>}, {pipeline_mode = #tpu.pipeline_mode<synchronous>, transform_indices = @transform_2, window_bounds = array<i64: 4, 32>}, {pipeline_mode = #tpu.pipeline_mode<synchronous>, transform_indices = @transform_3, window_bounds = array<i64: 32, 4>}, {pipeline_mode = #tpu.pipeline_mode<synchronous>, transform_indices = @transform_4, window_bounds = array<i64: 1, 64>}, {transform_indices = @transform_5, window_bounds = array<i64: 128, 256>}, {transform_indices = @transform_6, window_bounds = array<i64: 128, 64>}]} {
    %c0 = arith.constant 0 : index
    %c0_0 = arith.constant 0 : index
    %0 = vector.load %arg1[%c0, %c0_0] : memref<256x32xbf16, #tpu.memory_space<vmem>>, vector<256x32xbf16>
    %c0_1 = arith.constant 0 : index
    %c0_2 = arith.constant 0 : index
    %1 = vector.load %arg2[%c0_1, %c0_2] : memref<32x64xbf16, #tpu.memory_space<vmem>>, vector<32x64xbf16>
    %cst = arith.constant dense<0.000000e+00> : vector<256x64xf32>
    %2 = tpu.matmul %0, %1, %cst {dimension_numbers = #tpu.dot_dimension_numbers<[1], [0], [0], [1], [0, 0, 1, 1], [], []>} : vector<256x32xbf16>, vector<32x64xbf16>, vector<256x64xf32> -> vector<256x64xf32>
    %3 = arith.truncf %2 : vector<256x64xf32> to vector<256x64xbf16>
    %c0_3 = arith.constant 0 : index
    %c0_4 = arith.constant 0 : index
    %4 = vector.load %arg3[%c0_3, %c0_4] : memref<4x32xbf16, #tpu.memory_space<vmem>>, vector<4x32xbf16>
    %cst_5 = arith.constant dense<0.000000e+00> : vector<4x256xf32>
    %5 = tpu.matmul %4, %0, %cst_5 {dimension_numbers = #tpu.dot_dimension_numbers<[1], [1], [0], [0], [0, 0, 1, 0], [], []>} : vector<4x32xbf16>, vector<256x32xbf16>, vector<4x256xf32> -> vector<4x256xf32>
    %c128_i32 = arith.constant 128 : i32
    %6 = arith.muli %arg0, %c128_i32 : i32
    %7 = tpu.assume_multiple %6, 128 : i32
    %8 = arith.index_cast %7 : i32 to index
    %c0_6 = arith.constant 0 : index
    %9 = vector.load %arg1[%8, %c0_6] : memref<256x32xbf16, #tpu.memory_space<vmem>>, vector<128x32xbf16>
    %c0_7 = arith.constant 0 : index
    %c0_8 = arith.constant 0 : index
    %10 = vector.load %arg4[%c0_7, %c0_8] : memref<32x4xbf16, #tpu.memory_space<vmem>>, vector<32x4xbf16>
    %cst_9 = arith.constant dense<0.000000e+00> : vector<128x4xf32>
    %11 = tpu.matmul %9, %10, %cst_9 {dimension_numbers = #tpu.dot_dimension_numbers<[1], [0], [0], [1], [0, 0, 1, 1], [], []>} : vector<128x32xbf16>, vector<32x4xbf16>, vector<128x4xf32> -> vector<128x4xf32>
    %c0_10 = arith.constant 0 : index
    %c0_11 = arith.constant 0 : index
    %12 = vector.load %arg6[%c0_10, %c0_11] : memref<128x256xi8, #tpu.memory_space<vmem>>, vector<128x256xi8>
    %13 = arith.sitofp %12 : vector<128x256xi8> to vector<128x256xf32>
    %cst_12 = arith.constant 0.000000e+00 : f32
    %14 = vector.broadcast %cst_12 : f32 to vector<128x256xf32>
    %15 = arith.cmpf ogt, %13, %14 : vector<128x256xf32>
    %cst_13 = arith.constant 0.000000e+00 : f32
    %cst_14 = arith.constant -1.000000e+30 : f32
    %16 = vector.broadcast %cst_13 : f32 to vector<128x256xf32>
    %17 = vector.broadcast %cst_14 : f32 to vector<128x256xf32>
    %18 = arith.select %15, %16, %17 : vector<128x256xi1>, vector<128x256xf32>
    %19 = vector.extract_strided_slice %11 {offsets = [0, 0], sizes = [128, 1], strides = [1, 1]} : vector<128x4xf32> to vector<128x1xf32>
    %20 = vector.extract_strided_slice %5 {offsets = [0, 0], sizes = [1, 256], strides = [1, 1]} : vector<4x256xf32> to vector<1x256xf32>
    %21 = vector.broadcast %19 : vector<128x1xf32> to vector<128x256xf32>
    %22 = vector.broadcast %20 : vector<1x256xf32> to vector<128x256xf32>
    %23 = arith.addf %21, %22 : vector<128x256xf32>
    %cst_15 = arith.constant 0.000000e+00 : f32
    %24 = vector.broadcast %cst_15 : f32 to vector<128x256xf32>
    %25 = arith.cmpf ogt, %23, %24 : vector<128x256xf32>
    %cst_16 = arith.constant 2.000000e-01 : f32
    %26 = vector.broadcast %cst_16 : f32 to vector<128x256xf32>
    %27 = arith.mulf %26, %23 : vector<128x256xf32>
    %28 = arith.select %25, %23, %27 : vector<128x256xi1>, vector<128x256xf32>
    %29 = arith.addf %28, %18 : vector<128x256xf32>
    %cst_17 = arith.constant dense<0xFF800000> : vector<128xf32>
    %30 = vector.multi_reduction <maximumf>, %29, %cst_17 [1] : vector<128x256xf32> to vector<128xf32>
    %31 = vector.shape_cast %30 : vector<128xf32> to vector<128x1xf32>
    %32 = vector.broadcast %31 : vector<128x1xf32> to vector<128x256xf32>
    %33 = arith.subf %29, %32 : vector<128x256xf32>
    %34 = math.exp %33 : vector<128x256xf32>
    %cst_18 = arith.constant dense<0.000000e+00> : vector<128xf32>
    %35 = vector.multi_reduction <add>, %34, %cst_18 [1] : vector<128x256xf32> to vector<128xf32>
    %36 = vector.shape_cast %35 : vector<128xf32> to vector<128x1xf32>
    %37 = tpu.reciprocal %36 {approx = true} : vector<128x1xf32> -> vector<128x1xf32>
    %38 = vector.broadcast %37 : vector<128x1xf32> to vector<128x256xf32>
    %39 = arith.mulf %34, %38 : vector<128x256xf32>
    %40 = arith.truncf %39 : vector<128x256xf32> to vector<128x256xbf16>
    %41 = vector.extract_strided_slice %3 {offsets = [0, 0], sizes = [256, 16], strides = [1, 1]} : vector<256x64xbf16> to vector<256x16xbf16>
    %cst_19 = arith.constant dense<0.000000e+00> : vector<128x16xf32>
    %42 = tpu.matmul %40, %41, %cst_19 {dimension_numbers = #tpu.dot_dimension_numbers<[1], [0], [0], [1], [0, 0, 1, 1], [], []>} : vector<128x256xbf16>, vector<256x16xbf16>, vector<128x16xf32> -> vector<128x16xf32>
    %43 = vector.extract_strided_slice %11 {offsets = [0, 1], sizes = [128, 1], strides = [1, 1]} : vector<128x4xf32> to vector<128x1xf32>
    %44 = vector.extract_strided_slice %5 {offsets = [1, 0], sizes = [1, 256], strides = [1, 1]} : vector<4x256xf32> to vector<1x256xf32>
    %45 = vector.broadcast %43 : vector<128x1xf32> to vector<128x256xf32>
    %46 = vector.broadcast %44 : vector<1x256xf32> to vector<128x256xf32>
    %47 = arith.addf %45, %46 : vector<128x256xf32>
    %cst_20 = arith.constant 0.000000e+00 : f32
    %48 = vector.broadcast %cst_20 : f32 to vector<128x256xf32>
    %49 = arith.cmpf ogt, %47, %48 : vector<128x256xf32>
    %cst_21 = arith.constant 2.000000e-01 : f32
    %50 = vector.broadcast %cst_21 : f32 to vector<128x256xf32>
    %51 = arith.mulf %50, %47 : vector<128x256xf32>
    %52 = arith.select %49, %47, %51 : vector<128x256xi1>, vector<128x256xf32>
    %53 = arith.addf %52, %18 : vector<128x256xf32>
    %cst_22 = arith.constant dense<0xFF800000> : vector<128xf32>
    %54 = vector.multi_reduction <maximumf>, %53, %cst_22 [1] : vector<128x256xf32> to vector<128xf32>
    %55 = vector.shape_cast %54 : vector<128xf32> to vector<128x1xf32>
    %56 = vector.broadcast %55 : vector<128x1xf32> to vector<128x256xf32>
    %57 = arith.subf %53, %56 : vector<128x256xf32>
    %58 = math.exp %57 : vector<128x256xf32>
    %cst_23 = arith.constant dense<0.000000e+00> : vector<128xf32>
    %59 = vector.multi_reduction <add>, %58, %cst_23 [1] : vector<128x256xf32> to vector<128xf32>
    %60 = vector.shape_cast %59 : vector<128xf32> to vector<128x1xf32>
    %61 = tpu.reciprocal %60 {approx = true} : vector<128x1xf32> -> vector<128x1xf32>
    %62 = vector.broadcast %61 : vector<128x1xf32> to vector<128x256xf32>
    %63 = arith.mulf %58, %62 : vector<128x256xf32>
    %64 = arith.truncf %63 : vector<128x256xf32> to vector<128x256xbf16>
    %65 = vector.extract_strided_slice %3 {offsets = [0, 16], sizes = [256, 16], strides = [1, 1]} : vector<256x64xbf16> to vector<256x16xbf16>
    %cst_24 = arith.constant dense<0.000000e+00> : vector<128x16xf32>
    %66 = tpu.matmul %64, %65, %cst_24 {dimension_numbers = #tpu.dot_dimension_numbers<[1], [0], [0], [1], [0, 0, 1, 1], [], []>} : vector<128x256xbf16>, vector<256x16xbf16>, vector<128x16xf32> -> vector<128x16xf32>
    %67 = vector.extract_strided_slice %11 {offsets = [0, 2], sizes = [128, 1], strides = [1, 1]} : vector<128x4xf32> to vector<128x1xf32>
    %68 = vector.extract_strided_slice %5 {offsets = [2, 0], sizes = [1, 256], strides = [1, 1]} : vector<4x256xf32> to vector<1x256xf32>
    %69 = vector.broadcast %67 : vector<128x1xf32> to vector<128x256xf32>
    %70 = vector.broadcast %68 : vector<1x256xf32> to vector<128x256xf32>
    %71 = arith.addf %69, %70 : vector<128x256xf32>
    %cst_25 = arith.constant 0.000000e+00 : f32
    %72 = vector.broadcast %cst_25 : f32 to vector<128x256xf32>
    %73 = arith.cmpf ogt, %71, %72 : vector<128x256xf32>
    %cst_26 = arith.constant 2.000000e-01 : f32
    %74 = vector.broadcast %cst_26 : f32 to vector<128x256xf32>
    %75 = arith.mulf %74, %71 : vector<128x256xf32>
    %76 = arith.select %73, %71, %75 : vector<128x256xi1>, vector<128x256xf32>
    %77 = arith.addf %76, %18 : vector<128x256xf32>
    %cst_27 = arith.constant dense<0xFF800000> : vector<128xf32>
    %78 = vector.multi_reduction <maximumf>, %77, %cst_27 [1] : vector<128x256xf32> to vector<128xf32>
    %79 = vector.shape_cast %78 : vector<128xf32> to vector<128x1xf32>
    %80 = vector.broadcast %79 : vector<128x1xf32> to vector<128x256xf32>
    %81 = arith.subf %77, %80 : vector<128x256xf32>
    %82 = math.exp %81 : vector<128x256xf32>
    %cst_28 = arith.constant dense<0.000000e+00> : vector<128xf32>
    %83 = vector.multi_reduction <add>, %82, %cst_28 [1] : vector<128x256xf32> to vector<128xf32>
    %84 = vector.shape_cast %83 : vector<128xf32> to vector<128x1xf32>
    %85 = tpu.reciprocal %84 {approx = true} : vector<128x1xf32> -> vector<128x1xf32>
    %86 = vector.broadcast %85 : vector<128x1xf32> to vector<128x256xf32>
    %87 = arith.mulf %82, %86 : vector<128x256xf32>
    %88 = arith.truncf %87 : vector<128x256xf32> to vector<128x256xbf16>
    %89 = vector.extract_strided_slice %3 {offsets = [0, 32], sizes = [256, 16], strides = [1, 1]} : vector<256x64xbf16> to vector<256x16xbf16>
    %cst_29 = arith.constant dense<0.000000e+00> : vector<128x16xf32>
    %90 = tpu.matmul %88, %89, %cst_29 {dimension_numbers = #tpu.dot_dimension_numbers<[1], [0], [0], [1], [0, 0, 1, 1], [], []>} : vector<128x256xbf16>, vector<256x16xbf16>, vector<128x16xf32> -> vector<128x16xf32>
    %91 = vector.extract_strided_slice %11 {offsets = [0, 3], sizes = [128, 1], strides = [1, 1]} : vector<128x4xf32> to vector<128x1xf32>
    %92 = vector.extract_strided_slice %5 {offsets = [3, 0], sizes = [1, 256], strides = [1, 1]} : vector<4x256xf32> to vector<1x256xf32>
    %93 = vector.broadcast %91 : vector<128x1xf32> to vector<128x256xf32>
    %94 = vector.broadcast %92 : vector<1x256xf32> to vector<128x256xf32>
    %95 = arith.addf %93, %94 : vector<128x256xf32>
    %cst_30 = arith.constant 0.000000e+00 : f32
    %96 = vector.broadcast %cst_30 : f32 to vector<128x256xf32>
    %97 = arith.cmpf ogt, %95, %96 : vector<128x256xf32>
    %cst_31 = arith.constant 2.000000e-01 : f32
    %98 = vector.broadcast %cst_31 : f32 to vector<128x256xf32>
    %99 = arith.mulf %98, %95 : vector<128x256xf32>
    %100 = arith.select %97, %95, %99 : vector<128x256xi1>, vector<128x256xf32>
    %101 = arith.addf %100, %18 : vector<128x256xf32>
    %cst_32 = arith.constant dense<0xFF800000> : vector<128xf32>
    %102 = vector.multi_reduction <maximumf>, %101, %cst_32 [1] : vector<128x256xf32> to vector<128xf32>
    %103 = vector.shape_cast %102 : vector<128xf32> to vector<128x1xf32>
    %104 = vector.broadcast %103 : vector<128x1xf32> to vector<128x256xf32>
    %105 = arith.subf %101, %104 : vector<128x256xf32>
    %106 = math.exp %105 : vector<128x256xf32>
    %cst_33 = arith.constant dense<0.000000e+00> : vector<128xf32>
    %107 = vector.multi_reduction <add>, %106, %cst_33 [1] : vector<128x256xf32> to vector<128xf32>
    %108 = vector.shape_cast %107 : vector<128xf32> to vector<128x1xf32>
    %109 = tpu.reciprocal %108 {approx = true} : vector<128x1xf32> -> vector<128x1xf32>
    %110 = vector.broadcast %109 : vector<128x1xf32> to vector<128x256xf32>
    %111 = arith.mulf %106, %110 : vector<128x256xf32>
    %112 = arith.truncf %111 : vector<128x256xf32> to vector<128x256xbf16>
    %113 = vector.extract_strided_slice %3 {offsets = [0, 48], sizes = [256, 16], strides = [1, 1]} : vector<256x64xbf16> to vector<256x16xbf16>
    %cst_34 = arith.constant dense<0.000000e+00> : vector<128x16xf32>
    %114 = tpu.matmul %112, %113, %cst_34 {dimension_numbers = #tpu.dot_dimension_numbers<[1], [0], [0], [1], [0, 0, 1, 1], [], []>} : vector<128x256xbf16>, vector<256x16xbf16>, vector<128x16xf32> -> vector<128x16xf32>
    %115 = tpu.concatenate %42, %66, %90, %114 in 1 : vector<128x16xf32>, vector<128x16xf32>, vector<128x16xf32>, vector<128x16xf32> -> vector<128x64xf32>
    %c0_35 = arith.constant 0 : index
    %c0_36 = arith.constant 0 : index
    %116 = vector.load %arg5[%c0_35, %c0_36] : memref<1x64xf32, #tpu.memory_space<vmem>>, vector<1x64xf32>
    %117 = vector.broadcast %116 : vector<1x64xf32> to vector<128x64xf32>
    %118 = arith.addf %115, %117 : vector<128x64xf32>
    %cst_37 = arith.constant 0.000000e+00 : f32
    %119 = vector.broadcast %cst_37 : f32 to vector<128x64xf32>
    %120 = arith.maximumf %118, %119 : vector<128x64xf32>
    %121 = arith.truncf %120 : vector<128x64xf32> to vector<128x64xbf16>
    %c0_38 = arith.constant 0 : index
    %c0_39 = arith.constant 0 : index
    %122 = vector.load %arg7[%c0_38, %c0_39] : memref<128x64xbf16, #tpu.memory_space<vmem>>, vector<128x64xbf16>
    tpu.vector_store %arg7[%c0_38, %c0_39], %121 {strides = array<i32>} : memref<128x64xbf16, #tpu.memory_space<vmem>>, vector<128x64xbf16>,
    return
  }
  func.func @transform_0(%arg0: i32) -> (i32, i32) {
    %c0_i32 = arith.constant 0 : i32
    %c0_i32_0 = arith.constant 0 : i32
    %c0_i32_1 = arith.constant 0 : i32
    return %c0_i32, %c0_i32_0 : i32, i32
  }
  func.func @transform_1(%arg0: i32) -> (i32, i32) {
    %c0_i32 = arith.constant 0 : i32
    %c0_i32_0 = arith.constant 0 : i32
    %c0_i32_1 = arith.constant 0 : i32
    return %c0_i32, %c0_i32_0 : i32, i32
  }
  func.func @transform_2(%arg0: i32) -> (i32, i32) {
    %c0_i32 = arith.constant 0 : i32
    %c0_i32_0 = arith.constant 0 : i32
    %c0_i32_1 = arith.constant 0 : i32
    return %c0_i32, %c0_i32_0 : i32, i32
  }
  func.func @transform_3(%arg0: i32) -> (i32, i32) {
    %c0_i32 = arith.constant 0 : i32
    %c0_i32_0 = arith.constant 0 : i32
    %c0_i32_1 = arith.constant 0 : i32
    return %c0_i32, %c0_i32_0 : i32, i32
  }
  func.func @transform_4(%arg0: i32) -> (i32, i32) {
    %c0_i32 = arith.constant 0 : i32
    %c0_i32_0 = arith.constant 0 : i32
    %c0_i32_1 = arith.constant 0 : i32
    return %c0_i32, %c0_i32_0 : i32, i32
  }
  func.func @transform_5(%arg0: i32) -> (i32, i32) {
    %c0_i32 = arith.constant 0 : i32
    %c0_i32_0 = arith.constant 0 : i32
    return %arg0, %c0_i32 : i32, i32
  }
  func.func @transform_6(%arg0: i32) -> (i32, i32) {
    %c0_i32 = arith.constant 0 : i32
    %c0_i32_0 = arith.constant 0 : i32
    return %arg0, %c0_i32 : i32, i32
  }
}

module attributes {stable_mosaic.version = 11 : i64} {
  func.func @_gat_layer_kernel(%arg0: i32, %arg1: memref<256x64xbf16, #tpu.memory_space<vmem>>, %arg2: memref<64x32xbf16, #tpu.memory_space<vmem>>, %arg3: memref<4x64xbf16, #tpu.memory_space<vmem>>, %arg4: memref<64x4xbf16, #tpu.memory_space<vmem>>, %arg5: memref<1x32xf32, #tpu.memory_space<vmem>>, %arg6: memref<128x256xi8, #tpu.memory_space<vmem>>, %arg7: memref<128x32xf32, #tpu.memory_space<vmem>>) attributes {dimension_semantics = [#tpu.dimension_semantics<parallel>], iteration_bounds = array<i64: 2>, scalar_prefetch = 0 : i64, scratch_operands = 0 : i64, tpu.core_type = #tpu.core_type<tc>, window_params = [{pipeline_mode = #tpu.pipeline_mode<synchronous>, transform_indices = @transform_0, window_bounds = array<i64: 256, 64>}, {pipeline_mode = #tpu.pipeline_mode<synchronous>, transform_indices = @transform_1, window_bounds = array<i64: 64, 32>}, {pipeline_mode = #tpu.pipeline_mode<synchronous>, transform_indices = @transform_2, window_bounds = array<i64: 4, 64>}, {pipeline_mode = #tpu.pipeline_mode<synchronous>, transform_indices = @transform_3, window_bounds = array<i64: 64, 4>}, {pipeline_mode = #tpu.pipeline_mode<synchronous>, transform_indices = @transform_4, window_bounds = array<i64: 1, 32>}, {transform_indices = @transform_5, window_bounds = array<i64: 128, 256>}, {transform_indices = @transform_6, window_bounds = array<i64: 128, 32>}]} {
    %c0 = arith.constant 0 : index
    %c0_0 = arith.constant 0 : index
    %0 = vector.load %arg1[%c0, %c0_0] : memref<256x64xbf16, #tpu.memory_space<vmem>>, vector<256x64xbf16>
    %c0_1 = arith.constant 0 : index
    %c0_2 = arith.constant 0 : index
    %1 = vector.load %arg2[%c0_1, %c0_2] : memref<64x32xbf16, #tpu.memory_space<vmem>>, vector<64x32xbf16>
    %cst = arith.constant dense<0.000000e+00> : vector<256x32xf32>
    %2 = tpu.matmul %0, %1, %cst {dimension_numbers = #tpu.dot_dimension_numbers<[1], [0], [0], [1], [0, 0, 1, 1], [], []>} : vector<256x64xbf16>, vector<64x32xbf16>, vector<256x32xf32> -> vector<256x32xf32>
    %3 = arith.truncf %2 : vector<256x32xf32> to vector<256x32xbf16>
    %c0_3 = arith.constant 0 : index
    %c0_4 = arith.constant 0 : index
    %4 = vector.load %arg3[%c0_3, %c0_4] : memref<4x64xbf16, #tpu.memory_space<vmem>>, vector<4x64xbf16>
    %cst_5 = arith.constant dense<0.000000e+00> : vector<4x256xf32>
    %5 = tpu.matmul %4, %0, %cst_5 {dimension_numbers = #tpu.dot_dimension_numbers<[1], [1], [0], [0], [0, 0, 1, 0], [], []>} : vector<4x64xbf16>, vector<256x64xbf16>, vector<4x256xf32> -> vector<4x256xf32>
    %c128_i32 = arith.constant 128 : i32
    %6 = arith.muli %arg0, %c128_i32 : i32
    %7 = tpu.assume_multiple %6, 128 : i32
    %8 = arith.index_cast %7 : i32 to index
    %c0_6 = arith.constant 0 : index
    %9 = vector.load %arg1[%8, %c0_6] : memref<256x64xbf16, #tpu.memory_space<vmem>>, vector<128x64xbf16>
    %c0_7 = arith.constant 0 : index
    %c0_8 = arith.constant 0 : index
    %10 = vector.load %arg4[%c0_7, %c0_8] : memref<64x4xbf16, #tpu.memory_space<vmem>>, vector<64x4xbf16>
    %cst_9 = arith.constant dense<0.000000e+00> : vector<128x4xf32>
    %11 = tpu.matmul %9, %10, %cst_9 {dimension_numbers = #tpu.dot_dimension_numbers<[1], [0], [0], [1], [0, 0, 1, 1], [], []>} : vector<128x64xbf16>, vector<64x4xbf16>, vector<128x4xf32> -> vector<128x4xf32>
    %c0_10 = arith.constant 0 : index
    %c0_11 = arith.constant 0 : index
    %12 = vector.load %arg6[%c0_10, %c0_11] : memref<128x256xi8, #tpu.memory_space<vmem>>, vector<128x256xi8>
    %13 = arith.sitofp %12 : vector<128x256xi8> to vector<128x256xf32>
    %cst_12 = arith.constant 0.000000e+00 : f32
    %14 = vector.broadcast %cst_12 : f32 to vector<128x256xf32>
    %15 = arith.cmpf ogt, %13, %14 : vector<128x256xf32>
    %cst_13 = arith.constant 0.000000e+00 : f32
    %cst_14 = arith.constant -1.000000e+30 : f32
    %16 = vector.broadcast %cst_13 : f32 to vector<128x256xf32>
    %17 = vector.broadcast %cst_14 : f32 to vector<128x256xf32>
    %18 = arith.select %15, %16, %17 : vector<128x256xi1>, vector<128x256xf32>
    %19 = vector.extract_strided_slice %11 {offsets = [0, 0], sizes = [128, 1], strides = [1, 1]} : vector<128x4xf32> to vector<128x1xf32>
    %20 = vector.extract_strided_slice %5 {offsets = [0, 0], sizes = [1, 256], strides = [1, 1]} : vector<4x256xf32> to vector<1x256xf32>
    %21 = vector.broadcast %19 : vector<128x1xf32> to vector<128x256xf32>
    %22 = vector.broadcast %20 : vector<1x256xf32> to vector<128x256xf32>
    %23 = arith.addf %21, %22 : vector<128x256xf32>
    %cst_15 = arith.constant 0.000000e+00 : f32
    %24 = vector.broadcast %cst_15 : f32 to vector<128x256xf32>
    %25 = arith.cmpf ogt, %23, %24 : vector<128x256xf32>
    %cst_16 = arith.constant 2.000000e-01 : f32
    %26 = vector.broadcast %cst_16 : f32 to vector<128x256xf32>
    %27 = arith.mulf %26, %23 : vector<128x256xf32>
    %28 = arith.select %25, %23, %27 : vector<128x256xi1>, vector<128x256xf32>
    %29 = arith.addf %28, %18 : vector<128x256xf32>
    %cst_17 = arith.constant dense<0xFF800000> : vector<128xf32>
    %30 = vector.multi_reduction <maximumf>, %29, %cst_17 [1] : vector<128x256xf32> to vector<128xf32>
    %31 = vector.shape_cast %30 : vector<128xf32> to vector<128x1xf32>
    %32 = vector.broadcast %31 : vector<128x1xf32> to vector<128x256xf32>
    %33 = arith.subf %29, %32 : vector<128x256xf32>
    %34 = math.exp %33 : vector<128x256xf32>
    %cst_18 = arith.constant dense<0.000000e+00> : vector<128xf32>
    %35 = vector.multi_reduction <add>, %34, %cst_18 [1] : vector<128x256xf32> to vector<128xf32>
    %36 = vector.shape_cast %35 : vector<128xf32> to vector<128x1xf32>
    %37 = tpu.reciprocal %36 {approx = true} : vector<128x1xf32> -> vector<128x1xf32>
    %38 = vector.broadcast %37 : vector<128x1xf32> to vector<128x256xf32>
    %39 = arith.mulf %34, %38 : vector<128x256xf32>
    %40 = arith.truncf %39 : vector<128x256xf32> to vector<128x256xbf16>
    %41 = vector.extract_strided_slice %3 {offsets = [0, 0], sizes = [256, 8], strides = [1, 1]} : vector<256x32xbf16> to vector<256x8xbf16>
    %cst_19 = arith.constant dense<0.000000e+00> : vector<128x8xf32>
    %42 = tpu.matmul %40, %41, %cst_19 {dimension_numbers = #tpu.dot_dimension_numbers<[1], [0], [0], [1], [0, 0, 1, 1], [], []>} : vector<128x256xbf16>, vector<256x8xbf16>, vector<128x8xf32> -> vector<128x8xf32>
    %43 = vector.extract_strided_slice %11 {offsets = [0, 1], sizes = [128, 1], strides = [1, 1]} : vector<128x4xf32> to vector<128x1xf32>
    %44 = vector.extract_strided_slice %5 {offsets = [1, 0], sizes = [1, 256], strides = [1, 1]} : vector<4x256xf32> to vector<1x256xf32>
    %45 = vector.broadcast %43 : vector<128x1xf32> to vector<128x256xf32>
    %46 = vector.broadcast %44 : vector<1x256xf32> to vector<128x256xf32>
    %47 = arith.addf %45, %46 : vector<128x256xf32>
    %cst_20 = arith.constant 0.000000e+00 : f32
    %48 = vector.broadcast %cst_20 : f32 to vector<128x256xf32>
    %49 = arith.cmpf ogt, %47, %48 : vector<128x256xf32>
    %cst_21 = arith.constant 2.000000e-01 : f32
    %50 = vector.broadcast %cst_21 : f32 to vector<128x256xf32>
    %51 = arith.mulf %50, %47 : vector<128x256xf32>
    %52 = arith.select %49, %47, %51 : vector<128x256xi1>, vector<128x256xf32>
    %53 = arith.addf %52, %18 : vector<128x256xf32>
    %cst_22 = arith.constant dense<0xFF800000> : vector<128xf32>
    %54 = vector.multi_reduction <maximumf>, %53, %cst_22 [1] : vector<128x256xf32> to vector<128xf32>
    %55 = vector.shape_cast %54 : vector<128xf32> to vector<128x1xf32>
    %56 = vector.broadcast %55 : vector<128x1xf32> to vector<128x256xf32>
    %57 = arith.subf %53, %56 : vector<128x256xf32>
    %58 = math.exp %57 : vector<128x256xf32>
    %cst_23 = arith.constant dense<0.000000e+00> : vector<128xf32>
    %59 = vector.multi_reduction <add>, %58, %cst_23 [1] : vector<128x256xf32> to vector<128xf32>
    %60 = vector.shape_cast %59 : vector<128xf32> to vector<128x1xf32>
    %61 = tpu.reciprocal %60 {approx = true} : vector<128x1xf32> -> vector<128x1xf32>
    %62 = vector.broadcast %61 : vector<128x1xf32> to vector<128x256xf32>
    %63 = arith.mulf %58, %62 : vector<128x256xf32>
    %64 = arith.truncf %63 : vector<128x256xf32> to vector<128x256xbf16>
    %65 = vector.extract_strided_slice %3 {offsets = [0, 8], sizes = [256, 8], strides = [1, 1]} : vector<256x32xbf16> to vector<256x8xbf16>
    %cst_24 = arith.constant dense<0.000000e+00> : vector<128x8xf32>
    %66 = tpu.matmul %64, %65, %cst_24 {dimension_numbers = #tpu.dot_dimension_numbers<[1], [0], [0], [1], [0, 0, 1, 1], [], []>} : vector<128x256xbf16>, vector<256x8xbf16>, vector<128x8xf32> -> vector<128x8xf32>
    %67 = vector.extract_strided_slice %11 {offsets = [0, 2], sizes = [128, 1], strides = [1, 1]} : vector<128x4xf32> to vector<128x1xf32>
    %68 = vector.extract_strided_slice %5 {offsets = [2, 0], sizes = [1, 256], strides = [1, 1]} : vector<4x256xf32> to vector<1x256xf32>
    %69 = vector.broadcast %67 : vector<128x1xf32> to vector<128x256xf32>
    %70 = vector.broadcast %68 : vector<1x256xf32> to vector<128x256xf32>
    %71 = arith.addf %69, %70 : vector<128x256xf32>
    %cst_25 = arith.constant 0.000000e+00 : f32
    %72 = vector.broadcast %cst_25 : f32 to vector<128x256xf32>
    %73 = arith.cmpf ogt, %71, %72 : vector<128x256xf32>
    %cst_26 = arith.constant 2.000000e-01 : f32
    %74 = vector.broadcast %cst_26 : f32 to vector<128x256xf32>
    %75 = arith.mulf %74, %71 : vector<128x256xf32>
    %76 = arith.select %73, %71, %75 : vector<128x256xi1>, vector<128x256xf32>
    %77 = arith.addf %76, %18 : vector<128x256xf32>
    %cst_27 = arith.constant dense<0xFF800000> : vector<128xf32>
    %78 = vector.multi_reduction <maximumf>, %77, %cst_27 [1] : vector<128x256xf32> to vector<128xf32>
    %79 = vector.shape_cast %78 : vector<128xf32> to vector<128x1xf32>
    %80 = vector.broadcast %79 : vector<128x1xf32> to vector<128x256xf32>
    %81 = arith.subf %77, %80 : vector<128x256xf32>
    %82 = math.exp %81 : vector<128x256xf32>
    %cst_28 = arith.constant dense<0.000000e+00> : vector<128xf32>
    %83 = vector.multi_reduction <add>, %82, %cst_28 [1] : vector<128x256xf32> to vector<128xf32>
    %84 = vector.shape_cast %83 : vector<128xf32> to vector<128x1xf32>
    %85 = tpu.reciprocal %84 {approx = true} : vector<128x1xf32> -> vector<128x1xf32>
    %86 = vector.broadcast %85 : vector<128x1xf32> to vector<128x256xf32>
    %87 = arith.mulf %82, %86 : vector<128x256xf32>
    %88 = arith.truncf %87 : vector<128x256xf32> to vector<128x256xbf16>
    %89 = vector.extract_strided_slice %3 {offsets = [0, 16], sizes = [256, 8], strides = [1, 1]} : vector<256x32xbf16> to vector<256x8xbf16>
    %cst_29 = arith.constant dense<0.000000e+00> : vector<128x8xf32>
    %90 = tpu.matmul %88, %89, %cst_29 {dimension_numbers = #tpu.dot_dimension_numbers<[1], [0], [0], [1], [0, 0, 1, 1], [], []>} : vector<128x256xbf16>, vector<256x8xbf16>, vector<128x8xf32> -> vector<128x8xf32>
    %91 = vector.extract_strided_slice %11 {offsets = [0, 3], sizes = [128, 1], strides = [1, 1]} : vector<128x4xf32> to vector<128x1xf32>
    %92 = vector.extract_strided_slice %5 {offsets = [3, 0], sizes = [1, 256], strides = [1, 1]} : vector<4x256xf32> to vector<1x256xf32>
    %93 = vector.broadcast %91 : vector<128x1xf32> to vector<128x256xf32>
    %94 = vector.broadcast %92 : vector<1x256xf32> to vector<128x256xf32>
    %95 = arith.addf %93, %94 : vector<128x256xf32>
    %cst_30 = arith.constant 0.000000e+00 : f32
    %96 = vector.broadcast %cst_30 : f32 to vector<128x256xf32>
    %97 = arith.cmpf ogt, %95, %96 : vector<128x256xf32>
    %cst_31 = arith.constant 2.000000e-01 : f32
    %98 = vector.broadcast %cst_31 : f32 to vector<128x256xf32>
    %99 = arith.mulf %98, %95 : vector<128x256xf32>
    %100 = arith.select %97, %95, %99 : vector<128x256xi1>, vector<128x256xf32>
    %101 = arith.addf %100, %18 : vector<128x256xf32>
    %cst_32 = arith.constant dense<0xFF800000> : vector<128xf32>
    %102 = vector.multi_reduction <maximumf>, %101, %cst_32 [1] : vector<128x256xf32> to vector<128xf32>
    %103 = vector.shape_cast %102 : vector<128xf32> to vector<128x1xf32>
    %104 = vector.broadcast %103 : vector<128x1xf32> to vector<128x256xf32>
    %105 = arith.subf %101, %104 : vector<128x256xf32>
    %106 = math.exp %105 : vector<128x256xf32>
    %cst_33 = arith.constant dense<0.000000e+00> : vector<128xf32>
    %107 = vector.multi_reduction <add>, %106, %cst_33 [1] : vector<128x256xf32> to vector<128xf32>
    %108 = vector.shape_cast %107 : vector<128xf32> to vector<128x1xf32>
    %109 = tpu.reciprocal %108 {approx = true} : vector<128x1xf32> -> vector<128x1xf32>
    %110 = vector.broadcast %109 : vector<128x1xf32> to vector<128x256xf32>
    %111 = arith.mulf %106, %110 : vector<128x256xf32>
    %112 = arith.truncf %111 : vector<128x256xf32> to vector<128x256xbf16>
    %113 = vector.extract_strided_slice %3 {offsets = [0, 24], sizes = [256, 8], strides = [1, 1]} : vector<256x32xbf16> to vector<256x8xbf16>
    %cst_34 = arith.constant dense<0.000000e+00> : vector<128x8xf32>
    %114 = tpu.matmul %112, %113, %cst_34 {dimension_numbers = #tpu.dot_dimension_numbers<[1], [0], [0], [1], [0, 0, 1, 1], [], []>} : vector<128x256xbf16>, vector<256x8xbf16>, vector<128x8xf32> -> vector<128x8xf32>
    %115 = tpu.concatenate %42, %66, %90, %114 in 1 : vector<128x8xf32>, vector<128x8xf32>, vector<128x8xf32>, vector<128x8xf32> -> vector<128x32xf32>
    %c0_35 = arith.constant 0 : index
    %c0_36 = arith.constant 0 : index
    %116 = vector.load %arg5[%c0_35, %c0_36] : memref<1x32xf32, #tpu.memory_space<vmem>>, vector<1x32xf32>
    %117 = vector.broadcast %116 : vector<1x32xf32> to vector<128x32xf32>
    %118 = arith.addf %115, %117 : vector<128x32xf32>
    %119 = arith.negf %118 : vector<128x32xf32>
    %120 = math.exp %119 : vector<128x32xf32>
    %cst_37 = arith.constant 1.000000e+00 : f32
    %121 = vector.broadcast %cst_37 : f32 to vector<128x32xf32>
    %122 = arith.addf %121, %120 : vector<128x32xf32>
    %123 = arith.divf %121, %122 : vector<128x32xf32>
    %c0_38 = arith.constant 0 : index
    %c0_39 = arith.constant 0 : index
    %124 = vector.load %arg7[%c0_38, %c0_39] : memref<128x32xf32, #tpu.memory_space<vmem>>, vector<128x32xf32>
    tpu.vector_store %arg7[%c0_38, %c0_39], %123 {strides = array<i32>} : memref<128x32xf32, #tpu.memory_space<vmem>>, vector<128x32xf32>,
    return
  }
  func.func @transform_0(%arg0: i32) -> (i32, i32) {
    %c0_i32 = arith.constant 0 : i32
    %c0_i32_0 = arith.constant 0 : i32
    %c0_i32_1 = arith.constant 0 : i32
    return %c0_i32, %c0_i32_0 : i32, i32
  }
  func.func @transform_1(%arg0: i32) -> (i32, i32) {
    %c0_i32 = arith.constant 0 : i32
    %c0_i32_0 = arith.constant 0 : i32
    %c0_i32_1 = arith.constant 0 : i32
    return %c0_i32, %c0_i32_0 : i32, i32
  }
  func.func @transform_2(%arg0: i32) -> (i32, i32) {
    %c0_i32 = arith.constant 0 : i32
    %c0_i32_0 = arith.constant 0 : i32
    %c0_i32_1 = arith.constant 0 : i32
    return %c0_i32, %c0_i32_0 : i32, i32
  }
  func.func @transform_3(%arg0: i32) -> (i32, i32) {
    %c0_i32 = arith.constant 0 : i32
    %c0_i32_0 = arith.constant 0 : i32
    %c0_i32_1 = arith.constant 0 : i32
    return %c0_i32, %c0_i32_0 : i32, i32
  }
  func.func @transform_4(%arg0: i32) -> (i32, i32) {
    %c0_i32 = arith.constant 0 : i32
    %c0_i32_0 = arith.constant 0 : i32
    %c0_i32_1 = arith.constant 0 : i32
    return %c0_i32, %c0_i32_0 : i32, i32
  }
  func.func @transform_5(%arg0: i32) -> (i32, i32) {
    %c0_i32 = arith.constant 0 : i32
    %c0_i32_0 = arith.constant 0 : i32
    return %arg0, %c0_i32 : i32, i32
  }
  func.func @transform_6(%arg0: i32) -> (i32, i32) {
    %c0_i32 = arith.constant 0 : i32
    %c0_i32_0 = arith.constant 0 : i32
    return %arg0, %c0_i32 : i32, i32
  }
}

</mosaic_0001>

<llo_original>
// kernel: gat_2l_forward.3
$region0: #{gat_2l_forward.3}
  #allocation0 [shape = 'u32[]', space=smem, size = 0x4, offset = 0x4, fixed_abs, tag = 'smem constant byte address 0x4 - core index']
  #allocation1 [shape = 'u32[144,128]{1,0:T(1,128)}', space=vmem, size = 0x12000, scoped, tag = 'internal scratch']
  %s0 = inlined_call_operand.vmem [shape: bf16[256,64], index: 0, kind: input, shape index: {}]
  %s1 = inlined_call_operand.vmem [shape: bf16[64,32], index: 1, kind: input, shape index: {}]
  %s2 = inlined_call_operand.vmem [shape: bf16[4,64], index: 2, kind: input, shape index: {}]
  %s3 = inlined_call_operand.vmem [shape: bf16[64,4], index: 3, kind: input, shape index: {}]
  %s4 = inlined_call_operand.vmem [shape: f32[1,32], index: 4, kind: input, shape index: {}]
  %s5 = inlined_call_operand.vmem [shape: s8[256,256], index: 5, kind: input, shape index: {}]
  %s6 = inlined_call_operand.vmem [shape: f32[256,32], index: 6, kind: output, shape index: {}]
  %s7 = sld [smem:[#allocation0]]
  $region57: #{gat_2l_forward.3} parent=0
    _
  %s9 = ssub.s32 1, %s7
  %s10 = scalar_select 0, %s9, %s7
  loop: start=0, step=1, limit=4
  $region2: #{gat_2l_forward.3} parent=0 // loop_pre_header
    _
  $region3: #{gat_2l_forward.3} parent=0 // loop_header
    %s12 = sphi 0, %s16
    %p13 = scmp.ge.s32.totalorder %s12, 4
    %s20 = sphi 0, %s20
    %s22 = sphi 0, %s20
    %s23 = sphi 0, %s22
    %s37 = sphi 0, %s23
    %s41 = sphi 0, %s41
    %s43 = sphi 0, %s41
    %s44 = sphi 0, %s43
    %s58 = sphi 0, %s44
    %s62 = sphi 0, %s62
    %s64 = sphi 0, %s62
    %s65 = sphi 0, %s64
    %s79 = sphi 0, %s65
    %s83 = sphi 0, %s83
    %s85 = sphi 0, %s83
    %s86 = sphi 0, %s85
    %s100 = sphi 0, %s86
    %s104 = sphi 0, %s104
    %s106 = sphi 0, %s104
    %s107 = sphi 0, %s106
    %s121 = sphi 0, %s107
    %s127 = sphi 0, %s129
    %s130 = sphi 0, %s127
    %s131 = sphi 0, %s130
    %s147 = sphi 0, %s131
    %s153 = sphi 0, %s155
    %s156 = sphi 0, %s153
    %s157 = sphi 0, %s156
    %s173 = sphi 0, %s157
  $region4: #{gat_2l_forward.3} parent=0 // loop_header_branch
    %15 = sbr.rel (%p13) target = $region8
  $region5: #{gat_2l_forward.3} parent=0 // loop_body
    %s17 = ssub.s32 %s12, 1
    %s18 = ssub.s32 %s12, 2
    %s19 = sadd.s32 %s12, 1
    %s21 = sadd.s32 %s20, 1
    %p24 = scmp.eq.s32.totalorder %s12, 1
    %p25 = scmp.ne.s32.totalorder %s20, %s22
    %p26 = scmp.eq.s32.totalorder %s12, 0
    %p27 = por %p25, %p26
    %p28 = scmp.ne.s32.totalorder %s20, %s22
    %p29 = scmp.eq.s32.totalorder %s17, 1
    %p30 = por %p28, %p29
    %p31 = scmp.ne.s32.totalorder %s22, %s23
    %p32 = scmp.eq.s32.totalorder %s17, 0
    %p33 = por %p31, %p32
    %p34 = scmp.ne.s32.totalorder %s22, %s23
    %p35 = scmp.eq.s32.totalorder %s18, 1
    %p36 = por %p34, %p35
    %p38 = scmp.ne.s32.totalorder %s23, %s37
    %p39 = scmp.eq.s32.totalorder %s18, 0
    %p40 = por %p38, %p39
    %s42 = sadd.s32 %s41, 1
    %p45 = scmp.eq.s32.totalorder %s12, 1
    %p46 = scmp.ne.s32.totalorder %s41, %s43
    %p47 = scmp.eq.s32.totalorder %s12, 0
    %p48 = por %p46, %p47
    %p49 = scmp.ne.s32.totalorder %s41, %s43
    %p50 = scmp.eq.s32.totalorder %s17, 1
    %p51 = por %p49, %p50
    %p52 = scmp.ne.s32.totalorder %s43, %s44
    %p53 = scmp.eq.s32.totalorder %s17, 0
    %p54 = por %p52, %p53
    %p55 = scmp.ne.s32.totalorder %s43, %s44
    %p56 = scmp.eq.s32.totalorder %s18, 1
    %p57 = por %p55, %p56
    %p59 = scmp.ne.s32.totalorder %s44, %s58
    %p60 = scmp.eq.s32.totalorder %s18, 0
    %p61 = por %p59, %p60
    %s63 = sadd.s32 %s62, 1
    %p66 = scmp.eq.s32.totalorder %s12, 1
    %p67 = scmp.ne.s32.totalorder %s62, %s64
    %p68 = scmp.eq.s32.totalorder %s12, 0
    %p69 = por %p67, %p68
    %p70 = scmp.ne.s32.totalorder %s62, %s64
    %p71 = scmp.eq.s32.totalorder %s17, 1
    %p72 = por %p70, %p71
    %p73 = scmp.ne.s32.totalorder %s64, %s65
    %p74 = scmp.eq.s32.totalorder %s17, 0
    %p75 = por %p73, %p74
    %p76 = scmp.ne.s32.totalorder %s64, %s65
    %p77 = scmp.eq.s32.totalorder %s18, 1
    %p78 = por %p76, %p77
    %p80 = scmp.ne.s32.totalorder %s65, %s79
    %p81 = scmp.eq.s32.totalorder %s18, 0
    %p82 = por %p80, %p81
    %s84 = sadd.s32 %s83, 1
    %p87 = scmp.eq.s32.totalorder %s12, 1
    %p88 = scmp.ne.s32.totalorder %s83, %s85
    %p89 = scmp.eq.s32.totalorder %s12, 0
    %p90 = por %p88, %p89
    %p91 = scmp.ne.s32.totalorder %s83, %s85
    %p92 = scmp.eq.s32.totalorder %s17, 1
    %p93 = por %p91, %p92
    %p94 = scmp.ne.s32.totalorder %s85, %s86
    %p95 = scmp.eq.s32.totalorder %s17, 0
    %p96 = por %p94, %p95
    %p97 = scmp.ne.s32.totalorder %s85, %s86
    %p98 = scmp.eq.s32.totalorder %s18, 1
    %p99 = por %p97, %p98
    %p101 = scmp.ne.s32.totalorder %s86, %s100
    %p102 = scmp.eq.s32.totalorder %s18, 0
    %p103 = por %p101, %p102
    %s105 = sadd.s32 %s104, 1
    %p108 = scmp.eq.s32.totalorder %s12, 1
    %p109 = scmp.ne.s32.totalorder %s104, %s106
    %p110 = scmp.eq.s32.totalorder %s12, 0
    %p111 = por %p109, %p110
    %p112 = scmp.ne.s32.totalorder %s104, %s106
    %p113 = scmp.eq.s32.totalorder %s17, 1
    %p114 = por %p112, %p113
    %p115 = scmp.ne.s32.totalorder %s106, %s107
    %p116 = scmp.eq.s32.totalorder %s17, 0
    %p117 = por %p115, %p116
    %p118 = scmp.ne.s32.totalorder %s106, %s107
    %p119 = scmp.eq.s32.totalorder %s18, 1
    %p120 = por %p118, %p119
    %p122 = scmp.ne.s32.totalorder %s107, %s121
    %p123 = scmp.eq.s32.totalorder %s18, 0
    %p124 = por %p122, %p123
    %s125 = ssub.s32 %s12, %s19
    %p126 = scmp.eq.s32.totalorder %s125, 0
    %s128 = sadd.s32 %s127, 1
    %s129 = scalar_select %p126, %s127, %s128
    %p132 = pneg %p126
    %p133 = scmp.eq.s32.totalorder %s12, 1
    %p134 = por %p132, %p133
    %p135 = scmp.ne.s32.totalorder %s127, %s130
    %p136 = scmp.eq.s32.totalorder %s12, 0
    %p137 = por %p135, %p136
    %p138 = scmp.ne.s32.totalorder %s127, %s130
    %p139 = scmp.eq.s32.totalorder %s17, 1
    %p140 = por %p138, %p139
    %p141 = scmp.ne.s32.totalorder %s130, %s131
    %p142 = scmp.eq.s32.totalorder %s17, 0
    %p143 = por %p141, %p142
    %p144 = scmp.ne.s32.totalorder %s130, %s131
    %p145 = scmp.eq.s32.totalorder %s18, 1
    %p146 = por %p144, %p145
    %p148 = scmp.ne.s32.totalorder %s131, %s147
    %p149 = scmp.eq.s32.totalorder %s18, 0
    %p150 = por %p148, %p149
    %s151 = ssub.s32 %s12, %s19
    %p152 = scmp.eq.s32.totalorder %s151, 0
    %s154 = sadd.s32 %s153, 1
    %s155 = scalar_select %p152, %s153, %s154
    %p158 = pneg %p152
    %p159 = scmp.eq.s32.totalorder %s12, 1
    %p160 = por %p158, %p159
    %p161 = scmp.ne.s32.totalorder %s153, %s156
    %p162 = scmp.eq.s32.totalorder %s12, 0
    %p163 = por %p161, %p162
    %p164 = scmp.ne.s32.totalorder %s153, %s156
    %p165 = scmp.eq.s32.totalorder %s17, 1
    %p166 = por %p164, %p165
    %p167 = scmp.ne.s32.totalorder %s156, %s157
    %p168 = scmp.eq.s32.totalorder %s17, 0
    %p169 = por %p167, %p168
    %p170 = scmp.ne.s32.totalorder %s156, %s157
    %p171 = scmp.eq.s32.totalorder %s18, 1
    %p172 = por %p170, %p171
    %p174 = scmp.ne.s32.totalorder %s157, %s173
    %p175 = scmp.eq.s32.totalorder %s18, 0
    %p176 = por %p174, %p175
    %p177 = scmp.le.s32.totalorder 1, %s12
    %p178 = scmp.lt.s32.totalorder %s12, 3
    %p179 = pnand %p177, %p178
    %p180 = pneg %p179
    // Predicated region
    $region9: #{gat_2l_forward.3} parent=5 // pred_check
      _
    $region10: #{gat_2l_forward.3} parent=5 // pred_check_branch
      %182 = sbr.rel (%p179) target = $region12
    $region11: #{gat_2l_forward.3} parent=5 // pred_region
      %s183 = ssub.s32 %s12, 1
      // Predicated region
      $region13: #{gat_2l_forward.3} parent=11 // pred_check
        %p184 = pneg %p33
      $region14: #{gat_2l_forward.3} parent=11 // pred_check_branch
        %186 = sbr.rel (%p184) target = $region16
      $region15: #{gat_2l_forward.3} parent=11 // pred_region
        _
      $region16: #{gat_2l_forward.3} parent=11 // pred_fallthru
        _
      // Predicated region
      $region17: #{gat_2l_forward.3} parent=11 // pred_check
        %p187 = pneg %p54
      $region18: #{gat_2l_forward.3} parent=11 // pred_check_branch
        %189 = sbr.rel (%p187) target = $region20
      $region19: #{gat_2l_forward.3} parent=11 // pred_region
        _
      $region20: #{gat_2l_forward.3} parent=11 // pred_fallthru
        _
      // Predicated region
      $region21: #{gat_2l_forward.3} parent=11 // pred_check
        %p190 = pneg %p75
      $region22: #{gat_2l_forward.3} parent=11 // pred_check_branch
        %192 = sbr.rel (%p190) target = $region24
      $region23: #{gat_2l_forward.3} parent=11 // pred_region
        _
      $region24: #{gat_2l_forward.3} parent=11 // pred_fallthru
        _
      // Predicated region
      $region25: #{gat_2l_forward.3} parent=11 // pred_check
        %p193 = pneg %p96
      $region26: #{gat_2l_forward.3} parent=11 // pred_check_branch
        %195 = sbr.rel (%p193) target = $region28
      $region27: #{gat_2l_forward.3} parent=11 // pred_region
        _
      $region28: #{gat_2l_forward.3} parent=11 // pred_fallthru
        _
      // Predicated region
      $region29: #{gat_2l_forward.3} parent=11 // pred_check
        %p196 = pneg %p117
      $region30: #{gat_2l_forward.3} parent=11 // pred_check_branch
        %198 = sbr.rel (%p196) target = $region32
      $region31: #{gat_2l_forward.3} parent=11 // pred_region
        _
      $region32: #{gat_2l_forward.3} parent=11 // pred_fallthru
        _
    $region12: #{gat_2l_forward.3} parent=5 // pred_fallthru
      _
    %p199 = scmp.lt.s32.totalorder %s12, 2
    // Predicated region
    $region33: #{gat_2l_forward.3} parent=5 // pred_check
      %p200 = pneg %p199
    $region34: #{gat_2l_forward.3} parent=5 // pred_check_branch
      %202 = sbr.rel (%p200) target = $region36
    $region35: #{gat_2l_forward.3} parent=5 // pred_region
      // Predicated region
      $region37: #{gat_2l_forward.3} parent=35 // pred_check
        %p203 = pneg %p137
      $region38: #{gat_2l_forward.3} parent=35 // pred_check_branch
        %205 = sbr.rel (%p203) target = $region40
      $region39: #{gat_2l_forward.3} parent=35 // pred_region
        %s206 = smul.u32 4, %s12
        %p207 = scmp.lt.s32.totalorder %s206, 7
        %s208 = scalar_select %p207, %s206, 7
        %s209 = smul.addr %s208, 2
        %s210 = smul.addr %s209, 8
        %s211 = scalar_lea.vmem %s5, %s210
        %s212 = smul.u32 4, %s12
      $region40: #{gat_2l_forward.3} parent=35 // pred_fallthru
        _
    $region36: #{gat_2l_forward.3} parent=5 // pred_fallthru
      _
    %p213 = scmp.le.s32.totalorder 1, %s12
    %p214 = scmp.lt.s32.totalorder %s12, 3
    %p215 = pnand %p213, %p214
    %p216 = pneg %p215
    // Predicated region
    $region41: #{gat_2l_forward.3} parent=5 // pred_check
      _
    $region42: #{gat_2l_forward.3} parent=5 // pred_check_branch
      %218 = sbr.rel (%p215) target = $region44
    $region43: #{gat_2l_forward.3} parent=5 // pred_region
      %s219 = ssub.s32 %s12, 1
      %p220 = pneg %p33
      %p221 = pneg %p30
      %p222 = pneg %p54
      %p223 = pneg %p51
      %p224 = pneg %p75
      %p225 = pneg %p72
      %p226 = pneg %p96
      %p227 = pneg %p93
      %p228 = pneg %p117
      %p229 = pneg %p114
      %s230 = smul.u32 4, %s17
      %p231 = scmp.lt.s32.totalorder %s230, 7
      %s232 = scalar_select %p231, %s230, 7
      %s233 = smul.addr %s232, 2
      %s234 = smul.addr %s233, 8
      %s235 = scalar_lea.vmem %s5, %s234
      %p236 = pneg %p143
      %p237 = pneg %p140
      %p238 = pneg %p169
      %p239 = pneg %p166
      %s240 = smul.u32 16, %s17
      %p241 = scmp.lt.s32.totalorder %s240, 31
      %s242 = scalar_select %p241, %s240, 31
      %s243 = smul.addr %s242, 8
      %s244 = scalar_lea.vmem %s6, %s243
      %s245 = smul.u32 4, %s17
      %p246 = scmp.lt.s32.totalorder %s245, 7
      %s247 = scalar_select %p246, %s245, 7
      %s248 = smul.addr %s247, 2
      %s249 = smul.addr %s248, 8
      %s250 = scalar_lea.vmem %s5, %s249
      %s251 = smul.u32 4, %s17
      %s252 = smul.u32 16, %s17
      %p253 = scmp.lt.s32.totalorder %s252, 31
      %s254 = scalar_select %p253, %s252, 31
      %s255 = smul.addr %s254, 8
      %s256 = scalar_lea.vmem %s6, %s255
      %s257 = smul.u32 16, %s17
      %v259 = vld [vmem:[%s0] sm:$0xf]
      %v260 = vld [vmem:[%s0 + $0x4] sm:$0xf]
      %v261 = vld [vmem:[%s0 + $0x8] sm:$0xf]
      %v262 = vld [vmem:[%s0 + $0xc] sm:$0xf]
      %v263 = vld [vmem:[%s0 + $0x10] sm:$0xf]
      %v264 = vld [vmem:[%s0 + $0x14] sm:$0xf]
      %v265 = vld [vmem:[%s0 + $0x18] sm:$0xf]
      %v266 = vld [vmem:[%s0 + $0x1c] sm:$0xf]
      %v267 = vld [vmem:[%s0 + $0x20] sm:$0xf]
      %v268 = vld [vmem:[%s0 + $0x24] sm:$0xf]
      %v269 = vld [vmem:[%s0 + $0x28] sm:$0xf]
      %v270 = vld [vmem:[%s0 + $0x2c] sm:$0xf]
      %v271 = vld [vmem:[%s0 + $0x30] sm:$0xf]
      %v272 = vld [vmem:[%s0 + $0x34] sm:$0xf]
      %v273 = vld [vmem:[%s0 + $0x38] sm:$0xf]
      %v274 = vld [vmem:[%s0 + $0x3c] sm:$0xf]
      %v275 = vld [vmem:[%s0 + $0x40] sm:$0xf]
      %v276 = vld [vmem:[%s0 + $0x44] sm:$0xf]
      %v277 = vld [vmem:[%s0 + $0x48] sm:$0xf]
      %v278 = vld [vmem:[%s0 + $0x4c] sm:$0xf]
      %v279 = vld [vmem:[%s0 + $0x50] sm:$0xf]
      %v280 = vld [vmem:[%s0 + $0x54] sm:$0xf]
      %v281 = vld [vmem:[%s0 + $0x58] sm:$0xf]
      %v282 = vld [vmem:[%s0 + $0x5c] sm:$0xf]
      %v283 = vld [vmem:[%s0 + $0x60] sm:$0xf]
      %v284 = vld [vmem:[%s0 + $0x64] sm:$0xf]
      %v285 = vld [vmem:[%s0 + $0x68] sm:$0xf]
      %v286 = vld [vmem:[%s0 + $0x6c] sm:$0xf]
      %v287 = vld [vmem:[%s0 + $0x70] sm:$0xf]
      %v288 = vld [vmem:[%s0 + $0x74] sm:$0xf]
      %v289 = vld [vmem:[%s0 + $0x78] sm:$0xf]
      %v290 = vld [vmem:[%s0 + $0x7c] sm:$0xf]
      %v291 = vld [vmem:[%s1] sm:$0xf]
      %v292 = vld [vmem:[%s1 + $0x4] sm:$0xf]
      %v293 = vld [vmem:[%s1 + $0x8] sm:$0xf]
      %v294 = vld [vmem:[%s1 + $0xc] sm:$0xf]
      %v295 = vld [vmem:[%s1 + $0x10] sm:$0xf]
      %v296 = vld [vmem:[%s1 + $0x14] sm:$0xf]
      %v297 = vld [vmem:[%s1 + $0x18] sm:$0xf]
      %v298 = vld [vmem:[%s1 + $0x1c] sm:$0xf]
      %v331 = vunpack.c.l.b16 %v259
      %v332 = vunpack.c.l.b16 %v260
      %v333 = vunpack.c.l.b16 %v261
      %v334 = vunpack.c.l.b16 %v262
      %v335 = vunpack.c.l.b16 %v263
      %v336 = vunpack.c.l.b16 %v264
      %v337 = vunpack.c.l.b16 %v265
      %v338 = vunpack.c.l.b16 %v266
      %v339 = vunpack.c.l.b16 %v267
      %v340 = vunpack.c.l.b16 %v268
      %v341 = vunpack.c.l.b16 %v269
      %v342 = vunpack.c.l.b16 %v270
      %v343 = vunpack.c.l.b16 %v271
      %v344 = vunpack.c.l.b16 %v272
      %v345 = vunpack.c.l.b16 %v273
      %v346 = vunpack.c.l.b16 %v274
      %v347 = vunpack.c.l.b16 %v275
      %v348 = vunpack.c.l.b16 %v276
      %v349 = vunpack.c.l.b16 %v277
      %v350 = vunpack.c.l.b16 %v278
      %v351 = vunpack.c.l.b16 %v279
      %v352 = vunpack.c.l.b16 %v280
      %v353 = vunpack.c.l.b16 %v281
      %v354 = vunpack.c.l.b16 %v282
      %v355 = vunpack.c.l.b16 %v283
      %v356 = vunpack.c.l.b16 %v284
      %v357 = vunpack.c.l.b16 %v285
      %v358 = vunpack.c.l.b16 %v286
      %v359 = vunpack.c.l.b16 %v287
      %v360 = vunpack.c.l.b16 %v288
      %v361 = vunpack.c.l.b16 %v289
      %v362 = vunpack.c.l.b16 %v290
      %v363 = vpack.c.b16 %v332, %v331
      %v364 = vpack.c.b16 %v334, %v333
      %v365 = vpack.c.b16 %v336, %v335
      %v366 = vpack.c.b16 %v338, %v337
      %v367 = vpack.c.b16 %v340, %v339
      %v368 = vpack.c.b16 %v342, %v341
      %v369 = vpack.c.b16 %v344, %v343
      %v370 = vpack.c.b16 %v346, %v345
      %v371 = vpack.c.b16 %v348, %v347
      %v372 = vpack.c.b16 %v350, %v349
      %v373 = vpack.c.b16 %v352, %v351
      %v374 = vpack.c.b16 %v354, %v353
      %v375 = vpack.c.b16 %v356, %v355
      %v376 = vpack.c.b16 %v358, %v357
      %v377 = vpack.c.b16 %v360, %v359
      %v378 = vpack.c.b16 %v362, %v361
      %v387 = vunpack.c.l.b16 %v291
      %v388 = vunpack.c.l.b16 %v292
      %v389 = vunpack.c.l.b16 %v293
      %v390 = vunpack.c.l.b16 %v294
      %v391 = vunpack.c.l.b16 %v295
      %v392 = vunpack.c.l.b16 %v296
      %v393 = vunpack.c.l.b16 %v297
      %v394 = vunpack.c.l.b16 %v298
      %v395 = vpack.c.b16 %v388, %v387
      %v396 = vpack.c.b16 %v390, %v389
      %v397 = vpack.c.b16 %v392, %v391
      %v398 = vpack.c.b16 %v394, %v393
      %vm403 = vcmask 523264
      %v405 = vsel %vm403, %v363, 0
      %v408 = vsel %vm403, %v364, 0
      %v411 = vsel %vm403, %v365, 0
      %v414 = vsel %vm403, %v366, 0
      %v417 = vsel %vm403, %v367, 0
      %v420 = vsel %vm403, %v368, 0
      %v423 = vsel %vm403, %v369, 0
      %v426 = vsel %vm403, %v370, 0
      %v429 = vsel %vm403, %v371, 0
      %v432 = vsel %vm403, %v372, 0
      %v435 = vsel %vm403, %v373, 0
      %v438 = vsel %vm403, %v374, 0
      %v441 = vsel %vm403, %v375, 0
      %v444 = vsel %vm403, %v376, 0
      %v447 = vsel %vm403, %v377, 0
      %v450 = vsel %vm403, %v378, 0
      %452 = vmatprep.subr.bf16.mxu0 0
      %453 = vmatpush1.bf16.msra.mxu0 %v395
      %454 = vmatprep.subr.bf16.mxu0 0
      %455 = vmatpush1.bf16.msra.mxu0 %v396
      %456 = vmatprep.subr.bf16.mxu0 0
      %457 = vmatpush1.bf16.msra.mxu0 %v397
      %458 = vmatprep.subr.bf16.mxu0 0
      %459 = vmatpush1.bf16.msra.mxu0 %v398
      %460 = vmatprep.subr.bf16.mxu0 0
      %461 = vmatpush1.bf16.msra.mxu0 0
      %462 = vmatprep.subr.bf16.mxu0 0
      %463 = vmatpush1.bf16.msra.mxu0 0
      %464 = vmatprep.subr.bf16.mxu0 0
      %465 = vmatpush1.bf16.msra.mxu0 0
      %466 = vmatprep.subr.bf16.mxu0 0
      %467 = vmatpush1.bf16.msra.mxu0 0
      %468 = vmatprep.subr.bf16.mxu0 0
      %469 = vmatpush1.bf16.msra.mxu0 0
      %470 = vmatprep.subr.bf16.mxu0 0
      %471 = vmatpush1.bf16.msra.mxu0 0
      %472 = vmatprep.subr.bf16.mxu0 0
      %473 = vmatpush1.bf16.msra.mxu0 0
      %474 = vmatprep.subr.bf16.mxu0 0
      %475 = vmatpush1.bf16.msra.mxu0 0
      %476 = vmatprep.subr.bf16.mxu0 0
      %477 = vmatpush1.bf16.msra.mxu0 0
      %478 = vmatprep.subr.bf16.mxu0 0
      %479 = vmatpush1.bf16.msra.mxu0 0
      %480 = vmatprep.subr.bf16.mxu0 0
      %481 = vmatpush1.bf16.msra.mxu0 0
      %482 = vmatprep.subr.bf16.mxu0 0
      %483 = vmatpush1.bf16.msra.mxu0 0
      %484 = vmatprep.mubr.bf16.mxu0 0
      %485 = vmatmul.mubr.bf16.gmra.mrb[0].mxu0 %v405
      %v486 = vpop.f32.mrb[0].mxu0
      %v487 = vadd.f32 0.0, %v486
      %v488 = vpop.f32.mrb[0].mxu0
      %v489 = vpop.f32.mrb[0].mxu0
      %v490 = vadd.f32 0.0, %v489
      %v491 = vpop.f32.mrb[0].mxu0
      %492 = vmatprep.mubr.bf16.mxu0 0
      %493 = vmatmul.mubr.bf16.gmra.mrb[0].mxu0 %v408
      %v494 = vpop.f32.mrb[0].mxu0
      %v495 = vadd.f32 0.0, %v494
      %v496 = vpop.f32.mrb[0].mxu0
      %v497 = vpop.f32.mrb[0].mxu0
      %v498 = vadd.f32 0.0, %v497
      %v499 = vpop.f32.mrb[0].mxu0
      %500 = vmatprep.mubr.bf16.mxu0 0
      %501 = vmatmul.mubr.bf16.gmra.mrb[0].mxu0 %v411
      %v502 = vpop.f32.mrb[0].mxu0
      %v503 = vadd.f32 0.0, %v502
      %v504 = vpop.f32.mrb[0].mxu0
      %v505 = vpop.f32.mrb[0].mxu0
      %v506 = vadd.f32 0.0, %v505
      %v507 = vpop.f32.mrb[0].mxu0
      %508 = vmatprep.mubr.bf16.mxu0 0
      %509 = vmatmul.mubr.bf16.gmra.mrb[0].mxu0 %v414
      %v510 = vpop.f32.mrb[0].mxu0
      %v511 = vadd.f32 0.0, %v510
      %v512 = vpop.f32.mrb[0].mxu0
      %v513 = vpop.f32.mrb[0].mxu0
      %v514 = vadd.f32 0.0, %v513
      %v515 = vpop.f32.mrb[0].mxu0
      %516 = vmatprep.mubr.bf16.mxu0 0
      %517 = vmatmul.mubr.bf16.gmra.mrb[0].mxu0 %v417
      %v518 = vpop.f32.mrb[0].mxu0
      %v519 = vadd.f32 0.0, %v518
      %v520 = vpop.f32.mrb[0].mxu0
      %v521 = vpop.f32.mrb[0].mxu0
      %v522 = vadd.f32 0.0, %v521
      %v523 = vpop.f32.mrb[0].mxu0
      %524 = vmatprep.mubr.bf16.mxu0 0
      %525 = vmatmul.mubr.bf16.gmra.mrb[0].mxu0 %v420
      %v526 = vpop.f32.mrb[0].mxu0
      %v527 = vadd.f32 0.0, %v526
      %v528 = vpop.f32.mrb[0].mxu0
      %v529 = vpop.f32.mrb[0].mxu0
      %v530 = vadd.f32 0.0, %v529
      %v531 = vpop.f32.mrb[0].mxu0
      %532 = vmatprep.mubr.bf16.mxu0 0
      %533 = vmatmul.mubr.bf16.gmra.mrb[0].mxu0 %v423
      %v534 = vpop.f32.mrb[0].mxu0
      %v535 = vadd.f32 0.0, %v534
      %v536 = vpop.f32.mrb[0].mxu0
      %v537 = vpop.f32.mrb[0].mxu0
      %v538 = vadd.f32 0.0, %v537
      %v539 = vpop.f32.mrb[0].mxu0
      %540 = vmatprep.mubr.bf16.mxu0 0
      %541 = vmatmul.mubr.bf16.gmra.mrb[0].mxu0 %v426
      %v542 = vpop.f32.mrb[0].mxu0
      %v543 = vadd.f32 0.0, %v542
      %v544 = vpop.f32.mrb[0].mxu0
      %v545 = vpop.f32.mrb[0].mxu0
      %v546 = vadd.f32 0.0, %v545
      %v547 = vpop.f32.mrb[0].mxu0
      %548 = vmatprep.mubr.bf16.mxu0 0
      %549 = vmatmul.mubr.bf16.gmra.mrb[0].mxu0 %v429
      %v550 = vpop.f32.mrb[0].mxu0
      %v551 = vadd.f32 0.0, %v550
      %v552 = vpop.f32.mrb[0].mxu0
      %v553 = vpop.f32.mrb[0].mxu0
      %v554 = vadd.f32 0.0, %v553
      %v555 = vpop.f32.mrb[0].mxu0
      %556 = vmatprep.mubr.bf16.mxu0 0
      %557 = vmatmul.mubr.bf16.gmra.mrb[0].mxu0 %v432
      %v558 = vpop.f32.mrb[0].mxu0
      %v559 = vadd.f32 0.0, %v558
      %v560 = vpop.f32.mrb[0].mxu0
      %v561 = vpop.f32.mrb[0].mxu0
      %v562 = vadd.f32 0.0, %v561
      %v563 = vpop.f32.mrb[0].mxu0
      %564 = vmatprep.mubr.bf16.mxu0 0
      %565 = vmatmul.mubr.bf16.gmra.mrb[0].mxu0 %v435
      %v566 = vpop.f32.mrb[0].mxu0
      %v567 = vadd.f32 0.0, %v566
      %v568 = vpop.f32.mrb[0].mxu0
      %v569 = vpop.f32.mrb[0].mxu0
      %v570 = vadd.f32 0.0, %v569
      %v571 = vpop.f32.mrb[0].mxu0
      %572 = vmatprep.mubr.bf16.mxu0 0
      %573 = vmatmul.mubr.bf16.gmra.mrb[0].mxu0 %v438
      %v574 = vpop.f32.mrb[0].mxu0
      %v575 = vadd.f32 0.0, %v574
      %v576 = vpop.f32.mrb[0].mxu0
      %v577 = vpop.f32.mrb[0].mxu0
      %v578 = vadd.f32 0.0, %v577
      %v579 = vpop.f32.mrb[0].mxu0
      %580 = vmatprep.mubr.bf16.mxu0 0
      %581 = vmatmul.mubr.bf16.gmra.mrb[0].mxu0 %v441
      %v582 = vpop.f32.mrb[0].mxu0
      %v583 = vadd.f32 0.0, %v582
      %v584 = vpop.f32.mrb[0].mxu0
      %v585 = vpop.f32.mrb[0].mxu0
      %v586 = vadd.f32 0.0, %v585
      %v587 = vpop.f32.mrb[0].mxu0
      %588 = vmatprep.mubr.bf16.mxu0 0
      %589 = vmatmul.mubr.bf16.gmra.mrb[0].mxu0 %v444
      %v590 = vpop.f32.mrb[0].mxu0
      %v591 = vadd.f32 0.0, %v590
      %v592 = vpop.f32.mrb[0].mxu0
      %v593 = vpop.f32.mrb[0].mxu0
      %v594 = vadd.f32 0.0, %v593
      %v595 = vpop.f32.mrb[0].mxu0
      %596 = vmatprep.mubr.bf16.mxu0 0
      %597 = vmatmul.mubr.bf16.gmra.mrb[0].mxu0 %v447
      %v598 = vpop.f32.mrb[0].mxu0
      %v599 = vadd.f32 0.0, %v598
      %v600 = vpop.f32.mrb[0].mxu0
      %v601 = vpop.f32.mrb[0].mxu0
      %v602 = vadd.f32 0.0, %v601
      %v603 = vpop.f32.mrb[0].mxu0
      %604 = vmatprep.mubr.bf16.mxu0 0
      %605 = vmatmul.mubr.bf16.gmra.mrb[0].mxu0 %v450
      %v606 = vpop.f32.mrb[0].mxu0
      %v607 = vadd.f32 0.0, %v606
      %v608 = vpop.f32.mrb[0].mxu0
      %v609 = vpop.f32.mrb[0].mxu0
      %v610 = vadd.f32 0.0, %v609
      %v611 = vpop.f32.mrb[0].mxu0
      %612 = vdwg.mxu0
      %v613 = vpack.c.bf16 %v490, %v487
      %v614 = vpack.c.bf16 %v498, %v495
      %v615 = vpack.c.bf16 %v506, %v503
      %v616 = vpack.c.bf16 %v514, %v511
      %v617 = vpack.c.bf16 %v522, %v519
      %v618 = vpack.c.bf16 %v530, %v527
      %v619 = vpack.c.bf16 %v538, %v535
      %v620 = vpack.c.bf16 %v546, %v543
      %v621 = vpack.c.bf16 %v554, %v551
      %v622 = vpack.c.bf16 %v562, %v559
      %v623 = vpack.c.bf16 %v570, %v567
      %v624 = vpack.c.bf16 %v578, %v575
      %v625 = vpack.c.bf16 %v586, %v583
      %v626 = vpack.c.bf16 %v594, %v591
      %v627 = vpack.c.bf16 %v602, %v599
      %v628 = vpack.c.bf16 %v610, %v607
      %v629 = vld [vmem:[%s2] sm:$0x3]
      %v631 = vsel %vm403, %v629, 0
      %633 = vmatprep.subr.bf16.mxu0 0
      %634 = vmatpush1.bf16.xpose.msra.mxu0 %v405
      %635 = vmatprep.subr.bf16.mxu0 0
      %636 = vmatpush1.bf16.xpose.msra.mxu0 %v408
      %637 = vmatprep.subr.bf16.mxu0 0
      %638 = vmatpush1.bf16.xpose.msra.mxu0 %v411
      %639 = vmatprep.subr.bf16.mxu0 0
      %640 = vmatpush1.bf16.xpose.msra.mxu0 %v414
      %641 = vmatprep.subr.bf16.mxu0 0
      %642 = vmatpush1.bf16.xpose.msra.mxu0 %v417
      %643 = vmatprep.subr.bf16.mxu0 0
      %644 = vmatpush1.bf16.xpose.msra.mxu0 %v420
      %645 = vmatprep.subr.bf16.mxu0 0
      %646 = vmatpush1.bf16.xpose.msra.mxu0 %v423
      %647 = vmatprep.subr.bf16.mxu0 0
      %648 = vmatpush1.bf16.xpose.msra.mxu0 %v426
      %649 = vmatprep.subr.bf16.mxu0 0
      %650 = vmatpush1.bf16.xpose.msra.mxu0 %v429
      %651 = vmatprep.subr.bf16.mxu0 0
      %652 = vmatpush1.bf16.xpose.msra.mxu0 %v432
      %653 = vmatprep.subr.bf16.mxu0 0
      %654 = vmatpush1.bf16.xpose.msra.mxu0 %v435
      %655 = vmatprep.subr.bf16.mxu0 0
      %656 = vmatpush1.bf16.xpose.msra.mxu0 %v438
      %657 = vmatprep.subr.bf16.mxu0 0
      %658 = vmatpush1.bf16.xpose.msra.mxu0 %v441
      %659 = vmatprep.subr.bf16.mxu0 0
      %660 = vmatpush1.bf16.xpose.msra.mxu0 %v444
      %661 = vmatprep.subr.bf16.mxu0 0
      %662 = vmatpush1.bf16.xpose.msra.mxu0 %v447
      %663 = vmatprep.subr.bf16.mxu0 0
      %664 = vmatpush1.bf16.xpose.msra.mxu0 %v450
      %665 = vmatprep.mubr.bf16.mxu0 0
      %666 = vmatmul.mubr.bf16.gmra.mrb[0].mxu0 %v631
      %v667 = vpop.f32.mrb[0].mxu0
      %v668 = vadd.f32 0.0, %v667
      %v669 = vpop.f32.mrb[0].mxu0
      %v670 = vadd.f32 0.0, %v669
      %v671 = vpop.f32.mrb[0].mxu0
      %v672 = vpop.f32.mrb[0].mxu0
      %673 = vdwg.mxu0
      %s674 = smul.u32 %s17, 128
      %s675 = sshra.s32 %s674, 3
      %s676 = sand.u32 %s674, 7
      %s677 = smul.addr %s675, 4
      %s678 = scalar_lea.vmem %s0, %s677
      %v679 = vld [vmem:[%s678] sm:$0xf]
      %v680 = vld [vmem:[%s678 + $0x4] sm:$0xf]
      %v681 = vld [vmem:[%s678 + $0x8] sm:$0xf]
      %v682 = vld [vmem:[%s678 + $0xc] sm:$0xf]
      %v683 = vld [vmem:[%s678 + $0x10] sm:$0xf]
      %v684 = vld [vmem:[%s678 + $0x14] sm:$0xf]
      %v685 = vld [vmem:[%s678 + $0x18] sm:$0xf]
      %v686 = vld [vmem:[%s678 + $0x1c] sm:$0xf]
      %v687 = vld [vmem:[%s678 + $0x20] sm:$0xf]
      %v688 = vld [vmem:[%s678 + $0x24] sm:$0xf]
      %v689 = vld [vmem:[%s678 + $0x28] sm:$0xf]
      %v690 = vld [vmem:[%s678 + $0x2c] sm:$0xf]
      %v691 = vld [vmem:[%s678 + $0x30] sm:$0xf]
      %v692 = vld [vmem:[%s678 + $0x34] sm:$0xf]
      %v693 = vld [vmem:[%s678 + $0x38] sm:$0xf]
      %v694 = vld [vmem:[%s678 + $0x3c] sm:$0xf]
      %v695 = vld [vmem:[%s3] sm:$0xf]
      %v696 = vld [vmem:[%s3 + $0x4] sm:$0xf]
      %v697 = vld [vmem:[%s3 + $0x8] sm:$0xf]
      %v698 = vld [vmem:[%s3 + $0xc] sm:$0xf]
      %v699 = vld [vmem:[%s3 + $0x10] sm:$0xf]
      %v700 = vld [vmem:[%s3 + $0x14] sm:$0xf]
      %v701 = vld [vmem:[%s3 + $0x18] sm:$0xf]
      %v702 = vld [vmem:[%s3 + $0x1c] sm:$0xf]
      %v719 = vunpack.c.l.b16 %v679
      %v720 = vunpack.c.l.b16 %v680
      %v721 = vunpack.c.l.b16 %v681
      %v722 = vunpack.c.l.b16 %v682
      %v723 = vunpack.c.l.b16 %v683
      %v724 = vunpack.c.l.b16 %v684
      %v725 = vunpack.c.l.b16 %v685
      %v726 = vunpack.c.l.b16 %v686
      %v727 = vunpack.c.l.b16 %v687
      %v728 = vunpack.c.l.b16 %v688
      %v729 = vunpack.c.l.b16 %v689
      %v730 = vunpack.c.l.b16 %v690
      %v731 = vunpack.c.l.b16 %v691
      %v732 = vunpack.c.l.b16 %v692
      %v733 = vunpack.c.l.b16 %v693
      %v734 = vunpack.c.l.b16 %v694
      %v735 = vpack.c.b16 %v720, %v719
      %v736 = vpack.c.b16 %v722, %v721
      %v737 = vpack.c.b16 %v724, %v723
      %v738 = vpack.c.b16 %v726, %v725
      %v739 = vpack.c.b16 %v728, %v727
      %v740 = vpack.c.b16 %v730, %v729
      %v741 = vpack.c.b16 %v732, %v731
      %v742 = vpack.c.b16 %v734, %v733
      %v751 = vunpack.c.l.b16 %v695
      %v752 = vunpack.c.l.b16 %v696
      %v753 = vunpack.c.l.b16 %v697
      %v754 = vunpack.c.l.b16 %v698
      %v755 = vunpack.c.l.b16 %v699
      %v756 = vunpack.c.l.b16 %v700
      %v757 = vunpack.c.l.b16 %v701
      %v758 = vunpack.c.l.b16 %v702
      %v759 = vpack.c.b16 %v752, %v751
      %v760 = vpack.c.b16 %v754, %v753
      %v761 = vpack.c.b16 %v756, %v755
      %v762 = vpack.c.b16 %v758, %v757
      %v768 = vsel %vm403, %v735, 0
      %v771 = vsel %vm403, %v736, 0
      %v774 = vsel %vm403, %v737, 0
      %v777 = vsel %vm403, %v738, 0
      %v780 = vsel %vm403, %v739, 0
      %v783 = vsel %vm403, %v740, 0
      %v786 = vsel %vm403, %v741, 0
      %v789 = vsel %vm403, %v742, 0
      %791 = vmatprep.subr.bf16.mxu0 0
      %792 = vmatpush1.bf16.msra.mxu0 %v759
      %793 = vmatprep.subr.bf16.mxu0 0
      %794 = vmatpush1.bf16.msra.mxu0 %v760
      %795 = vmatprep.subr.bf16.mxu0 0
      %796 = vmatpush1.bf16.msra.mxu0 %v761
      %797 = vmatprep.subr.bf16.mxu0 0
      %798 = vmatpush1.bf16.msra.mxu0 %v762
      %799 = vmatprep.subr.bf16.mxu0 0
      %800 = vmatpush1.bf16.msra.mxu0 0
      %801 = vmatprep.subr.bf16.mxu0 0
      %802 = vmatpush1.bf16.msra.mxu0 0
      %803 = vmatprep.subr.bf16.mxu0 0
      %804 = vmatpush1.bf16.msra.mxu0 0
      %805 = vmatprep.subr.bf16.mxu0 0
      %806 = vmatpush1.bf16.msra.mxu0 0
      %807 = vmatprep.subr.bf16.mxu0 0
      %808 = vmatpush1.bf16.msra.mxu0 0
      %809 = vmatprep.subr.bf16.mxu0 0
      %810 = vmatpush1.bf16.msra.mxu0 0
      %811 = vmatprep.subr.bf16.mxu0 0
      %812 = vmatpush1.bf16.msra.mxu0 0
      %813 = vmatprep.subr.bf16.mxu0 0
      %814 = vmatpush1.bf16.msra.mxu0 0
      %815 = vmatprep.subr.bf16.mxu0 0
      %816 = vmatpush1.bf16.msra.mxu0 0
      %817 = vmatprep.subr.bf16.mxu0 0
      %818 = vmatpush1.bf16.msra.mxu0 0
      %819 = vmatprep.subr.bf16.mxu0 0
      %820 = vmatpush1.bf16.msra.mxu0 0
      %821 = vmatprep.subr.bf16.mxu0 0
      %822 = vmatpush1.bf16.msra.mxu0 0
      %823 = vmatprep.mubr.bf16.mxu0 0
      %824 = vmatmul.mubr.bf16.gmra.mrb[0].mxu0 %v768
      %v825 = vpop.f32.mrb[0].mxu0
      %v826 = vadd.f32 0.0, %v825
      %v827 = vpop.f32.mrb[0].mxu0
      %v828 = vpop.f32.mrb[0].mxu0
      %v829 = vadd.f32 0.0, %v828
      %v830 = vpop.f32.mrb[0].mxu0
      %831 = vmatprep.mubr.bf16.mxu0 0
      %832 = vmatmul.mubr.bf16.gmra.mrb[0].mxu0 %v771
      %v833 = vpop.f32.mrb[0].mxu0
      %v834 = vadd.f32 0.0, %v833
      %v835 = vpop.f32.mrb[0].mxu0
      %v836 = vpop.f32.mrb[0].mxu0
      %v837 = vadd.f32 0.0, %v836
      %v838 = vpop.f32.mrb[0].mxu0
      %839 = vmatprep.mubr.bf16.mxu0 0
      %840 = vmatmul.mubr.bf16.gmra.mrb[0].mxu0 %v774
      %v841 = vpop.f32.mrb[0].mxu0
      %v842 = vadd.f32 0.0, %v841
      %v843 = vpop.f32.mrb[0].mxu0
      %v844 = vpop.f32.mrb[0].mxu0
      %v845 = vadd.f32 0.0, %v844
      %v846 = vpop.f32.mrb[0].mxu0
      %847 = vmatprep.mubr.bf16.mxu0 0
      %848 = vmatmul.mubr.bf16.gmra.mrb[0].mxu0 %v777
      %v849 = vpop.f32.mrb[0].mxu0
      %v850 = vadd.f32 0.0, %v849
      %v851 = vpop.f32.mrb[0].mxu0
      %v852 = vpop.f32.mrb[0].mxu0
      %v853 = vadd.f32 0.0, %v852
      %v854 = vpop.f32.mrb[0].mxu0
      %855 = vmatprep.mubr.bf16.mxu0 0
      %856 = vmatmul.mubr.bf16.gmra.mrb[0].mxu0 %v780
      %v857 = vpop.f32.mrb[0].mxu0
      %v858 = vadd.f32 0.0, %v857
      %v859 = vpop.f32.mrb[0].mxu0
      %v860 = vpop.f32.mrb[0].mxu0
      %v861 = vadd.f32 0.0, %v860
      %v862 = vpop.f32.mrb[0].mxu0
      %863 = vmatprep.mubr.bf16.mxu0 0
      %864 = vmatmul.mubr.bf16.gmra.mrb[0].mxu0 %v783
      %v865 = vpop.f32.mrb[0].mxu0
      %v866 = vadd.f32 0.0, %v865
      %v867 = vpop.f32.mrb[0].mxu0
      %v868 = vpop.f32.mrb[0].mxu0
      %v869 = vadd.f32 0.0, %v868
      %v870 = vpop.f32.mrb[0].mxu0
      %871 = vmatprep.mubr.bf16.mxu0 0
      %872 = vmatmul.mubr.bf16.gmra.mrb[0].mxu0 %v786
      %v873 = vpop.f32.mrb[0].mxu0
      %v874 = vadd.f32 0.0, %v873
      %v875 = vpop.f32.mrb[0].mxu0
      %v876 = vpop.f32.mrb[0].mxu0
      %v877 = vadd.f32 0.0, %v876
      %v878 = vpop.f32.mrb[0].mxu0
      %879 = vmatprep.mubr.bf16.mxu0 0
      %880 = vmatmul.mubr.bf16.gmra.mrb[0].mxu0 %v789
      %v881 = vpop.f32.mrb[0].mxu0
      %v882 = vadd.f32 0.0, %v881
      %v883 = vpop.f32.mrb[0].mxu0
      %v884 = vpop.f32.mrb[0].mxu0
      %v885 = vadd.f32 0.0, %v884
      %v886 = vpop.f32.mrb[0].mxu0
      %887 = vdwg.mxu0
      %v888 = vld [vmem:[%s250] sm:$0xff]
      %v889 = vld [vmem:[%s250 + $0x8] sm:$0xff]
      %v890 = vld [vmem:[%s250 + $0x10] sm:$0xff]
      %v891 = vld [vmem:[%s250 + $0x18] sm:$0xff]
      %v892 = vld [vmem:[%s250 + $0x20] sm:$0xff]
      %v893 = vld [vmem:[%s250 + $0x28] sm:$0xff]
      %v894 = vld [vmem:[%s250 + $0x30] sm:$0xff]
      %v895 = vld [vmem:[%s250 + $0x38] sm:$0xff]
      %v896 = vunpack.c.0.s8 %v888
      %v897 = vunpack.c.0.s8 %v889
      %v898 = vunpack.c.1.s8 %v888
      %v899 = vunpack.c.1.s8 %v889
      %v900 = vunpack.c.2.s8 %v888
      %v901 = vunpack.c.2.s8 %v889
      %v902 = vunpack.c.3.s8 %v888
      %v903 = vunpack.c.3.s8 %v889
      %v904 = vunpack.c.0.s8 %v890
      %v905 = vunpack.c.0.s8 %v891
      %v906 = vunpack.c.1.s8 %v890
      %v907 = vunpack.c.1.s8 %v891
      %v908 = vunpack.c.2.s8 %v890
      %v909 = vunpack.c.2.s8 %v891
      %v910 = vunpack.c.3.s8 %v890
      %v911 = vunpack.c.3.s8 %v891
      %v912 = vunpack.c.0.s8 %v892
      %v913 = vunpack.c.0.s8 %v893
      %v914 = vunpack.c.1.s8 %v892
      %v915 = vunpack.c.1.s8 %v893
      %v916 = vunpack.c.2.s8 %v892
      %v917 = vunpack.c.2.s8 %v893
      %v918 = vunpack.c.3.s8 %v892
      %v919 = vunpack.c.3.s8 %v893
      %v920 = vunpack.c.0.s8 %v894
      %v921 = vunpack.c.0.s8 %v895
      %v922 = vunpack.c.1.s8 %v894
      %v923 = vunpack.c.1.s8 %v895
      %v924 = vunpack.c.2.s8 %v894
      %v925 = vunpack.c.2.s8 %v895
      %v926 = vunpack.c.3.s8 %v894
      %v927 = vunpack.c.3.s8 %v895
      %v928 = vcvt.s32.f32 %v896
      %v929 = vcvt.s32.f32 %v897
      %v930 = vcvt.s32.f32 %v898
      %v931 = vcvt.s32.f32 %v899
      %v932 = vcvt.s32.f32 %v900
      %v933 = vcvt.s32.f32 %v901
      %v934 = vcvt.s32.f32 %v902
      %v935 = vcvt.s32.f32 %v903
      %v936 = vcvt.s32.f32 %v904
      %v937 = vcvt.s32.f32 %v905
      %v938 = vcvt.s32.f32 %v906
      %v939 = vcvt.s32.f32 %v907
      %v940 = vcvt.s32.f32 %v908
      %v941 = vcvt.s32.f32 %v909
      %v942 = vcvt.s32.f32 %v910
      %v943 = vcvt.s32.f32 %v911
      %v944 = vcvt.s32.f32 %v912
      %v945 = vcvt.s32.f32 %v913
      %v946 = vcvt.s32.f32 %v914
      %v947 = vcvt.s32.f32 %v915
      %v948 = vcvt.s32.f32 %v916
      %v949 = vcvt.s32.f32 %v917
      %v950 = vcvt.s32.f32 %v918
      %v951 = vcvt.s32.f32 %v919
      %v952 = vcvt.s32.f32 %v920
      %v953 = vcvt.s32.f32 %v921
      %v954 = vcvt.s32.f32 %v922
      %v955 = vcvt.s32.f32 %v923
      %v956 = vcvt.s32.f32 %v924
      %v957 = vcvt.s32.f32 %v925
      %v958 = vcvt.s32.f32 %v926
      %v959 = vcvt.s32.f32 %v927
      %vm960 = vcmp.gt.f32.partialorder %v928, 0.0
      %vm961 = vcmp.gt.f32.partialorder %v929, 0.0
      %vm962 = vcmp.gt.f32.partialorder %v930, 0.0
      %vm963 = vcmp.gt.f32.partialorder %v931, 0.0
      %vm964 = vcmp.gt.f32.partialorder %v932, 0.0
      %vm965 = vcmp.gt.f32.partialorder %v933, 0.0
      %vm966 = vcmp.gt.f32.partialorder %v934, 0.0
      %vm967 = vcmp.gt.f32.partialorder %v935, 0.0
      %vm968 = vcmp.gt.f32.partialorder %v936, 0.0
      %vm969 = vcmp.gt.f32.partialorder %v937, 0.0
      %vm970 = vcmp.gt.f32.partialorder %v938, 0.0
      %vm971 = vcmp.gt.f32.partialorder %v939, 0.0
      %vm972 = vcmp.gt.f32.partialorder %v940, 0.0
      %vm973 = vcmp.gt.f32.partialorder %v941, 0.0
      %vm974 = vcmp.gt.f32.partialorder %v942, 0.0
      %vm975 = vcmp.gt.f32.partialorder %v943, 0.0
      %vm976 = vcmp.gt.f32.partialorder %v944, 0.0
      %vm977 = vcmp.gt.f32.partialorder %v945, 0.0
      %vm978 = vcmp.gt.f32.partialorder %v946, 0.0
      %vm979 = vcmp.gt.f32.partialorder %v947, 0.0
      %vm980 = vcmp.gt.f32.partialorder %v948, 0.0
      %vm981 = vcmp.gt.f32.partialorder %v949, 0.0
      %vm982 = vcmp.gt.f32.partialorder %v950, 0.0
      %vm983 = vcmp.gt.f32.partialorder %v951, 0.0
      %vm984 = vcmp.gt.f32.partialorder %v952, 0.0
      %vm985 = vcmp.gt.f32.partialorder %v953, 0.0
      %vm986 = vcmp.gt.f32.partialorder %v954, 0.0
      %vm987 = vcmp.gt.f32.partialorder %v955, 0.0
      %vm988 = vcmp.gt.f32.partialorder %v956, 0.0
      %vm989 = vcmp.gt.f32.partialorder %v957, 0.0
      %vm990 = vcmp.gt.f32.partialorder %v958, 0.0
      %vm991 = vcmp.gt.f32.partialorder %v959, 0.0
      %v992 = vsel %vm960, 0.0, -1e+30
      %v993 = vsel %vm961, 0.0, -1e+30
      %v994 = vsel %vm962, 0.0, -1e+30
      %v995 = vsel %vm963, 0.0, -1e+30
      %v996 = vsel %vm964, 0.0, -1e+30
      %v997 = vsel %vm965, 0.0, -1e+30
      %v998 = vsel %vm966, 0.0, -1e+30
      %v999 = vsel %vm967, 0.0, -1e+30
      %v1000 = vsel %vm968, 0.0, -1e+30
      %v1001 = vsel %vm969, 0.0, -1e+30
      %v1002 = vsel %vm970, 0.0, -1e+30
      %v1003 = vsel %vm971, 0.0, -1e+30
      %v1004 = vsel %vm972, 0.0, -1e+30
      %v1005 = vsel %vm973, 0.0, -1e+30
      %v1006 = vsel %vm974, 0.0, -1e+30
      %v1007 = vsel %vm975, 0.0, -1e+30
      %v1008 = vsel %vm976, 0.0, -1e+30
      %v1009 = vsel %vm977, 0.0, -1e+30
      %v1010 = vsel %vm978, 0.0, -1e+30
      %v1011 = vsel %vm979, 0.0, -1e+30
      %v1012 = vsel %vm980, 0.0, -1e+30
      %v1013 = vsel %vm981, 0.0, -1e+30
      %v1014 = vsel %vm982, 0.0, -1e+30
      %v1015 = vsel %vm983, 0.0, -1e+30
      %v1016 = vsel %vm984, 0.0, -1e+30
      %v1017 = vsel %vm985, 0.0, -1e+30
      %v1018 = vsel %vm986, 0.0, -1e+30
      %v1019 = vsel %vm987, 0.0, -1e+30
      %v1020 = vsel %vm988, 0.0, -1e+30
      %v1021 = vsel %vm989, 0.0, -1e+30
      %v1022 = vsel %vm990, 0.0, -1e+30
      %v1023 = vsel %vm991, 0.0, -1e+30
      %1025 = vset.pattern.permute.xlu0 0
      %1026 = vperm.xlu0 %1025, %v826
      %v1027 = vpop.permute.xlu0 %1026
      %1030 = vset.pattern.permute.xlu0 0
      %1031 = vperm.xlu0 %1030, %v829
      %v1032 = vpop.permute.xlu0 %1031
      %1035 = vset.pattern.permute.xlu0 0
      %1036 = vperm.xlu0 %1035, %v834
      %v1037 = vpop.permute.xlu0 %1036
      %1040 = vset.pattern.permute.xlu0 0
      %1041 = vperm.xlu0 %1040, %v837
      %v1042 = vpop.permute.xlu0 %1041
      %1045 = vset.pattern.permute.xlu0 0
      %1046 = vperm.xlu0 %1045, %v842
      %v1047 = vpop.permute.xlu0 %1046
      %1050 = vset.pattern.permute.xlu0 0
      %1051 = vperm.xlu0 %1050, %v845
      %v1052 = vpop.permute.xlu0 %1051
      %1055 = vset.pattern.permute.xlu0 0
      %1056 = vperm.xlu0 %1055, %v850
      %v1057 = vpop.permute.xlu0 %1056
      %1060 = vset.pattern.permute.xlu0 0
      %1061 = vperm.xlu0 %1060, %v853
      %v1062 = vpop.permute.xlu0 %1061
      %1065 = vset.pattern.permute.xlu0 0
      %1066 = vperm.xlu0 %1065, %v858
      %v1067 = vpop.permute.xlu0 %1066
      %1070 = vset.pattern.permute.xlu0 0
      %1071 = vperm.xlu0 %1070, %v861
      %v1072 = vpop.permute.xlu0 %1071
      %1075 = vset.pattern.permute.xlu0 0
      %1076 = vperm.xlu0 %1075, %v866
      %v1077 = vpop.permute.xlu0 %1076
      %1080 = vset.pattern.permute.xlu0 0
      %1081 = vperm.xlu0 %1080, %v869
      %v1082 = vpop.permute.xlu0 %1081
      %1085 = vset.pattern.permute.xlu0 0
      %1086 = vperm.xlu0 %1085, %v874
      %v1087 = vpop.permute.xlu0 %1086
      %1090 = vset.pattern.permute.xlu0 0
      %1091 = vperm.xlu0 %1090, %v877
      %v1092 = vpop.permute.xlu0 %1091
      %1095 = vset.pattern.permute.xlu0 0
      %1096 = vperm.xlu0 %1095, %v882
      %v1097 = vpop.permute.xlu0 %1096
      %1100 = vset.pattern.permute.xlu0 0
      %1101 = vperm.xlu0 %1100, %v885
      %v1102 = vpop.permute.xlu0 %1101
      %v1104 = vlaneseq
      %v1105 = vshrl.u32 %v1104, 7
      %v1106 = vsub.s32 0, %v1105
      %v1107 = vrot.slane %v668, %v1106
      %v1108 = vlaneseq
      %v1109 = vshrl.u32 %v1108, 7
      %v1110 = vsub.s32 0, %v1109
      %v1111 = vrot.slane %v670, %v1110
      %v1112 = vadd.f32 %v1027, %v1107
      %v1113 = vadd.f32 %v1027, %v1111
      %v1114 = vadd.f32 %v1032, %v1107
      %v1115 = vadd.f32 %v1032, %v1111
      %v1116 = vadd.f32 %v1037, %v1107
      %v1117 = vadd.f32 %v1037, %v1111
      %v1118 = vadd.f32 %v1042, %v1107
      %v1119 = vadd.f32 %v1042, %v1111
      %v1120 = vadd.f32 %v1047, %v1107
      %v1121 = vadd.f32 %v1047, %v1111
      %v1122 = vadd.f32 %v1052, %v1107
      %v1123 = vadd.f32 %v1052, %v1111
      %v1124 = vadd.f32 %v1057, %v1107
      %v1125 = vadd.f32 %v1057, %v1111
      %v1126 = vadd.f32 %v1062, %v1107
      %v1127 = vadd.f32 %v1062, %v1111
      %v1128 = vadd.f32 %v1067, %v1107
      %v1129 = vadd.f32 %v1067, %v1111
      %v1130 = vadd.f32 %v1072, %v1107
      %v1131 = vadd.f32 %v1072, %v1111
      %v1132 = vadd.f32 %v1077, %v1107
      %v1133 = vadd.f32 %v1077, %v1111
      %v1134 = vadd.f32 %v1082, %v1107
      %v1135 = vadd.f32 %v1082, %v1111
      %v1136 = vadd.f32 %v1087, %v1107
      %v1137 = vadd.f32 %v1087, %v1111
      %v1138 = vadd.f32 %v1092, %v1107
      %v1139 = vadd.f32 %v1092, %v1111
      %v1140 = vadd.f32 %v1097, %v1107
      %v1141 = vadd.f32 %v1097, %v1111
      %v1142 = vadd.f32 %v1102, %v1107
      %v1143 = vadd.f32 %v1102, %v1111
      %vm1144 = vcmp.gt.f32.partialorder %v1112, 0.0
      %vm1145 = vcmp.gt.f32.partialorder %v1113, 0.0
      %vm1146 = vcmp.gt.f32.partialorder %v1114, 0.0
      %vm1147 = vcmp.gt.f32.partialorder %v1115, 0.0
      %vm1148 = vcmp.gt.f32.partialorder %v1116, 0.0
      %vm1149 = vcmp.gt.f32.partialorder %v1117, 0.0
      %vm1150 = vcmp.gt.f32.partialorder %v1118, 0.0
      %vm1151 = vcmp.gt.f32.partialorder %v1119, 0.0
      %vm1152 = vcmp.gt.f32.partialorder %v1120, 0.0
      %vm1153 = vcmp.gt.f32.partialorder %v1121, 0.0
      %vm1154 = vcmp.gt.f32.partialorder %v1122, 0.0
      %vm1155 = vcmp.gt.f32.partialorder %v1123, 0.0
      %vm1156 = vcmp.gt.f32.partialorder %v1124, 0.0
      %vm1157 = vcmp.gt.f32.partialorder %v1125, 0.0
      %vm1158 = vcmp.gt.f32.partialorder %v1126, 0.0
      %vm1159 = vcmp.gt.f32.partialorder %v1127, 0.0
      %vm1160 = vcmp.gt.f32.partialorder %v1128, 0.0
      %vm1161 = vcmp.gt.f32.partialorder %v1129, 0.0
      %vm1162 = vcmp.gt.f32.partialorder %v1130, 0.0
      %vm1163 = vcmp.gt.f32.partialorder %v1131, 0.0
      %vm1164 = vcmp.gt.f32.partialorder %v1132, 0.0
      %vm1165 = vcmp.gt.f32.partialorder %v1133, 0.0
      %vm1166 = vcmp.gt.f32.partialorder %v1134, 0.0
      %vm1167 = vcmp.gt.f32.partialorder %v1135, 0.0
      %vm1168 = vcmp.gt.f32.partialorder %v1136, 0.0
      %vm1169 = vcmp.gt.f32.partialorder %v1137, 0.0
      %vm1170 = vcmp.gt.f32.partialorder %v1138, 0.0
      %vm1171 = vcmp.gt.f32.partialorder %v1139, 0.0
      %vm1172 = vcmp.gt.f32.partialorder %v1140, 0.0
      %vm1173 = vcmp.gt.f32.partialorder %v1141, 0.0
      %vm1174 = vcmp.gt.f32.partialorder %v1142, 0.0
      %vm1175 = vcmp.gt.f32.partialorder %v1143, 0.0
      %v1176 = vmul.f32 %v1112, 0.2
      %v1177 = vmul.f32 %v1113, 0.2
      %v1178 = vmul.f32 %v1114, 0.2
      %v1179 = vmul.f32 %v1115, 0.2
      %v1180 = vmul.f32 %v1116, 0.2
      %v1181 = vmul.f32 %v1117, 0.2
      %v1182 = vmul.f32 %v1118, 0.2
      %v1183 = vmul.f32 %v1119, 0.2
      %v1184 = vmul.f32 %v1120, 0.2
      %v1185 = vmul.f32 %v1121, 0.2
      %v1186 = vmul.f32 %v1122, 0.2
      %v1187 = vmul.f32 %v1123, 0.2
      %v1188 = vmul.f32 %v1124, 0.2
      %v1189 = vmul.f32 %v1125, 0.2
      %v1190 = vmul.f32 %v1126, 0.2
      %v1191 = vmul.f32 %v1127, 0.2
      %v1192 = vmul.f32 %v1128, 0.2
      %v1193 = vmul.f32 %v1129, 0.2
      %v1194 = vmul.f32 %v1130, 0.2
      %v1195 = vmul.f32 %v1131, 0.2
      %v1196 = vmul.f32 %v1132, 0.2
      %v1197 = vmul.f32 %v1133, 0.2
      %v1198 = vmul.f32 %v1134, 0.2
      %v1199 = vmul.f32 %v1135, 0.2
      %v1200 = vmul.f32 %v1136, 0.2
      %v1201 = vmul.f32 %v1137, 0.2
      %v1202 = vmul.f32 %v1138, 0.2
      %v1203 = vmul.f32 %v1139, 0.2
      %v1204 = vmul.f32 %v1140, 0.2
      %v1205 = vmul.f32 %v1141, 0.2
      %v1206 = vmul.f32 %v1142, 0.2
      %v1207 = vmul.f32 %v1143, 0.2
      %v1208 = vsel %vm1144, %v1112, %v1176
      %v1209 = vsel %vm1145, %v1113, %v1177
      %v1210 = vsel %vm1146, %v1114, %v1178
      %v1211 = vsel %vm1147, %v1115, %v1179
      %v1212 = vsel %vm1148, %v1116, %v1180
      %v1213 = vsel %vm1149, %v1117, %v1181
      %v1214 = vsel %vm1150, %v1118, %v1182
      %v1215 = vsel %vm1151, %v1119, %v1183
      %v1216 = vsel %vm1152, %v1120, %v1184
      %v1217 = vsel %vm1153, %v1121, %v1185
      %v1218 = vsel %vm1154, %v1122, %v1186
      %v1219 = vsel %vm1155, %v1123, %v1187
      %v1220 = vsel %vm1156, %v1124, %v1188
      %v1221 = vsel %vm1157, %v1125, %v1189
      %v1222 = vsel %vm1158, %v1126, %v1190
      %v1223 = vsel %vm1159, %v1127, %v1191
      %v1224 = vsel %vm1160, %v1128, %v1192
      %v1225 = vsel %vm1161, %v1129, %v1193
      %v1226 = vsel %vm1162, %v1130, %v1194
      %v1227 = vsel %vm1163, %v1131, %v1195
      %v1228 = vsel %vm1164, %v1132, %v1196
      %v1229 = vsel %vm1165, %v1133, %v1197
      %v1230 = vsel %vm1166, %v1134, %v1198
      %v1231 = vsel %vm1167, %v1135, %v1199
      %v1232 = vsel %vm1168, %v1136, %v1200
      %v1233 = vsel %vm1169, %v1137, %v1201
      %v1234 = vsel %vm1170, %v1138, %v1202
      %v1235 = vsel %vm1171, %v1139, %v1203
      %v1236 = vsel %vm1172, %v1140, %v1204
      %v1237 = vsel %vm1173, %v1141, %v1205
      %v1238 = vsel %vm1174, %v1142, %v1206
      %v1239 = vsel %vm1175, %v1143, %v1207
      %v1240 = vadd.f32 %v1208, %v992
      %v1241 = vadd.f32 %v1209, %v993
      %v1242 = vadd.f32 %v1210, %v994
      %v1243 = vadd.f32 %v1211, %v995
      %v1244 = vadd.f32 %v1212, %v996
      %v1245 = vadd.f32 %v1213, %v997
      %v1246 = vadd.f32 %v1214, %v998
      %v1247 = vadd.f32 %v1215, %v999
      %v1248 = vadd.f32 %v1216, %v1000
      %v1249 = vadd.f32 %v1217, %v1001
      %v1250 = vadd.f32 %v1218, %v1002
      %v1251 = vadd.f32 %v1219, %v1003
      %v1252 = vadd.f32 %v1220, %v1004
      %v1253 = vadd.f32 %v1221, %v1005
      %v1254 = vadd.f32 %v1222, %v1006
      %v1255 = vadd.f32 %v1223, %v1007
      %v1256 = vadd.f32 %v1224, %v1008
      %v1257 = vadd.f32 %v1225, %v1009
      %v1258 = vadd.f32 %v1226, %v1010
      %v1259 = vadd.f32 %v1227, %v1011
      %v1260 = vadd.f32 %v1228, %v1012
      %v1261 = vadd.f32 %v1229, %v1013
      %v1262 = vadd.f32 %v1230, %v1014
      %v1263 = vadd.f32 %v1231, %v1015
      %v1264 = vadd.f32 %v1232, %v1016
      %v1265 = vadd.f32 %v1233, %v1017
      %v1266 = vadd.f32 %v1234, %v1018
      %v1267 = vadd.f32 %v1235, %v1019
      %v1268 = vadd.f32 %v1236, %v1020
      %v1269 = vadd.f32 %v1237, %v1021
      %v1270 = vadd.f32 %v1238, %v1022
      %v1271 = vadd.f32 %v1239, %v1023
      %v1272 = vmax.f32 %v1240, %v1241
      %1273 = vmax.xlane.f32.xlu0 %v1272
      %v1274 = vpop.xlane.xlu0 %1273
      %v1275 = vmax.f32 %v1242, %v1243
      %1276 = vmax.xlane.f32.xlu0 %v1275
      %v1277 = vpop.xlane.xlu0 %1276
      %v1278 = vmax.f32 %v1244, %v1245
      %1279 = vmax.xlane.f32.xlu0 %v1278
      %v1280 = vpop.xlane.xlu0 %1279
      %v1281 = vmax.f32 %v1246, %v1247
      %1282 = vmax.xlane.f32.xlu0 %v1281
      %v1283 = vpop.xlane.xlu0 %1282
      %v1284 = vmax.f32 %v1248, %v1249
      %1285 = vmax.xlane.f32.xlu0 %v1284
      %v1286 = vpop.xlane.xlu0 %1285
      %v1287 = vmax.f32 %v1250, %v1251
      %1288 = vmax.xlane.f32.xlu0 %v1287
      %v1289 = vpop.xlane.xlu0 %1288
      %v1290 = vmax.f32 %v1252, %v1253
      %1291 = vmax.xlane.f32.xlu0 %v1290
      %v1292 = vpop.xlane.xlu0 %1291
      %v1293 = vmax.f32 %v1254, %v1255
      %1294 = vmax.xlane.f32.xlu0 %v1293
      %v1295 = vpop.xlane.xlu0 %1294
      %v1296 = vmax.f32 %v1256, %v1257
      %1297 = vmax.xlane.f32.xlu0 %v1296
      %v1298 = vpop.xlane.xlu0 %1297
      %v1299 = vmax.f32 %v1258, %v1259
      %1300 = vmax.xlane.f32.xlu0 %v1299
      %v1301 = vpop.xlane.xlu0 %1300
      %v1302 = vmax.f32 %v1260, %v1261
      %1303 = vmax.xlane.f32.xlu0 %v1302
      %v1304 = vpop.xlane.xlu0 %1303
      %v1305 = vmax.f32 %v1262, %v1263
      %1306 = vmax.xlane.f32.xlu0 %v1305
      %v1307 = vpop.xlane.xlu0 %1306
      %v1308 = vmax.f32 %v1264, %v1265
      %1309 = vmax.xlane.f32.xlu0 %v1308
      %v1310 = vpop.xlane.xlu0 %1309
      %v1311 = vmax.f32 %v1266, %v1267
      %1312 = vmax.xlane.f32.xlu0 %v1311
      %v1313 = vpop.xlane.xlu0 %1312
      %v1314 = vmax.f32 %v1268, %v1269
      %1315 = vmax.xlane.f32.xlu0 %v1314
      %v1316 = vpop.xlane.xlu0 %1315
      %v1317 = vmax.f32 %v1270, %v1271
      %1318 = vmax.xlane.f32.xlu0 %v1317
      %v1319 = vpop.xlane.xlu0 %1318
      %v1320 = vsub.f32 %v1240, %v1274
      %v1321 = vsub.f32 %v1241, %v1274
      %v1322 = vsub.f32 %v1242, %v1277
      %v1323 = vsub.f32 %v1243, %v1277
      %v1324 = vsub.f32 %v1244, %v1280
      %v1325 = vsub.f32 %v1245, %v1280
      %v1326 = vsub.f32 %v1246, %v1283
      %v1327 = vsub.f32 %v1247, %v1283
      %v1328 = vsub.f32 %v1248, %v1286
      %v1329 = vsub.f32 %v1249, %v1286
      %v1330 = vsub.f32 %v1250, %v1289
      %v1331 = vsub.f32 %v1251, %v1289
      %v1332 = vsub.f32 %v1252, %v1292
      %v1333 = vsub.f32 %v1253, %v1292
      %v1334 = vsub.f32 %v1254, %v1295
      %v1335 = vsub.f32 %v1255, %v1295
      %v1336 = vsub.f32 %v1256, %v1298
      %v1337 = vsub.f32 %v1257, %v1298
      %v1338 = vsub.f32 %v1258, %v1301
      %v1339 = vsub.f32 %v1259, %v1301
      %v1340 = vsub.f32 %v1260, %v1304
      %v1341 = vsub.f32 %v1261, %v1304
      %v1342 = vsub.f32 %v1262, %v1307
      %v1343 = vsub.f32 %v1263, %v1307
      %v1344 = vsub.f32 %v1264, %v1310
      %v1345 = vsub.f32 %v1265, %v1310
      %v1346 = vsub.f32 %v1266, %v1313
      %v1347 = vsub.f32 %v1267, %v1313
      %v1348 = vsub.f32 %v1268, %v1316
      %v1349 = vsub.f32 %v1269, %v1316
      %v1350 = vsub.f32 %v1270, %v1319
      %v1351 = vsub.f32 %v1271, %v1319
      %v1352 = vmul.f32 %v1320, 1.442695
      %v1353 = vpow.pop %v1352
      %v1354 = vmul.f32 %v1321, 1.442695
      %v1355 = vpow.pop %v1354
      %v1356 = vmul.f32 %v1322, 1.442695
      %v1357 = vpow.pop %v1356
      %v1358 = vmul.f32 %v1323, 1.442695
      %v1359 = vpow.pop %v1358
      %v1360 = vmul.f32 %v1324, 1.442695
      %v1361 = vpow.pop %v1360
      %v1362 = vmul.f32 %v1325, 1.442695
      %v1363 = vpow.pop %v1362
      %v1364 = vmul.f32 %v1326, 1.442695
      %v1365 = vpow.pop %v1364
      %v1366 = vmul.f32 %v1327, 1.442695
      %v1367 = vpow.pop %v1366
      %v1368 = vmul.f32 %v1328, 1.442695
      %v1369 = vpow.pop %v1368
      %v1370 = vmul.f32 %v1329, 1.442695
      %v1371 = vpow.pop %v1370
      %v1372 = vmul.f32 %v1330, 1.442695
      %v1373 = vpow.pop %v1372
      %v1374 = vmul.f32 %v1331, 1.442695
      %v1375 = vpow.pop %v1374
      %v1376 = vmul.f32 %v1332, 1.442695
      %v1377 = vpow.pop %v1376
      %v1378 = vmul.f32 %v1333, 1.442695
      %v1379 = vpow.pop %v1378
      %v1380 = vmul.f32 %v1334, 1.442695
      %v1381 = vpow.pop %v1380
      %v1382 = vmul.f32 %v1335, 1.442695
      %v1383 = vpow.pop %v1382
      %v1384 = vmul.f32 %v1336, 1.442695
      %v1385 = vpow.pop %v1384
      %v1386 = vmul.f32 %v1337, 1.442695
      %v1387 = vpow.pop %v1386
      %v1388 = vmul.f32 %v1338, 1.442695
      %v1389 = vpow.pop %v1388
      %v1390 = vmul.f32 %v1339, 1.442695
      %v1391 = vpow.pop %v1390
      %v1392 = vmul.f32 %v1340, 1.442695
      %v1393 = vpow.pop %v1392
      %v1394 = vmul.f32 %v1341, 1.442695
      %v1395 = vpow.pop %v1394
      %v1396 = vmul.f32 %v1342, 1.442695
      %v1397 = vpow.pop %v1396
      %v1398 = vmul.f32 %v1343, 1.442695
      %v1399 = vpow.pop %v1398
      %v1400 = vmul.f32 %v1344, 1.442695
      %v1401 = vpow.pop %v1400
      %v1402 = vmul.f32 %v1345, 1.442695
      %v1403 = vpow.pop %v1402
      %v1404 = vmul.f32 %v1346, 1.442695
      %v1405 = vpow.pop %v1404
      %v1406 = vmul.f32 %v1347, 1.442695
      %v1407 = vpow.pop %v1406
      %v1408 = vmul.f32 %v1348, 1.442695
      %v1409 = vpow.pop %v1408
      %v1410 = vmul.f32 %v1349, 1.442695
      %v1411 = vpow.pop %v1410
      %v1412 = vmul.f32 %v1350, 1.442695
      %v1413 = vpow.pop %v1412
      %v1414 = vmul.f32 %v1351, 1.442695
      %v1415 = vpow.pop %v1414
      %v1416 = vadd.f32 %v1353, %v1355
      %1417 = vadd.xlane.f32.xlu0 %v1416
      %v1418 = vpop.xlane.xlu0 %1417
      %v1419 = vadd.f32 %v1357, %v1359
      %1420 = vadd.xlane.f32.xlu0 %v1419
      %v1421 = vpop.xlane.xlu0 %1420
      %v1422 = vadd.f32 %v1361, %v1363
      %1423 = vadd.xlane.f32.xlu0 %v1422
      %v1424 = vpop.xlane.xlu0 %1423
      %v1425 = vadd.f32 %v1365, %v1367
      %1426 = vadd.xlane.f32.xlu0 %v1425
      %v1427 = vpop.xlane.xlu0 %1426
      %v1428 = vadd.f32 %v1369, %v1371
      %1429 = vadd.xlane.f32.xlu0 %v1428
      %v1430 = vpop.xlane.xlu0 %1429
      %v1431 = vadd.f32 %v1373, %v1375
      %1432 = vadd.xlane.f32.xlu0 %v1431
      %v1433 = vpop.xlane.xlu0 %1432
      %v1434 = vadd.f32 %v1377, %v1379
      %1435 = vadd.xlane.f32.xlu0 %v1434
      %v1436 = vpop.xlane.xlu0 %1435
      %v1437 = vadd.f32 %v1381, %v1383
      %1438 = vadd.xlane.f32.xlu0 %v1437
      %v1439 = vpop.xlane.xlu0 %1438
      %v1440 = vadd.f32 %v1385, %v1387
      %1441 = vadd.xlane.f32.xlu0 %v1440
      %v1442 = vpop.xlane.xlu0 %1441
      %v1443 = vadd.f32 %v1389, %v1391
      %1444 = vadd.xlane.f32.xlu0 %v1443
      %v1445 = vpop.xlane.xlu0 %1444
      %v1446 = vadd.f32 %v1393, %v1395
      %1447 = vadd.xlane.f32.xlu0 %v1446
      %v1448 = vpop.xlane.xlu0 %1447
      %v1449 = vadd.f32 %v1397, %v1399
      %1450 = vadd.xlane.f32.xlu0 %v1449
      %v1451 = vpop.xlane.xlu0 %1450
      %v1452 = vadd.f32 %v1401, %v1403
      %1453 = vadd.xlane.f32.xlu0 %v1452
      %v1454 = vpop.xlane.xlu0 %1453
      %v1455 = vadd.f32 %v1405, %v1407
      %1456 = vadd.xlane.f32.xlu0 %v1455
      %v1457 = vpop.xlane.xlu0 %1456
      %v1458 = vadd.f32 %v1409, %v1411
      %1459 = vadd.xlane.f32.xlu0 %v1458
      %v1460 = vpop.xlane.xlu0 %1459
      %v1461 = vadd.f32 %v1413, %v1415
      %1462 = vadd.xlane.f32.xlu0 %v1461
      %v1463 = vpop.xlane.xlu0 %1462
      %v1464 = vrcp.pop %v1418
      %v1465 = vrcp.pop %v1421
      %v1466 = vrcp.pop %v1424
      %v1467 = vrcp.pop %v1427
      %v1468 = vrcp.pop %v1430
      %v1469 = vrcp.pop %v1433
      %v1470 = vrcp.pop %v1436
      %v1471 = vrcp.pop %v1439
      %v1472 = vrcp.pop %v1442
      %v1473 = vrcp.pop %v1445
      %v1474 = vrcp.pop %v1448
      %v1475 = vrcp.pop %v1451
      %v1476 = vrcp.pop %v1454
      %v1477 = vrcp.pop %v1457
      %v1478 = vrcp.pop %v1460
      %v1479 = vrcp.pop %v1463
      %v1480 = vmul.f32 %v1353, %v1464
      %v1481 = vmul.f32 %v1355, %v1464
      %v1482 = vmul.f32 %v1357, %v1465
      %v1483 = vmul.f32 %v1359, %v1465
      %v1484 = vmul.f32 %v1361, %v1466
      %v1485 = vmul.f32 %v1363, %v1466
      %v1486 = vmul.f32 %v1365, %v1467
      %v1487 = vmul.f32 %v1367, %v1467
      %v1488 = vmul.f32 %v1369, %v1468
      %v1489 = vmul.f32 %v1371, %v1468
      %v1490 = vmul.f32 %v1373, %v1469
      %v1491 = vmul.f32 %v1375, %v1469
      %v1492 = vmul.f32 %v1377, %v1470
      %v1493 = vmul.f32 %v1379, %v1470
      %v1494 = vmul.f32 %v1381, %v1471
      %v1495 = vmul.f32 %v1383, %v1471
      %v1496 = vmul.f32 %v1385, %v1472
      %v1497 = vmul.f32 %v1387, %v1472
      %v1498 = vmul.f32 %v1389, %v1473
      %v1499 = vmul.f32 %v1391, %v1473
      %v1500 = vmul.f32 %v1393, %v1474
      %v1501 = vmul.f32 %v1395, %v1474
      %v1502 = vmul.f32 %v1397, %v1475
      %v1503 = vmul.f32 %v1399, %v1475
      %v1504 = vmul.f32 %v1401, %v1476
      %v1505 = vmul.f32 %v1403, %v1476
      %v1506 = vmul.f32 %v1405, %v1477
      %v1507 = vmul.f32 %v1407, %v1477
      %v1508 = vmul.f32 %v1409, %v1478
      %v1509 = vmul.f32 %v1411, %v1478
      %v1510 = vmul.f32 %v1413, %v1479
      %v1511 = vmul.f32 %v1415, %v1479
      %v1512 = vpack.c.bf16 %v1482, %v1480
      %v1513 = vpack.c.bf16 %v1483, %v1481
      %v1514 = vpack.c.bf16 %v1486, %v1484
      %v1515 = vpack.c.bf16 %v1487, %v1485
      %v1516 = vpack.c.bf16 %v1490, %v1488
      %v1517 = vpack.c.bf16 %v1491, %v1489
      %v1518 = vpack.c.bf16 %v1494, %v1492
      %v1519 = vpack.c.bf16 %v1495, %v1493
      %v1520 = vpack.c.bf16 %v1498, %v1496
      %v1521 = vpack.c.bf16 %v1499, %v1497
      %v1522 = vpack.c.bf16 %v1502, %v1500
      %v1523 = vpack.c.bf16 %v1503, %v1501
      %v1524 = vpack.c.bf16 %v1506, %v1504
      %v1525 = vpack.c.bf16 %v1507, %v1505
      %v1526 = vpack.c.bf16 %v1510, %v1508
      %v1527 = vpack.c.bf16 %v1511, %v1509
      %1528 = vmatprep.subr.bf16.mxu0 0
      %1529 = vmatpush1.bf16.msra.mxu0 %v613
      %1530 = vmatprep.subr.bf16.mxu0 0
      %1531 = vmatpush1.bf16.msra.mxu0 %v614
      %1532 = vmatprep.subr.bf16.mxu0 0
      %1533 = vmatpush1.bf16.msra.mxu0 %v615
      %1534 = vmatprep.subr.bf16.mxu0 0
      %1535 = vmatpush1.bf16.msra.mxu0 %v616
      %1536 = vmatprep.subr.bf16.mxu0 0
      %1537 = vmatpush1.bf16.msra.mxu0 %v617
      %1538 = vmatprep.subr.bf16.mxu0 0
      %1539 = vmatpush1.bf16.msra.mxu0 %v618
      %1540 = vmatprep.subr.bf16.mxu0 0
      %1541 = vmatpush1.bf16.msra.mxu0 %v619
      %1542 = vmatprep.subr.bf16.mxu0 0
      %1543 = vmatpush1.bf16.msra.mxu0 %v620
      %1544 = vmatprep.subr.bf16.mxu0 0
      %1545 = vmatpush1.bf16.msra.mxu0 %v621
      %1546 = vmatprep.subr.bf16.mxu0 0
      %1547 = vmatpush1.bf16.msra.mxu0 %v622
      %1548 = vmatprep.subr.bf16.mxu0 0
      %1549 = vmatpush1.bf16.msra.mxu0 %v623
      %1550 = vmatprep.subr.bf16.mxu0 0
      %1551 = vmatpush1.bf16.msra.mxu0 %v624
      %1552 = vmatprep.subr.bf16.mxu0 0
      %1553 = vmatpush1.bf16.msra.mxu0 %v625
      %1554 = vmatprep.subr.bf16.mxu0 0
      %1555 = vmatpush1.bf16.msra.mxu0 %v626
      %1556 = vmatprep.subr.bf16.mxu0 0
      %1557 = vmatpush1.bf16.msra.mxu0 %v627
      %1558 = vmatprep.subr.bf16.mxu0 0
      %1559 = vmatpush1.bf16.msra.mxu0 %v628
      %1560 = vmatprep.mubr.bf16.mxu0 %v1513
      %1561 = vmatmul.mubr.bf16.gmra.mrb[0].mxu0 %v1512
      %v1562 = vpop.f32.mrb[0].mxu0
      %v1563 = vadd.f32 0.0, %v1562
      %v1564 = vpop.f32.mrb[0].mxu0
      %v1565 = vpop.f32.mrb[0].mxu0
      %v1566 = vadd.f32 0.0, %v1565
      %v1567 = vpop.f32.mrb[0].mxu0
      %1568 = vmatprep.mubr.bf16.mxu0 %v1515
      %1569 = vmatmul.mubr.bf16.gmra.mrb[0].mxu0 %v1514
      %v1570 = vpop.f32.mrb[0].mxu0
      %v1571 = vadd.f32 0.0, %v1570
      %v1572 = vpop.f32.mrb[0].mxu0
      %v1573 = vpop.f32.mrb[0].mxu0
      %v1574 = vadd.f32 0.0, %v1573
      %v1575 = vpop.f32.mrb[0].mxu0
      %1576 = vmatprep.mubr.bf16.mxu0 %v1517
      %1577 = vmatmul.mubr.bf16.gmra.mrb[0].mxu0 %v1516
      %v1578 = vpop.f32.mrb[0].mxu0
      %v1579 = vadd.f32 0.0, %v1578
      %v1580 = vpop.f32.mrb[0].mxu0
      %v1581 = vpop.f32.mrb[0].mxu0
      %v1582 = vadd.f32 0.0, %v1581
      %v1583 = vpop.f32.mrb[0].mxu0
      %1584 = vmatprep.mubr.bf16.mxu0 %v1519
      %1585 = vmatmul.mubr.bf16.gmra.mrb[0].mxu0 %v1518
      %v1586 = vpop.f32.mrb[0].mxu0
      %v1587 = vadd.f32 0.0, %v1586
      %v1588 = vpop.f32.mrb[0].mxu0
      %v1589 = vpop.f32.mrb[0].mxu0
      %v1590 = vadd.f32 0.0, %v1589
      %v1591 = vpop.f32.mrb[0].mxu0
      %1592 = vmatprep.mubr.bf16.mxu0 %v1521
      %1593 = vmatmul.mubr.bf16.gmra.mrb[0].mxu0 %v1520
      %v1594 = vpop.f32.mrb[0].mxu0
      %v1595 = vadd.f32 0.0, %v1594
      %v1596 = vpop.f32.mrb[0].mxu0
      %v1597 = vpop.f32.mrb[0].mxu0
      %v1598 = vadd.f32 0.0, %v1597
      %v1599 = vpop.f32.mrb[0].mxu0
      %1600 = vmatprep.mubr.bf16.mxu0 %v1523
      %1601 = vmatmul.mubr.bf16.gmra.mrb[0].mxu0 %v1522
      %v1602 = vpop.f32.mrb[0].mxu0
      %v1603 = vadd.f32 0.0, %v1602
      %v1604 = vpop.f32.mrb[0].mxu0
      %v1605 = vpop.f32.mrb[0].mxu0
      %v1606 = vadd.f32 0.0, %v1605
      %v1607 = vpop.f32.mrb[0].mxu0
      %1608 = vmatprep.mubr.bf16.mxu0 %v1525
      %1609 = vmatmul.mubr.bf16.gmra.mrb[0].mxu0 %v1524
      %v1610 = vpop.f32.mrb[0].mxu0
      %v1611 = vadd.f32 0.0, %v1610
      %v1612 = vpop.f32.mrb[0].mxu0
      %v1613 = vpop.f32.mrb[0].mxu0
      %v1614 = vadd.f32 0.0, %v1613
      %v1615 = vpop.f32.mrb[0].mxu0
      %1616 = vmatprep.mubr.bf16.mxu0 %v1527
      %1617 = vmatmul.mubr.bf16.gmra.mrb[0].mxu0 %v1526
      %v1618 = vpop.f32.mrb[0].mxu0
      %v1619 = vadd.f32 0.0, %v1618
      %v1620 = vpop.f32.mrb[0].mxu0
      %v1621 = vpop.f32.mrb[0].mxu0
      %v1622 = vadd.f32 0.0, %v1621
      %v1623 = vpop.f32.mrb[0].mxu0
      %1624 = vdwg.mxu0
      %1625 = vset.pattern.permute.xlu0 1
      %1626 = vperm.xlu0 %1625, %v826
      %v1627 = vpop.permute.xlu0 %1626
      %1629 = vset.pattern.permute.xlu0 1
      %1630 = vperm.xlu0 %1629, %v829
      %v1631 = vpop.permute.xlu0 %1630
      %1633 = vset.pattern.permute.xlu0 1
      %1634 = vperm.xlu0 %1633, %v834
      %v1635 = vpop.permute.xlu0 %1634
      %1637 = vset.pattern.permute.xlu0 1
      %1638 = vperm.xlu0 %1637, %v837
      %v1639 = vpop.permute.xlu0 %1638
      %1641 = vset.pattern.permute.xlu0 1
      %1642 = vperm.xlu0 %1641, %v842
      %v1643 = vpop.permute.xlu0 %1642
      %1645 = vset.pattern.permute.xlu0 1
      %1646 = vperm.xlu0 %1645, %v845
      %v1647 = vpop.permute.xlu0 %1646
      %1649 = vset.pattern.permute.xlu0 1
      %1650 = vperm.xlu0 %1649, %v850
      %v1651 = vpop.permute.xlu0 %1650
      %1653 = vset.pattern.permute.xlu0 1
      %1654 = vperm.xlu0 %1653, %v853
      %v1655 = vpop.permute.xlu0 %1654
      %1657 = vset.pattern.permute.xlu0 1
      %1658 = vperm.xlu0 %1657, %v858
      %v1659 = vpop.permute.xlu0 %1658
      %1661 = vset.pattern.permute.xlu0 1
      %1662 = vperm.xlu0 %1661, %v861
      %v1663 = vpop.permute.xlu0 %1662
      %1665 = vset.pattern.permute.xlu0 1
      %1666 = vperm.xlu0 %1665, %v866
      %v1667 = vpop.permute.xlu0 %1666
      %1669 = vset.pattern.permute.xlu0 1
      %1670 = vperm.xlu0 %1669, %v869
      %v1671 = vpop.permute.xlu0 %1670
      %1673 = vset.pattern.permute.xlu0 1
      %1674 = vperm.xlu0 %1673, %v874
      %v1675 = vpop.permute.xlu0 %1674
      %1677 = vset.pattern.permute.xlu0 1
      %1678 = vperm.xlu0 %1677, %v877
      %v1679 = vpop.permute.xlu0 %1678
      %1681 = vset.pattern.permute.xlu0 1
      %1682 = vperm.xlu0 %1681, %v882
      %v1683 = vpop.permute.xlu0 %1682
      %1685 = vset.pattern.permute.xlu0 1
      %1686 = vperm.xlu0 %1685, %v885
      %v1687 = vpop.permute.xlu0 %1686
      %v1689 = vlaneseq
      %v1690 = vshrl.u32 %v1689, 7
      %v1691 = vsub.s32 1, %v1690
      %v1692 = vrot.slane %v668, %v1691
      %v1693 = vlaneseq
      %v1694 = vshrl.u32 %v1693, 7
      %v1695 = vsub.s32 1, %v1694
      %v1696 = vrot.slane %v670, %v1695
      %v1697 = vadd.f32 %v1627, %v1692
      %v1698 = vadd.f32 %v1627, %v1696
      %v1699 = vadd.f32 %v1631, %v1692
      %v1700 = vadd.f32 %v1631, %v1696
      %v1701 = vadd.f32 %v1635, %v1692
      %v1702 = vadd.f32 %v1635, %v1696
      %v1703 = vadd.f32 %v1639, %v1692
      %v1704 = vadd.f32 %v1639, %v1696
      %v1705 = vadd.f32 %v1643, %v1692
      %v1706 = vadd.f32 %v1643, %v1696
      %v1707 = vadd.f32 %v1647, %v1692
      %v1708 = vadd.f32 %v1647, %v1696
      %v1709 = vadd.f32 %v1651, %v1692
      %v1710 = vadd.f32 %v1651, %v1696
      %v1711 = vadd.f32 %v1655, %v1692
      %v1712 = vadd.f32 %v1655, %v1696
      %v1713 = vadd.f32 %v1659, %v1692
      %v1714 = vadd.f32 %v1659, %v1696
      %v1715 = vadd.f32 %v1663, %v1692
      %v1716 = vadd.f32 %v1663, %v1696
      %v1717 = vadd.f32 %v1667, %v1692
      %v1718 = vadd.f32 %v1667, %v1696
      %v1719 = vadd.f32 %v1671, %v1692
      %v1720 = vadd.f32 %v1671, %v1696
      %v1721 = vadd.f32 %v1675, %v1692
      %v1722 = vadd.f32 %v1675, %v1696
      %v1723 = vadd.f32 %v1679, %v1692
      %v1724 = vadd.f32 %v1679, %v1696
      %v1725 = vadd.f32 %v1683, %v1692
      %v1726 = vadd.f32 %v1683, %v1696
      %v1727 = vadd.f32 %v1687, %v1692
      %v1728 = vadd.f32 %v1687, %v1696
      %vm1729 = vcmp.gt.f32.partialorder %v1697, 0.0
      %vm1730 = vcmp.gt.f32.partialorder %v1698, 0.0
      %vm1731 = vcmp.gt.f32.partialorder %v1699, 0.0
      %vm1732 = vcmp.gt.f32.partialorder %v1700, 0.0
      %vm1733 = vcmp.gt.f32.partialorder %v1701, 0.0
      %vm1734 = vcmp.gt.f32.partialorder %v1702, 0.0
      %vm1735 = vcmp.gt.f32.partialorder %v1703, 0.0
      %vm1736 = vcmp.gt.f32.partialorder %v1704, 0.0
      %vm1737 = vcmp.gt.f32.partialorder %v1705, 0.0
      %vm1738 = vcmp.gt.f32.partialorder %v1706, 0.0
      %vm1739 = vcmp.gt.f32.partialorder %v1707, 0.0
      %vm1740 = vcmp.gt.f32.partialorder %v1708, 0.0
      %vm1741 = vcmp.gt.f32.partialorder %v1709, 0.0
      %vm1742 = vcmp.gt.f32.partialorder %v1710, 0.0
      %vm1743 = vcmp.gt.f32.partialorder %v1711, 0.0
      %vm1744 = vcmp.gt.f32.partialorder %v1712, 0.0
      %vm1745 = vcmp.gt.f32.partialorder %v1713, 0.0
      %vm1746 = vcmp.gt.f32.partialorder %v1714, 0.0
      %vm1747 = vcmp.gt.f32.partialorder %v1715, 0.0
      %vm1748 = vcmp.gt.f32.partialorder %v1716, 0.0
      %vm1749 = vcmp.gt.f32.partialorder %v1717, 0.0
      %vm1750 = vcmp.gt.f32.partialorder %v1718, 0.0
      %vm1751 = vcmp.gt.f32.partialorder %v1719, 0.0
      %vm1752 = vcmp.gt.f32.partialorder %v1720, 0.0
      %vm1753 = vcmp.gt.f32.partialorder %v1721, 0.0
      %vm1754 = vcmp.gt.f32.partialorder %v1722, 0.0
      %vm1755 = vcmp.gt.f32.partialorder %v1723, 0.0
      %vm1756 = vcmp.gt.f32.partialorder %v1724, 0.0
      %vm1757 = vcmp.gt.f32.partialorder %v1725, 0.0
      %vm1758 = vcmp.gt.f32.partialorder %v1726, 0.0
      %vm1759 = vcmp.gt.f32.partialorder %v1727, 0.0
      %vm1760 = vcmp.gt.f32.partialorder %v1728, 0.0
      %v1761 = vmul.f32 %v1697, 0.2
      %v1762 = vmul.f32 %v1698, 0.2
      %v1763 = vmul.f32 %v1699, 0.2
      %v1764 = vmul.f32 %v1700, 0.2
      %v1765 = vmul.f32 %v1701, 0.2
      %v1766 = vmul.f32 %v1702, 0.2
      %v1767 = vmul.f32 %v1703, 0.2
      %v1768 = vmul.f32 %v1704, 0.2
      %v1769 = vmul.f32 %v1705, 0.2
      %v1770 = vmul.f32 %v1706, 0.2
      %v1771 = vmul.f32 %v1707, 0.2
      %v1772 = vmul.f32 %v1708, 0.2
      %v1773 = vmul.f32 %v1709, 0.2
      %v1774 = vmul.f32 %v1710, 0.2
      %v1775 = vmul.f32 %v1711, 0.2
      %v1776 = vmul.f32 %v1712, 0.2
      %v1777 = vmul.f32 %v1713, 0.2
      %v1778 = vmul.f32 %v1714, 0.2
      %v1779 = vmul.f32 %v1715, 0.2
      %v1780 = vmul.f32 %v1716, 0.2
      %v1781 = vmul.f32 %v1717, 0.2
      %v1782 = vmul.f32 %v1718, 0.2
      %v1783 = vmul.f32 %v1719, 0.2
      %v1784 = vmul.f32 %v1720, 0.2
      %v1785 = vmul.f32 %v1721, 0.2
      %v1786 = vmul.f32 %v1722, 0.2
      %v1787 = vmul.f32 %v1723, 0.2
      %v1788 = vmul.f32 %v1724, 0.2
      %v1789 = vmul.f32 %v1725, 0.2
      %v1790 = vmul.f32 %v1726, 0.2
      %v1791 = vmul.f32 %v1727, 0.2
      %v1792 = vmul.f32 %v1728, 0.2
      %v1793 = vsel %vm1729, %v1697, %v1761
      %v1794 = vsel %vm1730, %v1698, %v1762
      %v1795 = vsel %vm1731, %v1699, %v1763
      %v1796 = vsel %vm1732, %v1700, %v1764
      %v1797 = vsel %vm1733, %v1701, %v1765
      %v1798 = vsel %vm1734, %v1702, %v1766
      %v1799 = vsel %vm1735, %v1703, %v1767
      %v1800 = vsel %vm1736, %v1704, %v1768
      %v1801 = vsel %vm1737, %v1705, %v1769
      %v1802 = vsel %vm1738, %v1706, %v1770
      %v1803 = vsel %vm1739, %v1707, %v1771
      %v1804 = vsel %vm1740, %v1708, %v1772
      %v1805 = vsel %vm1741, %v1709, %v1773
      %v1806 = vsel %vm1742, %v1710, %v1774
      %v1807 = vsel %vm1743, %v1711, %v1775
      %v1808 = vsel %vm1744, %v1712, %v1776
      %v1809 = vsel %vm1745, %v1713, %v1777
      %v1810 = vsel %vm1746, %v1714, %v1778
      %v1811 = vsel %vm1747, %v1715, %v1779
      %v1812 = vsel %vm1748, %v1716, %v1780
      %v1813 = vsel %vm1749, %v1717, %v1781
      %v1814 = vsel %vm1750, %v1718, %v1782
      %v1815 = vsel %vm1751, %v1719, %v1783
      %v1816 = vsel %vm1752, %v1720, %v1784
      %v1817 = vsel %vm1753, %v1721, %v1785
      %v1818 = vsel %vm1754, %v1722, %v1786
      %v1819 = vsel %vm1755, %v1723, %v1787
      %v1820 = vsel %vm1756, %v1724, %v1788
      %v1821 = vsel %vm1757, %v1725, %v1789
      %v1822 = vsel %vm1758, %v1726, %v1790
      %v1823 = vsel %vm1759, %v1727, %v1791
      %v1824 = vsel %vm1760, %v1728, %v1792
      %v1825 = vadd.f32 %v1793, %v992
      %v1826 = vadd.f32 %v1794, %v993
      %v1827 = vadd.f32 %v1795, %v994
      %v1828 = vadd.f32 %v1796, %v995
      %v1829 = vadd.f32 %v1797, %v996
      %v1830 = vadd.f32 %v1798, %v997
      %v1831 = vadd.f32 %v1799, %v998
      %v1832 = vadd.f32 %v1800, %v999
      %v1833 = vadd.f32 %v1801, %v1000
      %v1834 = vadd.f32 %v1802, %v1001
      %v1835 = vadd.f32 %v1803, %v1002
      %v1836 = vadd.f32 %v1804, %v1003
      %v1837 = vadd.f32 %v1805, %v1004
      %v1838 = vadd.f32 %v1806, %v1005
      %v1839 = vadd.f32 %v1807, %v1006
      %v1840 = vadd.f32 %v1808, %v1007
      %v1841 = vadd.f32 %v1809, %v1008
      %v1842 = vadd.f32 %v1810, %v1009
      %v1843 = vadd.f32 %v1811, %v1010
      %v1844 = vadd.f32 %v1812, %v1011
      %v1845 = vadd.f32 %v1813, %v1012
      %v1846 = vadd.f32 %v1814, %v1013
      %v1847 = vadd.f32 %v1815, %v1014
      %v1848 = vadd.f32 %v1816, %v1015
      %v1849 = vadd.f32 %v1817, %v1016
      %v1850 = vadd.f32 %v1818, %v1017
      %v1851 = vadd.f32 %v1819, %v1018
      %v1852 = vadd.f32 %v1820, %v1019
      %v1853 = vadd.f32 %v1821, %v1020
      %v1854 = vadd.f32 %v1822, %v1021
      %v1855 = vadd.f32 %v1823, %v1022
      %v1856 = vadd.f32 %v1824, %v1023
      %v1857 = vmax.f32 %v1825, %v1826
      %1858 = vmax.xlane.f32.xlu0 %v1857
      %v1859 = vpop.xlane.xlu0 %1858
      %v1860 = vmax.f32 %v1827, %v1828
      %1861 = vmax.xlane.f32.xlu0 %v1860
      %v1862 = vpop.xlane.xlu0 %1861
      %v1863 = vmax.f32 %v1829, %v1830
      %1864 = vmax.xlane.f32.xlu0 %v1863
      %v1865 = vpop.xlane.xlu0 %1864
      %v1866 = vmax.f32 %v1831, %v1832
      %1867 = vmax.xlane.f32.xlu0 %v1866
      %v1868 = vpop.xlane.xlu0 %1867
      %v1869 = vmax.f32 %v1833, %v1834
      %1870 = vmax.xlane.f32.xlu0 %v1869
      %v1871 = vpop.xlane.xlu0 %1870
      %v1872 = vmax.f32 %v1835, %v1836
      %1873 = vmax.xlane.f32.xlu0 %v1872
      %v1874 = vpop.xlane.xlu0 %1873
      %v1875 = vmax.f32 %v1837, %v1838
      %1876 = vmax.xlane.f32.xlu0 %v1875
      %v1877 = vpop.xlane.xlu0 %1876
      %v1878 = vmax.f32 %v1839, %v1840
      %1879 = vmax.xlane.f32.xlu0 %v1878
      %v1880 = vpop.xlane.xlu0 %1879
      %v1881 = vmax.f32 %v1841, %v1842
      %1882 = vmax.xlane.f32.xlu0 %v1881
      %v1883 = vpop.xlane.xlu0 %1882
      %v1884 = vmax.f32 %v1843, %v1844
      %1885 = vmax.xlane.f32.xlu0 %v1884
      %v1886 = vpop.xlane.xlu0 %1885
      %v1887 = vmax.f32 %v1845, %v1846
      %1888 = vmax.xlane.f32.xlu0 %v1887
      %v1889 = vpop.xlane.xlu0 %1888
      %v1890 = vmax.f32 %v1847, %v1848
      %1891 = vmax.xlane.f32.xlu0 %v1890
      %v1892 = vpop.xlane.xlu0 %1891
      %v1893 = vmax.f32 %v1849, %v1850
      %1894 = vmax.xlane.f32.xlu0 %v1893
      %v1895 = vpop.xlane.xlu0 %1894
      %v1896 = vmax.f32 %v1851, %v1852
      %1897 = vmax.xlane.f32.xlu0 %v1896
      %v1898 = vpop.xlane.xlu0 %1897
      %v1899 = vmax.f32 %v1853, %v1854
      %1900 = vmax.xlane.f32.xlu0 %v1899
      %v1901 = vpop.xlane.xlu0 %1900
      %v1902 = vmax.f32 %v1855, %v1856
      %1903 = vmax.xlane.f32.xlu0 %v1902
      %v1904 = vpop.xlane.xlu0 %1903
      %v1905 = vsub.f32 %v1825, %v1859
      %v1906 = vsub.f32 %v1826, %v1859
      %v1907 = vsub.f32 %v1827, %v1862
      %v1908 = vsub.f32 %v1828, %v1862
      %v1909 = vsub.f32 %v1829, %v1865
      %v1910 = vsub.f32 %v1830, %v1865
      %v1911 = vsub.f32 %v1831, %v1868
      %v1912 = vsub.f32 %v1832, %v1868
      %v1913 = vsub.f32 %v1833, %v1871
      %v1914 = vsub.f32 %v1834, %v1871
      %v1915 = vsub.f32 %v1835, %v1874
      %v1916 = vsub.f32 %v1836, %v1874
      %v1917 = vsub.f32 %v1837, %v1877
      %v1918 = vsub.f32 %v1838, %v1877
      %v1919 = vsub.f32 %v1839, %v1880
      %v1920 = vsub.f32 %v1840, %v1880
      %v1921 = vsub.f32 %v1841, %v1883
      %v1922 = vsub.f32 %v1842, %v1883
      %v1923 = vsub.f32 %v1843, %v1886
      %v1924 = vsub.f32 %v1844, %v1886
      %v1925 = vsub.f32 %v1845, %v1889
      %v1926 = vsub.f32 %v1846, %v1889
      %v1927 = vsub.f32 %v1847, %v1892
      %v1928 = vsub.f32 %v1848, %v1892
      %v1929 = vsub.f32 %v1849, %v1895
      %v1930 = vsub.f32 %v1850, %v1895
      %v1931 = vsub.f32 %v1851, %v1898
      %v1932 = vsub.f32 %v1852, %v1898
      %v1933 = vsub.f32 %v1853, %v1901
      %v1934 = vsub.f32 %v1854, %v1901
      %v1935 = vsub.f32 %v1855, %v1904
      %v1936 = vsub.f32 %v1856, %v1904
      %v1937 = vmul.f32 %v1905, 1.442695
      %v1938 = vpow.pop %v1937
      %v1939 = vmul.f32 %v1906, 1.442695
      %v1940 = vpow.pop %v1939
      %v1941 = vmul.f32 %v1907, 1.442695
      %v1942 = vpow.pop %v1941
      %v1943 = vmul.f32 %v1908, 1.442695
      %v1944 = vpow.pop %v1943
      %v1945 = vmul.f32 %v1909, 1.442695
      %v1946 = vpow.pop %v1945
      %v1947 = vmul.f32 %v1910, 1.442695
      %v1948 = vpow.pop %v1947
      %v1949 = vmul.f32 %v1911, 1.442695
      %v1950 = vpow.pop %v1949
      %v1951 = vmul.f32 %v1912, 1.442695
      %v1952 = vpow.pop %v1951
      %v1953 = vmul.f32 %v1913, 1.442695
      %v1954 = vpow.pop %v1953
      %v1955 = vmul.f32 %v1914, 1.442695
      %v1956 = vpow.pop %v1955
      %v1957 = vmul.f32 %v1915, 1.442695
      %v1958 = vpow.pop %v1957
      %v1959 = vmul.f32 %v1916, 1.442695
      %v1960 = vpow.pop %v1959
      %v1961 = vmul.f32 %v1917, 1.442695
      %v1962 = vpow.pop %v1961
      %v1963 = vmul.f32 %v1918, 1.442695
      %v1964 = vpow.pop %v1963
      %v1965 = vmul.f32 %v1919, 1.442695
      %v1966 = vpow.pop %v1965
      %v1967 = vmul.f32 %v1920, 1.442695
      %v1968 = vpow.pop %v1967
      %v1969 = vmul.f32 %v1921, 1.442695
      %v1970 = vpow.pop %v1969
      %v1971 = vmul.f32 %v1922, 1.442695
      %v1972 = vpow.pop %v1971
      %v1973 = vmul.f32 %v1923, 1.442695
      %v1974 = vpow.pop %v1973
      %v1975 = vmul.f32 %v1924, 1.442695
      %v1976 = vpow.pop %v1975
      %v1977 = vmul.f32 %v1925, 1.442695
      %v1978 = vpow.pop %v1977
      %v1979 = vmul.f32 %v1926, 1.442695
      %v1980 = vpow.pop %v1979
      %v1981 = vmul.f32 %v1927, 1.442695
      %v1982 = vpow.pop %v1981
      %v1983 = vmul.f32 %v1928, 1.442695
      %v1984 = vpow.pop %v1983
      %v1985 = vmul.f32 %v1929, 1.442695
      %v1986 = vpow.pop %v1985
      %v1987 = vmul.f32 %v1930, 1.442695
      %v1988 = vpow.pop %v1987
      %v1989 = vmul.f32 %v1931, 1.442695
      %v1990 = vpow.pop %v1989
      %v1991 = vmul.f32 %v1932, 1.442695
      %v1992 = vpow.pop %v1991
      %v1993 = vmul.f32 %v1933, 1.442695
      %v1994 = vpow.pop %v1993
      %v1995 = vmul.f32 %v1934, 1.442695
      %v1996 = vpow.pop %v1995
      %v1997 = vmul.f32 %v1935, 1.442695
      %v1998 = vpow.pop %v1997
      %v1999 = vmul.f32 %v1936, 1.442695
      %v2000 = vpow.pop %v1999
      %v2001 = vadd.f32 %v1938, %v1940
      %2002 = vadd.xlane.f32.xlu0 %v2001
      %v2003 = vpop.xlane.xlu0 %2002
      %v2004 = vadd.f32 %v1942, %v1944
      %2005 = vadd.xlane.f32.xlu0 %v2004
      %v2006 = vpop.xlane.xlu0 %2005
      %v2007 = vadd.f32 %v1946, %v1948
      %2008 = vadd.xlane.f32.xlu0 %v2007
      %v2009 = vpop.xlane.xlu0 %2008
      %v2010 = vadd.f32 %v1950, %v1952
      %2011 = vadd.xlane.f32.xlu0 %v2010
      %v2012 = vpop.xlane.xlu0 %2011
      %v2013 = vadd.f32 %v1954, %v1956
      %2014 = vadd.xlane.f32.xlu0 %v2013
      %v2015 = vpop.xlane.xlu0 %2014
      %v2016 = vadd.f32 %v1958, %v1960
      %2017 = vadd.xlane.f32.xlu0 %v2016
      %v2018 = vpop.xlane.xlu0 %2017
      %v2019 = vadd.f32 %v1962, %v1964
      %2020 = vadd.xlane.f32.xlu0 %v2019
      %v2021 = vpop.xlane.xlu0 %2020
      %v2022 = vadd.f32 %v1966, %v1968
      %2023 = vadd.xlane.f32.xlu0 %v2022
      %v2024 = vpop.xlane.xlu0 %2023
      %v2025 = vadd.f32 %v1970, %v1972
      %2026 = vadd.xlane.f32.xlu0 %v2025
      %v2027 = vpop.xlane.xlu0 %2026
      %v2028 = vadd.f32 %v1974, %v1976
      %2029 = vadd.xlane.f32.xlu0 %v2028
      %v2030 = vpop.xlane.xlu0 %2029
      %v2031 = vadd.f32 %v1978, %v1980
      %2032 = vadd.xlane.f32.xlu0 %v2031
      %v2033 = vpop.xlane.xlu0 %2032
      %v2034 = vadd.f32 %v1982, %v1984
      %2035 = vadd.xlane.f32.xlu0 %v2034
      %v2036 = vpop.xlane.xlu0 %2035
      %v2037 = vadd.f32 %v1986, %v1988
      %2038 = vadd.xlane.f32.xlu0 %v2037
      %v2039 = vpop.xlane.xlu0 %2038
      %v2040 = vadd.f32 %v1990, %v1992
      %2041 = vadd.xlane.f32.xlu0 %v2040
      %v2042 = vpop.xlane.xlu0 %2041
      %v2043 = vadd.f32 %v1994, %v1996
      %2044 = vadd.xlane.f32.xlu0 %v2043
      %v2045 = vpop.xlane.xlu0 %2044
      %v2046 = vadd.f32 %v1998, %v2000
      %2047 = vadd.xlane.f32.xlu0 %v2046
      %v2048 = vpop.xlane.xlu0 %2047
      %v2049 = vrcp.pop %v2003
      %v2050 = vrcp.pop %v2006
      %v2051 = vrcp.pop %v2009
      %v2052 = vrcp.pop %v2012
      %v2053 = vrcp.pop %v2015
      %v2054 = vrcp.pop %v2018
      %v2055 = vrcp.pop %v2021
      %v2056 = vrcp.pop %v2024
      %v2057 = vrcp.pop %v2027
      %v2058 = vrcp.pop %v2030
      %v2059 = vrcp.pop %v2033
      %v2060 = vrcp.pop %v2036
      %v2061 = vrcp.pop %v2039
      %v2062 = vrcp.pop %v2042
      %v2063 = vrcp.pop %v2045
      %v2064 = vrcp.pop %v2048
      %v2065 = vmul.f32 %v1938, %v2049
      %v2066 = vmul.f32 %v1940, %v2049
      %v2067 = vmul.f32 %v1942, %v2050
      %v2068 = vmul.f32 %v1944, %v2050
      %v2069 = vmul.f32 %v1946, %v2051
      %v2070 = vmul.f32 %v1948, %v2051
      %v2071 = vmul.f32 %v1950, %v2052
      %v2072 = vmul.f32 %v1952, %v2052
      %v2073 = vmul.f32 %v1954, %v2053
      %v2074 = vmul.f32 %v1956, %v2053
      %v2075 = vmul.f32 %v1958, %v2054
      %v2076 = vmul.f32 %v1960, %v2054
      %v2077 = vmul.f32 %v1962, %v2055
      %v2078 = vmul.f32 %v1964, %v2055
      %v2079 = vmul.f32 %v1966, %v2056
      %v2080 = vmul.f32 %v1968, %v2056
      %v2081 = vmul.f32 %v1970, %v2057
      %v2082 = vmul.f32 %v1972, %v2057
      %v2083 = vmul.f32 %v1974, %v2058
      %v2084 = vmul.f32 %v1976, %v2058
      %v2085 = vmul.f32 %v1978, %v2059
      %v2086 = vmul.f32 %v1980, %v2059
      %v2087 = vmul.f32 %v1982, %v2060
      %v2088 = vmul.f32 %v1984, %v2060
      %v2089 = vmul.f32 %v1986, %v2061
      %v2090 = vmul.f32 %v1988, %v2061
      %v2091 = vmul.f32 %v1990, %v2062
      %v2092 = vmul.f32 %v1992, %v2062
      %v2093 = vmul.f32 %v1994, %v2063
      %v2094 = vmul.f32 %v1996, %v2063
      %v2095 = vmul.f32 %v1998, %v2064
      %v2096 = vmul.f32 %v2000, %v2064
      %v2097 = vpack.c.bf16 %v2067, %v2065
      %v2098 = vpack.c.bf16 %v2068, %v2066
      %v2099 = vpack.c.bf16 %v2071, %v2069
      %v2100 = vpack.c.bf16 %v2072, %v2070
      %v2101 = vpack.c.bf16 %v2075, %v2073
      %v2102 = vpack.c.bf16 %v2076, %v2074
      %v2103 = vpack.c.bf16 %v2079, %v2077
      %v2104 = vpack.c.bf16 %v2080, %v2078
      %v2105 = vpack.c.bf16 %v2083, %v2081
      %v2106 = vpack.c.bf16 %v2084, %v2082
      %v2107 = vpack.c.bf16 %v2087, %v2085
      %v2108 = vpack.c.bf16 %v2088, %v2086
      %v2109 = vpack.c.bf16 %v2091, %v2089
      %v2110 = vpack.c.bf16 %v2092, %v2090
      %v2111 = vpack.c.bf16 %v2095, %v2093
      %v2112 = vpack.c.bf16 %v2096, %v2094
      %2129 = vrot.lane.b32.xlu0 %v613, 120
      %v2130 = vpop.permute.xlu0 %2129
      %2131 = vrot.lane.b32.xlu0 %v614, 120
      %v2132 = vpop.permute.xlu0 %2131
      %2133 = vrot.lane.b32.xlu0 %v615, 120
      %v2134 = vpop.permute.xlu0 %2133
      %2135 = vrot.lane.b32.xlu0 %v616, 120
      %v2136 = vpop.permute.xlu0 %2135
      %2137 = vrot.lane.b32.xlu0 %v617, 120
      %v2138 = vpop.permute.xlu0 %2137
      %2139 = vrot.lane.b32.xlu0 %v618, 120
      %v2140 = vpop.permute.xlu0 %2139
      %2141 = vrot.lane.b32.xlu0 %v619, 120
      %v2142 = vpop.permute.xlu0 %2141
      %2143 = vrot.lane.b32.xlu0 %v620, 120
      %v2144 = vpop.permute.xlu0 %2143
      %2145 = vrot.lane.b32.xlu0 %v621, 120
      %v2146 = vpop.permute.xlu0 %2145
      %2147 = vrot.lane.b32.xlu0 %v622, 120
      %v2148 = vpop.permute.xlu0 %2147
      %2149 = vrot.lane.b32.xlu0 %v623, 120
      %v2150 = vpop.permute.xlu0 %2149
      %2151 = vrot.lane.b32.xlu0 %v624, 120
      %v2152 = vpop.permute.xlu0 %2151
      %2153 = vrot.lane.b32.xlu0 %v625, 120
      %v2154 = vpop.permute.xlu0 %2153
      %2155 = vrot.lane.b32.xlu0 %v626, 120
      %v2156 = vpop.permute.xlu0 %2155
      %2157 = vrot.lane.b32.xlu0 %v627, 120
      %v2158 = vpop.permute.xlu0 %2157
      %2159 = vrot.lane.b32.xlu0 %v628, 120
      %v2160 = vpop.permute.xlu0 %2159
      %2177 = vmatprep.subr.bf16.mxu0 0
      %2178 = vmatpush1.bf16.msra.mxu0 %v2130
      %2179 = vmatprep.subr.bf16.mxu0 0
      %2180 = vmatpush1.bf16.msra.mxu0 %v2132
      %2181 = vmatprep.subr.bf16.mxu0 0
      %2182 = vmatpush1.bf16.msra.mxu0 %v2134
      %2183 = vmatprep.subr.bf16.mxu0 0
      %2184 = vmatpush1.bf16.msra.mxu0 %v2136
      %2185 = vmatprep.subr.bf16.mxu0 0
      %2186 = vmatpush1.bf16.msra.mxu0 %v2138
      %2187 = vmatprep.subr.bf16.mxu0 0
      %2188 = vmatpush1.bf16.msra.mxu0 %v2140
      %2189 = vmatprep.subr.bf16.mxu0 0
      %2190 = vmatpush1.bf16.msra.mxu0 %v2142
      %2191 = vmatprep.subr.bf16.mxu0 0
      %2192 = vmatpush1.bf16.msra.mxu0 %v2144
      %2193 = vmatprep.subr.bf16.mxu0 0
      %2194 = vmatpush1.bf16.msra.mxu0 %v2146
      %2195 = vmatprep.subr.bf16.mxu0 0
      %2196 = vmatpush1.bf16.msra.mxu0 %v2148
      %2197 = vmatprep.subr.bf16.mxu0 0
      %2198 = vmatpush1.bf16.msra.mxu0 %v2150
      %2199 = vmatprep.subr.bf16.mxu0 0
      %2200 = vmatpush1.bf16.msra.mxu0 %v2152
      %2201 = vmatprep.subr.bf16.mxu0 0
      %2202 = vmatpush1.bf16.msra.mxu0 %v2154
      %2203 = vmatprep.subr.bf16.mxu0 0
      %2204 = vmatpush1.bf16.msra.mxu0 %v2156
      %2205 = vmatprep.subr.bf16.mxu0 0
      %2206 = vmatpush1.bf16.msra.mxu0 %v2158
      %2207 = vmatprep.subr.bf16.mxu0 0
      %2208 = vmatpush1.bf16.msra.mxu0 %v2160
      %2209 = vmatprep.mubr.bf16.mxu0 %v2098
      %2210 = vmatmul.mubr.bf16.gmra.mrb[0].mxu0 %v2097
      %v2211 = vpop.f32.mrb[0].mxu0
      %v2212 = vadd.f32 0.0, %v2211
      %v2213 = vpop.f32.mrb[0].mxu0
      %v2214 = vpop.f32.mrb[0].mxu0
      %v2215 = vadd.f32 0.0, %v2214
      %v2216 = vpop.f32.mrb[0].mxu0
      %2217 = vmatprep.mubr.bf16.mxu0 %v2100
      %2218 = vmatmul.mubr.bf16.gmra.mrb[0].mxu0 %v2099
      %v2219 = vpop.f32.mrb[0].mxu0
      %v2220 = vadd.f32 0.0, %v2219
      %v2221 = vpop.f32.mrb[0].mxu0
      %v2222 = vpop.f32.mrb[0].mxu0
      %v2223 = vadd.f32 0.0, %v2222
      %v2224 = vpop.f32.mrb[0].mxu0
      %2225 = vmatprep.mubr.bf16.mxu0 %v2102
      %2226 = vmatmul.mubr.bf16.gmra.mrb[0].mxu0 %v2101
      %v2227 = vpop.f32.mrb[0].mxu0
      %v2228 = vadd.f32 0.0, %v2227
      %v2229 = vpop.f32.mrb[0].mxu0
      %v2230 = vpop.f32.mrb[0].mxu0
      %v2231 = vadd.f32 0.0, %v2230
      %v2232 = vpop.f32.mrb[0].mxu0
      %2233 = vmatprep.mubr.bf16.mxu0 %v2104
      %2234 = vmatmul.mubr.bf16.gmra.mrb[0].mxu0 %v2103
      %v2235 = vpop.f32.mrb[0].mxu0
      %v2236 = vadd.f32 0.0, %v2235
      %v2237 = vpop.f32.mrb[0].mxu0
      %v2238 = vpop.f32.mrb[0].mxu0
      %v2239 = vadd.f32 0.0, %v2238
      %v2240 = vpop.f32.mrb[0].mxu0
      %2241 = vmatprep.mubr.bf16.mxu0 %v2106
      %2242 = vmatmul.mubr.bf16.gmra.mrb[0].mxu0 %v2105
      %v2243 = vpop.f32.mrb[0].mxu0
      %v2244 = vadd.f32 0.0, %v2243
      %v2245 = vpop.f32.mrb[0].mxu0
      %v2246 = vpop.f32.mrb[0].mxu0
      %v2247 = vadd.f32 0.0, %v2246
      %v2248 = vpop.f32.mrb[0].mxu0
      %2249 = vmatprep.mubr.bf16.mxu0 %v2108
      %2250 = vmatmul.mubr.bf16.gmra.mrb[0].mxu0 %v2107
      %v2251 = vpop.f32.mrb[0].mxu0
      %v2252 = vadd.f32 0.0, %v2251
      %v2253 = vpop.f32.mrb[0].mxu0
      %v2254 = vpop.f32.mrb[0].mxu0
      %v2255 = vadd.f32 0.0, %v2254
      %v2256 = vpop.f32.mrb[0].mxu0
      %2257 = vmatprep.mubr.bf16.mxu0 %v2110
      %2258 = vmatmul.mubr.bf16.gmra.mrb[0].mxu0 %v2109
      %v2259 = vpop.f32.mrb[0].mxu0
      %v2260 = vadd.f32 0.0, %v2259
      %v2261 = vpop.f32.mrb[0].mxu0
      %v2262 = vpop.f32.mrb[0].mxu0
      %v2263 = vadd.f32 0.0, %v2262
      %v2264 = vpop.f32.mrb[0].mxu0
      %2265 = vmatprep.mubr.bf16.mxu0 %v2112
      %2266 = vmatmul.mubr.bf16.gmra.mrb[0].mxu0 %v2111
      %v2267 = vpop.f32.mrb[0].mxu0
      %v2268 = vadd.f32 0.0, %v2267
      %v2269 = vpop.f32.mrb[0].mxu0
      %v2270 = vpop.f32.mrb[0].mxu0
      %v2271 = vadd.f32 0.0, %v2270
      %v2272 = vpop.f32.mrb[0].mxu0
      %2273 = vdwg.mxu0
      %2274 = vset.pattern.permute.xlu0 2
      %2275 = vperm.xlu0 %2274, %v826
      %v2276 = vpop.permute.xlu0 %2275
      %2278 = vset.pattern.permute.xlu0 2
      %2279 = vperm.xlu0 %2278, %v829
      %v2280 = vpop.permute.xlu0 %2279
      %2282 = vset.pattern.permute.xlu0 2
      %2283 = vperm.xlu0 %2282, %v834
      %v2284 = vpop.permute.xlu0 %2283
      %2286 = vset.pattern.permute.xlu0 2
      %2287 = vperm.xlu0 %2286, %v837
      %v2288 = vpop.permute.xlu0 %2287
      %2290 = vset.pattern.permute.xlu0 2
      %2291 = vperm.xlu0 %2290, %v842
      %v2292 = vpop.permute.xlu0 %2291
      %2294 = vset.pattern.permute.xlu0 2
      %2295 = vperm.xlu0 %2294, %v845
      %v2296 = vpop.permute.xlu0 %2295
      %2298 = vset.pattern.permute.xlu0 2
      %2299 = vperm.xlu0 %2298, %v850
      %v2300 = vpop.permute.xlu0 %2299
      %2302 = vset.pattern.permute.xlu0 2
      %2303 = vperm.xlu0 %2302, %v853
      %v2304 = vpop.permute.xlu0 %2303
      %2306 = vset.pattern.permute.xlu0 2
      %2307 = vperm.xlu0 %2306, %v858
      %v2308 = vpop.permute.xlu0 %2307
      %2310 = vset.pattern.permute.xlu0 2
      %2311 = vperm.xlu0 %2310, %v861
      %v2312 = vpop.permute.xlu0 %2311
      %2314 = vset.pattern.permute.xlu0 2
      %2315 = vperm.xlu0 %2314, %v866
      %v2316 = vpop.permute.xlu0 %2315
      %2318 = vset.pattern.permute.xlu0 2
      %2319 = vperm.xlu0 %2318, %v869
      %v2320 = vpop.permute.xlu0 %2319
      %2322 = vset.pattern.permute.xlu0 2
      %2323 = vperm.xlu0 %2322, %v874
      %v2324 = vpop.permute.xlu0 %2323
      %2326 = vset.pattern.permute.xlu0 2
      %2327 = vperm.xlu0 %2326, %v877
      %v2328 = vpop.permute.xlu0 %2327
      %2330 = vset.pattern.permute.xlu0 2
      %2331 = vperm.xlu0 %2330, %v882
      %v2332 = vpop.permute.xlu0 %2331
      %2334 = vset.pattern.permute.xlu0 2
      %2335 = vperm.xlu0 %2334, %v885
      %v2336 = vpop.permute.xlu0 %2335
      %v2338 = vlaneseq
      %v2339 = vshrl.u32 %v2338, 7
      %v2340 = vsub.s32 2, %v2339
      %v2341 = vrot.slane %v668, %v2340
      %v2342 = vlaneseq
      %v2343 = vshrl.u32 %v2342, 7
      %v2344 = vsub.s32 2, %v2343
      %v2345 = vrot.slane %v670, %v2344
      %v2346 = vadd.f32 %v2276, %v2341
      %v2347 = vadd.f32 %v2276, %v2345
      %v2348 = vadd.f32 %v2280, %v2341
      %v2349 = vadd.f32 %v2280, %v2345
      %v2350 = vadd.f32 %v2284, %v2341
      %v2351 = vadd.f32 %v2284, %v2345
      %v2352 = vadd.f32 %v2288, %v2341
      %v2353 = vadd.f32 %v2288, %v2345
      %v2354 = vadd.f32 %v2292, %v2341
      %v2355 = vadd.f32 %v2292, %v2345
      %v2356 = vadd.f32 %v2296, %v2341
      %v2357 = vadd.f32 %v2296, %v2345
      %v2358 = vadd.f32 %v2300, %v2341
      %v2359 = vadd.f32 %v2300, %v2345
      %v2360 = vadd.f32 %v2304, %v2341
      %v2361 = vadd.f32 %v2304, %v2345
      %v2362 = vadd.f32 %v2308, %v2341
      %v2363 = vadd.f32 %v2308, %v2345
      %v2364 = vadd.f32 %v2312, %v2341
      %v2365 = vadd.f32 %v2312, %v2345
      %v2366 = vadd.f32 %v2316, %v2341
      %v2367 = vadd.f32 %v2316, %v2345
      %v2368 = vadd.f32 %v2320, %v2341
      %v2369 = vadd.f32 %v2320, %v2345
      %v2370 = vadd.f32 %v2324, %v2341
      %v2371 = vadd.f32 %v2324, %v2345
      %v2372 = vadd.f32 %v2328, %v2341
      %v2373 = vadd.f32 %v2328, %v2345
      %v2374 = vadd.f32 %v2332, %v2341
      %v2375 = vadd.f32 %v2332, %v2345
      %v2376 = vadd.f32 %v2336, %v2341
      %v2377 = vadd.f32 %v2336, %v2345
      %vm2378 = vcmp.gt.f32.partialorder %v2346, 0.0
      %vm2379 = vcmp.gt.f32.partialorder %v2347, 0.0
      %vm2380 = vcmp.gt.f32.partialorder %v2348, 0.0
      %vm2381 = vcmp.gt.f32.partialorder %v2349, 0.0
      %vm2382 = vcmp.gt.f32.partialorder %v2350, 0.0
      %vm2383 = vcmp.gt.f32.partialorder %v2351, 0.0
      %vm2384 = vcmp.gt.f32.partialorder %v2352, 0.0
      %vm2385 = vcmp.gt.f32.partialorder %v2353, 0.0
      %vm2386 = vcmp.gt.f32.partialorder %v2354, 0.0
      %vm2387 = vcmp.gt.f32.partialorder %v2355, 0.0
      %vm2388 = vcmp.gt.f32.partialorder %v2356, 0.0
      %vm2389 = vcmp.gt.f32.partialorder %v2357, 0.0
      %vm2390 = vcmp.gt.f32.partialorder %v2358, 0.0
      %vm2391 = vcmp.gt.f32.partialorder %v2359, 0.0
      %vm2392 = vcmp.gt.f32.partialorder %v2360, 0.0
      %vm2393 = vcmp.gt.f32.partialorder %v2361, 0.0
      %vm2394 = vcmp.gt.f32.partialorder %v2362, 0.0
      %vm2395 = vcmp.gt.f32.partialorder %v2363, 0.0
      %vm2396 = vcmp.gt.f32.partialorder %v2364, 0.0
      %vm2397 = vcmp.gt.f32.partialorder %v2365, 0.0
      %vm2398 = vcmp.gt.f32.partialorder %v2366, 0.0
      %vm2399 = vcmp.gt.f32.partialorder %v2367, 0.0
      %vm2400 = vcmp.gt.f32.partialorder %v2368, 0.0
      %vm2401 = vcmp.gt.f32.partialorder %v2369, 0.0
      %vm2402 = vcmp.gt.f32.partialorder %v2370, 0.0
      %vm2403 = vcmp.gt.f32.partialorder %v2371, 0.0
      %vm2404 = vcmp.gt.f32.partialorder %v2372, 0.0
      %vm2405 = vcmp.gt.f32.partialorder %v2373, 0.0
      %vm2406 = vcmp.gt.f32.partialorder %v2374, 0.0
      %vm2407 = vcmp.gt.f32.partialorder %v2375, 0.0
      %vm2408 = vcmp.gt.f32.partialorder %v2376, 0.0
      %vm2409 = vcmp.gt.f32.partialorder %v2377, 0.0
      %v2410 = vmul.f32 %v2346, 0.2
      %v2411 = vmul.f32 %v2347, 0.2
      %v2412 = vmul.f32 %v2348, 0.2
      %v2413 = vmul.f32 %v2349, 0.2
      %v2414 = vmul.f32 %v2350, 0.2
      %v2415 = vmul.f32 %v2351, 0.2
      %v2416 = vmul.f32 %v2352, 0.2
      %v2417 = vmul.f32 %v2353, 0.2
      %v2418 = vmul.f32 %v2354, 0.2
      %v2419 = vmul.f32 %v2355, 0.2
      %v2420 = vmul.f32 %v2356, 0.2
      %v2421 = vmul.f32 %v2357, 0.2
      %v2422 = vmul.f32 %v2358, 0.2
      %v2423 = vmul.f32 %v2359, 0.2
      %v2424 = vmul.f32 %v2360, 0.2
      %v2425 = vmul.f32 %v2361, 0.2
      %v2426 = vmul.f32 %v2362, 0.2
      %v2427 = vmul.f32 %v2363, 0.2
      %v2428 = vmul.f32 %v2364, 0.2
      %v2429 = vmul.f32 %v2365, 0.2
      %v2430 = vmul.f32 %v2366, 0.2
      %v2431 = vmul.f32 %v2367, 0.2
      %v2432 = vmul.f32 %v2368, 0.2
      %v2433 = vmul.f32 %v2369, 0.2
      %v2434 = vmul.f32 %v2370, 0.2
      %v2435 = vmul.f32 %v2371, 0.2
      %v2436 = vmul.f32 %v2372, 0.2
      %v2437 = vmul.f32 %v2373, 0.2
      %v2438 = vmul.f32 %v2374, 0.2
      %v2439 = vmul.f32 %v2375, 0.2
      %v2440 = vmul.f32 %v2376, 0.2
      %v2441 = vmul.f32 %v2377, 0.2
      %v2442 = vsel %vm2378, %v2346, %v2410
      %v2443 = vsel %vm2379, %v2347, %v2411
      %v2444 = vsel %vm2380, %v2348, %v2412
      %v2445 = vsel %vm2381, %v2349, %v2413
      %v2446 = vsel %vm2382, %v2350, %v2414
      %v2447 = vsel %vm2383, %v2351, %v2415
      %v2448 = vsel %vm2384, %v2352, %v2416
      %v2449 = vsel %vm2385, %v2353, %v2417
      %v2450 = vsel %vm2386, %v2354, %v2418
      %v2451 = vsel %vm2387, %v2355, %v2419
      %v2452 = vsel %vm2388, %v2356, %v2420
      %v2453 = vsel %vm2389, %v2357, %v2421
      %v2454 = vsel %vm2390, %v2358, %v2422
      %v2455 = vsel %vm2391, %v2359, %v2423
      %v2456 = vsel %vm2392, %v2360, %v2424
      %v2457 = vsel %vm2393, %v2361, %v2425
      %v2458 = vsel %vm2394, %v2362, %v2426
      %v2459 = vsel %vm2395, %v2363, %v2427
      %v2460 = vsel %vm2396, %v2364, %v2428
      %v2461 = vsel %vm2397, %v2365, %v2429
      %v2462 = vsel %vm2398, %v2366, %v2430
      %v2463 = vsel %vm2399, %v2367, %v2431
      %v2464 = vsel %vm2400, %v2368, %v2432
      %v2465 = vsel %vm2401, %v2369, %v2433
      %v2466 = vsel %vm2402, %v2370, %v2434
      %v2467 = vsel %vm2403, %v2371, %v2435
      %v2468 = vsel %vm2404, %v2372, %v2436
      %v2469 = vsel %vm2405, %v2373, %v2437
      %v2470 = vsel %vm2406, %v2374, %v2438
      %v2471 = vsel %vm2407, %v2375, %v2439
      %v2472 = vsel %vm2408, %v2376, %v2440
      %v2473 = vsel %vm2409, %v2377, %v2441
      %v2474 = vadd.f32 %v2442, %v992
      %v2475 = vadd.f32 %v2443, %v993
      %v2476 = vadd.f32 %v2444, %v994
      %v2477 = vadd.f32 %v2445, %v995
      %v2478 = vadd.f32 %v2446, %v996
      %v2479 = vadd.f32 %v2447, %v997
      %v2480 = vadd.f32 %v2448, %v998
      %v2481 = vadd.f32 %v2449, %v999
      %v2482 = vadd.f32 %v2450, %v1000
      %v2483 = vadd.f32 %v2451, %v1001
      %v2484 = vadd.f32 %v2452, %v1002
      %v2485 = vadd.f32 %v2453, %v1003
      %v2486 = vadd.f32 %v2454, %v1004
      %v2487 = vadd.f32 %v2455, %v1005
      %v2488 = vadd.f32 %v2456, %v1006
      %v2489 = vadd.f32 %v2457, %v1007
      %v2490 = vadd.f32 %v2458, %v1008
      %v2491 = vadd.f32 %v2459, %v1009
      %v2492 = vadd.f32 %v2460, %v1010
      %v2493 = vadd.f32 %v2461, %v1011
      %v2494 = vadd.f32 %v2462, %v1012
      %v2495 = vadd.f32 %v2463, %v1013
      %v2496 = vadd.f32 %v2464, %v1014
      %v2497 = vadd.f32 %v2465, %v1015
      %v2498 = vadd.f32 %v2466, %v1016
      %v2499 = vadd.f32 %v2467, %v1017
      %v2500 = vadd.f32 %v2468, %v1018
      %v2501 = vadd.f32 %v2469, %v1019
      %v2502 = vadd.f32 %v2470, %v1020
      %v2503 = vadd.f32 %v2471, %v1021
      %v2504 = vadd.f32 %v2472, %v1022
      %v2505 = vadd.f32 %v2473, %v1023
      %v2506 = vmax.f32 %v2474, %v2475
      %2507 = vmax.xlane.f32.xlu0 %v2506
      %v2508 = vpop.xlane.xlu0 %2507
      %v2509 = vmax.f32 %v2476, %v2477
      %2510 = vmax.xlane.f32.xlu0 %v2509
      %v2511 = vpop.xlane.xlu0 %2510
      %v2512 = vmax.f32 %v2478, %v2479
      %2513 = vmax.xlane.f32.xlu0 %v2512
      %v2514 = vpop.xlane.xlu0 %2513
      %v2515 = vmax.f32 %v2480, %v2481
      %2516 = vmax.xlane.f32.xlu0 %v2515
      %v2517 = vpop.xlane.xlu0 %2516
      %v2518 = vmax.f32 %v2482, %v2483
      %2519 = vmax.xlane.f32.xlu0 %v2518
      %v2520 = vpop.xlane.xlu0 %2519
      %v2521 = vmax.f32 %v2484, %v2485
      %2522 = vmax.xlane.f32.xlu0 %v2521
      %v2523 = vpop.xlane.xlu0 %2522
      %v2524 = vmax.f32 %v2486, %v2487
      %2525 = vmax.xlane.f32.xlu0 %v2524
      %v2526 = vpop.xlane.xlu0 %2525
      %v2527 = vmax.f32 %v2488, %v2489
      %2528 = vmax.xlane.f32.xlu0 %v2527
      %v2529 = vpop.xlane.xlu0 %2528
      %v2530 = vmax.f32 %v2490, %v2491
      %2531 = vmax.xlane.f32.xlu0 %v2530
      %v2532 = vpop.xlane.xlu0 %2531
      %v2533 = vmax.f32 %v2492, %v2493
      %2534 = vmax.xlane.f32.xlu0 %v2533
      %v2535 = vpop.xlane.xlu0 %2534
      %v2536 = vmax.f32 %v2494, %v2495
      %2537 = vmax.xlane.f32.xlu0 %v2536
      %v2538 = vpop.xlane.xlu0 %2537
      %v2539 = vmax.f32 %v2496, %v2497
      %2540 = vmax.xlane.f32.xlu0 %v2539
      %v2541 = vpop.xlane.xlu0 %2540
      %v2542 = vmax.f32 %v2498, %v2499
      %2543 = vmax.xlane.f32.xlu0 %v2542
      %v2544 = vpop.xlane.xlu0 %2543
      %v2545 = vmax.f32 %v2500, %v2501
      %2546 = vmax.xlane.f32.xlu0 %v2545
      %v2547 = vpop.xlane.xlu0 %2546
      %v2548 = vmax.f32 %v2502, %v2503
      %2549 = vmax.xlane.f32.xlu0 %v2548
      %v2550 = vpop.xlane.xlu0 %2549
      %v2551 = vmax.f32 %v2504, %v2505
      %2552 = vmax.xlane.f32.xlu0 %v2551
      %v2553 = vpop.xlane.xlu0 %2552
      %v2554 = vsub.f32 %v2474, %v2508
      %v2555 = vsub.f32 %v2475, %v2508
      %v2556 = vsub.f32 %v2476, %v2511
      %v2557 = vsub.f32 %v2477, %v2511
      %v2558 = vsub.f32 %v2478, %v2514
      %v2559 = vsub.f32 %v2479, %v2514
      %v2560 = vsub.f32 %v2480, %v2517
      %v2561 = vsub.f32 %v2481, %v2517
      %v2562 = vsub.f32 %v2482, %v2520
      %v2563 = vsub.f32 %v2483, %v2520
      %v2564 = vsub.f32 %v2484, %v2523
      %v2565 = vsub.f32 %v2485, %v2523
      %v2566 = vsub.f32 %v2486, %v2526
      %v2567 = vsub.f32 %v2487, %v2526
      %v2568 = vsub.f32 %v2488, %v2529
      %v2569 = vsub.f32 %v2489, %v2529
      %v2570 = vsub.f32 %v2490, %v2532
      %v2571 = vsub.f32 %v2491, %v2532
      %v2572 = vsub.f32 %v2492, %v2535
      %v2573 = vsub.f32 %v2493, %v2535
      %v2574 = vsub.f32 %v2494, %v2538
      %v2575 = vsub.f32 %v2495, %v2538
      %v2576 = vsub.f32 %v2496, %v2541
      %v2577 = vsub.f32 %v2497, %v2541
      %v2578 = vsub.f32 %v2498, %v2544
      %v2579 = vsub.f32 %v2499, %v2544
      %v2580 = vsub.f32 %v2500, %v2547
      %v2581 = vsub.f32 %v2501, %v2547
      %v2582 = vsub.f32 %v2502, %v2550
      %v2583 = vsub.f32 %v2503, %v2550
      %v2584 = vsub.f32 %v2504, %v2553
      %v2585 = vsub.f32 %v2505, %v2553
      %v2586 = vmul.f32 %v2554, 1.442695
      %v2587 = vpow.pop %v2586
      %v2588 = vmul.f32 %v2555, 1.442695
      %v2589 = vpow.pop %v2588
      %v2590 = vmul.f32 %v2556, 1.442695
      %v2591 = vpow.pop %v2590
      %v2592 = vmul.f32 %v2557, 1.442695
      %v2593 = vpow.pop %v2592
      %v2594 = vmul.f32 %v2558, 1.442695
      %v2595 = vpow.pop %v2594
      %v2596 = vmul.f32 %v2559, 1.442695
      %v2597 = vpow.pop %v2596
      %v2598 = vmul.f32 %v2560, 1.442695
      %v2599 = vpow.pop %v2598
      %v2600 = vmul.f32 %v2561, 1.442695
      %v2601 = vpow.pop %v2600
      %v2602 = vmul.f32 %v2562, 1.442695
      %v2603 = vpow.pop %v2602
      %v2604 = vmul.f32 %v2563, 1.442695
      %v2605 = vpow.pop %v2604
      %v2606 = vmul.f32 %v2564, 1.442695
      %v2607 = vpow.pop %v2606
      %v2608 = vmul.f32 %v2565, 1.442695
      %v2609 = vpow.pop %v2608
      %v2610 = vmul.f32 %v2566, 1.442695
      %v2611 = vpow.pop %v2610
      %v2612 = vmul.f32 %v2567, 1.442695
      %v2613 = vpow.pop %v2612
      %v2614 = vmul.f32 %v2568, 1.442695
      %v2615 = vpow.pop %v2614
      %v2616 = vmul.f32 %v2569, 1.442695
      %v2617 = vpow.pop %v2616
      %v2618 = vmul.f32 %v2570, 1.442695
      %v2619 = vpow.pop %v2618
      %v2620 = vmul.f32 %v2571, 1.442695
      %v2621 = vpow.pop %v2620
      %v2622 = vmul.f32 %v2572, 1.442695
      %v2623 = vpow.pop %v2622
      %v2624 = vmul.f32 %v2573, 1.442695
      %v2625 = vpow.pop %v2624
      %v2626 = vmul.f32 %v2574, 1.442695
      %v2627 = vpow.pop %v2626
      %v2628 = vmul.f32 %v2575, 1.442695
      %v2629 = vpow.pop %v2628
      %v2630 = vmul.f32 %v2576, 1.442695
      %v2631 = vpow.pop %v2630
      %v2632 = vmul.f32 %v2577, 1.442695
      %v2633 = vpow.pop %v2632
      %v2634 = vmul.f32 %v2578, 1.442695
      %v2635 = vpow.pop %v2634
      %v2636 = vmul.f32 %v2579, 1.442695
      %v2637 = vpow.pop %v2636
      %v2638 = vmul.f32 %v2580, 1.442695
      %v2639 = vpow.pop %v2638
      %v2640 = vmul.f32 %v2581, 1.442695
      %v2641 = vpow.pop %v2640
      %v2642 = vmul.f32 %v2582, 1.442695
      %v2643 = vpow.pop %v2642
      %v2644 = vmul.f32 %v2583, 1.442695
      %v2645 = vpow.pop %v2644
      %v2646 = vmul.f32 %v2584, 1.442695
      %v2647 = vpow.pop %v2646
      %v2648 = vmul.f32 %v2585, 1.442695
      %v2649 = vpow.pop %v2648
      %v2650 = vadd.f32 %v2587, %v2589
      %2651 = vadd.xlane.f32.xlu0 %v2650
      %v2652 = vpop.xlane.xlu0 %2651
      %v2653 = vadd.f32 %v2591, %v2593
      %2654 = vadd.xlane.f32.xlu0 %v2653
      %v2655 = vpop.xlane.xlu0 %2654
      %v2656 = vadd.f32 %v2595, %v2597
      %2657 = vadd.xlane.f32.xlu0 %v2656
      %v2658 = vpop.xlane.xlu0 %2657
      %v2659 = vadd.f32 %v2599, %v2601
      %2660 = vadd.xlane.f32.xlu0 %v2659
      %v2661 = vpop.xlane.xlu0 %2660
      %v2662 = vadd.f32 %v2603, %v2605
      %2663 = vadd.xlane.f32.xlu0 %v2662
      %v2664 = vpop.xlane.xlu0 %2663
      %v2665 = vadd.f32 %v2607, %v2609
      %2666 = vadd.xlane.f32.xlu0 %v2665
      %v2667 = vpop.xlane.xlu0 %2666
      %v2668 = vadd.f32 %v2611, %v2613
      %2669 = vadd.xlane.f32.xlu0 %v2668
      %v2670 = vpop.xlane.xlu0 %2669
      %v2671 = vadd.f32 %v2615, %v2617
      %2672 = vadd.xlane.f32.xlu0 %v2671
      %v2673 = vpop.xlane.xlu0 %2672
      %v2674 = vadd.f32 %v2619, %v2621
      %2675 = vadd.xlane.f32.xlu0 %v2674
      %v2676 = vpop.xlane.xlu0 %2675
      %v2677 = vadd.f32 %v2623, %v2625
      %2678 = vadd.xlane.f32.xlu0 %v2677
      %v2679 = vpop.xlane.xlu0 %2678
      %v2680 = vadd.f32 %v2627, %v2629
      %2681 = vadd.xlane.f32.xlu0 %v2680
      %v2682 = vpop.xlane.xlu0 %2681
      %v2683 = vadd.f32 %v2631, %v2633
      %2684 = vadd.xlane.f32.xlu0 %v2683
      %v2685 = vpop.xlane.xlu0 %2684
      %v2686 = vadd.f32 %v2635, %v2637
      %2687 = vadd.xlane.f32.xlu0 %v2686
      %v2688 = vpop.xlane.xlu0 %2687
      %v2689 = vadd.f32 %v2639, %v2641
      %2690 = vadd.xlane.f32.xlu0 %v2689
      %v2691 = vpop.xlane.xlu0 %2690
      %v2692 = vadd.f32 %v2643, %v2645
      %2693 = vadd.xlane.f32.xlu0 %v2692
      %v2694 = vpop.xlane.xlu0 %2693
      %v2695 = vadd.f32 %v2647, %v2649
      %2696 = vadd.xlane.f32.xlu0 %v2695
      %v2697 = vpop.xlane.xlu0 %2696
      %v2698 = vrcp.pop %v2652
      %v2699 = vrcp.pop %v2655
      %v2700 = vrcp.pop %v2658
      %v2701 = vrcp.pop %v2661
      %v2702 = vrcp.pop %v2664
      %v2703 = vrcp.pop %v2667
      %v2704 = vrcp.pop %v2670
      %v2705 = vrcp.pop %v2673
      %v2706 = vrcp.pop %v2676
      %v2707 = vrcp.pop %v2679
      %v2708 = vrcp.pop %v2682
      %v2709 = vrcp.pop %v2685
      %v2710 = vrcp.pop %v2688
      %v2711 = vrcp.pop %v2691
      %v2712 = vrcp.pop %v2694
      %v2713 = vrcp.pop %v2697
      %v2714 = vmul.f32 %v2587, %v2698
      %v2715 = vmul.f32 %v2589, %v2698
      %v2716 = vmul.f32 %v2591, %v2699
      %v2717 = vmul.f32 %v2593, %v2699
      %v2718 = vmul.f32 %v2595, %v2700
      %v2719 = vmul.f32 %v2597, %v2700
      %v2720 = vmul.f32 %v2599, %v2701
      %v2721 = vmul.f32 %v2601, %v2701
      %v2722 = vmul.f32 %v2603, %v2702
      %v2723 = vmul.f32 %v2605, %v2702
      %v2724 = vmul.f32 %v2607, %v2703
      %v2725 = vmul.f32 %v2609, %v2703
      %v2726 = vmul.f32 %v2611, %v2704
      %v2727 = vmul.f32 %v2613, %v2704
      %v2728 = vmul.f32 %v2615, %v2705
      %v2729 = vmul.f32 %v2617, %v2705
      %v2730 = vmul.f32 %v2619, %v2706
      %v2731 = vmul.f32 %v2621, %v2706
      %v2732 = vmul.f32 %v2623, %v2707
      %v2733 = vmul.f32 %v2625, %v2707
      %v2734 = vmul.f32 %v2627, %v2708
      %v2735 = vmul.f32 %v2629, %v2708
      %v2736 = vmul.f32 %v2631, %v2709
      %v2737 = vmul.f32 %v2633, %v2709
      %v2738 = vmul.f32 %v2635, %v2710
      %v2739 = vmul.f32 %v2637, %v2710
      %v2740 = vmul.f32 %v2639, %v2711
      %v2741 = vmul.f32 %v2641, %v2711
      %v2742 = vmul.f32 %v2643, %v2712
      %v2743 = vmul.f32 %v2645, %v2712
      %v2744 = vmul.f32 %v2647, %v2713
      %v2745 = vmul.f32 %v2649, %v2713
      %v2746 = vpack.c.bf16 %v2716, %v2714
      %v2747 = vpack.c.bf16 %v2717, %v2715
      %v2748 = vpack.c.bf16 %v2720, %v2718
      %v2749 = vpack.c.bf16 %v2721, %v2719
      %v2750 = vpack.c.bf16 %v2724, %v2722
      %v2751 = vpack.c.bf16 %v2725, %v2723
      %v2752 = vpack.c.bf16 %v2728, %v2726
      %v2753 = vpack.c.bf16 %v2729, %v2727
      %v2754 = vpack.c.bf16 %v2732, %v2730
      %v2755 = vpack.c.bf16 %v2733, %v2731
      %v2756 = vpack.c.bf16 %v2736, %v2734
      %v2757 = vpack.c.bf16 %v2737, %v2735
      %v2758 = vpack.c.bf16 %v2740, %v2738
      %v2759 = vpack.c.bf16 %v2741, %v2739
      %v2760 = vpack.c.bf16 %v2744, %v2742
      %v2761 = vpack.c.bf16 %v2745, %v2743
      %2762 = vrot.lane.b32.xlu0 %v613, 112
      %v2763 = vpop.permute.xlu0 %2762
      %2764 = vrot.lane.b32.xlu0 %v614, 112
      %v2765 = vpop.permute.xlu0 %2764
      %2766 = vrot.lane.b32.xlu0 %v615, 112
      %v2767 = vpop.permute.xlu0 %2766
      %2768 = vrot.lane.b32.xlu0 %v616, 112
      %v2769 = vpop.permute.xlu0 %2768
      %2770 = vrot.lane.b32.xlu0 %v617, 112
      %v2771 = vpop.permute.xlu0 %2770
      %2772 = vrot.lane.b32.xlu0 %v618, 112
      %v2773 = vpop.permute.xlu0 %2772
      %2774 = vrot.lane.b32.xlu0 %v619, 112
      %v2775 = vpop.permute.xlu0 %2774
      %2776 = vrot.lane.b32.xlu0 %v620, 112
      %v2777 = vpop.permute.xlu0 %2776
      %2778 = vrot.lane.b32.xlu0 %v621, 112
      %v2779 = vpop.permute.xlu0 %2778
      %2780 = vrot.lane.b32.xlu0 %v622, 112
      %v2781 = vpop.permute.xlu0 %2780
      %2782 = vrot.lane.b32.xlu0 %v623, 112
      %v2783 = vpop.permute.xlu0 %2782
      %2784 = vrot.lane.b32.xlu0 %v624, 112
      %v2785 = vpop.permute.xlu0 %2784
      %2786 = vrot.lane.b32.xlu0 %v625, 112
      %v2787 = vpop.permute.xlu0 %2786
      %2788 = vrot.lane.b32.xlu0 %v626, 112
      %v2789 = vpop.permute.xlu0 %2788
      %2790 = vrot.lane.b32.xlu0 %v627, 112
      %v2791 = vpop.permute.xlu0 %2790
      %2792 = vrot.lane.b32.xlu0 %v628, 112
      %v2793 = vpop.permute.xlu0 %2792
      %2810 = vmatprep.subr.bf16.mxu0 0
      %2811 = vmatpush1.bf16.msra.mxu0 %v2763
      %2812 = vmatprep.subr.bf16.mxu0 0
      %2813 = vmatpush1.bf16.msra.mxu0 %v2765
      %2814 = vmatprep.subr.bf16.mxu0 0
      %2815 = vmatpush1.bf16.msra.mxu0 %v2767
      %2816 = vmatprep.subr.bf16.mxu0 0
      %2817 = vmatpush1.bf16.msra.mxu0 %v2769
      %2818 = vmatprep.subr.bf16.mxu0 0
      %2819 = vmatpush1.bf16.msra.mxu0 %v2771
      %2820 = vmatprep.subr.bf16.mxu0 0
      %2821 = vmatpush1.bf16.msra.mxu0 %v2773
      %2822 = vmatprep.subr.bf16.mxu0 0
      %2823 = vmatpush1.bf16.msra.mxu0 %v2775
      %2824 = vmatprep.subr.bf16.mxu0 0
      %2825 = vmatpush1.bf16.msra.mxu0 %v2777
      %2826 = vmatprep.subr.bf16.mxu0 0
      %2827 = vmatpush1.bf16.msra.mxu0 %v2779
      %2828 = vmatprep.subr.bf16.mxu0 0
      %2829 = vmatpush1.bf16.msra.mxu0 %v2781
      %2830 = vmatprep.subr.bf16.mxu0 0
      %2831 = vmatpush1.bf16.msra.mxu0 %v2783
      %2832 = vmatprep.subr.bf16.mxu0 0
      %2833 = vmatpush1.bf16.msra.mxu0 %v2785
      %2834 = vmatprep.subr.bf16.mxu0 0
      %2835 = vmatpush1.bf16.msra.mxu0 %v2787
      %2836 = vmatprep.subr.bf16.mxu0 0
      %2837 = vmatpush1.bf16.msra.mxu0 %v2789
      %2838 = vmatprep.subr.bf16.mxu0 0
      %2839 = vmatpush1.bf16.msra.mxu0 %v2791
      %2840 = vmatprep.subr.bf16.mxu0 0
      %2841 = vmatpush1.bf16.msra.mxu0 %v2793
      %2842 = vmatprep.mubr.bf16.mxu0 %v2747
      %2843 = vmatmul.mubr.bf16.gmra.mrb[0].mxu0 %v2746
      %v2844 = vpop.f32.mrb[0].mxu0
      %v2845 = vadd.f32 0.0, %v2844
      %v2846 = vpop.f32.mrb[0].mxu0
      %v2847 = vpop.f32.mrb[0].mxu0
      %v2848 = vadd.f32 0.0, %v2847
      %v2849 = vpop.f32.mrb[0].mxu0
      %2850 = vmatprep.mubr.bf16.mxu0 %v2749
      %2851 = vmatmul.mubr.bf16.gmra.mrb[0].mxu0 %v2748
      %v2852 = vpop.f32.mrb[0].mxu0
      %v2853 = vadd.f32 0.0, %v2852
      %v2854 = vpop.f32.mrb[0].mxu0
      %v2855 = vpop.f32.mrb[0].mxu0
      %v2856 = vadd.f32 0.0, %v2855
      %v2857 = vpop.f32.mrb[0].mxu0
      %2858 = vmatprep.mubr.bf16.mxu0 %v2751
      %2859 = vmatmul.mubr.bf16.gmra.mrb[0].mxu0 %v2750
      %v2860 = vpop.f32.mrb[0].mxu0
      %v2861 = vadd.f32 0.0, %v2860
      %v2862 = vpop.f32.mrb[0].mxu0
      %v2863 = vpop.f32.mrb[0].mxu0
      %v2864 = vadd.f32 0.0, %v2863
      %v2865 = vpop.f32.mrb[0].mxu0
      %2866 = vmatprep.mubr.bf16.mxu0 %v2753
      %2867 = vmatmul.mubr.bf16.gmra.mrb[0].mxu0 %v2752
      %v2868 = vpop.f32.mrb[0].mxu0
      %v2869 = vadd.f32 0.0, %v2868
      %v2870 = vpop.f32.mrb[0].mxu0
      %v2871 = vpop.f32.mrb[0].mxu0
      %v2872 = vadd.f32 0.0, %v2871
      %v2873 = vpop.f32.mrb[0].mxu0
      %2874 = vmatprep.mubr.bf16.mxu0 %v2755
      %2875 = vmatmul.mubr.bf16.gmra.mrb[0].mxu0 %v2754
      %v2876 = vpop.f32.mrb[0].mxu0
      %v2877 = vadd.f32 0.0, %v2876
      %v2878 = vpop.f32.mrb[0].mxu0
      %v2879 = vpop.f32.mrb[0].mxu0
      %v2880 = vadd.f32 0.0, %v2879
      %v2881 = vpop.f32.mrb[0].mxu0
      %2882 = vmatprep.mubr.bf16.mxu0 %v2757
      %2883 = vmatmul.mubr.bf16.gmra.mrb[0].mxu0 %v2756
      %v2884 = vpop.f32.mrb[0].mxu0
      %v2885 = vadd.f32 0.0, %v2884
      %v2886 = vpop.f32.mrb[0].mxu0
      %v2887 = vpop.f32.mrb[0].mxu0
      %v2888 = vadd.f32 0.0, %v2887
      %v2889 = vpop.f32.mrb[0].mxu0
      %2890 = vmatprep.mubr.bf16.mxu0 %v2759
      %2891 = vmatmul.mubr.bf16.gmra.mrb[0].mxu0 %v2758
      %v2892 = vpop.f32.mrb[0].mxu0
      %v2893 = vadd.f32 0.0, %v2892
      %v2894 = vpop.f32.mrb[0].mxu0
      %v2895 = vpop.f32.mrb[0].mxu0
      %v2896 = vadd.f32 0.0, %v2895
      %v2897 = vpop.f32.mrb[0].mxu0
      %2898 = vmatprep.mubr.bf16.mxu0 %v2761
      %2899 = vmatmul.mubr.bf16.gmra.mrb[0].mxu0 %v2760
      %v2900 = vpop.f32.mrb[0].mxu0
      %v2901 = vadd.f32 0.0, %v2900
      %v2902 = vpop.f32.mrb[0].mxu0
      %v2903 = vpop.f32.mrb[0].mxu0
      %v2904 = vadd.f32 0.0, %v2903
      %v2905 = vpop.f32.mrb[0].mxu0
      %2906 = vdwg.mxu0
      %2907 = vset.pattern.permute.xlu0 3
      %2908 = vperm.xlu0 %2907, %v826
      %v2909 = vpop.permute.xlu0 %2908
      %2911 = vset.pattern.permute.xlu0 3
      %2912 = vperm.xlu0 %2911, %v829
      %v2913 = vpop.permute.xlu0 %2912
      %2915 = vset.pattern.permute.xlu0 3
      %2916 = vperm.xlu0 %2915, %v834
      %v2917 = vpop.permute.xlu0 %2916
      %2919 = vset.pattern.permute.xlu0 3
      %2920 = vperm.xlu0 %2919, %v837
      %v2921 = vpop.permute.xlu0 %2920
      %2923 = vset.pattern.permute.xlu0 3
      %2924 = vperm.xlu0 %2923, %v842
      %v2925 = vpop.permute.xlu0 %2924
      %2927 = vset.pattern.permute.xlu0 3
      %2928 = vperm.xlu0 %2927, %v845
      %v2929 = vpop.permute.xlu0 %2928
      %2931 = vset.pattern.permute.xlu0 3
      %2932 = vperm.xlu0 %2931, %v850
      %v2933 = vpop.permute.xlu0 %2932
      %2935 = vset.pattern.permute.xlu0 3
      %2936 = vperm.xlu0 %2935, %v853
      %v2937 = vpop.permute.xlu0 %2936
      %2939 = vset.pattern.permute.xlu0 3
      %2940 = vperm.xlu0 %2939, %v858
      %v2941 = vpop.permute.xlu0 %2940
      %2943 = vset.pattern.permute.xlu0 3
      %2944 = vperm.xlu0 %2943, %v861
      %v2945 = vpop.permute.xlu0 %2944
      %2947 = vset.pattern.permute.xlu0 3
      %2948 = vperm.xlu0 %2947, %v866
      %v2949 = vpop.permute.xlu0 %2948
      %2951 = vset.pattern.permute.xlu0 3
      %2952 = vperm.xlu0 %2951, %v869
      %v2953 = vpop.permute.xlu0 %2952
      %2955 = vset.pattern.permute.xlu0 3
      %2956 = vperm.xlu0 %2955, %v874
      %v2957 = vpop.permute.xlu0 %2956
      %2959 = vset.pattern.permute.xlu0 3
      %2960 = vperm.xlu0 %2959, %v877
      %v2961 = vpop.permute.xlu0 %2960
      %2963 = vset.pattern.permute.xlu0 3
      %2964 = vperm.xlu0 %2963, %v882
      %v2965 = vpop.permute.xlu0 %2964
      %2967 = vset.pattern.permute.xlu0 3
      %2968 = vperm.xlu0 %2967, %v885
      %v2969 = vpop.permute.xlu0 %2968
      %v2971 = vlaneseq
      %v2972 = vshrl.u32 %v2971, 7
      %v2973 = vsub.s32 3, %v2972
      %v2974 = vrot.slane %v668, %v2973
      %v2975 = vlaneseq
      %v2976 = vshrl.u32 %v2975, 7
      %v2977 = vsub.s32 3, %v2976
      %v2978 = vrot.slane %v670, %v2977
      %v2979 = vadd.f32 %v2909, %v2974
      %v2980 = vadd.f32 %v2909, %v2978
      %v2981 = vadd.f32 %v2913, %v2974
      %v2982 = vadd.f32 %v2913, %v2978
      %v2983 = vadd.f32 %v2917, %v2974
      %v2984 = vadd.f32 %v2917, %v2978
      %v2985 = vadd.f32 %v2921, %v2974
      %v2986 = vadd.f32 %v2921, %v2978
      %v2987 = vadd.f32 %v2925, %v2974
      %v2988 = vadd.f32 %v2925, %v2978
      %v2989 = vadd.f32 %v2929, %v2974
      %v2990 = vadd.f32 %v2929, %v2978
      %v2991 = vadd.f32 %v2933, %v2974
      %v2992 = vadd.f32 %v2933, %v2978
      %v2993 = vadd.f32 %v2937, %v2974
      %v2994 = vadd.f32 %v2937, %v2978
      %v2995 = vadd.f32 %v2941, %v2974
      %v2996 = vadd.f32 %v2941, %v2978
      %v2997 = vadd.f32 %v2945, %v2974
      %v2998 = vadd.f32 %v2945, %v2978
      %v2999 = vadd.f32 %v2949, %v2974
      %v3000 = vadd.f32 %v2949, %v2978
      %v3001 = vadd.f32 %v2953, %v2974
      %v3002 = vadd.f32 %v2953, %v2978
      %v3003 = vadd.f32 %v2957, %v2974
      %v3004 = vadd.f32 %v2957, %v2978
      %v3005 = vadd.f32 %v2961, %v2974
      %v3006 = vadd.f32 %v2961, %v2978
      %v3007 = vadd.f32 %v2965, %v2974
      %v3008 = vadd.f32 %v2965, %v2978
      %v3009 = vadd.f32 %v2969, %v2974
      %v3010 = vadd.f32 %v2969, %v2978
      %vm3011 = vcmp.gt.f32.partialorder %v2979, 0.0
      %vm3012 = vcmp.gt.f32.partialorder %v2980, 0.0
      %vm3013 = vcmp.gt.f32.partialorder %v2981, 0.0
      %vm3014 = vcmp.gt.f32.partialorder %v2982, 0.0
      %vm3015 = vcmp.gt.f32.partialorder %v2983, 0.0
      %vm3016 = vcmp.gt.f32.partialorder %v2984, 0.0
      %vm3017 = vcmp.gt.f32.partialorder %v2985, 0.0
      %vm3018 = vcmp.gt.f32.partialorder %v2986, 0.0
      %vm3019 = vcmp.gt.f32.partialorder %v2987, 0.0
      %vm3020 = vcmp.gt.f32.partialorder %v2988, 0.0
      %vm3021 = vcmp.gt.f32.partialorder %v2989, 0.0
      %vm3022 = vcmp.gt.f32.partialorder %v2990, 0.0
      %vm3023 = vcmp.gt.f32.partialorder %v2991, 0.0
      %vm3024 = vcmp.gt.f32.partialorder %v2992, 0.0
      %vm3025 = vcmp.gt.f32.partialorder %v2993, 0.0
      %vm3026 = vcmp.gt.f32.partialorder %v2994, 0.0
      %vm3027 = vcmp.gt.f32.partialorder %v2995, 0.0
      %vm3028 = vcmp.gt.f32.partialorder %v2996, 0.0
      %vm3029 = vcmp.gt.f32.partialorder %v2997, 0.0
      %vm3030 = vcmp.gt.f32.partialorder %v2998, 0.0
      %vm3031 = vcmp.gt.f32.partialorder %v2999, 0.0
      %vm3032 = vcmp.gt.f32.partialorder %v3000, 0.0
      %vm3033 = vcmp.gt.f32.partialorder %v3001, 0.0
      %vm3034 = vcmp.gt.f32.partialorder %v3002, 0.0
      %vm3035 = vcmp.gt.f32.partialorder %v3003, 0.0
      %vm3036 = vcmp.gt.f32.partialorder %v3004, 0.0
      %vm3037 = vcmp.gt.f32.partialorder %v3005, 0.0
      %vm3038 = vcmp.gt.f32.partialorder %v3006, 0.0
      %vm3039 = vcmp.gt.f32.partialorder %v3007, 0.0
      %vm3040 = vcmp.gt.f32.partialorder %v3008, 0.0
      %vm3041 = vcmp.gt.f32.partialorder %v3009, 0.0
      %vm3042 = vcmp.gt.f32.partialorder %v3010, 0.0
      %v3043 = vmul.f32 %v2979, 0.2
      %v3044 = vmul.f32 %v2980, 0.2
      %v3045 = vmul.f32 %v2981, 0.2
      %v3046 = vmul.f32 %v2982, 0.2
      %v3047 = vmul.f32 %v2983, 0.2
      %v3048 = vmul.f32 %v2984, 0.2
      %v3049 = vmul.f32 %v2985, 0.2
      %v3050 = vmul.f32 %v2986, 0.2
      %v3051 = vmul.f32 %v2987, 0.2
      %v3052 = vmul.f32 %v2988, 0.2
      %v3053 = vmul.f32 %v2989, 0.2
      %v3054 = vmul.f32 %v2990, 0.2
      %v3055 = vmul.f32 %v2991, 0.2
      %v3056 = vmul.f32 %v2992, 0.2
      %v3057 = vmul.f32 %v2993, 0.2
      %v3058 = vmul.f32 %v2994, 0.2
      %v3059 = vmul.f32 %v2995, 0.2
      %v3060 = vmul.f32 %v2996, 0.2
      %v3061 = vmul.f32 %v2997, 0.2
      %v3062 = vmul.f32 %v2998, 0.2
      %v3063 = vmul.f32 %v2999, 0.2
      %v3064 = vmul.f32 %v3000, 0.2
      %v3065 = vmul.f32 %v3001, 0.2
      %v3066 = vmul.f32 %v3002, 0.2
      %v3067 = vmul.f32 %v3003, 0.2
      %v3068 = vmul.f32 %v3004, 0.2
      %v3069 = vmul.f32 %v3005, 0.2
      %v3070 = vmul.f32 %v3006, 0.2
      %v3071 = vmul.f32 %v3007, 0.2
      %v3072 = vmul.f32 %v3008, 0.2
      %v3073 = vmul.f32 %v3009, 0.2
      %v3074 = vmul.f32 %v3010, 0.2
      %v3075 = vsel %vm3011, %v2979, %v3043
      %v3076 = vsel %vm3012, %v2980, %v3044
      %v3077 = vsel %vm3013, %v2981, %v3045
      %v3078 = vsel %vm3014, %v2982, %v3046
      %v3079 = vsel %vm3015, %v2983, %v3047
      %v3080 = vsel %vm3016, %v2984, %v3048
      %v3081 = vsel %vm3017, %v2985, %v3049
      %v3082 = vsel %vm3018, %v2986, %v3050
      %v3083 = vsel %vm3019, %v2987, %v3051
      %v3084 = vsel %vm3020, %v2988, %v3052
      %v3085 = vsel %vm3021, %v2989, %v3053
      %v3086 = vsel %vm3022, %v2990, %v3054
      %v3087 = vsel %vm3023, %v2991, %v3055
      %v3088 = vsel %vm3024, %v2992, %v3056
      %v3089 = vsel %vm3025, %v2993, %v3057
      %v3090 = vsel %vm3026, %v2994, %v3058
      %v3091 = vsel %vm3027, %v2995, %v3059
      %v3092 = vsel %vm3028, %v2996, %v3060
      %v3093 = vsel %vm3029, %v2997, %v3061
      %v3094 = vsel %vm3030, %v2998, %v3062
      %v3095 = vsel %vm3031, %v2999, %v3063
      %v3096 = vsel %vm3032, %v3000, %v3064
      %v3097 = vsel %vm3033, %v3001, %v3065
      %v3098 = vsel %vm3034, %v3002, %v3066
      %v3099 = vsel %vm3035, %v3003, %v3067
      %v3100 = vsel %vm3036, %v3004, %v3068
      %v3101 = vsel %vm3037, %v3005, %v3069
      %v3102 = vsel %vm3038, %v3006, %v3070
      %v3103 = vsel %vm3039, %v3007, %v3071
      %v3104 = vsel %vm3040, %v3008, %v3072
      %v3105 = vsel %vm3041, %v3009, %v3073
      %v3106 = vsel %vm3042, %v3010, %v3074
      %v3107 = vadd.f32 %v3075, %v992
      %v3108 = vadd.f32 %v3076, %v993
      %v3109 = vadd.f32 %v3077, %v994
      %v3110 = vadd.f32 %v3078, %v995
      %v3111 = vadd.f32 %v3079, %v996
      %v3112 = vadd.f32 %v3080, %v997
      %v3113 = vadd.f32 %v3081, %v998
      %v3114 = vadd.f32 %v3082, %v999
      %v3115 = vadd.f32 %v3083, %v1000
      %v3116 = vadd.f32 %v3084, %v1001
      %v3117 = vadd.f32 %v3085, %v1002
      %v3118 = vadd.f32 %v3086, %v1003
      %v3119 = vadd.f32 %v3087, %v1004
      %v3120 = vadd.f32 %v3088, %v1005
      %v3121 = vadd.f32 %v3089, %v1006
      %v3122 = vadd.f32 %v3090, %v1007
      %v3123 = vadd.f32 %v3091, %v1008
      %v3124 = vadd.f32 %v3092, %v1009
      %v3125 = vadd.f32 %v3093, %v1010
      %v3126 = vadd.f32 %v3094, %v1011
      %v3127 = vadd.f32 %v3095, %v1012
      %v3128 = vadd.f32 %v3096, %v1013
      %v3129 = vadd.f32 %v3097, %v1014
      %v3130 = vadd.f32 %v3098, %v1015
      %v3131 = vadd.f32 %v3099, %v1016
      %v3132 = vadd.f32 %v3100, %v1017
      %v3133 = vadd.f32 %v3101, %v1018
      %v3134 = vadd.f32 %v3102, %v1019
      %v3135 = vadd.f32 %v3103, %v1020
      %v3136 = vadd.f32 %v3104, %v1021
      %v3137 = vadd.f32 %v3105, %v1022
      %v3138 = vadd.f32 %v3106, %v1023
      %v3139 = vmax.f32 %v3107, %v3108
      %3140 = vmax.xlane.f32.xlu0 %v3139
      %v3141 = vpop.xlane.xlu0 %3140
      %v3142 = vmax.f32 %v3109, %v3110
      %3143 = vmax.xlane.f32.xlu0 %v3142
      %v3144 = vpop.xlane.xlu0 %3143
      %v3145 = vmax.f32 %v3111, %v3112
      %3146 = vmax.xlane.f32.xlu0 %v3145
      %v3147 = vpop.xlane.xlu0 %3146
      %v3148 = vmax.f32 %v3113, %v3114
      %3149 = vmax.xlane.f32.xlu0 %v3148
      %v3150 = vpop.xlane.xlu0 %3149
      %v3151 = vmax.f32 %v3115, %v3116
      %3152 = vmax.xlane.f32.xlu0 %v3151
      %v3153 = vpop.xlane.xlu0 %3152
      %v3154 = vmax.f32 %v3117, %v3118
      %3155 = vmax.xlane.f32.xlu0 %v3154
      %v3156 = vpop.xlane.xlu0 %3155
      %v3157 = vmax.f32 %v3119, %v3120
      %3158 = vmax.xlane.f32.xlu0 %v3157
      %v3159 = vpop.xlane.xlu0 %3158
      %v3160 = vmax.f32 %v3121, %v3122
      %3161 = vmax.xlane.f32.xlu0 %v3160
      %v3162 = vpop.xlane.xlu0 %3161
      %v3163 = vmax.f32 %v3123, %v3124
      %3164 = vmax.xlane.f32.xlu0 %v3163
      %v3165 = vpop.xlane.xlu0 %3164
      %v3166 = vmax.f32 %v3125, %v3126
      %3167 = vmax.xlane.f32.xlu0 %v3166
      %v3168 = vpop.xlane.xlu0 %3167
      %v3169 = vmax.f32 %v3127, %v3128
      %3170 = vmax.xlane.f32.xlu0 %v3169
      %v3171 = vpop.xlane.xlu0 %3170
      %v3172 = vmax.f32 %v3129, %v3130
      %3173 = vmax.xlane.f32.xlu0 %v3172
      %v3174 = vpop.xlane.xlu0 %3173
      %v3175 = vmax.f32 %v3131, %v3132
      %3176 = vmax.xlane.f32.xlu0 %v3175
      %v3177 = vpop.xlane.xlu0 %3176
      %v3178 = vmax.f32 %v3133, %v3134
      %3179 = vmax.xlane.f32.xlu0 %v3178
      %v3180 = vpop.xlane.xlu0 %3179
      %v3181 = vmax.f32 %v3135, %v3136
      %3182 = vmax.xlane.f32.xlu0 %v3181
      %v3183 = vpop.xlane.xlu0 %3182
      %v3184 = vmax.f32 %v3137, %v3138
      %3185 = vmax.xlane.f32.xlu0 %v3184
      %v3186 = vpop.xlane.xlu0 %3185
      %v3187 = vsub.f32 %v3107, %v3141
      %v3188 = vsub.f32 %v3108, %v3141
      %v3189 = vsub.f32 %v3109, %v3144
      %v3190 = vsub.f32 %v3110, %v3144
      %v3191 = vsub.f32 %v3111, %v3147
      %v3192 = vsub.f32 %v3112, %v3147
      %v3193 = vsub.f32 %v3113, %v3150
      %v3194 = vsub.f32 %v3114, %v3150
      %v3195 = vsub.f32 %v3115, %v3153
      %v3196 = vsub.f32 %v3116, %v3153
      %v3197 = vsub.f32 %v3117, %v3156
      %v3198 = vsub.f32 %v3118, %v3156
      %v3199 = vsub.f32 %v3119, %v3159
      %v3200 = vsub.f32 %v3120, %v3159
      %v3201 = vsub.f32 %v3121, %v3162
      %v3202 = vsub.f32 %v3122, %v3162
      %v3203 = vsub.f32 %v3123, %v3165
      %v3204 = vsub.f32 %v3124, %v3165
      %v3205 = vsub.f32 %v3125, %v3168
      %v3206 = vsub.f32 %v3126, %v3168
      %v3207 = vsub.f32 %v3127, %v3171
      %v3208 = vsub.f32 %v3128, %v3171
      %v3209 = vsub.f32 %v3129, %v3174
      %v3210 = vsub.f32 %v3130, %v3174
      %v3211 = vsub.f32 %v3131, %v3177
      %v3212 = vsub.f32 %v3132, %v3177
      %v3213 = vsub.f32 %v3133, %v3180
      %v3214 = vsub.f32 %v3134, %v3180
      %v3215 = vsub.f32 %v3135, %v3183
      %v3216 = vsub.f32 %v3136, %v3183
      %v3217 = vsub.f32 %v3137, %v3186
      %v3218 = vsub.f32 %v3138, %v3186
      %v3219 = vmul.f32 %v3187, 1.442695
      %v3220 = vpow.pop %v3219
      %v3221 = vmul.f32 %v3188, 1.442695
      %v3222 = vpow.pop %v3221
      %v3223 = vmul.f32 %v3189, 1.442695
      %v3224 = vpow.pop %v3223
      %v3225 = vmul.f32 %v3190, 1.442695
      %v3226 = vpow.pop %v3225
      %v3227 = vmul.f32 %v3191, 1.442695
      %v3228 = vpow.pop %v3227
      %v3229 = vmul.f32 %v3192, 1.442695
      %v3230 = vpow.pop %v3229
      %v3231 = vmul.f32 %v3193, 1.442695
      %v3232 = vpow.pop %v3231
      %v3233 = vmul.f32 %v3194, 1.442695
      %v3234 = vpow.pop %v3233
      %v3235 = vmul.f32 %v3195, 1.442695
      %v3236 = vpow.pop %v3235
      %v3237 = vmul.f32 %v3196, 1.442695
      %v3238 = vpow.pop %v3237
      %v3239 = vmul.f32 %v3197, 1.442695
      %v3240 = vpow.pop %v3239
      %v3241 = vmul.f32 %v3198, 1.442695
      %v3242 = vpow.pop %v3241
      %v3243 = vmul.f32 %v3199, 1.442695
      %v3244 = vpow.pop %v3243
      %v3245 = vmul.f32 %v3200, 1.442695
      %v3246 = vpow.pop %v3245
      %v3247 = vmul.f32 %v3201, 1.442695
      %v3248 = vpow.pop %v3247
      %v3249 = vmul.f32 %v3202, 1.442695
      %v3250 = vpow.pop %v3249
      %v3251 = vmul.f32 %v3203, 1.442695
      %v3252 = vpow.pop %v3251
      %v3253 = vmul.f32 %v3204, 1.442695
      %v3254 = vpow.pop %v3253
      %v3255 = vmul.f32 %v3205, 1.442695
      %v3256 = vpow.pop %v3255
      %v3257 = vmul.f32 %v3206, 1.442695
      %v3258 = vpow.pop %v3257
      %v3259 = vmul.f32 %v3207, 1.442695
      %v3260 = vpow.pop %v3259
      %v3261 = vmul.f32 %v3208, 1.442695
      %v3262 = vpow.pop %v3261
      %v3263 = vmul.f32 %v3209, 1.442695
      %v3264 = vpow.pop %v3263
      %v3265 = vmul.f32 %v3210, 1.442695
      %v3266 = vpow.pop %v3265
      %v3267 = vmul.f32 %v3211, 1.442695
      %v3268 = vpow.pop %v3267
      %v3269 = vmul.f32 %v3212, 1.442695
      %v3270 = vpow.pop %v3269
      %v3271 = vmul.f32 %v3213, 1.442695
      %v3272 = vpow.pop %v3271
      %v3273 = vmul.f32 %v3214, 1.442695
      %v3274 = vpow.pop %v3273
      %v3275 = vmul.f32 %v3215, 1.442695
      %v3276 = vpow.pop %v3275
      %v3277 = vmul.f32 %v3216, 1.442695
      %v3278 = vpow.pop %v3277
      %v3279 = vmul.f32 %v3217, 1.442695
      %v3280 = vpow.pop %v3279
      %v3281 = vmul.f32 %v3218, 1.442695
      %v3282 = vpow.pop %v3281
      %v3283 = vadd.f32 %v3220, %v3222
      %3284 = vadd.xlane.f32.xlu0 %v3283
      %v3285 = vpop.xlane.xlu0 %3284
      %v3286 = vadd.f32 %v3224, %v3226
      %3287 = vadd.xlane.f32.xlu0 %v3286
      %v3288 = vpop.xlane.xlu0 %3287
      %v3289 = vadd.f32 %v3228, %v3230
      %3290 = vadd.xlane.f32.xlu0 %v3289
      %v3291 = vpop.xlane.xlu0 %3290
      %v3292 = vadd.f32 %v3232, %v3234
      %3293 = vadd.xlane.f32.xlu0 %v3292
      %v3294 = vpop.xlane.xlu0 %3293
      %v3295 = vadd.f32 %v3236, %v3238
      %3296 = vadd.xlane.f32.xlu0 %v3295
      %v3297 = vpop.xlane.xlu0 %3296
      %v3298 = vadd.f32 %v3240, %v3242
      %3299 = vadd.xlane.f32.xlu0 %v3298
      %v3300 = vpop.xlane.xlu0 %3299
      %v3301 = vadd.f32 %v3244, %v3246
      %3302 = vadd.xlane.f32.xlu0 %v3301
      %v3303 = vpop.xlane.xlu0 %3302
      %v3304 = vadd.f32 %v3248, %v3250
      %3305 = vadd.xlane.f32.xlu0 %v3304
      %v3306 = vpop.xlane.xlu0 %3305
      %v3307 = vadd.f32 %v3252, %v3254
      %3308 = vadd.xlane.f32.xlu0 %v3307
      %v3309 = vpop.xlane.xlu0 %3308
      %v3310 = vadd.f32 %v3256, %v3258
      %3311 = vadd.xlane.f32.xlu0 %v3310
      %v3312 = vpop.xlane.xlu0 %3311
      %v3313 = vadd.f32 %v3260, %v3262
      %3314 = vadd.xlane.f32.xlu0 %v3313
      %v3315 = vpop.xlane.xlu0 %3314
      %v3316 = vadd.f32 %v3264, %v3266
      %3317 = vadd.xlane.f32.xlu0 %v3316
      %v3318 = vpop.xlane.xlu0 %3317
      %v3319 = vadd.f32 %v3268, %v3270
      %3320 = vadd.xlane.f32.xlu0 %v3319
      %v3321 = vpop.xlane.xlu0 %3320
      %v3322 = vadd.f32 %v3272, %v3274
      %3323 = vadd.xlane.f32.xlu0 %v3322
      %v3324 = vpop.xlane.xlu0 %3323
      %v3325 = vadd.f32 %v3276, %v3278
      %3326 = vadd.xlane.f32.xlu0 %v3325
      %v3327 = vpop.xlane.xlu0 %3326
      %v3328 = vadd.f32 %v3280, %v3282
      %3329 = vadd.xlane.f32.xlu0 %v3328
      %v3330 = vpop.xlane.xlu0 %3329
      %v3331 = vrcp.pop %v3285
      %v3332 = vrcp.pop %v3288
      %v3333 = vrcp.pop %v3291
      %v3334 = vrcp.pop %v3294
      %v3335 = vrcp.pop %v3297
      %v3336 = vrcp.pop %v3300
      %v3337 = vrcp.pop %v3303
      %v3338 = vrcp.pop %v3306
      %v3339 = vrcp.pop %v3309
      %v3340 = vrcp.pop %v3312
      %v3341 = vrcp.pop %v3315
      %v3342 = vrcp.pop %v3318
      %v3343 = vrcp.pop %v3321
      %v3344 = vrcp.pop %v3324
      %v3345 = vrcp.pop %v3327
      %v3346 = vrcp.pop %v3330
      %v3347 = vmul.f32 %v3220, %v3331
      %v3348 = vmul.f32 %v3222, %v3331
      %v3349 = vmul.f32 %v3224, %v3332
      %v3350 = vmul.f32 %v3226, %v3332
      %v3351 = vmul.f32 %v3228, %v3333
      %v3352 = vmul.f32 %v3230, %v3333
      %v3353 = vmul.f32 %v3232, %v3334
      %v3354 = vmul.f32 %v3234, %v3334
      %v3355 = vmul.f32 %v3236, %v3335
      %v3356 = vmul.f32 %v3238, %v3335
      %v3357 = vmul.f32 %v3240, %v3336
      %v3358 = vmul.f32 %v3242, %v3336
      %v3359 = vmul.f32 %v3244, %v3337
      %v3360 = vmul.f32 %v3246, %v3337
      %v3361 = vmul.f32 %v3248, %v3338
      %v3362 = vmul.f32 %v3250, %v3338
      %v3363 = vmul.f32 %v3252, %v3339
      %v3364 = vmul.f32 %v3254, %v3339
      %v3365 = vmul.f32 %v3256, %v3340
      %v3366 = vmul.f32 %v3258, %v3340
      %v3367 = vmul.f32 %v3260, %v3341
      %v3368 = vmul.f32 %v3262, %v3341
      %v3369 = vmul.f32 %v3264, %v3342
      %v3370 = vmul.f32 %v3266, %v3342
      %v3371 = vmul.f32 %v3268, %v3343
      %v3372 = vmul.f32 %v3270, %v3343
      %v3373 = vmul.f32 %v3272, %v3344
      %v3374 = vmul.f32 %v3274, %v3344
      %v3375 = vmul.f32 %v3276, %v3345
      %v3376 = vmul.f32 %v3278, %v3345
      %v3377 = vmul.f32 %v3280, %v3346
      %v3378 = vmul.f32 %v3282, %v3346
      %v3379 = vpack.c.bf16 %v3349, %v3347
      %v3380 = vpack.c.bf16 %v3350, %v3348
      %v3381 = vpack.c.bf16 %v3353, %v3351
      %v3382 = vpack.c.bf16 %v3354, %v3352
      %v3383 = vpack.c.bf16 %v3357, %v3355
      %v3384 = vpack.c.bf16 %v3358, %v3356
      %v3385 = vpack.c.bf16 %v3361, %v3359
      %v3386 = vpack.c.bf16 %v3362, %v3360
      %v3387 = vpack.c.bf16 %v3365, %v3363
      %v3388 = vpack.c.bf16 %v3366, %v3364
      %v3389 = vpack.c.bf16 %v3369, %v3367
      %v3390 = vpack.c.bf16 %v3370, %v3368
      %v3391 = vpack.c.bf16 %v3373, %v3371
      %v3392 = vpack.c.bf16 %v3374, %v3372
      %v3393 = vpack.c.bf16 %v3377, %v3375
      %v3394 = vpack.c.bf16 %v3378, %v3376
      %3395 = vrot.lane.b32.xlu0 %v613, 104
      %v3396 = vpop.permute.xlu0 %3395
      %3397 = vrot.lane.b32.xlu0 %v614, 104
      %v3398 = vpop.permute.xlu0 %3397
      %3399 = vrot.lane.b32.xlu0 %v615, 104
      %v3400 = vpop.permute.xlu0 %3399
      %3401 = vrot.lane.b32.xlu0 %v616, 104
      %v3402 = vpop.permute.xlu0 %3401
      %3403 = vrot.lane.b32.xlu0 %v617, 104
      %v3404 = vpop.permute.xlu0 %3403
      %3405 = vrot.lane.b32.xlu0 %v618, 104
      %v3406 = vpop.permute.xlu0 %3405
      %3407 = vrot.lane.b32.xlu0 %v619, 104
      %v3408 = vpop.permute.xlu0 %3407
      %3409 = vrot.lane.b32.xlu0 %v620, 104
      %v3410 = vpop.permute.xlu0 %3409
      %3411 = vrot.lane.b32.xlu0 %v621, 104
      %v3412 = vpop.permute.xlu0 %3411
      %3413 = vrot.lane.b32.xlu0 %v622, 104
      %v3414 = vpop.permute.xlu0 %3413
      %3415 = vrot.lane.b32.xlu0 %v623, 104
      %v3416 = vpop.permute.xlu0 %3415
      %3417 = vrot.lane.b32.xlu0 %v624, 104
      %v3418 = vpop.permute.xlu0 %3417
      %3419 = vrot.lane.b32.xlu0 %v625, 104
      %v3420 = vpop.permute.xlu0 %3419
      %3421 = vrot.lane.b32.xlu0 %v626, 104
      %v3422 = vpop.permute.xlu0 %3421
      %3423 = vrot.lane.b32.xlu0 %v627, 104
      %v3424 = vpop.permute.xlu0 %3423
      %3425 = vrot.lane.b32.xlu0 %v628, 104
      %v3426 = vpop.permute.xlu0 %3425
      %3443 = vmatprep.subr.bf16.mxu0 0
      %3444 = vmatpush1.bf16.msra.mxu0 %v3396
      %3445 = vmatprep.subr.bf16.mxu0 0
      %3446 = vmatpush1.bf16.msra.mxu0 %v3398
      %3447 = vmatprep.subr.bf16.mxu0 0
      %3448 = vmatpush1.bf16.msra.mxu0 %v3400
      %3449 = vmatprep.subr.bf16.mxu0 0
      %3450 = vmatpush1.bf16.msra.mxu0 %v3402
      %3451 = vmatprep.subr.bf16.mxu0 0
      %3452 = vmatpush1.bf16.msra.mxu0 %v3404
      %3453 = vmatprep.subr.bf16.mxu0 0
      %3454 = vmatpush1.bf16.msra.mxu0 %v3406
      %3455 = vmatprep.subr.bf16.mxu0 0
      %3456 = vmatpush1.bf16.msra.mxu0 %v3408
      %3457 = vmatprep.subr.bf16.mxu0 0
      %3458 = vmatpush1.bf16.msra.mxu0 %v3410
      %3459 = vmatprep.subr.bf16.mxu0 0
      %3460 = vmatpush1.bf16.msra.mxu0 %v3412
      %3461 = vmatprep.subr.bf16.mxu0 0
      %3462 = vmatpush1.bf16.msra.mxu0 %v3414
      %3463 = vmatprep.subr.bf16.mxu0 0
      %3464 = vmatpush1.bf16.msra.mxu0 %v3416
      %3465 = vmatprep.subr.bf16.mxu0 0
      %3466 = vmatpush1.bf16.msra.mxu0 %v3418
      %3467 = vmatprep.subr.bf16.mxu0 0
      %3468 = vmatpush1.bf16.msra.mxu0 %v3420
      %3469 = vmatprep.subr.bf16.mxu0 0
      %3470 = vmatpush1.bf16.msra.mxu0 %v3422
      %3471 = vmatprep.subr.bf16.mxu0 0
      %3472 = vmatpush1.bf16.msra.mxu0 %v3424
      %3473 = vmatprep.subr.bf16.mxu0 0
      %3474 = vmatpush1.bf16.msra.mxu0 %v3426
      %3475 = vmatprep.mubr.bf16.mxu0 %v3380
      %3476 = vmatmul.mubr.bf16.gmra.mrb[0].mxu0 %v3379
      %v3477 = vpop.f32.mrb[0].mxu0
      %v3478 = vadd.f32 0.0, %v3477
      %v3479 = vpop.f32.mrb[0].mxu0
      %v3480 = vpop.f32.mrb[0].mxu0
      %v3481 = vadd.f32 0.0, %v3480
      %v3482 = vpop.f32.mrb[0].mxu0
      %3483 = vmatprep.mubr.bf16.mxu0 %v3382
      %3484 = vmatmul.mubr.bf16.gmra.mrb[0].mxu0 %v3381
      %v3485 = vpop.f32.mrb[0].mxu0
      %v3486 = vadd.f32 0.0, %v3485
      %v3487 = vpop.f32.mrb[0].mxu0
      %v3488 = vpop.f32.mrb[0].mxu0
      %v3489 = vadd.f32 0.0, %v3488
      %v3490 = vpop.f32.mrb[0].mxu0
      %3491 = vmatprep.mubr.bf16.mxu0 %v3384
      %3492 = vmatmul.mubr.bf16.gmra.mrb[0].mxu0 %v3383
      %v3493 = vpop.f32.mrb[0].mxu0
      %v3494 = vadd.f32 0.0, %v3493
      %v3495 = vpop.f32.mrb[0].mxu0
      %v3496 = vpop.f32.mrb[0].mxu0
      %v3497 = vadd.f32 0.0, %v3496
      %v3498 = vpop.f32.mrb[0].mxu0
      %3499 = vmatprep.mubr.bf16.mxu0 %v3386
      %3500 = vmatmul.mubr.bf16.gmra.mrb[0].mxu0 %v3385
      %v3501 = vpop.f32.mrb[0].mxu0
      %v3502 = vadd.f32 0.0, %v3501
      %v3503 = vpop.f32.mrb[0].mxu0
      %v3504 = vpop.f32.mrb[0].mxu0
      %v3505 = vadd.f32 0.0, %v3504
      %v3506 = vpop.f32.mrb[0].mxu0
      %3507 = vmatprep.mubr.bf16.mxu0 %v3388
      %3508 = vmatmul.mubr.bf16.gmra.mrb[0].mxu0 %v3387
      %v3509 = vpop.f32.mrb[0].mxu0
      %v3510 = vadd.f32 0.0, %v3509
      %v3511 = vpop.f32.mrb[0].mxu0
      %v3512 = vpop.f32.mrb[0].mxu0
      %v3513 = vadd.f32 0.0, %v3512
      %v3514 = vpop.f32.mrb[0].mxu0
      %3515 = vmatprep.mubr.bf16.mxu0 %v3390
      %3516 = vmatmul.mubr.bf16.gmra.mrb[0].mxu0 %v3389
      %v3517 = vpop.f32.mrb[0].mxu0
      %v3518 = vadd.f32 0.0, %v3517
      %v3519 = vpop.f32.mrb[0].mxu0
      %v3520 = vpop.f32.mrb[0].mxu0
      %v3521 = vadd.f32 0.0, %v3520
      %v3522 = vpop.f32.mrb[0].mxu0
      %3523 = vmatprep.mubr.bf16.mxu0 %v3392
      %3524 = vmatmul.mubr.bf16.gmra.mrb[0].mxu0 %v3391
      %v3525 = vpop.f32.mrb[0].mxu0
      %v3526 = vadd.f32 0.0, %v3525
      %v3527 = vpop.f32.mrb[0].mxu0
      %v3528 = vpop.f32.mrb[0].mxu0
      %v3529 = vadd.f32 0.0, %v3528
      %v3530 = vpop.f32.mrb[0].mxu0
      %3531 = vmatprep.mubr.bf16.mxu0 %v3394
      %3532 = vmatmul.mubr.bf16.gmra.mrb[0].mxu0 %v3393
      %v3533 = vpop.f32.mrb[0].mxu0
      %v3534 = vadd.f32 0.0, %v3533
      %v3535 = vpop.f32.mrb[0].mxu0
      %v3536 = vpop.f32.mrb[0].mxu0
      %v3537 = vadd.f32 0.0, %v3536
      %v3538 = vpop.f32.mrb[0].mxu0
      %3539 = vdwg.mxu0
      %3556 = vrot.lane.b32.xlu0 %v2212, 8
      %v3557 = vpop.permute.xlu0 %3556
      %3558 = vrot.lane.b32.xlu0 %v2215, 8
      %v3559 = vpop.permute.xlu0 %3558
      %3560 = vrot.lane.b32.xlu0 %v2220, 8
      %v3561 = vpop.permute.xlu0 %3560
      %3562 = vrot.lane.b32.xlu0 %v2223, 8
      %v3563 = vpop.permute.xlu0 %3562
      %3564 = vrot.lane.b32.xlu0 %v2228, 8
      %v3565 = vpop.permute.xlu0 %3564
      %3566 = vrot.lane.b32.xlu0 %v2231, 8
      %v3567 = vpop.permute.xlu0 %3566
      %3568 = vrot.lane.b32.xlu0 %v2236, 8
      %v3569 = vpop.permute.xlu0 %3568
      %3570 = vrot.lane.b32.xlu0 %v2239, 8
      %v3571 = vpop.permute.xlu0 %3570
      %3572 = vrot.lane.b32.xlu0 %v2244, 8
      %v3573 = vpop.permute.xlu0 %3572
      %3574 = vrot.lane.b32.xlu0 %v2247, 8
      %v3575 = vpop.permute.xlu0 %3574
      %3576 = vrot.lane.b32.xlu0 %v2252, 8
      %v3577 = vpop.permute.xlu0 %3576
      %3578 = vrot.lane.b32.xlu0 %v2255, 8
      %v3579 = vpop.permute.xlu0 %3578
      %3580 = vrot.lane.b32.xlu0 %v2260, 8
      %v3581 = vpop.permute.xlu0 %3580
      %3582 = vrot.lane.b32.xlu0 %v2263, 8
      %v3583 = vpop.permute.xlu0 %3582
      %3584 = vrot.lane.b32.xlu0 %v2268, 8
      %v3585 = vpop.permute.xlu0 %3584
      %3586 = vrot.lane.b32.xlu0 %v2271, 8
      %v3587 = vpop.permute.xlu0 %3586
      %3620 = vrot.lane.b32.xlu0 %v2845, 16
      %v3621 = vpop.permute.xlu0 %3620
      %3622 = vrot.lane.b32.xlu0 %v2848, 16
      %v3623 = vpop.permute.xlu0 %3622
      %3624 = vrot.lane.b32.xlu0 %v2853, 16
      %v3625 = vpop.permute.xlu0 %3624
      %3626 = vrot.lane.b32.xlu0 %v2856, 16
      %v3627 = vpop.permute.xlu0 %3626
      %3628 = vrot.lane.b32.xlu0 %v2861, 16
      %v3629 = vpop.permute.xlu0 %3628
      %3630 = vrot.lane.b32.xlu0 %v2864, 16
      %v3631 = vpop.permute.xlu0 %3630
      %3632 = vrot.lane.b32.xlu0 %v2869, 16
      %v3633 = vpop.permute.xlu0 %3632
      %3634 = vrot.lane.b32.xlu0 %v2872, 16
      %v3635 = vpop.permute.xlu0 %3634
      %3636 = vrot.lane.b32.xlu0 %v2877, 16
      %v3637 = vpop.permute.xlu0 %3636
      %3638 = vrot.lane.b32.xlu0 %v2880, 16
      %v3639 = vpop.permute.xlu0 %3638
      %3640 = vrot.lane.b32.xlu0 %v2885, 16
      %v3641 = vpop.permute.xlu0 %3640
      %3642 = vrot.lane.b32.xlu0 %v2888, 16
      %v3643 = vpop.permute.xlu0 %3642
      %3644 = vrot.lane.b32.xlu0 %v2893, 16
      %v3645 = vpop.permute.xlu0 %3644
      %3646 = vrot.lane.b32.xlu0 %v2896, 16
      %v3647 = vpop.permute.xlu0 %3646
      %3648 = vrot.lane.b32.xlu0 %v2901, 16
      %v3649 = vpop.permute.xlu0 %3648
      %3650 = vrot.lane.b32.xlu0 %v2904, 16
      %v3651 = vpop.permute.xlu0 %3650
      %3684 = vrot.lane.b32.xlu0 %v3478, 24
      %v3685 = vpop.permute.xlu0 %3684
      %3686 = vrot.lane.b32.xlu0 %v3481, 24
      %v3687 = vpop.permute.xlu0 %3686
      %3688 = vrot.lane.b32.xlu0 %v3486, 24
      %v3689 = vpop.permute.xlu0 %3688
      %3690 = vrot.lane.b32.xlu0 %v3489, 24
      %v3691 = vpop.permute.xlu0 %3690
      %3692 = vrot.lane.b32.xlu0 %v3494, 24
      %v3693 = vpop.permute.xlu0 %3692
      %3694 = vrot.lane.b32.xlu0 %v3497, 24
      %v3695 = vpop.permute.xlu0 %3694
      %3696 = vrot.lane.b32.xlu0 %v3502, 24
      %v3697 = vpop.permute.xlu0 %3696
      %3698 = vrot.lane.b32.xlu0 %v3505, 24
      %v3699 = vpop.permute.xlu0 %3698
      %3700 = vrot.lane.b32.xlu0 %v3510, 24
      %v3701 = vpop.permute.xlu0 %3700
      %3702 = vrot.lane.b32.xlu0 %v3513, 24
      %v3703 = vpop.permute.xlu0 %3702
      %3704 = vrot.lane.b32.xlu0 %v3518, 24
      %v3705 = vpop.permute.xlu0 %3704
      %3706 = vrot.lane.b32.xlu0 %v3521, 24
      %v3707 = vpop.permute.xlu0 %3706
      %3708 = vrot.lane.b32.xlu0 %v3526, 24
      %v3709 = vpop.permute.xlu0 %3708
      %3710 = vrot.lane.b32.xlu0 %v3529, 24
      %v3711 = vpop.permute.xlu0 %3710
      %3712 = vrot.lane.b32.xlu0 %v3534, 24
      %v3713 = vpop.permute.xlu0 %3712
      %3714 = vrot.lane.b32.xlu0 %v3537, 24
      %v3715 = vpop.permute.xlu0 %3714
      %vm3732 = vcmask 64512
      %v3733 = vsel %vm3732, %v1563, %v3557
      %v3734 = vsel %vm3732, %v1566, %v3559
      %v3735 = vsel %vm3732, %v1571, %v3561
      %v3736 = vsel %vm3732, %v1574, %v3563
      %v3737 = vsel %vm3732, %v1579, %v3565
      %v3738 = vsel %vm3732, %v1582, %v3567
      %v3739 = vsel %vm3732, %v1587, %v3569
      %v3740 = vsel %vm3732, %v1590, %v3571
      %v3741 = vsel %vm3732, %v1595, %v3573
      %v3742 = vsel %vm3732, %v1598, %v3575
      %v3743 = vsel %vm3732, %v1603, %v3577
      %v3744 = vsel %vm3732, %v1606, %v3579
      %v3745 = vsel %vm3732, %v1611, %v3581
      %v3746 = vsel %vm3732, %v1614, %v3583
      %v3747 = vsel %vm3732, %v1619, %v3585
      %v3748 = vsel %vm3732, %v1622, %v3587
      %vm3749 = vcmask 130048
      %v3750 = vsel %vm3749, %v3733, %v3621
      %v3751 = vsel %vm3749, %v3734, %v3623
      %v3752 = vsel %vm3749, %v3735, %v3625
      %v3753 = vsel %vm3749, %v3736, %v3627
      %v3754 = vsel %vm3749, %v3737, %v3629
      %v3755 = vsel %vm3749, %v3738, %v3631
      %v3756 = vsel %vm3749, %v3739, %v3633
      %v3757 = vsel %vm3749, %v3740, %v3635
      %v3758 = vsel %vm3749, %v3741, %v3637
      %v3759 = vsel %vm3749, %v3742, %v3639
      %v3760 = vsel %vm3749, %v3743, %v3641
      %v3761 = vsel %vm3749, %v3744, %v3643
      %v3762 = vsel %vm3749, %v3745, %v3645
      %v3763 = vsel %vm3749, %v3746, %v3647
      %v3764 = vsel %vm3749, %v3747, %v3649
      %v3765 = vsel %vm3749, %v3748, %v3651
      %vm3766 = vcmask 195584
      %v3767 = vsel %vm3766, %v3750, %v3685
      %v3768 = vsel %vm3766, %v3751, %v3687
      %v3769 = vsel %vm3766, %v3752, %v3689
      %v3770 = vsel %vm3766, %v3753, %v3691
      %v3771 = vsel %vm3766, %v3754, %v3693
      %v3772 = vsel %vm3766, %v3755, %v3695
      %v3773 = vsel %vm3766, %v3756, %v3697
      %v3774 = vsel %vm3766, %v3757, %v3699
      %v3775 = vsel %vm3766, %v3758, %v3701
      %v3776 = vsel %vm3766, %v3759, %v3703
      %v3777 = vsel %vm3766, %v3760, %v3705
      %v3778 = vsel %vm3766, %v3761, %v3707
      %v3779 = vsel %vm3766, %v3762, %v3709
      %v3780 = vsel %vm3766, %v3763, %v3711
      %v3781 = vsel %vm3766, %v3764, %v3713
      %v3782 = vsel %vm3766, %v3765, %v3715
      %v3783 = vld [vmem:[%s4] sm:$0x1]
      %v3785 = vlaneseq
      %v3786 = vshrl.u32 %v3785, 7
      %v3787 = vsub.s32 0, %v3786
      %v3788 = vrot.slane %v3783, %v3787
      %v3790 = vadd.f32 %v3767, %v3788
      %v3791 = vadd.f32 %v3768, %v3788
      %v3792 = vadd.f32 %v3769, %v3788
      %v3793 = vadd.f32 %v3770, %v3788
      %v3794 = vadd.f32 %v3771, %v3788
      %v3795 = vadd.f32 %v3772, %v3788
      %v3796 = vadd.f32 %v3773, %v3788
      %v3797 = vadd.f32 %v3774, %v3788
      %v3798 = vadd.f32 %v3775, %v3788
      %v3799 = vadd.f32 %v3776, %v3788
      %v3800 = vadd.f32 %v3777, %v3788
      %v3801 = vadd.f32 %v3778, %v3788
      %v3802 = vadd.f32 %v3779, %v3788
      %v3803 = vadd.f32 %v3780, %v3788
      %v3804 = vadd.f32 %v3781, %v3788
      %v3805 = vadd.f32 %v3782, %v3788
      %v3806 = vxor.u32 %v3790, 2147483648
      %v3807 = vxor.u32 %v3791, 2147483648
      %v3808 = vxor.u32 %v3792, 2147483648
      %v3809 = vxor.u32 %v3793, 2147483648
      %v3810 = vxor.u32 %v3794, 2147483648
      %v3811 = vxor.u32 %v3795, 2147483648
      %v3812 = vxor.u32 %v3796, 2147483648
      %v3813 = vxor.u32 %v3797, 2147483648
      %v3814 = vxor.u32 %v3798, 2147483648
      %v3815 = vxor.u32 %v3799, 2147483648
      %v3816 = vxor.u32 %v3800, 2147483648
      %v3817 = vxor.u32 %v3801, 2147483648
      %v3818 = vxor.u32 %v3802, 2147483648
      %v3819 = vxor.u32 %v3803, 2147483648
      %v3820 = vxor.u32 %v3804, 2147483648
      %v3821 = vxor.u32 %v3805, 2147483648
      %v3822 = vmul.f32 %v3806, 1.442695
      %v3823 = vpow.pop %v3822
      %v3824 = vmul.f32 %v3807, 1.442695
      %v3825 = vpow.pop %v3824
      %v3826 = vmul.f32 %v3808, 1.442695
      %v3827 = vpow.pop %v3826
      %v3828 = vmul.f32 %v3809, 1.442695
      %v3829 = vpow.pop %v3828
      %v3830 = vmul.f32 %v3810, 1.442695
      %v3831 = vpow.pop %v3830
      %v3832 = vmul.f32 %v3811, 1.442695
      %v3833 = vpow.pop %v3832
      %v3834 = vmul.f32 %v3812, 1.442695
      %v3835 = vpow.pop %v3834
      %v3836 = vmul.f32 %v3813, 1.442695
      %v3837 = vpow.pop %v3836
      %v3838 = vmul.f32 %v3814, 1.442695
      %v3839 = vpow.pop %v3838
      %v3840 = vmul.f32 %v3815, 1.442695
      %v3841 = vpow.pop %v3840
      %v3842 = vmul.f32 %v3816, 1.442695
      %v3843 = vpow.pop %v3842
      %v3844 = vmul.f32 %v3817, 1.442695
      %v3845 = vpow.pop %v3844
      %v3846 = vmul.f32 %v3818, 1.442695
      %v3847 = vpow.pop %v3846
      %v3848 = vmul.f32 %v3819, 1.442695
      %v3849 = vpow.pop %v3848
      %v3850 = vmul.f32 %v3820, 1.442695
      %v3851 = vpow.pop %v3850
      %v3852 = vmul.f32 %v3821, 1.442695
      %v3853 = vpow.pop %v3852
      %v3854 = vadd.f32 %v3823, 1.0
      %v3855 = vadd.f32 %v3825, 1.0
      %v3856 = vadd.f32 %v3827, 1.0
      %v3857 = vadd.f32 %v3829, 1.0
      %v3858 = vadd.f32 %v3831, 1.0
      %v3859 = vadd.f32 %v3833, 1.0
      %v3860 = vadd.f32 %v3835, 1.0
      %v3861 = vadd.f32 %v3837, 1.0
      %v3862 = vadd.f32 %v3839, 1.0
      %v3863 = vadd.f32 %v3841, 1.0
      %v3864 = vadd.f32 %v3843, 1.0
      %v3865 = vadd.f32 %v3845, 1.0
      %v3866 = vadd.f32 %v3847, 1.0
      %v3867 = vadd.f32 %v3849, 1.0
      %v3868 = vadd.f32 %v3851, 1.0
      %v3869 = vadd.f32 %v3853, 1.0
      %v3870 = vrcp.pop %v3854
      %v3871 = vmul.f32 1.0, %v3870
      %v3872 = vrcp.pop %v3855
      %v3873 = vmul.f32 1.0, %v3872
      %v3874 = vrcp.pop %v3856
      %v3875 = vmul.f32 1.0, %v3874
      %v3876 = vrcp.pop %v3857
      %v3877 = vmul.f32 1.0, %v3876
      %v3878 = vrcp.pop %v3858
      %v3879 = vmul.f32 1.0, %v3878
      %v3880 = vrcp.pop %v3859
      %v3881 = vmul.f32 1.0, %v3880
      %v3882 = vrcp.pop %v3860
      %v3883 = vmul.f32 1.0, %v3882
      %v3884 = vrcp.pop %v3861
      %v3885 = vmul.f32 1.0, %v3884
      %v3886 = vrcp.pop %v3862
      %v3887 = vmul.f32 1.0, %v3886
      %v3888 = vrcp.pop %v3863
      %v3889 = vmul.f32 1.0, %v3888
      %v3890 = vrcp.pop %v3864
      %v3891 = vmul.f32 1.0, %v3890
      %v3892 = vrcp.pop %v3865
      %v3893 = vmul.f32 1.0, %v3892
      %v3894 = vrcp.pop %v3866
      %v3895 = vmul.f32 1.0, %v3894
      %v3896 = vrcp.pop %v3867
      %v3897 = vmul.f32 1.0, %v3896
      %v3898 = vrcp.pop %v3868
      %v3899 = vmul.f32 1.0, %v3898
      %v3900 = vrcp.pop %v3869
      %v3901 = vmul.f32 1.0, %v3900
      %vm3902 = vcmask 261120
      %3903 = vst.msk [vmem:[%s256] sm:$0xff] %vm3902, %v3871
      %3904 = vst.msk [vmem:[%s256 + $0x8] sm:$0xff] %vm3902, %v3873
      %3905 = vst.msk [vmem:[%s256 + $0x10] sm:$0xff] %vm3902, %v3875
      %3906 = vst.msk [vmem:[%s256 + $0x18] sm:$0xff] %vm3902, %v3877
      %3907 = vst.msk [vmem:[%s256 + $0x20] sm:$0xff] %vm3902, %v3879
      %3908 = vst.msk [vmem:[%s256 + $0x28] sm:$0xff] %vm3902, %v3881
      %3909 = vst.msk [vmem:[%s256 + $0x30] sm:$0xff] %vm3902, %v3883
      %3910 = vst.msk [vmem:[%s256 + $0x38] sm:$0xff] %vm3902, %v3885
      %3911 = vst.msk [vmem:[%s256 + $0x40] sm:$0xff] %vm3902, %v3887
      %3912 = vst.msk [vmem:[%s256 + $0x48] sm:$0xff] %vm3902, %v3889
      %3913 = vst.msk [vmem:[%s256 + $0x50] sm:$0xff] %vm3902, %v3891
      %3914 = vst.msk [vmem:[%s256 + $0x58] sm:$0xff] %vm3902, %v3893
      %3915 = vst.msk [vmem:[%s256 + $0x60] sm:$0xff] %vm3902, %v3895
      %3916 = vst.msk [vmem:[%s256 + $0x68] sm:$0xff] %vm3902, %v3897
      %3917 = vst.msk [vmem:[%s256 + $0x70] sm:$0xff] %vm3902, %v3899
      %3918 = vst.msk [vmem:[%s256 + $0x78] sm:$0xff] %vm3902, %v3901
      %s3919 = smul.u32 16, %s17
      %p3920 = scmp.lt.s32.totalorder %s3919, 31
      %s3921 = scalar_select %p3920, %s3919, 31
      %s3922 = smul.addr %s3921, 8
      %s3923 = scalar_lea.vmem %s6, %s3922
      // Predicated region
      $region45: #{gat_2l_forward.3} parent=43 // pred_check
        %p3924 = pneg %p166
      $region46: #{gat_2l_forward.3} parent=43 // pred_check_branch
        %3926 = sbr.rel (%p3924) target = $region48
      $region47: #{gat_2l_forward.3} parent=43 // pred_region
        %s3927 = smul.u32 16, %s17
      $region48: #{gat_2l_forward.3} parent=43 // pred_fallthru
        _
    $region44: #{gat_2l_forward.3} parent=5 // pred_fallthru
      _
    %p3928 = scmp.le.s32.totalorder 2, %s12
    // Predicated region
    $region49: #{gat_2l_forward.3} parent=5 // pred_check
      %p3929 = pneg %p3928
    $region50: #{gat_2l_forward.3} parent=5 // pred_check_branch
      %3931 = sbr.rel (%p3929) target = $region52
    $region51: #{gat_2l_forward.3} parent=5 // pred_region
      %s3932 = ssub.s32 %s12, 2
      // Predicated region
      $region53: #{gat_2l_forward.3} parent=51 // pred_check
        %p3933 = pneg %p172
      $region54: #{gat_2l_forward.3} parent=51 // pred_check_branch
        %3935 = sbr.rel (%p3933) target = $region56
      $region55: #{gat_2l_forward.3} parent=51 // pred_region
        %s3936 = smul.u32 16, %s18
        %p3937 = scmp.lt.s32.totalorder %s3936, 31
        %s3938 = scalar_select %p3937, %s3936, 31
        %s3939 = smul.addr %s3938, 8
        %s3940 = scalar_lea.vmem %s6, %s3939
      $region56: #{gat_2l_forward.3} parent=51 // pred_fallthru
        _
    $region52: #{gat_2l_forward.3} parent=5 // pred_fallthru
      _
  $region6: #{gat_2l_forward.3} parent=0 // loop_footer
    %s16 = sadd.s32 1, %s12
  $region7: #{gat_2l_forward.3} parent=0 // loop_footer_branch
    %11 = sbr.rel target = $region3
  $region8: #{gat_2l_forward.3} parent=0 // loop_exit
    _

// kernel: gat_2l_forward.2
$region0: #{gat_2l_forward.2}
  #allocation0 [shape = 'u32[]', space=smem, size = 0x4, offset = 0x4, fixed_abs, tag = 'smem constant byte address 0x4 - core index']
  #allocation1 [shape = 'u32[144,128]{1,0:T(1,128)}', space=vmem, size = 0x12000, scoped, tag = 'internal scratch']
  %s0 = inlined_call_operand.vmem [shape: bf16[256,32], index: 0, kind: input, shape index: {}]
  %s1 = inlined_call_operand.vmem [shape: bf16[32,64], index: 1, kind: input, shape index: {}]
  %s2 = inlined_call_operand.vmem [shape: bf16[4,32], index: 2, kind: input, shape index: {}]
  %s3 = inlined_call_operand.vmem [shape: bf16[32,4], index: 3, kind: input, shape index: {}]
  %s4 = inlined_call_operand.vmem [shape: f32[1,64], index: 4, kind: input, shape index: {}]
  %s5 = inlined_call_operand.vmem [shape: s8[256,256], index: 5, kind: input, shape index: {}]
  %s6 = inlined_call_operand.vmem [shape: bf16[256,64], index: 6, kind: output, shape index: {}]
  %s7 = sld [smem:[#allocation0]]
  $region57: #{gat_2l_forward.2} parent=0
    _
  %s9 = ssub.s32 1, %s7
  %s10 = scalar_select 0, %s9, %s7
  loop: start=0, step=1, limit=4
  $region2: #{gat_2l_forward.2} parent=0 // loop_pre_header
    _
  $region3: #{gat_2l_forward.2} parent=0 // loop_header
    %s12 = sphi 0, %s16
    %p13 = scmp.ge.s32.totalorder %s12, 4
    %s20 = sphi 0, %s20
    %s22 = sphi 0, %s20
    %s23 = sphi 0, %s22
    %s37 = sphi 0, %s23
    %s41 = sphi 0, %s41
    %s43 = sphi 0, %s41
    %s44 = sphi 0, %s43
    %s58 = sphi 0, %s44
    %s62 = sphi 0, %s62
    %s64 = sphi 0, %s62
    %s65 = sphi 0, %s64
    %s79 = sphi 0, %s65
    %s83 = sphi 0, %s83
    %s85 = sphi 0, %s83
    %s86 = sphi 0, %s85
    %s100 = sphi 0, %s86
    %s104 = sphi 0, %s104
    %s106 = sphi 0, %s104
    %s107 = sphi 0, %s106
    %s121 = sphi 0, %s107
    %s127 = sphi 0, %s129
    %s130 = sphi 0, %s127
    %s131 = sphi 0, %s130
    %s147 = sphi 0, %s131
    %s153 = sphi 0, %s155
    %s156 = sphi 0, %s153
    %s157 = sphi 0, %s156
    %s173 = sphi 0, %s157
  $region4: #{gat_2l_forward.2} parent=0 // loop_header_branch
    %15 = sbr.rel (%p13) target = $region8
  $region5: #{gat_2l_forward.2} parent=0 // loop_body
    %s17 = ssub.s32 %s12, 1
    %s18 = ssub.s32 %s12, 2
    %s19 = sadd.s32 %s12, 1
    %s21 = sadd.s32 %s20, 1
    %p24 = scmp.eq.s32.totalorder %s12, 1
    %p25 = scmp.ne.s32.totalorder %s20, %s22
    %p26 = scmp.eq.s32.totalorder %s12, 0
    %p27 = por %p25, %p26
    %p28 = scmp.ne.s32.totalorder %s20, %s22
    %p29 = scmp.eq.s32.totalorder %s17, 1
    %p30 = por %p28, %p29
    %p31 = scmp.ne.s32.totalorder %s22, %s23
    %p32 = scmp.eq.s32.totalorder %s17, 0
    %p33 = por %p31, %p32
    %p34 = scmp.ne.s32.totalorder %s22, %s23
    %p35 = scmp.eq.s32.totalorder %s18, 1
    %p36 = por %p34, %p35
    %p38 = scmp.ne.s32.totalorder %s23, %s37
    %p39 = scmp.eq.s32.totalorder %s18, 0
    %p40 = por %p38, %p39
    %s42 = sadd.s32 %s41, 1
    %p45 = scmp.eq.s32.totalorder %s12, 1
    %p46 = scmp.ne.s32.totalorder %s41, %s43
    %p47 = scmp.eq.s32.totalorder %s12, 0
    %p48 = por %p46, %p47
    %p49 = scmp.ne.s32.totalorder %s41, %s43
    %p50 = scmp.eq.s32.totalorder %s17, 1
    %p51 = por %p49, %p50
    %p52 = scmp.ne.s32.totalorder %s43, %s44
    %p53 = scmp.eq.s32.totalorder %s17, 0
    %p54 = por %p52, %p53
    %p55 = scmp.ne.s32.totalorder %s43, %s44
    %p56 = scmp.eq.s32.totalorder %s18, 1
    %p57 = por %p55, %p56
    %p59 = scmp.ne.s32.totalorder %s44, %s58
    %p60 = scmp.eq.s32.totalorder %s18, 0
    %p61 = por %p59, %p60
    %s63 = sadd.s32 %s62, 1
    %p66 = scmp.eq.s32.totalorder %s12, 1
    %p67 = scmp.ne.s32.totalorder %s62, %s64
    %p68 = scmp.eq.s32.totalorder %s12, 0
    %p69 = por %p67, %p68
    %p70 = scmp.ne.s32.totalorder %s62, %s64
    %p71 = scmp.eq.s32.totalorder %s17, 1
    %p72 = por %p70, %p71
    %p73 = scmp.ne.s32.totalorder %s64, %s65
    %p74 = scmp.eq.s32.totalorder %s17, 0
    %p75 = por %p73, %p74
    %p76 = scmp.ne.s32.totalorder %s64, %s65
    %p77 = scmp.eq.s32.totalorder %s18, 1
    %p78 = por %p76, %p77
    %p80 = scmp.ne.s32.totalorder %s65, %s79
    %p81 = scmp.eq.s32.totalorder %s18, 0
    %p82 = por %p80, %p81
    %s84 = sadd.s32 %s83, 1
    %p87 = scmp.eq.s32.totalorder %s12, 1
    %p88 = scmp.ne.s32.totalorder %s83, %s85
    %p89 = scmp.eq.s32.totalorder %s12, 0
    %p90 = por %p88, %p89
    %p91 = scmp.ne.s32.totalorder %s83, %s85
    %p92 = scmp.eq.s32.totalorder %s17, 1
    %p93 = por %p91, %p92
    %p94 = scmp.ne.s32.totalorder %s85, %s86
    %p95 = scmp.eq.s32.totalorder %s17, 0
    %p96 = por %p94, %p95
    %p97 = scmp.ne.s32.totalorder %s85, %s86
    %p98 = scmp.eq.s32.totalorder %s18, 1
    %p99 = por %p97, %p98
    %p101 = scmp.ne.s32.totalorder %s86, %s100
    %p102 = scmp.eq.s32.totalorder %s18, 0
    %p103 = por %p101, %p102
    %s105 = sadd.s32 %s104, 1
    %p108 = scmp.eq.s32.totalorder %s12, 1
    %p109 = scmp.ne.s32.totalorder %s104, %s106
    %p110 = scmp.eq.s32.totalorder %s12, 0
    %p111 = por %p109, %p110
    %p112 = scmp.ne.s32.totalorder %s104, %s106
    %p113 = scmp.eq.s32.totalorder %s17, 1
    %p114 = por %p112, %p113
    %p115 = scmp.ne.s32.totalorder %s106, %s107
    %p116 = scmp.eq.s32.totalorder %s17, 0
    %p117 = por %p115, %p116
    %p118 = scmp.ne.s32.totalorder %s106, %s107
    %p119 = scmp.eq.s32.totalorder %s18, 1
    %p120 = por %p118, %p119
    %p122 = scmp.ne.s32.totalorder %s107, %s121
    %p123 = scmp.eq.s32.totalorder %s18, 0
    %p124 = por %p122, %p123
    %s125 = ssub.s32 %s12, %s19
    %p126 = scmp.eq.s32.totalorder %s125, 0
    %s128 = sadd.s32 %s127, 1
    %s129 = scalar_select %p126, %s127, %s128
    %p132 = pneg %p126
    %p133 = scmp.eq.s32.totalorder %s12, 1
    %p134 = por %p132, %p133
    %p135 = scmp.ne.s32.totalorder %s127, %s130
    %p136 = scmp.eq.s32.totalorder %s12, 0
    %p137 = por %p135, %p136
    %p138 = scmp.ne.s32.totalorder %s127, %s130
    %p139 = scmp.eq.s32.totalorder %s17, 1
    %p140 = por %p138, %p139
    %p141 = scmp.ne.s32.totalorder %s130, %s131
    %p142 = scmp.eq.s32.totalorder %s17, 0
    %p143 = por %p141, %p142
    %p144 = scmp.ne.s32.totalorder %s130, %s131
    %p145 = scmp.eq.s32.totalorder %s18, 1
    %p146 = por %p144, %p145
    %p148 = scmp.ne.s32.totalorder %s131, %s147
    %p149 = scmp.eq.s32.totalorder %s18, 0
    %p150 = por %p148, %p149
    %s151 = ssub.s32 %s12, %s19
    %p152 = scmp.eq.s32.totalorder %s151, 0
    %s154 = sadd.s32 %s153, 1
    %s155 = scalar_select %p152, %s153, %s154
    %p158 = pneg %p152
    %p159 = scmp.eq.s32.totalorder %s12, 1
    %p160 = por %p158, %p159
    %p161 = scmp.ne.s32.totalorder %s153, %s156
    %p162 = scmp.eq.s32.totalorder %s12, 0
    %p163 = por %p161, %p162
    %p164 = scmp.ne.s32.totalorder %s153, %s156
    %p165 = scmp.eq.s32.totalorder %s17, 1
    %p166 = por %p164, %p165
    %p167 = scmp.ne.s32.totalorder %s156, %s157
    %p168 = scmp.eq.s32.totalorder %s17, 0
    %p169 = por %p167, %p168
    %p170 = scmp.ne.s32.totalorder %s156, %s157
    %p171 = scmp.eq.s32.totalorder %s18, 1
    %p172 = por %p170, %p171
    %p174 = scmp.ne.s32.totalorder %s157, %s173
    %p175 = scmp.eq.s32.totalorder %s18, 0
    %p176 = por %p174, %p175
    %p177 = scmp.le.s32.totalorder 1, %s12
    %p178 = scmp.lt.s32.totalorder %s12, 3
    %p179 = pnand %p177, %p178
    %p180 = pneg %p179
    // Predicated region
    $region9: #{gat_2l_forward.2} parent=5 // pred_check
      _
    $region10: #{gat_2l_forward.2} parent=5 // pred_check_branch
      %182 = sbr.rel (%p179) target = $region12
    $region11: #{gat_2l_forward.2} parent=5 // pred_region
      %s183 = ssub.s32 %s12, 1
      // Predicated region
      $region13: #{gat_2l_forward.2} parent=11 // pred_check
        %p184 = pneg %p33
      $region14: #{gat_2l_forward.2} parent=11 // pred_check_branch
        %186 = sbr.rel (%p184) target = $region16
      $region15: #{gat_2l_forward.2} parent=11 // pred_region
        _
      $region16: #{gat_2l_forward.2} parent=11 // pred_fallthru
        _
      // Predicated region
      $region17: #{gat_2l_forward.2} parent=11 // pred_check
        %p187 = pneg %p54
      $region18: #{gat_2l_forward.2} parent=11 // pred_check_branch
        %189 = sbr.rel (%p187) target = $region20
      $region19: #{gat_2l_forward.2} parent=11 // pred_region
        _
      $region20: #{gat_2l_forward.2} parent=11 // pred_fallthru
        _
      // Predicated region
      $region21: #{gat_2l_forward.2} parent=11 // pred_check
        %p190 = pneg %p75
      $region22: #{gat_2l_forward.2} parent=11 // pred_check_branch
        %192 = sbr.rel (%p190) target = $region24
      $region23: #{gat_2l_forward.2} parent=11 // pred_region
        _
      $region24: #{gat_2l_forward.2} parent=11 // pred_fallthru
        _
      // Predicated region
      $region25: #{gat_2l_forward.2} parent=11 // pred_check
        %p193 = pneg %p96
      $region26: #{gat_2l_forward.2} parent=11 // pred_check_branch
        %195 = sbr.rel (%p193) target = $region28
      $region27: #{gat_2l_forward.2} parent=11 // pred_region
        _
      $region28: #{gat_2l_forward.2} parent=11 // pred_fallthru
        _
      // Predicated region
      $region29: #{gat_2l_forward.2} parent=11 // pred_check
        %p196 = pneg %p117
      $region30: #{gat_2l_forward.2} parent=11 // pred_check_branch
        %198 = sbr.rel (%p196) target = $region32
      $region31: #{gat_2l_forward.2} parent=11 // pred_region
        _
      $region32: #{gat_2l_forward.2} parent=11 // pred_fallthru
        _
    $region12: #{gat_2l_forward.2} parent=5 // pred_fallthru
      _
    %p199 = scmp.lt.s32.totalorder %s12, 2
    // Predicated region
    $region33: #{gat_2l_forward.2} parent=5 // pred_check
      %p200 = pneg %p199
    $region34: #{gat_2l_forward.2} parent=5 // pred_check_branch
      %202 = sbr.rel (%p200) target = $region36
    $region35: #{gat_2l_forward.2} parent=5 // pred_region
      // Predicated region
      $region37: #{gat_2l_forward.2} parent=35 // pred_check
        %p203 = pneg %p137
      $region38: #{gat_2l_forward.2} parent=35 // pred_check_branch
        %205 = sbr.rel (%p203) target = $region40
      $region39: #{gat_2l_forward.2} parent=35 // pred_region
        %s206 = smul.u32 4, %s12
        %p207 = scmp.lt.s32.totalorder %s206, 7
        %s208 = scalar_select %p207, %s206, 7
        %s209 = smul.addr %s208, 2
        %s210 = smul.addr %s209, 8
        %s211 = scalar_lea.vmem %s5, %s210
        %s212 = smul.u32 4, %s12
      $region40: #{gat_2l_forward.2} parent=35 // pred_fallthru
        _
    $region36: #{gat_2l_forward.2} parent=5 // pred_fallthru
      _
    %p213 = scmp.le.s32.totalorder 1, %s12
    %p214 = scmp.lt.s32.totalorder %s12, 3
    %p215 = pnand %p213, %p214
    %p216 = pneg %p215
    // Predicated region
    $region41: #{gat_2l_forward.2} parent=5 // pred_check
      _
    $region42: #{gat_2l_forward.2} parent=5 // pred_check_branch
      %218 = sbr.rel (%p215) target = $region44
    $region43: #{gat_2l_forward.2} parent=5 // pred_region
      %s219 = ssub.s32 %s12, 1
      %p220 = pneg %p33
      %p221 = pneg %p30
      %p222 = pneg %p54
      %p223 = pneg %p51
      %p224 = pneg %p75
      %p225 = pneg %p72
      %p226 = pneg %p96
      %p227 = pneg %p93
      %p228 = pneg %p117
      %p229 = pneg %p114
      %s230 = smul.u32 4, %s17
      %p231 = scmp.lt.s32.totalorder %s230, 7
      %s232 = scalar_select %p231, %s230, 7
      %s233 = smul.addr %s232, 2
      %s234 = smul.addr %s233, 8
      %s235 = scalar_lea.vmem %s5, %s234
      %p236 = pneg %p143
      %p237 = pneg %p140
      %p238 = pneg %p169
      %p239 = pneg %p166
      %s240 = smul.u32 16, %s17
      %p241 = scmp.lt.s32.totalorder %s240, 31
      %s242 = scalar_select %p241, %s240, 31
      %s243 = smul.addr %s242, 4
      %s244 = scalar_lea.vmem %s6, %s243
      %s245 = smul.u32 4, %s17
      %p246 = scmp.lt.s32.totalorder %s245, 7
      %s247 = scalar_select %p246, %s245, 7
      %s248 = smul.addr %s247, 2
      %s249 = smul.addr %s248, 8
      %s250 = scalar_lea.vmem %s5, %s249
      %s251 = smul.u32 4, %s17
      %s252 = smul.u32 16, %s17
      %p253 = scmp.lt.s32.totalorder %s252, 31
      %s254 = scalar_select %p253, %s252, 31
      %s255 = smul.addr %s254, 4
      %s256 = scalar_lea.vmem %s6, %s255
      %s257 = smul.u32 16, %s17
      %v259 = vld [vmem:[%s0] sm:$0xf]
      %v260 = vld [vmem:[%s0 + $0x4] sm:$0xf]
      %v261 = vld [vmem:[%s0 + $0x8] sm:$0xf]
      %v262 = vld [vmem:[%s0 + $0xc] sm:$0xf]
      %v263 = vld [vmem:[%s0 + $0x10] sm:$0xf]
      %v264 = vld [vmem:[%s0 + $0x14] sm:$0xf]
      %v265 = vld [vmem:[%s0 + $0x18] sm:$0xf]
      %v266 = vld [vmem:[%s0 + $0x1c] sm:$0xf]
      %v267 = vld [vmem:[%s0 + $0x20] sm:$0xf]
      %v268 = vld [vmem:[%s0 + $0x24] sm:$0xf]
      %v269 = vld [vmem:[%s0 + $0x28] sm:$0xf]
      %v270 = vld [vmem:[%s0 + $0x2c] sm:$0xf]
      %v271 = vld [vmem:[%s0 + $0x30] sm:$0xf]
      %v272 = vld [vmem:[%s0 + $0x34] sm:$0xf]
      %v273 = vld [vmem:[%s0 + $0x38] sm:$0xf]
      %v274 = vld [vmem:[%s0 + $0x3c] sm:$0xf]
      %v275 = vld [vmem:[%s0 + $0x40] sm:$0xf]
      %v276 = vld [vmem:[%s0 + $0x44] sm:$0xf]
      %v277 = vld [vmem:[%s0 + $0x48] sm:$0xf]
      %v278 = vld [vmem:[%s0 + $0x4c] sm:$0xf]
      %v279 = vld [vmem:[%s0 + $0x50] sm:$0xf]
      %v280 = vld [vmem:[%s0 + $0x54] sm:$0xf]
      %v281 = vld [vmem:[%s0 + $0x58] sm:$0xf]
      %v282 = vld [vmem:[%s0 + $0x5c] sm:$0xf]
      %v283 = vld [vmem:[%s0 + $0x60] sm:$0xf]
      %v284 = vld [vmem:[%s0 + $0x64] sm:$0xf]
      %v285 = vld [vmem:[%s0 + $0x68] sm:$0xf]
      %v286 = vld [vmem:[%s0 + $0x6c] sm:$0xf]
      %v287 = vld [vmem:[%s0 + $0x70] sm:$0xf]
      %v288 = vld [vmem:[%s0 + $0x74] sm:$0xf]
      %v289 = vld [vmem:[%s0 + $0x78] sm:$0xf]
      %v290 = vld [vmem:[%s0 + $0x7c] sm:$0xf]
      %v291 = vld [vmem:[%s1] sm:$0xf]
      %v292 = vld [vmem:[%s1 + $0x4] sm:$0xf]
      %v293 = vld [vmem:[%s1 + $0x8] sm:$0xf]
      %v294 = vld [vmem:[%s1 + $0xc] sm:$0xf]
      %v327 = vunpack.c.l.b16 %v259
      %v328 = vunpack.c.l.b16 %v260
      %v329 = vunpack.c.l.b16 %v261
      %v330 = vunpack.c.l.b16 %v262
      %v331 = vunpack.c.l.b16 %v263
      %v332 = vunpack.c.l.b16 %v264
      %v333 = vunpack.c.l.b16 %v265
      %v334 = vunpack.c.l.b16 %v266
      %v335 = vunpack.c.l.b16 %v267
      %v336 = vunpack.c.l.b16 %v268
      %v337 = vunpack.c.l.b16 %v269
      %v338 = vunpack.c.l.b16 %v270
      %v339 = vunpack.c.l.b16 %v271
      %v340 = vunpack.c.l.b16 %v272
      %v341 = vunpack.c.l.b16 %v273
      %v342 = vunpack.c.l.b16 %v274
      %v343 = vunpack.c.l.b16 %v275
      %v344 = vunpack.c.l.b16 %v276
      %v345 = vunpack.c.l.b16 %v277
      %v346 = vunpack.c.l.b16 %v278
      %v347 = vunpack.c.l.b16 %v279
      %v348 = vunpack.c.l.b16 %v280
      %v349 = vunpack.c.l.b16 %v281
      %v350 = vunpack.c.l.b16 %v282
      %v351 = vunpack.c.l.b16 %v283
      %v352 = vunpack.c.l.b16 %v284
      %v353 = vunpack.c.l.b16 %v285
      %v354 = vunpack.c.l.b16 %v286
      %v355 = vunpack.c.l.b16 %v287
      %v356 = vunpack.c.l.b16 %v288
      %v357 = vunpack.c.l.b16 %v289
      %v358 = vunpack.c.l.b16 %v290
      %v359 = vpack.c.b16 %v328, %v327
      %v360 = vpack.c.b16 %v330, %v329
      %v361 = vpack.c.b16 %v332, %v331
      %v362 = vpack.c.b16 %v334, %v333
      %v363 = vpack.c.b16 %v336, %v335
      %v364 = vpack.c.b16 %v338, %v337
      %v365 = vpack.c.b16 %v340, %v339
      %v366 = vpack.c.b16 %v342, %v341
      %v367 = vpack.c.b16 %v344, %v343
      %v368 = vpack.c.b16 %v346, %v345
      %v369 = vpack.c.b16 %v348, %v347
      %v370 = vpack.c.b16 %v350, %v349
      %v371 = vpack.c.b16 %v352, %v351
      %v372 = vpack.c.b16 %v354, %v353
      %v373 = vpack.c.b16 %v356, %v355
      %v374 = vpack.c.b16 %v358, %v357
      %v379 = vunpack.c.l.b16 %v291
      %v380 = vunpack.c.l.b16 %v292
      %v381 = vunpack.c.l.b16 %v293
      %v382 = vunpack.c.l.b16 %v294
      %v383 = vpack.c.b16 %v380, %v379
      %v384 = vpack.c.b16 %v382, %v381
      %vm387 = vcmask 261120
      %v389 = vsel %vm387, %v359, 0
      %v392 = vsel %vm387, %v360, 0
      %v395 = vsel %vm387, %v361, 0
      %v398 = vsel %vm387, %v362, 0
      %v401 = vsel %vm387, %v363, 0
      %v404 = vsel %vm387, %v364, 0
      %v407 = vsel %vm387, %v365, 0
      %v410 = vsel %vm387, %v366, 0
      %v413 = vsel %vm387, %v367, 0
      %v416 = vsel %vm387, %v368, 0
      %v419 = vsel %vm387, %v369, 0
      %v422 = vsel %vm387, %v370, 0
      %v425 = vsel %vm387, %v371, 0
      %v428 = vsel %vm387, %v372, 0
      %v431 = vsel %vm387, %v373, 0
      %v434 = vsel %vm387, %v374, 0
      %436 = vmatprep.subr.bf16.mxu0 0
      %437 = vmatpush1.bf16.msra.mxu0 %v383
      %438 = vmatprep.subr.bf16.mxu0 0
      %439 = vmatpush1.bf16.msra.mxu0 %v384
      %440 = vmatprep.subr.bf16.mxu0 0
      %441 = vmatpush1.bf16.msra.mxu0 0
      %442 = vmatprep.subr.bf16.mxu0 0
      %443 = vmatpush1.bf16.msra.mxu0 0
      %444 = vmatprep.subr.bf16.mxu0 0
      %445 = vmatpush1.bf16.msra.mxu0 0
      %446 = vmatprep.subr.bf16.mxu0 0
      %447 = vmatpush1.bf16.msra.mxu0 0
      %448 = vmatprep.subr.bf16.mxu0 0
      %449 = vmatpush1.bf16.msra.mxu0 0
      %450 = vmatprep.subr.bf16.mxu0 0
      %451 = vmatpush1.bf16.msra.mxu0 0
      %452 = vmatprep.subr.bf16.mxu0 0
      %453 = vmatpush1.bf16.msra.mxu0 0
      %454 = vmatprep.subr.bf16.mxu0 0
      %455 = vmatpush1.bf16.msra.mxu0 0
      %456 = vmatprep.subr.bf16.mxu0 0
      %457 = vmatpush1.bf16.msra.mxu0 0
      %458 = vmatprep.subr.bf16.mxu0 0
      %459 = vmatpush1.bf16.msra.mxu0 0
      %460 = vmatprep.subr.bf16.mxu0 0
      %461 = vmatpush1.bf16.msra.mxu0 0
      %462 = vmatprep.subr.bf16.mxu0 0
      %463 = vmatpush1.bf16.msra.mxu0 0
      %464 = vmatprep.subr.bf16.mxu0 0
      %465 = vmatpush1.bf16.msra.mxu0 0
      %466 = vmatprep.subr.bf16.mxu0 0
      %467 = vmatpush1.bf16.msra.mxu0 0
      %468 = vmatprep.mubr.bf16.mxu0 0
      %469 = vmatmul.mubr.bf16.gmra.mrb[0].mxu0 %v389
      %v470 = vpop.f32.mrb[0].mxu0
      %v471 = vadd.f32 0.0, %v470
      %v472 = vpop.f32.mrb[0].mxu0
      %v473 = vpop.f32.mrb[0].mxu0
      %v474 = vadd.f32 0.0, %v473
      %v475 = vpop.f32.mrb[0].mxu0
      %476 = vmatprep.mubr.bf16.mxu0 0
      %477 = vmatmul.mubr.bf16.gmra.mrb[0].mxu0 %v392
      %v478 = vpop.f32.mrb[0].mxu0
      %v479 = vadd.f32 0.0, %v478
      %v480 = vpop.f32.mrb[0].mxu0
      %v481 = vpop.f32.mrb[0].mxu0
      %v482 = vadd.f32 0.0, %v481
      %v483 = vpop.f32.mrb[0].mxu0
      %484 = vmatprep.mubr.bf16.mxu0 0
      %485 = vmatmul.mubr.bf16.gmra.mrb[0].mxu0 %v395
      %v486 = vpop.f32.mrb[0].mxu0
      %v487 = vadd.f32 0.0, %v486
      %v488 = vpop.f32.mrb[0].mxu0
      %v489 = vpop.f32.mrb[0].mxu0
      %v490 = vadd.f32 0.0, %v489
      %v491 = vpop.f32.mrb[0].mxu0
      %492 = vmatprep.mubr.bf16.mxu0 0
      %493 = vmatmul.mubr.bf16.gmra.mrb[0].mxu0 %v398
      %v494 = vpop.f32.mrb[0].mxu0
      %v495 = vadd.f32 0.0, %v494
      %v496 = vpop.f32.mrb[0].mxu0
      %v497 = vpop.f32.mrb[0].mxu0
      %v498 = vadd.f32 0.0, %v497
      %v499 = vpop.f32.mrb[0].mxu0
      %500 = vmatprep.mubr.bf16.mxu0 0
      %501 = vmatmul.mubr.bf16.gmra.mrb[0].mxu0 %v401
      %v502 = vpop.f32.mrb[0].mxu0
      %v503 = vadd.f32 0.0, %v502
      %v504 = vpop.f32.mrb[0].mxu0
      %v505 = vpop.f32.mrb[0].mxu0
      %v506 = vadd.f32 0.0, %v505
      %v507 = vpop.f32.mrb[0].mxu0
      %508 = vmatprep.mubr.bf16.mxu0 0
      %509 = vmatmul.mubr.bf16.gmra.mrb[0].mxu0 %v404
      %v510 = vpop.f32.mrb[0].mxu0
      %v511 = vadd.f32 0.0, %v510
      %v512 = vpop.f32.mrb[0].mxu0
      %v513 = vpop.f32.mrb[0].mxu0
      %v514 = vadd.f32 0.0, %v513
      %v515 = vpop.f32.mrb[0].mxu0
      %516 = vmatprep.mubr.bf16.mxu0 0
      %517 = vmatmul.mubr.bf16.gmra.mrb[0].mxu0 %v407
      %v518 = vpop.f32.mrb[0].mxu0
      %v519 = vadd.f32 0.0, %v518
      %v520 = vpop.f32.mrb[0].mxu0
      %v521 = vpop.f32.mrb[0].mxu0
      %v522 = vadd.f32 0.0, %v521
      %v523 = vpop.f32.mrb[0].mxu0
      %524 = vmatprep.mubr.bf16.mxu0 0
      %525 = vmatmul.mubr.bf16.gmra.mrb[0].mxu0 %v410
      %v526 = vpop.f32.mrb[0].mxu0
      %v527 = vadd.f32 0.0, %v526
      %v528 = vpop.f32.mrb[0].mxu0
      %v529 = vpop.f32.mrb[0].mxu0
      %v530 = vadd.f32 0.0, %v529
      %v531 = vpop.f32.mrb[0].mxu0
      %532 = vmatprep.mubr.bf16.mxu0 0
      %533 = vmatmul.mubr.bf16.gmra.mrb[0].mxu0 %v413
      %v534 = vpop.f32.mrb[0].mxu0
      %v535 = vadd.f32 0.0, %v534
      %v536 = vpop.f32.mrb[0].mxu0
      %v537 = vpop.f32.mrb[0].mxu0
      %v538 = vadd.f32 0.0, %v537
      %v539 = vpop.f32.mrb[0].mxu0
      %540 = vmatprep.mubr.bf16.mxu0 0
      %541 = vmatmul.mubr.bf16.gmra.mrb[0].mxu0 %v416
      %v542 = vpop.f32.mrb[0].mxu0
      %v543 = vadd.f32 0.0, %v542
      %v544 = vpop.f32.mrb[0].mxu0
      %v545 = vpop.f32.mrb[0].mxu0
      %v546 = vadd.f32 0.0, %v545
      %v547 = vpop.f32.mrb[0].mxu0
      %548 = vmatprep.mubr.bf16.mxu0 0
      %549 = vmatmul.mubr.bf16.gmra.mrb[0].mxu0 %v419
      %v550 = vpop.f32.mrb[0].mxu0
      %v551 = vadd.f32 0.0, %v550
      %v552 = vpop.f32.mrb[0].mxu0
      %v553 = vpop.f32.mrb[0].mxu0
      %v554 = vadd.f32 0.0, %v553
      %v555 = vpop.f32.mrb[0].mxu0
      %556 = vmatprep.mubr.bf16.mxu0 0
      %557 = vmatmul.mubr.bf16.gmra.mrb[0].mxu0 %v422
      %v558 = vpop.f32.mrb[0].mxu0
      %v559 = vadd.f32 0.0, %v558
      %v560 = vpop.f32.mrb[0].mxu0
      %v561 = vpop.f32.mrb[0].mxu0
      %v562 = vadd.f32 0.0, %v561
      %v563 = vpop.f32.mrb[0].mxu0
      %564 = vmatprep.mubr.bf16.mxu0 0
      %565 = vmatmul.mubr.bf16.gmra.mrb[0].mxu0 %v425
      %v566 = vpop.f32.mrb[0].mxu0
      %v567 = vadd.f32 0.0, %v566
      %v568 = vpop.f32.mrb[0].mxu0
      %v569 = vpop.f32.mrb[0].mxu0
      %v570 = vadd.f32 0.0, %v569
      %v571 = vpop.f32.mrb[0].mxu0
      %572 = vmatprep.mubr.bf16.mxu0 0
      %573 = vmatmul.mubr.bf16.gmra.mrb[0].mxu0 %v428
      %v574 = vpop.f32.mrb[0].mxu0
      %v575 = vadd.f32 0.0, %v574
      %v576 = vpop.f32.mrb[0].mxu0
      %v577 = vpop.f32.mrb[0].mxu0
      %v578 = vadd.f32 0.0, %v577
      %v579 = vpop.f32.mrb[0].mxu0
      %580 = vmatprep.mubr.bf16.mxu0 0
      %581 = vmatmul.mubr.bf16.gmra.mrb[0].mxu0 %v431
      %v582 = vpop.f32.mrb[0].mxu0
      %v583 = vadd.f32 0.0, %v582
      %v584 = vpop.f32.mrb[0].mxu0
      %v585 = vpop.f32.mrb[0].mxu0
      %v586 = vadd.f32 0.0, %v585
      %v587 = vpop.f32.mrb[0].mxu0
      %588 = vmatprep.mubr.bf16.mxu0 0
      %589 = vmatmul.mubr.bf16.gmra.mrb[0].mxu0 %v434
      %v590 = vpop.f32.mrb[0].mxu0
      %v591 = vadd.f32 0.0, %v590
      %v592 = vpop.f32.mrb[0].mxu0
      %v593 = vpop.f32.mrb[0].mxu0
      %v594 = vadd.f32 0.0, %v593
      %v595 = vpop.f32.mrb[0].mxu0
      %596 = vdwg.mxu0
      %v597 = vpack.c.bf16 %v474, %v471
      %v598 = vpack.c.bf16 %v482, %v479
      %v599 = vpack.c.bf16 %v490, %v487
      %v600 = vpack.c.bf16 %v498, %v495
      %v601 = vpack.c.bf16 %v506, %v503
      %v602 = vpack.c.bf16 %v514, %v511
      %v603 = vpack.c.bf16 %v522, %v519
      %v604 = vpack.c.bf16 %v530, %v527
      %v605 = vpack.c.bf16 %v538, %v535
      %v606 = vpack.c.bf16 %v546, %v543
      %v607 = vpack.c.bf16 %v554, %v551
      %v608 = vpack.c.bf16 %v562, %v559
      %v609 = vpack.c.bf16 %v570, %v567
      %v610 = vpack.c.bf16 %v578, %v575
      %v611 = vpack.c.bf16 %v586, %v583
      %v612 = vpack.c.bf16 %v594, %v591
      %v613 = vld [vmem:[%s2] sm:$0x3]
      %v615 = vsel %vm387, %v613, 0
      %617 = vmatprep.subr.bf16.mxu0 0
      %618 = vmatpush1.bf16.xpose.msra.mxu0 %v389
      %619 = vmatprep.subr.bf16.mxu0 0
      %620 = vmatpush1.bf16.xpose.msra.mxu0 %v392
      %621 = vmatprep.subr.bf16.mxu0 0
      %622 = vmatpush1.bf16.xpose.msra.mxu0 %v395
      %623 = vmatprep.subr.bf16.mxu0 0
      %624 = vmatpush1.bf16.xpose.msra.mxu0 %v398
      %625 = vmatprep.subr.bf16.mxu0 0
      %626 = vmatpush1.bf16.xpose.msra.mxu0 %v401
      %627 = vmatprep.subr.bf16.mxu0 0
      %628 = vmatpush1.bf16.xpose.msra.mxu0 %v404
      %629 = vmatprep.subr.bf16.mxu0 0
      %630 = vmatpush1.bf16.xpose.msra.mxu0 %v407
      %631 = vmatprep.subr.bf16.mxu0 0
      %632 = vmatpush1.bf16.xpose.msra.mxu0 %v410
      %633 = vmatprep.subr.bf16.mxu0 0
      %634 = vmatpush1.bf16.xpose.msra.mxu0 %v413
      %635 = vmatprep.subr.bf16.mxu0 0
      %636 = vmatpush1.bf16.xpose.msra.mxu0 %v416
      %637 = vmatprep.subr.bf16.mxu0 0
      %638 = vmatpush1.bf16.xpose.msra.mxu0 %v419
      %639 = vmatprep.subr.bf16.mxu0 0
      %640 = vmatpush1.bf16.xpose.msra.mxu0 %v422
      %641 = vmatprep.subr.bf16.mxu0 0
      %642 = vmatpush1.bf16.xpose.msra.mxu0 %v425
      %643 = vmatprep.subr.bf16.mxu0 0
      %644 = vmatpush1.bf16.xpose.msra.mxu0 %v428
      %645 = vmatprep.subr.bf16.mxu0 0
      %646 = vmatpush1.bf16.xpose.msra.mxu0 %v431
      %647 = vmatprep.subr.bf16.mxu0 0
      %648 = vmatpush1.bf16.xpose.msra.mxu0 %v434
      %649 = vmatprep.mubr.bf16.mxu0 0
      %650 = vmatmul.mubr.bf16.gmra.mrb[0].mxu0 %v615
      %v651 = vpop.f32.mrb[0].mxu0
      %v652 = vadd.f32 0.0, %v651
      %v653 = vpop.f32.mrb[0].mxu0
      %v654 = vadd.f32 0.0, %v653
      %v655 = vpop.f32.mrb[0].mxu0
      %v656 = vpop.f32.mrb[0].mxu0
      %657 = vdwg.mxu0
      %s658 = smul.u32 %s17, 128
      %s659 = sshra.s32 %s658, 3
      %s660 = sand.u32 %s658, 7
      %s661 = smul.addr %s659, 4
      %s662 = scalar_lea.vmem %s0, %s661
      %v663 = vld [vmem:[%s662] sm:$0xf]
      %v664 = vld [vmem:[%s662 + $0x4] sm:$0xf]
      %v665 = vld [vmem:[%s662 + $0x8] sm:$0xf]
      %v666 = vld [vmem:[%s662 + $0xc] sm:$0xf]
      %v667 = vld [vmem:[%s662 + $0x10] sm:$0xf]
      %v668 = vld [vmem:[%s662 + $0x14] sm:$0xf]
      %v669 = vld [vmem:[%s662 + $0x18] sm:$0xf]
      %v670 = vld [vmem:[%s662 + $0x1c] sm:$0xf]
      %v671 = vld [vmem:[%s662 + $0x20] sm:$0xf]
      %v672 = vld [vmem:[%s662 + $0x24] sm:$0xf]
      %v673 = vld [vmem:[%s662 + $0x28] sm:$0xf]
      %v674 = vld [vmem:[%s662 + $0x2c] sm:$0xf]
      %v675 = vld [vmem:[%s662 + $0x30] sm:$0xf]
      %v676 = vld [vmem:[%s662 + $0x34] sm:$0xf]
      %v677 = vld [vmem:[%s662 + $0x38] sm:$0xf]
      %v678 = vld [vmem:[%s662 + $0x3c] sm:$0xf]
      %v679 = vld [vmem:[%s3] sm:$0xf]
      %v680 = vld [vmem:[%s3 + $0x4] sm:$0xf]
      %v681 = vld [vmem:[%s3 + $0x8] sm:$0xf]
      %v682 = vld [vmem:[%s3 + $0xc] sm:$0xf]
      %v699 = vunpack.c.l.b16 %v663
      %v700 = vunpack.c.l.b16 %v664
      %v701 = vunpack.c.l.b16 %v665
      %v702 = vunpack.c.l.b16 %v666
      %v703 = vunpack.c.l.b16 %v667
      %v704 = vunpack.c.l.b16 %v668
      %v705 = vunpack.c.l.b16 %v669
      %v706 = vunpack.c.l.b16 %v670
      %v707 = vunpack.c.l.b16 %v671
      %v708 = vunpack.c.l.b16 %v672
      %v709 = vunpack.c.l.b16 %v673
      %v710 = vunpack.c.l.b16 %v674
      %v711 = vunpack.c.l.b16 %v675
      %v712 = vunpack.c.l.b16 %v676
      %v713 = vunpack.c.l.b16 %v677
      %v714 = vunpack.c.l.b16 %v678
      %v715 = vpack.c.b16 %v700, %v699
      %v716 = vpack.c.b16 %v702, %v701
      %v717 = vpack.c.b16 %v704, %v703
      %v718 = vpack.c.b16 %v706, %v705
      %v719 = vpack.c.b16 %v708, %v707
      %v720 = vpack.c.b16 %v710, %v709
      %v721 = vpack.c.b16 %v712, %v711
      %v722 = vpack.c.b16 %v714, %v713
      %v727 = vunpack.c.l.b16 %v679
      %v728 = vunpack.c.l.b16 %v680
      %v729 = vunpack.c.l.b16 %v681
      %v730 = vunpack.c.l.b16 %v682
      %v731 = vpack.c.b16 %v728, %v727
      %v732 = vpack.c.b16 %v730, %v729
      %v736 = vsel %vm387, %v715, 0
      %v739 = vsel %vm387, %v716, 0
      %v742 = vsel %vm387, %v717, 0
      %v745 = vsel %vm387, %v718, 0
      %v748 = vsel %vm387, %v719, 0
      %v751 = vsel %vm387, %v720, 0
      %v754 = vsel %vm387, %v721, 0
      %v757 = vsel %vm387, %v722, 0
      %759 = vmatprep.subr.bf16.mxu0 0
      %760 = vmatpush1.bf16.msra.mxu0 %v731
      %761 = vmatprep.subr.bf16.mxu0 0
      %762 = vmatpush1.bf16.msra.mxu0 %v732
      %763 = vmatprep.subr.bf16.mxu0 0
      %764 = vmatpush1.bf16.msra.mxu0 0
      %765 = vmatprep.subr.bf16.mxu0 0
      %766 = vmatpush1.bf16.msra.mxu0 0
      %767 = vmatprep.subr.bf16.mxu0 0
      %768 = vmatpush1.bf16.msra.mxu0 0
      %769 = vmatprep.subr.bf16.mxu0 0
      %770 = vmatpush1.bf16.msra.mxu0 0
      %771 = vmatprep.subr.bf16.mxu0 0
      %772 = vmatpush1.bf16.msra.mxu0 0
      %773 = vmatprep.subr.bf16.mxu0 0
      %774 = vmatpush1.bf16.msra.mxu0 0
      %775 = vmatprep.subr.bf16.mxu0 0
      %776 = vmatpush1.bf16.msra.mxu0 0
      %777 = vmatprep.subr.bf16.mxu0 0
      %778 = vmatpush1.bf16.msra.mxu0 0
      %779 = vmatprep.subr.bf16.mxu0 0
      %780 = vmatpush1.bf16.msra.mxu0 0
      %781 = vmatprep.subr.bf16.mxu0 0
      %782 = vmatpush1.bf16.msra.mxu0 0
      %783 = vmatprep.subr.bf16.mxu0 0
      %784 = vmatpush1.bf16.msra.mxu0 0
      %785 = vmatprep.subr.bf16.mxu0 0
      %786 = vmatpush1.bf16.msra.mxu0 0
      %787 = vmatprep.subr.bf16.mxu0 0
      %788 = vmatpush1.bf16.msra.mxu0 0
      %789 = vmatprep.subr.bf16.mxu0 0
      %790 = vmatpush1.bf16.msra.mxu0 0
      %791 = vmatprep.mubr.bf16.mxu0 0
      %792 = vmatmul.mubr.bf16.gmra.mrb[0].mxu0 %v736
      %v793 = vpop.f32.mrb[0].mxu0
      %v794 = vadd.f32 0.0, %v793
      %v795 = vpop.f32.mrb[0].mxu0
      %v796 = vpop.f32.mrb[0].mxu0
      %v797 = vadd.f32 0.0, %v796
      %v798 = vpop.f32.mrb[0].mxu0
      %799 = vmatprep.mubr.bf16.mxu0 0
      %800 = vmatmul.mubr.bf16.gmra.mrb[0].mxu0 %v739
      %v801 = vpop.f32.mrb[0].mxu0
      %v802 = vadd.f32 0.0, %v801
      %v803 = vpop.f32.mrb[0].mxu0
      %v804 = vpop.f32.mrb[0].mxu0
      %v805 = vadd.f32 0.0, %v804
      %v806 = vpop.f32.mrb[0].mxu0
      %807 = vmatprep.mubr.bf16.mxu0 0
      %808 = vmatmul.mubr.bf16.gmra.mrb[0].mxu0 %v742
      %v809 = vpop.f32.mrb[0].mxu0
      %v810 = vadd.f32 0.0, %v809
      %v811 = vpop.f32.mrb[0].mxu0
      %v812 = vpop.f32.mrb[0].mxu0
      %v813 = vadd.f32 0.0, %v812
      %v814 = vpop.f32.mrb[0].mxu0
      %815 = vmatprep.mubr.bf16.mxu0 0
      %816 = vmatmul.mubr.bf16.gmra.mrb[0].mxu0 %v745
      %v817 = vpop.f32.mrb[0].mxu0
      %v818 = vadd.f32 0.0, %v817
      %v819 = vpop.f32.mrb[0].mxu0
      %v820 = vpop.f32.mrb[0].mxu0
      %v821 = vadd.f32 0.0, %v820
      %v822 = vpop.f32.mrb[0].mxu0
      %823 = vmatprep.mubr.bf16.mxu0 0
      %824 = vmatmul.mubr.bf16.gmra.mrb[0].mxu0 %v748
      %v825 = vpop.f32.mrb[0].mxu0
      %v826 = vadd.f32 0.0, %v825
      %v827 = vpop.f32.mrb[0].mxu0
      %v828 = vpop.f32.mrb[0].mxu0
      %v829 = vadd.f32 0.0, %v828
      %v830 = vpop.f32.mrb[0].mxu0
      %831 = vmatprep.mubr.bf16.mxu0 0
      %832 = vmatmul.mubr.bf16.gmra.mrb[0].mxu0 %v751
      %v833 = vpop.f32.mrb[0].mxu0
      %v834 = vadd.f32 0.0, %v833
      %v835 = vpop.f32.mrb[0].mxu0
      %v836 = vpop.f32.mrb[0].mxu0
      %v837 = vadd.f32 0.0, %v836
      %v838 = vpop.f32.mrb[0].mxu0
      %839 = vmatprep.mubr.bf16.mxu0 0
      %840 = vmatmul.mubr.bf16.gmra.mrb[0].mxu0 %v754
      %v841 = vpop.f32.mrb[0].mxu0
      %v842 = vadd.f32 0.0, %v841
      %v843 = vpop.f32.mrb[0].mxu0
      %v844 = vpop.f32.mrb[0].mxu0
      %v845 = vadd.f32 0.0, %v844
      %v846 = vpop.f32.mrb[0].mxu0
      %847 = vmatprep.mubr.bf16.mxu0 0
      %848 = vmatmul.mubr.bf16.gmra.mrb[0].mxu0 %v757
      %v849 = vpop.f32.mrb[0].mxu0
      %v850 = vadd.f32 0.0, %v849
      %v851 = vpop.f32.mrb[0].mxu0
      %v852 = vpop.f32.mrb[0].mxu0
      %v853 = vadd.f32 0.0, %v852
      %v854 = vpop.f32.mrb[0].mxu0
      %855 = vdwg.mxu0
      %v856 = vld [vmem:[%s250] sm:$0xff]
      %v857 = vld [vmem:[%s250 + $0x8] sm:$0xff]
      %v858 = vld [vmem:[%s250 + $0x10] sm:$0xff]
      %v859 = vld [vmem:[%s250 + $0x18] sm:$0xff]
      %v860 = vld [vmem:[%s250 + $0x20] sm:$0xff]
      %v861 = vld [vmem:[%s250 + $0x28] sm:$0xff]
      %v862 = vld [vmem:[%s250 + $0x30] sm:$0xff]
      %v863 = vld [vmem:[%s250 + $0x38] sm:$0xff]
      %v864 = vunpack.c.0.s8 %v856
      %v865 = vunpack.c.0.s8 %v857
      %v866 = vunpack.c.1.s8 %v856
      %v867 = vunpack.c.1.s8 %v857
      %v868 = vunpack.c.2.s8 %v856
      %v869 = vunpack.c.2.s8 %v857
      %v870 = vunpack.c.3.s8 %v856
      %v871 = vunpack.c.3.s8 %v857
      %v872 = vunpack.c.0.s8 %v858
      %v873 = vunpack.c.0.s8 %v859
      %v874 = vunpack.c.1.s8 %v858
      %v875 = vunpack.c.1.s8 %v859
      %v876 = vunpack.c.2.s8 %v858
      %v877 = vunpack.c.2.s8 %v859
      %v878 = vunpack.c.3.s8 %v858
      %v879 = vunpack.c.3.s8 %v859
      %v880 = vunpack.c.0.s8 %v860
      %v881 = vunpack.c.0.s8 %v861
      %v882 = vunpack.c.1.s8 %v860
      %v883 = vunpack.c.1.s8 %v861
      %v884 = vunpack.c.2.s8 %v860
      %v885 = vunpack.c.2.s8 %v861
      %v886 = vunpack.c.3.s8 %v860
      %v887 = vunpack.c.3.s8 %v861
      %v888 = vunpack.c.0.s8 %v862
      %v889 = vunpack.c.0.s8 %v863
      %v890 = vunpack.c.1.s8 %v862
      %v891 = vunpack.c.1.s8 %v863
      %v892 = vunpack.c.2.s8 %v862
      %v893 = vunpack.c.2.s8 %v863
      %v894 = vunpack.c.3.s8 %v862
      %v895 = vunpack.c.3.s8 %v863
      %v896 = vcvt.s32.f32 %v864
      %v897 = vcvt.s32.f32 %v865
      %v898 = vcvt.s32.f32 %v866
      %v899 = vcvt.s32.f32 %v867
      %v900 = vcvt.s32.f32 %v868
      %v901 = vcvt.s32.f32 %v869
      %v902 = vcvt.s32.f32 %v870
      %v903 = vcvt.s32.f32 %v871
      %v904 = vcvt.s32.f32 %v872
      %v905 = vcvt.s32.f32 %v873
      %v906 = vcvt.s32.f32 %v874
      %v907 = vcvt.s32.f32 %v875
      %v908 = vcvt.s32.f32 %v876
      %v909 = vcvt.s32.f32 %v877
      %v910 = vcvt.s32.f32 %v878
      %v911 = vcvt.s32.f32 %v879
      %v912 = vcvt.s32.f32 %v880
      %v913 = vcvt.s32.f32 %v881
      %v914 = vcvt.s32.f32 %v882
      %v915 = vcvt.s32.f32 %v883
      %v916 = vcvt.s32.f32 %v884
      %v917 = vcvt.s32.f32 %v885
      %v918 = vcvt.s32.f32 %v886
      %v919 = vcvt.s32.f32 %v887
      %v920 = vcvt.s32.f32 %v888
      %v921 = vcvt.s32.f32 %v889
      %v922 = vcvt.s32.f32 %v890
      %v923 = vcvt.s32.f32 %v891
      %v924 = vcvt.s32.f32 %v892
      %v925 = vcvt.s32.f32 %v893
      %v926 = vcvt.s32.f32 %v894
      %v927 = vcvt.s32.f32 %v895
      %vm928 = vcmp.gt.f32.partialorder %v896, 0.0
      %vm929 = vcmp.gt.f32.partialorder %v897, 0.0
      %vm930 = vcmp.gt.f32.partialorder %v898, 0.0
      %vm931 = vcmp.gt.f32.partialorder %v899, 0.0
      %vm932 = vcmp.gt.f32.partialorder %v900, 0.0
      %vm933 = vcmp.gt.f32.partialorder %v901, 0.0
      %vm934 = vcmp.gt.f32.partialorder %v902, 0.0
      %vm935 = vcmp.gt.f32.partialorder %v903, 0.0
      %vm936 = vcmp.gt.f32.partialorder %v904, 0.0
      %vm937 = vcmp.gt.f32.partialorder %v905, 0.0
      %vm938 = vcmp.gt.f32.partialorder %v906, 0.0
      %vm939 = vcmp.gt.f32.partialorder %v907, 0.0
      %vm940 = vcmp.gt.f32.partialorder %v908, 0.0
      %vm941 = vcmp.gt.f32.partialorder %v909, 0.0
      %vm942 = vcmp.gt.f32.partialorder %v910, 0.0
      %vm943 = vcmp.gt.f32.partialorder %v911, 0.0
      %vm944 = vcmp.gt.f32.partialorder %v912, 0.0
      %vm945 = vcmp.gt.f32.partialorder %v913, 0.0
      %vm946 = vcmp.gt.f32.partialorder %v914, 0.0
      %vm947 = vcmp.gt.f32.partialorder %v915, 0.0
      %vm948 = vcmp.gt.f32.partialorder %v916, 0.0
      %vm949 = vcmp.gt.f32.partialorder %v917, 0.0
      %vm950 = vcmp.gt.f32.partialorder %v918, 0.0
      %vm951 = vcmp.gt.f32.partialorder %v919, 0.0
      %vm952 = vcmp.gt.f32.partialorder %v920, 0.0
      %vm953 = vcmp.gt.f32.partialorder %v921, 0.0
      %vm954 = vcmp.gt.f32.partialorder %v922, 0.0
      %vm955 = vcmp.gt.f32.partialorder %v923, 0.0
      %vm956 = vcmp.gt.f32.partialorder %v924, 0.0
      %vm957 = vcmp.gt.f32.partialorder %v925, 0.0
      %vm958 = vcmp.gt.f32.partialorder %v926, 0.0
      %vm959 = vcmp.gt.f32.partialorder %v927, 0.0
      %v960 = vsel %vm928, 0.0, -1e+30
      %v961 = vsel %vm929, 0.0, -1e+30
      %v962 = vsel %vm930, 0.0, -1e+30
      %v963 = vsel %vm931, 0.0, -1e+30
      %v964 = vsel %vm932, 0.0, -1e+30
      %v965 = vsel %vm933, 0.0, -1e+30
      %v966 = vsel %vm934, 0.0, -1e+30
      %v967 = vsel %vm935, 0.0, -1e+30
      %v968 = vsel %vm936, 0.0, -1e+30
      %v969 = vsel %vm937, 0.0, -1e+30
      %v970 = vsel %vm938, 0.0, -1e+30
      %v971 = vsel %vm939, 0.0, -1e+30
      %v972 = vsel %vm940, 0.0, -1e+30
      %v973 = vsel %vm941, 0.0, -1e+30
      %v974 = vsel %vm942, 0.0, -1e+30
      %v975 = vsel %vm943, 0.0, -1e+30
      %v976 = vsel %vm944, 0.0, -1e+30
      %v977 = vsel %vm945, 0.0, -1e+30
      %v978 = vsel %vm946, 0.0, -1e+30
      %v979 = vsel %vm947, 0.0, -1e+30
      %v980 = vsel %vm948, 0.0, -1e+30
      %v981 = vsel %vm949, 0.0, -1e+30
      %v982 = vsel %vm950, 0.0, -1e+30
      %v983 = vsel %vm951, 0.0, -1e+30
      %v984 = vsel %vm952, 0.0, -1e+30
      %v985 = vsel %vm953, 0.0, -1e+30
      %v986 = vsel %vm954, 0.0, -1e+30
      %v987 = vsel %vm955, 0.0, -1e+30
      %v988 = vsel %vm956, 0.0, -1e+30
      %v989 = vsel %vm957, 0.0, -1e+30
      %v990 = vsel %vm958, 0.0, -1e+30
      %v991 = vsel %vm959, 0.0, -1e+30
      %993 = vset.pattern.permute.xlu0 0
      %994 = vperm.xlu0 %993, %v794
      %v995 = vpop.permute.xlu0 %994
      %998 = vset.pattern.permute.xlu0 0
      %999 = vperm.xlu0 %998, %v797
      %v1000 = vpop.permute.xlu0 %999
      %1003 = vset.pattern.permute.xlu0 0
      %1004 = vperm.xlu0 %1003, %v802
      %v1005 = vpop.permute.xlu0 %1004
      %1008 = vset.pattern.permute.xlu0 0
      %1009 = vperm.xlu0 %1008, %v805
      %v1010 = vpop.permute.xlu0 %1009
      %1013 = vset.pattern.permute.xlu0 0
      %1014 = vperm.xlu0 %1013, %v810
      %v1015 = vpop.permute.xlu0 %1014
      %1018 = vset.pattern.permute.xlu0 0
      %1019 = vperm.xlu0 %1018, %v813
      %v1020 = vpop.permute.xlu0 %1019
      %1023 = vset.pattern.permute.xlu0 0
      %1024 = vperm.xlu0 %1023, %v818
      %v1025 = vpop.permute.xlu0 %1024
      %1028 = vset.pattern.permute.xlu0 0
      %1029 = vperm.xlu0 %1028, %v821
      %v1030 = vpop.permute.xlu0 %1029
      %1033 = vset.pattern.permute.xlu0 0
      %1034 = vperm.xlu0 %1033, %v826
      %v1035 = vpop.permute.xlu0 %1034
      %1038 = vset.pattern.permute.xlu0 0
      %1039 = vperm.xlu0 %1038, %v829
      %v1040 = vpop.permute.xlu0 %1039
      %1043 = vset.pattern.permute.xlu0 0
      %1044 = vperm.xlu0 %1043, %v834
      %v1045 = vpop.permute.xlu0 %1044
      %1048 = vset.pattern.permute.xlu0 0
      %1049 = vperm.xlu0 %1048, %v837
      %v1050 = vpop.permute.xlu0 %1049
      %1053 = vset.pattern.permute.xlu0 0
      %1054 = vperm.xlu0 %1053, %v842
      %v1055 = vpop.permute.xlu0 %1054
      %1058 = vset.pattern.permute.xlu0 0
      %1059 = vperm.xlu0 %1058, %v845
      %v1060 = vpop.permute.xlu0 %1059
      %1063 = vset.pattern.permute.xlu0 0
      %1064 = vperm.xlu0 %1063, %v850
      %v1065 = vpop.permute.xlu0 %1064
      %1068 = vset.pattern.permute.xlu0 0
      %1069 = vperm.xlu0 %1068, %v853
      %v1070 = vpop.permute.xlu0 %1069
      %v1072 = vlaneseq
      %v1073 = vshrl.u32 %v1072, 7
      %v1074 = vsub.s32 0, %v1073
      %v1075 = vrot.slane %v652, %v1074
      %v1076 = vlaneseq
      %v1077 = vshrl.u32 %v1076, 7
      %v1078 = vsub.s32 0, %v1077
      %v1079 = vrot.slane %v654, %v1078
      %v1080 = vadd.f32 %v995, %v1075
      %v1081 = vadd.f32 %v995, %v1079
      %v1082 = vadd.f32 %v1000, %v1075
      %v1083 = vadd.f32 %v1000, %v1079
      %v1084 = vadd.f32 %v1005, %v1075
      %v1085 = vadd.f32 %v1005, %v1079
      %v1086 = vadd.f32 %v1010, %v1075
      %v1087 = vadd.f32 %v1010, %v1079
      %v1088 = vadd.f32 %v1015, %v1075
      %v1089 = vadd.f32 %v1015, %v1079
      %v1090 = vadd.f32 %v1020, %v1075
      %v1091 = vadd.f32 %v1020, %v1079
      %v1092 = vadd.f32 %v1025, %v1075
      %v1093 = vadd.f32 %v1025, %v1079
      %v1094 = vadd.f32 %v1030, %v1075
      %v1095 = vadd.f32 %v1030, %v1079
      %v1096 = vadd.f32 %v1035, %v1075
      %v1097 = vadd.f32 %v1035, %v1079
      %v1098 = vadd.f32 %v1040, %v1075
      %v1099 = vadd.f32 %v1040, %v1079
      %v1100 = vadd.f32 %v1045, %v1075
      %v1101 = vadd.f32 %v1045, %v1079
      %v1102 = vadd.f32 %v1050, %v1075
      %v1103 = vadd.f32 %v1050, %v1079
      %v1104 = vadd.f32 %v1055, %v1075
      %v1105 = vadd.f32 %v1055, %v1079
      %v1106 = vadd.f32 %v1060, %v1075
      %v1107 = vadd.f32 %v1060, %v1079
      %v1108 = vadd.f32 %v1065, %v1075
      %v1109 = vadd.f32 %v1065, %v1079
      %v1110 = vadd.f32 %v1070, %v1075
      %v1111 = vadd.f32 %v1070, %v1079
      %vm1112 = vcmp.gt.f32.partialorder %v1080, 0.0
      %vm1113 = vcmp.gt.f32.partialorder %v1081, 0.0
      %vm1114 = vcmp.gt.f32.partialorder %v1082, 0.0
      %vm1115 = vcmp.gt.f32.partialorder %v1083, 0.0
      %vm1116 = vcmp.gt.f32.partialorder %v1084, 0.0
      %vm1117 = vcmp.gt.f32.partialorder %v1085, 0.0
      %vm1118 = vcmp.gt.f32.partialorder %v1086, 0.0
      %vm1119 = vcmp.gt.f32.partialorder %v1087, 0.0
      %vm1120 = vcmp.gt.f32.partialorder %v1088, 0.0
      %vm1121 = vcmp.gt.f32.partialorder %v1089, 0.0
      %vm1122 = vcmp.gt.f32.partialorder %v1090, 0.0
      %vm1123 = vcmp.gt.f32.partialorder %v1091, 0.0
      %vm1124 = vcmp.gt.f32.partialorder %v1092, 0.0
      %vm1125 = vcmp.gt.f32.partialorder %v1093, 0.0
      %vm1126 = vcmp.gt.f32.partialorder %v1094, 0.0
      %vm1127 = vcmp.gt.f32.partialorder %v1095, 0.0
      %vm1128 = vcmp.gt.f32.partialorder %v1096, 0.0
      %vm1129 = vcmp.gt.f32.partialorder %v1097, 0.0
      %vm1130 = vcmp.gt.f32.partialorder %v1098, 0.0
      %vm1131 = vcmp.gt.f32.partialorder %v1099, 0.0
      %vm1132 = vcmp.gt.f32.partialorder %v1100, 0.0
      %vm1133 = vcmp.gt.f32.partialorder %v1101, 0.0
      %vm1134 = vcmp.gt.f32.partialorder %v1102, 0.0
      %vm1135 = vcmp.gt.f32.partialorder %v1103, 0.0
      %vm1136 = vcmp.gt.f32.partialorder %v1104, 0.0
      %vm1137 = vcmp.gt.f32.partialorder %v1105, 0.0
      %vm1138 = vcmp.gt.f32.partialorder %v1106, 0.0
      %vm1139 = vcmp.gt.f32.partialorder %v1107, 0.0
      %vm1140 = vcmp.gt.f32.partialorder %v1108, 0.0
      %vm1141 = vcmp.gt.f32.partialorder %v1109, 0.0
      %vm1142 = vcmp.gt.f32.partialorder %v1110, 0.0
      %vm1143 = vcmp.gt.f32.partialorder %v1111, 0.0
      %v1144 = vmul.f32 %v1080, 0.2
      %v1145 = vmul.f32 %v1081, 0.2
      %v1146 = vmul.f32 %v1082, 0.2
      %v1147 = vmul.f32 %v1083, 0.2
      %v1148 = vmul.f32 %v1084, 0.2
      %v1149 = vmul.f32 %v1085, 0.2
      %v1150 = vmul.f32 %v1086, 0.2
      %v1151 = vmul.f32 %v1087, 0.2
      %v1152 = vmul.f32 %v1088, 0.2
      %v1153 = vmul.f32 %v1089, 0.2
      %v1154 = vmul.f32 %v1090, 0.2
      %v1155 = vmul.f32 %v1091, 0.2
      %v1156 = vmul.f32 %v1092, 0.2
      %v1157 = vmul.f32 %v1093, 0.2
      %v1158 = vmul.f32 %v1094, 0.2
      %v1159 = vmul.f32 %v1095, 0.2
      %v1160 = vmul.f32 %v1096, 0.2
      %v1161 = vmul.f32 %v1097, 0.2
      %v1162 = vmul.f32 %v1098, 0.2
      %v1163 = vmul.f32 %v1099, 0.2
      %v1164 = vmul.f32 %v1100, 0.2
      %v1165 = vmul.f32 %v1101, 0.2
      %v1166 = vmul.f32 %v1102, 0.2
      %v1167 = vmul.f32 %v1103, 0.2
      %v1168 = vmul.f32 %v1104, 0.2
      %v1169 = vmul.f32 %v1105, 0.2
      %v1170 = vmul.f32 %v1106, 0.2
      %v1171 = vmul.f32 %v1107, 0.2
      %v1172 = vmul.f32 %v1108, 0.2
      %v1173 = vmul.f32 %v1109, 0.2
      %v1174 = vmul.f32 %v1110, 0.2
      %v1175 = vmul.f32 %v1111, 0.2
      %v1176 = vsel %vm1112, %v1080, %v1144
      %v1177 = vsel %vm1113, %v1081, %v1145
      %v1178 = vsel %vm1114, %v1082, %v1146
      %v1179 = vsel %vm1115, %v1083, %v1147
      %v1180 = vsel %vm1116, %v1084, %v1148
      %v1181 = vsel %vm1117, %v1085, %v1149
      %v1182 = vsel %vm1118, %v1086, %v1150
      %v1183 = vsel %vm1119, %v1087, %v1151
      %v1184 = vsel %vm1120, %v1088, %v1152
      %v1185 = vsel %vm1121, %v1089, %v1153
      %v1186 = vsel %vm1122, %v1090, %v1154
      %v1187 = vsel %vm1123, %v1091, %v1155
      %v1188 = vsel %vm1124, %v1092, %v1156
      %v1189 = vsel %vm1125, %v1093, %v1157
      %v1190 = vsel %vm1126, %v1094, %v1158
      %v1191 = vsel %vm1127, %v1095, %v1159
      %v1192 = vsel %vm1128, %v1096, %v1160
      %v1193 = vsel %vm1129, %v1097, %v1161
      %v1194 = vsel %vm1130, %v1098, %v1162
      %v1195 = vsel %vm1131, %v1099, %v1163
      %v1196 = vsel %vm1132, %v1100, %v1164
      %v1197 = vsel %vm1133, %v1101, %v1165
      %v1198 = vsel %vm1134, %v1102, %v1166
      %v1199 = vsel %vm1135, %v1103, %v1167
      %v1200 = vsel %vm1136, %v1104, %v1168
      %v1201 = vsel %vm1137, %v1105, %v1169
      %v1202 = vsel %vm1138, %v1106, %v1170
      %v1203 = vsel %vm1139, %v1107, %v1171
      %v1204 = vsel %vm1140, %v1108, %v1172
      %v1205 = vsel %vm1141, %v1109, %v1173
      %v1206 = vsel %vm1142, %v1110, %v1174
      %v1207 = vsel %vm1143, %v1111, %v1175
      %v1208 = vadd.f32 %v1176, %v960
      %v1209 = vadd.f32 %v1177, %v961
      %v1210 = vadd.f32 %v1178, %v962
      %v1211 = vadd.f32 %v1179, %v963
      %v1212 = vadd.f32 %v1180, %v964
      %v1213 = vadd.f32 %v1181, %v965
      %v1214 = vadd.f32 %v1182, %v966
      %v1215 = vadd.f32 %v1183, %v967
      %v1216 = vadd.f32 %v1184, %v968
      %v1217 = vadd.f32 %v1185, %v969
      %v1218 = vadd.f32 %v1186, %v970
      %v1219 = vadd.f32 %v1187, %v971
      %v1220 = vadd.f32 %v1188, %v972
      %v1221 = vadd.f32 %v1189, %v973
      %v1222 = vadd.f32 %v1190, %v974
      %v1223 = vadd.f32 %v1191, %v975
      %v1224 = vadd.f32 %v1192, %v976
      %v1225 = vadd.f32 %v1193, %v977
      %v1226 = vadd.f32 %v1194, %v978
      %v1227 = vadd.f32 %v1195, %v979
      %v1228 = vadd.f32 %v1196, %v980
      %v1229 = vadd.f32 %v1197, %v981
      %v1230 = vadd.f32 %v1198, %v982
      %v1231 = vadd.f32 %v1199, %v983
      %v1232 = vadd.f32 %v1200, %v984
      %v1233 = vadd.f32 %v1201, %v985
      %v1234 = vadd.f32 %v1202, %v986
      %v1235 = vadd.f32 %v1203, %v987
      %v1236 = vadd.f32 %v1204, %v988
      %v1237 = vadd.f32 %v1205, %v989
      %v1238 = vadd.f32 %v1206, %v990
      %v1239 = vadd.f32 %v1207, %v991
      %v1240 = vmax.f32 %v1208, %v1209
      %1241 = vmax.xlane.f32.xlu0 %v1240
      %v1242 = vpop.xlane.xlu0 %1241
      %v1243 = vmax.f32 %v1210, %v1211
      %1244 = vmax.xlane.f32.xlu0 %v1243
      %v1245 = vpop.xlane.xlu0 %1244
      %v1246 = vmax.f32 %v1212, %v1213
      %1247 = vmax.xlane.f32.xlu0 %v1246
      %v1248 = vpop.xlane.xlu0 %1247
      %v1249 = vmax.f32 %v1214, %v1215
      %1250 = vmax.xlane.f32.xlu0 %v1249
      %v1251 = vpop.xlane.xlu0 %1250
      %v1252 = vmax.f32 %v1216, %v1217
      %1253 = vmax.xlane.f32.xlu0 %v1252
      %v1254 = vpop.xlane.xlu0 %1253
      %v1255 = vmax.f32 %v1218, %v1219
      %1256 = vmax.xlane.f32.xlu0 %v1255
      %v1257 = vpop.xlane.xlu0 %1256
      %v1258 = vmax.f32 %v1220, %v1221
      %1259 = vmax.xlane.f32.xlu0 %v1258
      %v1260 = vpop.xlane.xlu0 %1259
      %v1261 = vmax.f32 %v1222, %v1223
      %1262 = vmax.xlane.f32.xlu0 %v1261
      %v1263 = vpop.xlane.xlu0 %1262
      %v1264 = vmax.f32 %v1224, %v1225
      %1265 = vmax.xlane.f32.xlu0 %v1264
      %v1266 = vpop.xlane.xlu0 %1265
      %v1267 = vmax.f32 %v1226, %v1227
      %1268 = vmax.xlane.f32.xlu0 %v1267
      %v1269 = vpop.xlane.xlu0 %1268
      %v1270 = vmax.f32 %v1228, %v1229
      %1271 = vmax.xlane.f32.xlu0 %v1270
      %v1272 = vpop.xlane.xlu0 %1271
      %v1273 = vmax.f32 %v1230, %v1231
      %1274 = vmax.xlane.f32.xlu0 %v1273
      %v1275 = vpop.xlane.xlu0 %1274
      %v1276 = vmax.f32 %v1232, %v1233
      %1277 = vmax.xlane.f32.xlu0 %v1276
      %v1278 = vpop.xlane.xlu0 %1277
      %v1279 = vmax.f32 %v1234, %v1235
      %1280 = vmax.xlane.f32.xlu0 %v1279
      %v1281 = vpop.xlane.xlu0 %1280
      %v1282 = vmax.f32 %v1236, %v1237
      %1283 = vmax.xlane.f32.xlu0 %v1282
      %v1284 = vpop.xlane.xlu0 %1283
      %v1285 = vmax.f32 %v1238, %v1239
      %1286 = vmax.xlane.f32.xlu0 %v1285
      %v1287 = vpop.xlane.xlu0 %1286
      %v1288 = vsub.f32 %v1208, %v1242
      %v1289 = vsub.f32 %v1209, %v1242
      %v1290 = vsub.f32 %v1210, %v1245
      %v1291 = vsub.f32 %v1211, %v1245
      %v1292 = vsub.f32 %v1212, %v1248
      %v1293 = vsub.f32 %v1213, %v1248
      %v1294 = vsub.f32 %v1214, %v1251
      %v1295 = vsub.f32 %v1215, %v1251
      %v1296 = vsub.f32 %v1216, %v1254
      %v1297 = vsub.f32 %v1217, %v1254
      %v1298 = vsub.f32 %v1218, %v1257
      %v1299 = vsub.f32 %v1219, %v1257
      %v1300 = vsub.f32 %v1220, %v1260
      %v1301 = vsub.f32 %v1221, %v1260
      %v1302 = vsub.f32 %v1222, %v1263
      %v1303 = vsub.f32 %v1223, %v1263
      %v1304 = vsub.f32 %v1224, %v1266
      %v1305 = vsub.f32 %v1225, %v1266
      %v1306 = vsub.f32 %v1226, %v1269
      %v1307 = vsub.f32 %v1227, %v1269
      %v1308 = vsub.f32 %v1228, %v1272
      %v1309 = vsub.f32 %v1229, %v1272
      %v1310 = vsub.f32 %v1230, %v1275
      %v1311 = vsub.f32 %v1231, %v1275
      %v1312 = vsub.f32 %v1232, %v1278
      %v1313 = vsub.f32 %v1233, %v1278
      %v1314 = vsub.f32 %v1234, %v1281
      %v1315 = vsub.f32 %v1235, %v1281
      %v1316 = vsub.f32 %v1236, %v1284
      %v1317 = vsub.f32 %v1237, %v1284
      %v1318 = vsub.f32 %v1238, %v1287
      %v1319 = vsub.f32 %v1239, %v1287
      %v1320 = vmul.f32 %v1288, 1.442695
      %v1321 = vpow.pop %v1320
      %v1322 = vmul.f32 %v1289, 1.442695
      %v1323 = vpow.pop %v1322
      %v1324 = vmul.f32 %v1290, 1.442695
      %v1325 = vpow.pop %v1324
      %v1326 = vmul.f32 %v1291, 1.442695
      %v1327 = vpow.pop %v1326
      %v1328 = vmul.f32 %v1292, 1.442695
      %v1329 = vpow.pop %v1328
      %v1330 = vmul.f32 %v1293, 1.442695
      %v1331 = vpow.pop %v1330
      %v1332 = vmul.f32 %v1294, 1.442695
      %v1333 = vpow.pop %v1332
      %v1334 = vmul.f32 %v1295, 1.442695
      %v1335 = vpow.pop %v1334
      %v1336 = vmul.f32 %v1296, 1.442695
      %v1337 = vpow.pop %v1336
      %v1338 = vmul.f32 %v1297, 1.442695
      %v1339 = vpow.pop %v1338
      %v1340 = vmul.f32 %v1298, 1.442695
      %v1341 = vpow.pop %v1340
      %v1342 = vmul.f32 %v1299, 1.442695
      %v1343 = vpow.pop %v1342
      %v1344 = vmul.f32 %v1300, 1.442695
      %v1345 = vpow.pop %v1344
      %v1346 = vmul.f32 %v1301, 1.442695
      %v1347 = vpow.pop %v1346
      %v1348 = vmul.f32 %v1302, 1.442695
      %v1349 = vpow.pop %v1348
      %v1350 = vmul.f32 %v1303, 1.442695
      %v1351 = vpow.pop %v1350
      %v1352 = vmul.f32 %v1304, 1.442695
      %v1353 = vpow.pop %v1352
      %v1354 = vmul.f32 %v1305, 1.442695
      %v1355 = vpow.pop %v1354
      %v1356 = vmul.f32 %v1306, 1.442695
      %v1357 = vpow.pop %v1356
      %v1358 = vmul.f32 %v1307, 1.442695
      %v1359 = vpow.pop %v1358
      %v1360 = vmul.f32 %v1308, 1.442695
      %v1361 = vpow.pop %v1360
      %v1362 = vmul.f32 %v1309, 1.442695
      %v1363 = vpow.pop %v1362
      %v1364 = vmul.f32 %v1310, 1.442695
      %v1365 = vpow.pop %v1364
      %v1366 = vmul.f32 %v1311, 1.442695
      %v1367 = vpow.pop %v1366
      %v1368 = vmul.f32 %v1312, 1.442695
      %v1369 = vpow.pop %v1368
      %v1370 = vmul.f32 %v1313, 1.442695
      %v1371 = vpow.pop %v1370
      %v1372 = vmul.f32 %v1314, 1.442695
      %v1373 = vpow.pop %v1372
      %v1374 = vmul.f32 %v1315, 1.442695
      %v1375 = vpow.pop %v1374
      %v1376 = vmul.f32 %v1316, 1.442695
      %v1377 = vpow.pop %v1376
      %v1378 = vmul.f32 %v1317, 1.442695
      %v1379 = vpow.pop %v1378
      %v1380 = vmul.f32 %v1318, 1.442695
      %v1381 = vpow.pop %v1380
      %v1382 = vmul.f32 %v1319, 1.442695
      %v1383 = vpow.pop %v1382
      %v1384 = vadd.f32 %v1321, %v1323
      %1385 = vadd.xlane.f32.xlu0 %v1384
      %v1386 = vpop.xlane.xlu0 %1385
      %v1387 = vadd.f32 %v1325, %v1327
      %1388 = vadd.xlane.f32.xlu0 %v1387
      %v1389 = vpop.xlane.xlu0 %1388
      %v1390 = vadd.f32 %v1329, %v1331
      %1391 = vadd.xlane.f32.xlu0 %v1390
      %v1392 = vpop.xlane.xlu0 %1391
      %v1393 = vadd.f32 %v1333, %v1335
      %1394 = vadd.xlane.f32.xlu0 %v1393
      %v1395 = vpop.xlane.xlu0 %1394
      %v1396 = vadd.f32 %v1337, %v1339
      %1397 = vadd.xlane.f32.xlu0 %v1396
      %v1398 = vpop.xlane.xlu0 %1397
      %v1399 = vadd.f32 %v1341, %v1343
      %1400 = vadd.xlane.f32.xlu0 %v1399
      %v1401 = vpop.xlane.xlu0 %1400
      %v1402 = vadd.f32 %v1345, %v1347
      %1403 = vadd.xlane.f32.xlu0 %v1402
      %v1404 = vpop.xlane.xlu0 %1403
      %v1405 = vadd.f32 %v1349, %v1351
      %1406 = vadd.xlane.f32.xlu0 %v1405
      %v1407 = vpop.xlane.xlu0 %1406
      %v1408 = vadd.f32 %v1353, %v1355
      %1409 = vadd.xlane.f32.xlu0 %v1408
      %v1410 = vpop.xlane.xlu0 %1409
      %v1411 = vadd.f32 %v1357, %v1359
      %1412 = vadd.xlane.f32.xlu0 %v1411
      %v1413 = vpop.xlane.xlu0 %1412
      %v1414 = vadd.f32 %v1361, %v1363
      %1415 = vadd.xlane.f32.xlu0 %v1414
      %v1416 = vpop.xlane.xlu0 %1415
      %v1417 = vadd.f32 %v1365, %v1367
      %1418 = vadd.xlane.f32.xlu0 %v1417
      %v1419 = vpop.xlane.xlu0 %1418
      %v1420 = vadd.f32 %v1369, %v1371
      %1421 = vadd.xlane.f32.xlu0 %v1420
      %v1422 = vpop.xlane.xlu0 %1421
      %v1423 = vadd.f32 %v1373, %v1375
      %1424 = vadd.xlane.f32.xlu0 %v1423
      %v1425 = vpop.xlane.xlu0 %1424
      %v1426 = vadd.f32 %v1377, %v1379
      %1427 = vadd.xlane.f32.xlu0 %v1426
      %v1428 = vpop.xlane.xlu0 %1427
      %v1429 = vadd.f32 %v1381, %v1383
      %1430 = vadd.xlane.f32.xlu0 %v1429
      %v1431 = vpop.xlane.xlu0 %1430
      %v1432 = vrcp.pop %v1386
      %v1433 = vrcp.pop %v1389
      %v1434 = vrcp.pop %v1392
      %v1435 = vrcp.pop %v1395
      %v1436 = vrcp.pop %v1398
      %v1437 = vrcp.pop %v1401
      %v1438 = vrcp.pop %v1404
      %v1439 = vrcp.pop %v1407
      %v1440 = vrcp.pop %v1410
      %v1441 = vrcp.pop %v1413
      %v1442 = vrcp.pop %v1416
      %v1443 = vrcp.pop %v1419
      %v1444 = vrcp.pop %v1422
      %v1445 = vrcp.pop %v1425
      %v1446 = vrcp.pop %v1428
      %v1447 = vrcp.pop %v1431
      %v1448 = vmul.f32 %v1321, %v1432
      %v1449 = vmul.f32 %v1323, %v1432
      %v1450 = vmul.f32 %v1325, %v1433
      %v1451 = vmul.f32 %v1327, %v1433
      %v1452 = vmul.f32 %v1329, %v1434
      %v1453 = vmul.f32 %v1331, %v1434
      %v1454 = vmul.f32 %v1333, %v1435
      %v1455 = vmul.f32 %v1335, %v1435
      %v1456 = vmul.f32 %v1337, %v1436
      %v1457 = vmul.f32 %v1339, %v1436
      %v1458 = vmul.f32 %v1341, %v1437
      %v1459 = vmul.f32 %v1343, %v1437
      %v1460 = vmul.f32 %v1345, %v1438
      %v1461 = vmul.f32 %v1347, %v1438
      %v1462 = vmul.f32 %v1349, %v1439
      %v1463 = vmul.f32 %v1351, %v1439
      %v1464 = vmul.f32 %v1353, %v1440
      %v1465 = vmul.f32 %v1355, %v1440
      %v1466 = vmul.f32 %v1357, %v1441
      %v1467 = vmul.f32 %v1359, %v1441
      %v1468 = vmul.f32 %v1361, %v1442
      %v1469 = vmul.f32 %v1363, %v1442
      %v1470 = vmul.f32 %v1365, %v1443
      %v1471 = vmul.f32 %v1367, %v1443
      %v1472 = vmul.f32 %v1369, %v1444
      %v1473 = vmul.f32 %v1371, %v1444
      %v1474 = vmul.f32 %v1373, %v1445
      %v1475 = vmul.f32 %v1375, %v1445
      %v1476 = vmul.f32 %v1377, %v1446
      %v1477 = vmul.f32 %v1379, %v1446
      %v1478 = vmul.f32 %v1381, %v1447
      %v1479 = vmul.f32 %v1383, %v1447
      %v1480 = vpack.c.bf16 %v1450, %v1448
      %v1481 = vpack.c.bf16 %v1451, %v1449
      %v1482 = vpack.c.bf16 %v1454, %v1452
      %v1483 = vpack.c.bf16 %v1455, %v1453
      %v1484 = vpack.c.bf16 %v1458, %v1456
      %v1485 = vpack.c.bf16 %v1459, %v1457
      %v1486 = vpack.c.bf16 %v1462, %v1460
      %v1487 = vpack.c.bf16 %v1463, %v1461
      %v1488 = vpack.c.bf16 %v1466, %v1464
      %v1489 = vpack.c.bf16 %v1467, %v1465
      %v1490 = vpack.c.bf16 %v1470, %v1468
      %v1491 = vpack.c.bf16 %v1471, %v1469
      %v1492 = vpack.c.bf16 %v1474, %v1472
      %v1493 = vpack.c.bf16 %v1475, %v1473
      %v1494 = vpack.c.bf16 %v1478, %v1476
      %v1495 = vpack.c.bf16 %v1479, %v1477
      %1496 = vmatprep.subr.bf16.mxu0 0
      %1497 = vmatpush1.bf16.msra.mxu0 %v597
      %1498 = vmatprep.subr.bf16.mxu0 0
      %1499 = vmatpush1.bf16.msra.mxu0 %v598
      %1500 = vmatprep.subr.bf16.mxu0 0
      %1501 = vmatpush1.bf16.msra.mxu0 %v599
      %1502 = vmatprep.subr.bf16.mxu0 0
      %1503 = vmatpush1.bf16.msra.mxu0 %v600
      %1504 = vmatprep.subr.bf16.mxu0 0
      %1505 = vmatpush1.bf16.msra.mxu0 %v601
      %1506 = vmatprep.subr.bf16.mxu0 0
      %1507 = vmatpush1.bf16.msra.mxu0 %v602
      %1508 = vmatprep.subr.bf16.mxu0 0
      %1509 = vmatpush1.bf16.msra.mxu0 %v603
      %1510 = vmatprep.subr.bf16.mxu0 0
      %1511 = vmatpush1.bf16.msra.mxu0 %v604
      %1512 = vmatprep.subr.bf16.mxu0 0
      %1513 = vmatpush1.bf16.msra.mxu0 %v605
      %1514 = vmatprep.subr.bf16.mxu0 0
      %1515 = vmatpush1.bf16.msra.mxu0 %v606
      %1516 = vmatprep.subr.bf16.mxu0 0
      %1517 = vmatpush1.bf16.msra.mxu0 %v607
      %1518 = vmatprep.subr.bf16.mxu0 0
      %1519 = vmatpush1.bf16.msra.mxu0 %v608
      %1520 = vmatprep.subr.bf16.mxu0 0
      %1521 = vmatpush1.bf16.msra.mxu0 %v609
      %1522 = vmatprep.subr.bf16.mxu0 0
      %1523 = vmatpush1.bf16.msra.mxu0 %v610
      %1524 = vmatprep.subr.bf16.mxu0 0
      %1525 = vmatpush1.bf16.msra.mxu0 %v611
      %1526 = vmatprep.subr.bf16.mxu0 0
      %1527 = vmatpush1.bf16.msra.mxu0 %v612
      %1528 = vmatprep.mubr.bf16.mxu0 %v1481
      %1529 = vmatmul.mubr.bf16.gmra.mrb[0].mxu0 %v1480
      %v1530 = vpop.f32.mrb[0].mxu0
      %v1531 = vadd.f32 0.0, %v1530
      %v1532 = vpop.f32.mrb[0].mxu0
      %v1533 = vpop.f32.mrb[0].mxu0
      %v1534 = vadd.f32 0.0, %v1533
      %v1535 = vpop.f32.mrb[0].mxu0
      %1536 = vmatprep.mubr.bf16.mxu0 %v1483
      %1537 = vmatmul.mubr.bf16.gmra.mrb[0].mxu0 %v1482
      %v1538 = vpop.f32.mrb[0].mxu0
      %v1539 = vadd.f32 0.0, %v1538
      %v1540 = vpop.f32.mrb[0].mxu0
      %v1541 = vpop.f32.mrb[0].mxu0
      %v1542 = vadd.f32 0.0, %v1541
      %v1543 = vpop.f32.mrb[0].mxu0
      %1544 = vmatprep.mubr.bf16.mxu0 %v1485
      %1545 = vmatmul.mubr.bf16.gmra.mrb[0].mxu0 %v1484
      %v1546 = vpop.f32.mrb[0].mxu0
      %v1547 = vadd.f32 0.0, %v1546
      %v1548 = vpop.f32.mrb[0].mxu0
      %v1549 = vpop.f32.mrb[0].mxu0
      %v1550 = vadd.f32 0.0, %v1549
      %v1551 = vpop.f32.mrb[0].mxu0
      %1552 = vmatprep.mubr.bf16.mxu0 %v1487
      %1553 = vmatmul.mubr.bf16.gmra.mrb[0].mxu0 %v1486
      %v1554 = vpop.f32.mrb[0].mxu0
      %v1555 = vadd.f32 0.0, %v1554
      %v1556 = vpop.f32.mrb[0].mxu0
      %v1557 = vpop.f32.mrb[0].mxu0
      %v1558 = vadd.f32 0.0, %v1557
      %v1559 = vpop.f32.mrb[0].mxu0
      %1560 = vmatprep.mubr.bf16.mxu0 %v1489
      %1561 = vmatmul.mubr.bf16.gmra.mrb[0].mxu0 %v1488
      %v1562 = vpop.f32.mrb[0].mxu0
      %v1563 = vadd.f32 0.0, %v1562
      %v1564 = vpop.f32.mrb[0].mxu0
      %v1565 = vpop.f32.mrb[0].mxu0
      %v1566 = vadd.f32 0.0, %v1565
      %v1567 = vpop.f32.mrb[0].mxu0
      %1568 = vmatprep.mubr.bf16.mxu0 %v1491
      %1569 = vmatmul.mubr.bf16.gmra.mrb[0].mxu0 %v1490
      %v1570 = vpop.f32.mrb[0].mxu0
      %v1571 = vadd.f32 0.0, %v1570
      %v1572 = vpop.f32.mrb[0].mxu0
      %v1573 = vpop.f32.mrb[0].mxu0
      %v1574 = vadd.f32 0.0, %v1573
      %v1575 = vpop.f32.mrb[0].mxu0
      %1576 = vmatprep.mubr.bf16.mxu0 %v1493
      %1577 = vmatmul.mubr.bf16.gmra.mrb[0].mxu0 %v1492
      %v1578 = vpop.f32.mrb[0].mxu0
      %v1579 = vadd.f32 0.0, %v1578
      %v1580 = vpop.f32.mrb[0].mxu0
      %v1581 = vpop.f32.mrb[0].mxu0
      %v1582 = vadd.f32 0.0, %v1581
      %v1583 = vpop.f32.mrb[0].mxu0
      %1584 = vmatprep.mubr.bf16.mxu0 %v1495
      %1585 = vmatmul.mubr.bf16.gmra.mrb[0].mxu0 %v1494
      %v1586 = vpop.f32.mrb[0].mxu0
      %v1587 = vadd.f32 0.0, %v1586
      %v1588 = vpop.f32.mrb[0].mxu0
      %v1589 = vpop.f32.mrb[0].mxu0
      %v1590 = vadd.f32 0.0, %v1589
      %v1591 = vpop.f32.mrb[0].mxu0
      %1592 = vdwg.mxu0
      %1593 = vset.pattern.permute.xlu0 1
      %1594 = vperm.xlu0 %1593, %v794
      %v1595 = vpop.permute.xlu0 %1594
      %1597 = vset.pattern.permute.xlu0 1
      %1598 = vperm.xlu0 %1597, %v797
      %v1599 = vpop.permute.xlu0 %1598
      %1601 = vset.pattern.permute.xlu0 1
      %1602 = vperm.xlu0 %1601, %v802
      %v1603 = vpop.permute.xlu0 %1602
      %1605 = vset.pattern.permute.xlu0 1
      %1606 = vperm.xlu0 %1605, %v805
      %v1607 = vpop.permute.xlu0 %1606
      %1609 = vset.pattern.permute.xlu0 1
      %1610 = vperm.xlu0 %1609, %v810
      %v1611 = vpop.permute.xlu0 %1610
      %1613 = vset.pattern.permute.xlu0 1
      %1614 = vperm.xlu0 %1613, %v813
      %v1615 = vpop.permute.xlu0 %1614
      %1617 = vset.pattern.permute.xlu0 1
      %1618 = vperm.xlu0 %1617, %v818
      %v1619 = vpop.permute.xlu0 %1618
      %1621 = vset.pattern.permute.xlu0 1
      %1622 = vperm.xlu0 %1621, %v821
      %v1623 = vpop.permute.xlu0 %1622
      %1625 = vset.pattern.permute.xlu0 1
      %1626 = vperm.xlu0 %1625, %v826
      %v1627 = vpop.permute.xlu0 %1626
      %1629 = vset.pattern.permute.xlu0 1
      %1630 = vperm.xlu0 %1629, %v829
      %v1631 = vpop.permute.xlu0 %1630
      %1633 = vset.pattern.permute.xlu0 1
      %1634 = vperm.xlu0 %1633, %v834
      %v1635 = vpop.permute.xlu0 %1634
      %1637 = vset.pattern.permute.xlu0 1
      %1638 = vperm.xlu0 %1637, %v837
      %v1639 = vpop.permute.xlu0 %1638
      %1641 = vset.pattern.permute.xlu0 1
      %1642 = vperm.xlu0 %1641, %v842
      %v1643 = vpop.permute.xlu0 %1642
      %1645 = vset.pattern.permute.xlu0 1
      %1646 = vperm.xlu0 %1645, %v845
      %v1647 = vpop.permute.xlu0 %1646
      %1649 = vset.pattern.permute.xlu0 1
      %1650 = vperm.xlu0 %1649, %v850
      %v1651 = vpop.permute.xlu0 %1650
      %1653 = vset.pattern.permute.xlu0 1
      %1654 = vperm.xlu0 %1653, %v853
      %v1655 = vpop.permute.xlu0 %1654
      %v1657 = vlaneseq
      %v1658 = vshrl.u32 %v1657, 7
      %v1659 = vsub.s32 1, %v1658
      %v1660 = vrot.slane %v652, %v1659
      %v1661 = vlaneseq
      %v1662 = vshrl.u32 %v1661, 7
      %v1663 = vsub.s32 1, %v1662
      %v1664 = vrot.slane %v654, %v1663
      %v1665 = vadd.f32 %v1595, %v1660
      %v1666 = vadd.f32 %v1595, %v1664
      %v1667 = vadd.f32 %v1599, %v1660
      %v1668 = vadd.f32 %v1599, %v1664
      %v1669 = vadd.f32 %v1603, %v1660
      %v1670 = vadd.f32 %v1603, %v1664
      %v1671 = vadd.f32 %v1607, %v1660
      %v1672 = vadd.f32 %v1607, %v1664
      %v1673 = vadd.f32 %v1611, %v1660
      %v1674 = vadd.f32 %v1611, %v1664
      %v1675 = vadd.f32 %v1615, %v1660
      %v1676 = vadd.f32 %v1615, %v1664
      %v1677 = vadd.f32 %v1619, %v1660
      %v1678 = vadd.f32 %v1619, %v1664
      %v1679 = vadd.f32 %v1623, %v1660
      %v1680 = vadd.f32 %v1623, %v1664
      %v1681 = vadd.f32 %v1627, %v1660
      %v1682 = vadd.f32 %v1627, %v1664
      %v1683 = vadd.f32 %v1631, %v1660
      %v1684 = vadd.f32 %v1631, %v1664
      %v1685 = vadd.f32 %v1635, %v1660
      %v1686 = vadd.f32 %v1635, %v1664
      %v1687 = vadd.f32 %v1639, %v1660
      %v1688 = vadd.f32 %v1639, %v1664
      %v1689 = vadd.f32 %v1643, %v1660
      %v1690 = vadd.f32 %v1643, %v1664
      %v1691 = vadd.f32 %v1647, %v1660
      %v1692 = vadd.f32 %v1647, %v1664
      %v1693 = vadd.f32 %v1651, %v1660
      %v1694 = vadd.f32 %v1651, %v1664
      %v1695 = vadd.f32 %v1655, %v1660
      %v1696 = vadd.f32 %v1655, %v1664
      %vm1697 = vcmp.gt.f32.partialorder %v1665, 0.0
      %vm1698 = vcmp.gt.f32.partialorder %v1666, 0.0
      %vm1699 = vcmp.gt.f32.partialorder %v1667, 0.0
      %vm1700 = vcmp.gt.f32.partialorder %v1668, 0.0
      %vm1701 = vcmp.gt.f32.partialorder %v1669, 0.0
      %vm1702 = vcmp.gt.f32.partialorder %v1670, 0.0
      %vm1703 = vcmp.gt.f32.partialorder %v1671, 0.0
      %vm1704 = vcmp.gt.f32.partialorder %v1672, 0.0
      %vm1705 = vcmp.gt.f32.partialorder %v1673, 0.0
      %vm1706 = vcmp.gt.f32.partialorder %v1674, 0.0
      %vm1707 = vcmp.gt.f32.partialorder %v1675, 0.0
      %vm1708 = vcmp.gt.f32.partialorder %v1676, 0.0
      %vm1709 = vcmp.gt.f32.partialorder %v1677, 0.0
      %vm1710 = vcmp.gt.f32.partialorder %v1678, 0.0
      %vm1711 = vcmp.gt.f32.partialorder %v1679, 0.0
      %vm1712 = vcmp.gt.f32.partialorder %v1680, 0.0
      %vm1713 = vcmp.gt.f32.partialorder %v1681, 0.0
      %vm1714 = vcmp.gt.f32.partialorder %v1682, 0.0
      %vm1715 = vcmp.gt.f32.partialorder %v1683, 0.0
      %vm1716 = vcmp.gt.f32.partialorder %v1684, 0.0
      %vm1717 = vcmp.gt.f32.partialorder %v1685, 0.0
      %vm1718 = vcmp.gt.f32.partialorder %v1686, 0.0
      %vm1719 = vcmp.gt.f32.partialorder %v1687, 0.0
      %vm1720 = vcmp.gt.f32.partialorder %v1688, 0.0
      %vm1721 = vcmp.gt.f32.partialorder %v1689, 0.0
      %vm1722 = vcmp.gt.f32.partialorder %v1690, 0.0
      %vm1723 = vcmp.gt.f32.partialorder %v1691, 0.0
      %vm1724 = vcmp.gt.f32.partialorder %v1692, 0.0
      %vm1725 = vcmp.gt.f32.partialorder %v1693, 0.0
      %vm1726 = vcmp.gt.f32.partialorder %v1694, 0.0
      %vm1727 = vcmp.gt.f32.partialorder %v1695, 0.0
      %vm1728 = vcmp.gt.f32.partialorder %v1696, 0.0
      %v1729 = vmul.f32 %v1665, 0.2
      %v1730 = vmul.f32 %v1666, 0.2
      %v1731 = vmul.f32 %v1667, 0.2
      %v1732 = vmul.f32 %v1668, 0.2
      %v1733 = vmul.f32 %v1669, 0.2
      %v1734 = vmul.f32 %v1670, 0.2
      %v1735 = vmul.f32 %v1671, 0.2
      %v1736 = vmul.f32 %v1672, 0.2
      %v1737 = vmul.f32 %v1673, 0.2
      %v1738 = vmul.f32 %v1674, 0.2
      %v1739 = vmul.f32 %v1675, 0.2
      %v1740 = vmul.f32 %v1676, 0.2
      %v1741 = vmul.f32 %v1677, 0.2
      %v1742 = vmul.f32 %v1678, 0.2
      %v1743 = vmul.f32 %v1679, 0.2
      %v1744 = vmul.f32 %v1680, 0.2
      %v1745 = vmul.f32 %v1681, 0.2
      %v1746 = vmul.f32 %v1682, 0.2
      %v1747 = vmul.f32 %v1683, 0.2
      %v1748 = vmul.f32 %v1684, 0.2
      %v1749 = vmul.f32 %v1685, 0.2
      %v1750 = vmul.f32 %v1686, 0.2
      %v1751 = vmul.f32 %v1687, 0.2
      %v1752 = vmul.f32 %v1688, 0.2
      %v1753 = vmul.f32 %v1689, 0.2
      %v1754 = vmul.f32 %v1690, 0.2
      %v1755 = vmul.f32 %v1691, 0.2
      %v1756 = vmul.f32 %v1692, 0.2
      %v1757 = vmul.f32 %v1693, 0.2
      %v1758 = vmul.f32 %v1694, 0.2
      %v1759 = vmul.f32 %v1695, 0.2
      %v1760 = vmul.f32 %v1696, 0.2
      %v1761 = vsel %vm1697, %v1665, %v1729
      %v1762 = vsel %vm1698, %v1666, %v1730
      %v1763 = vsel %vm1699, %v1667, %v1731
      %v1764 = vsel %vm1700, %v1668, %v1732
      %v1765 = vsel %vm1701, %v1669, %v1733
      %v1766 = vsel %vm1702, %v1670, %v1734
      %v1767 = vsel %vm1703, %v1671, %v1735
      %v1768 = vsel %vm1704, %v1672, %v1736
      %v1769 = vsel %vm1705, %v1673, %v1737
      %v1770 = vsel %vm1706, %v1674, %v1738
      %v1771 = vsel %vm1707, %v1675, %v1739
      %v1772 = vsel %vm1708, %v1676, %v1740
      %v1773 = vsel %vm1709, %v1677, %v1741
      %v1774 = vsel %vm1710, %v1678, %v1742
      %v1775 = vsel %vm1711, %v1679, %v1743
      %v1776 = vsel %vm1712, %v1680, %v1744
      %v1777 = vsel %vm1713, %v1681, %v1745
      %v1778 = vsel %vm1714, %v1682, %v1746
      %v1779 = vsel %vm1715, %v1683, %v1747
      %v1780 = vsel %vm1716, %v1684, %v1748
      %v1781 = vsel %vm1717, %v1685, %v1749
      %v1782 = vsel %vm1718, %v1686, %v1750
      %v1783 = vsel %vm1719, %v1687, %v1751
      %v1784 = vsel %vm1720, %v1688, %v1752
      %v1785 = vsel %vm1721, %v1689, %v1753
      %v1786 = vsel %vm1722, %v1690, %v1754
      %v1787 = vsel %vm1723, %v1691, %v1755
      %v1788 = vsel %vm1724, %v1692, %v1756
      %v1789 = vsel %vm1725, %v1693, %v1757
      %v1790 = vsel %vm1726, %v1694, %v1758
      %v1791 = vsel %vm1727, %v1695, %v1759
      %v1792 = vsel %vm1728, %v1696, %v1760
      %v1793 = vadd.f32 %v1761, %v960
      %v1794 = vadd.f32 %v1762, %v961
      %v1795 = vadd.f32 %v1763, %v962
      %v1796 = vadd.f32 %v1764, %v963
      %v1797 = vadd.f32 %v1765, %v964
      %v1798 = vadd.f32 %v1766, %v965
      %v1799 = vadd.f32 %v1767, %v966
      %v1800 = vadd.f32 %v1768, %v967
      %v1801 = vadd.f32 %v1769, %v968
      %v1802 = vadd.f32 %v1770, %v969
      %v1803 = vadd.f32 %v1771, %v970
      %v1804 = vadd.f32 %v1772, %v971
      %v1805 = vadd.f32 %v1773, %v972
      %v1806 = vadd.f32 %v1774, %v973
      %v1807 = vadd.f32 %v1775, %v974
      %v1808 = vadd.f32 %v1776, %v975
      %v1809 = vadd.f32 %v1777, %v976
      %v1810 = vadd.f32 %v1778, %v977
      %v1811 = vadd.f32 %v1779, %v978
      %v1812 = vadd.f32 %v1780, %v979
      %v1813 = vadd.f32 %v1781, %v980
      %v1814 = vadd.f32 %v1782, %v981
      %v1815 = vadd.f32 %v1783, %v982
      %v1816 = vadd.f32 %v1784, %v983
      %v1817 = vadd.f32 %v1785, %v984
      %v1818 = vadd.f32 %v1786, %v985
      %v1819 = vadd.f32 %v1787, %v986
      %v1820 = vadd.f32 %v1788, %v987
      %v1821 = vadd.f32 %v1789, %v988
      %v1822 = vadd.f32 %v1790, %v989
      %v1823 = vadd.f32 %v1791, %v990
      %v1824 = vadd.f32 %v1792, %v991
      %v1825 = vmax.f32 %v1793, %v1794
      %1826 = vmax.xlane.f32.xlu0 %v1825
      %v1827 = vpop.xlane.xlu0 %1826
      %v1828 = vmax.f32 %v1795, %v1796
      %1829 = vmax.xlane.f32.xlu0 %v1828
      %v1830 = vpop.xlane.xlu0 %1829
      %v1831 = vmax.f32 %v1797, %v1798
      %1832 = vmax.xlane.f32.xlu0 %v1831
      %v1833 = vpop.xlane.xlu0 %1832
      %v1834 = vmax.f32 %v1799, %v1800
      %1835 = vmax.xlane.f32.xlu0 %v1834
      %v1836 = vpop.xlane.xlu0 %1835
      %v1837 = vmax.f32 %v1801, %v1802
      %1838 = vmax.xlane.f32.xlu0 %v1837
      %v1839 = vpop.xlane.xlu0 %1838
      %v1840 = vmax.f32 %v1803, %v1804
      %1841 = vmax.xlane.f32.xlu0 %v1840
      %v1842 = vpop.xlane.xlu0 %1841
      %v1843 = vmax.f32 %v1805, %v1806
      %1844 = vmax.xlane.f32.xlu0 %v1843
      %v1845 = vpop.xlane.xlu0 %1844
      %v1846 = vmax.f32 %v1807, %v1808
      %1847 = vmax.xlane.f32.xlu0 %v1846
      %v1848 = vpop.xlane.xlu0 %1847
      %v1849 = vmax.f32 %v1809, %v1810
      %1850 = vmax.xlane.f32.xlu0 %v1849
      %v1851 = vpop.xlane.xlu0 %1850
      %v1852 = vmax.f32 %v1811, %v1812
      %1853 = vmax.xlane.f32.xlu0 %v1852
      %v1854 = vpop.xlane.xlu0 %1853
      %v1855 = vmax.f32 %v1813, %v1814
      %1856 = vmax.xlane.f32.xlu0 %v1855
      %v1857 = vpop.xlane.xlu0 %1856
      %v1858 = vmax.f32 %v1815, %v1816
      %1859 = vmax.xlane.f32.xlu0 %v1858
      %v1860 = vpop.xlane.xlu0 %1859
      %v1861 = vmax.f32 %v1817, %v1818
      %1862 = vmax.xlane.f32.xlu0 %v1861
      %v1863 = vpop.xlane.xlu0 %1862
      %v1864 = vmax.f32 %v1819, %v1820
      %1865 = vmax.xlane.f32.xlu0 %v1864
      %v1866 = vpop.xlane.xlu0 %1865
      %v1867 = vmax.f32 %v1821, %v1822
      %1868 = vmax.xlane.f32.xlu0 %v1867
      %v1869 = vpop.xlane.xlu0 %1868
      %v1870 = vmax.f32 %v1823, %v1824
      %1871 = vmax.xlane.f32.xlu0 %v1870
      %v1872 = vpop.xlane.xlu0 %1871
      %v1873 = vsub.f32 %v1793, %v1827
      %v1874 = vsub.f32 %v1794, %v1827
      %v1875 = vsub.f32 %v1795, %v1830
      %v1876 = vsub.f32 %v1796, %v1830
      %v1877 = vsub.f32 %v1797, %v1833
      %v1878 = vsub.f32 %v1798, %v1833
      %v1879 = vsub.f32 %v1799, %v1836
      %v1880 = vsub.f32 %v1800, %v1836
      %v1881 = vsub.f32 %v1801, %v1839
      %v1882 = vsub.f32 %v1802, %v1839
      %v1883 = vsub.f32 %v1803, %v1842
      %v1884 = vsub.f32 %v1804, %v1842
      %v1885 = vsub.f32 %v1805, %v1845
      %v1886 = vsub.f32 %v1806, %v1845
      %v1887 = vsub.f32 %v1807, %v1848
      %v1888 = vsub.f32 %v1808, %v1848
      %v1889 = vsub.f32 %v1809, %v1851
      %v1890 = vsub.f32 %v1810, %v1851
      %v1891 = vsub.f32 %v1811, %v1854
      %v1892 = vsub.f32 %v1812, %v1854
      %v1893 = vsub.f32 %v1813, %v1857
      %v1894 = vsub.f32 %v1814, %v1857
      %v1895 = vsub.f32 %v1815, %v1860
      %v1896 = vsub.f32 %v1816, %v1860
      %v1897 = vsub.f32 %v1817, %v1863
      %v1898 = vsub.f32 %v1818, %v1863
      %v1899 = vsub.f32 %v1819, %v1866
      %v1900 = vsub.f32 %v1820, %v1866
      %v1901 = vsub.f32 %v1821, %v1869
      %v1902 = vsub.f32 %v1822, %v1869
      %v1903 = vsub.f32 %v1823, %v1872
      %v1904 = vsub.f32 %v1824, %v1872
      %v1905 = vmul.f32 %v1873, 1.442695
      %v1906 = vpow.pop %v1905
      %v1907 = vmul.f32 %v1874, 1.442695
      %v1908 = vpow.pop %v1907
      %v1909 = vmul.f32 %v1875, 1.442695
      %v1910 = vpow.pop %v1909
      %v1911 = vmul.f32 %v1876, 1.442695
      %v1912 = vpow.pop %v1911
      %v1913 = vmul.f32 %v1877, 1.442695
      %v1914 = vpow.pop %v1913
      %v1915 = vmul.f32 %v1878, 1.442695
      %v1916 = vpow.pop %v1915
      %v1917 = vmul.f32 %v1879, 1.442695
      %v1918 = vpow.pop %v1917
      %v1919 = vmul.f32 %v1880, 1.442695
      %v1920 = vpow.pop %v1919
      %v1921 = vmul.f32 %v1881, 1.442695
      %v1922 = vpow.pop %v1921
      %v1923 = vmul.f32 %v1882, 1.442695
      %v1924 = vpow.pop %v1923
      %v1925 = vmul.f32 %v1883, 1.442695
      %v1926 = vpow.pop %v1925
      %v1927 = vmul.f32 %v1884, 1.442695
      %v1928 = vpow.pop %v1927
      %v1929 = vmul.f32 %v1885, 1.442695
      %v1930 = vpow.pop %v1929
      %v1931 = vmul.f32 %v1886, 1.442695
      %v1932 = vpow.pop %v1931
      %v1933 = vmul.f32 %v1887, 1.442695
      %v1934 = vpow.pop %v1933
      %v1935 = vmul.f32 %v1888, 1.442695
      %v1936 = vpow.pop %v1935
      %v1937 = vmul.f32 %v1889, 1.442695
      %v1938 = vpow.pop %v1937
      %v1939 = vmul.f32 %v1890, 1.442695
      %v1940 = vpow.pop %v1939
      %v1941 = vmul.f32 %v1891, 1.442695
      %v1942 = vpow.pop %v1941
      %v1943 = vmul.f32 %v1892, 1.442695
      %v1944 = vpow.pop %v1943
      %v1945 = vmul.f32 %v1893, 1.442695
      %v1946 = vpow.pop %v1945
      %v1947 = vmul.f32 %v1894, 1.442695
      %v1948 = vpow.pop %v1947
      %v1949 = vmul.f32 %v1895, 1.442695
      %v1950 = vpow.pop %v1949
      %v1951 = vmul.f32 %v1896, 1.442695
      %v1952 = vpow.pop %v1951
      %v1953 = vmul.f32 %v1897, 1.442695
      %v1954 = vpow.pop %v1953
      %v1955 = vmul.f32 %v1898, 1.442695
      %v1956 = vpow.pop %v1955
      %v1957 = vmul.f32 %v1899, 1.442695
      %v1958 = vpow.pop %v1957
      %v1959 = vmul.f32 %v1900, 1.442695
      %v1960 = vpow.pop %v1959
      %v1961 = vmul.f32 %v1901, 1.442695
      %v1962 = vpow.pop %v1961
      %v1963 = vmul.f32 %v1902, 1.442695
      %v1964 = vpow.pop %v1963
      %v1965 = vmul.f32 %v1903, 1.442695
      %v1966 = vpow.pop %v1965
      %v1967 = vmul.f32 %v1904, 1.442695
      %v1968 = vpow.pop %v1967
      %v1969 = vadd.f32 %v1906, %v1908
      %1970 = vadd.xlane.f32.xlu0 %v1969
      %v1971 = vpop.xlane.xlu0 %1970
      %v1972 = vadd.f32 %v1910, %v1912
      %1973 = vadd.xlane.f32.xlu0 %v1972
      %v1974 = vpop.xlane.xlu0 %1973
      %v1975 = vadd.f32 %v1914, %v1916
      %1976 = vadd.xlane.f32.xlu0 %v1975
      %v1977 = vpop.xlane.xlu0 %1976
      %v1978 = vadd.f32 %v1918, %v1920
      %1979 = vadd.xlane.f32.xlu0 %v1978
      %v1980 = vpop.xlane.xlu0 %1979
      %v1981 = vadd.f32 %v1922, %v1924
      %1982 = vadd.xlane.f32.xlu0 %v1981
      %v1983 = vpop.xlane.xlu0 %1982
      %v1984 = vadd.f32 %v1926, %v1928
      %1985 = vadd.xlane.f32.xlu0 %v1984
      %v1986 = vpop.xlane.xlu0 %1985
      %v1987 = vadd.f32 %v1930, %v1932
      %1988 = vadd.xlane.f32.xlu0 %v1987
      %v1989 = vpop.xlane.xlu0 %1988
      %v1990 = vadd.f32 %v1934, %v1936
      %1991 = vadd.xlane.f32.xlu0 %v1990
      %v1992 = vpop.xlane.xlu0 %1991
      %v1993 = vadd.f32 %v1938, %v1940
      %1994 = vadd.xlane.f32.xlu0 %v1993
      %v1995 = vpop.xlane.xlu0 %1994
      %v1996 = vadd.f32 %v1942, %v1944
      %1997 = vadd.xlane.f32.xlu0 %v1996
      %v1998 = vpop.xlane.xlu0 %1997
      %v1999 = vadd.f32 %v1946, %v1948
      %2000 = vadd.xlane.f32.xlu0 %v1999
      %v2001 = vpop.xlane.xlu0 %2000
      %v2002 = vadd.f32 %v1950, %v1952
      %2003 = vadd.xlane.f32.xlu0 %v2002
      %v2004 = vpop.xlane.xlu0 %2003
      %v2005 = vadd.f32 %v1954, %v1956
      %2006 = vadd.xlane.f32.xlu0 %v2005
      %v2007 = vpop.xlane.xlu0 %2006
      %v2008 = vadd.f32 %v1958, %v1960
      %2009 = vadd.xlane.f32.xlu0 %v2008
      %v2010 = vpop.xlane.xlu0 %2009
      %v2011 = vadd.f32 %v1962, %v1964
      %2012 = vadd.xlane.f32.xlu0 %v2011
      %v2013 = vpop.xlane.xlu0 %2012
      %v2014 = vadd.f32 %v1966, %v1968
      %2015 = vadd.xlane.f32.xlu0 %v2014
      %v2016 = vpop.xlane.xlu0 %2015
      %v2017 = vrcp.pop %v1971
      %v2018 = vrcp.pop %v1974
      %v2019 = vrcp.pop %v1977
      %v2020 = vrcp.pop %v1980
      %v2021 = vrcp.pop %v1983
      %v2022 = vrcp.pop %v1986
      %v2023 = vrcp.pop %v1989
      %v2024 = vrcp.pop %v1992
      %v2025 = vrcp.pop %v1995
      %v2026 = vrcp.pop %v1998
      %v2027 = vrcp.pop %v2001
      %v2028 = vrcp.pop %v2004
      %v2029 = vrcp.pop %v2007
      %v2030 = vrcp.pop %v2010
      %v2031 = vrcp.pop %v2013
      %v2032 = vrcp.pop %v2016
      %v2033 = vmul.f32 %v1906, %v2017
      %v2034 = vmul.f32 %v1908, %v2017
      %v2035 = vmul.f32 %v1910, %v2018
      %v2036 = vmul.f32 %v1912, %v2018
      %v2037 = vmul.f32 %v1914, %v2019
      %v2038 = vmul.f32 %v1916, %v2019
      %v2039 = vmul.f32 %v1918, %v2020
      %v2040 = vmul.f32 %v1920, %v2020
      %v2041 = vmul.f32 %v1922, %v2021
      %v2042 = vmul.f32 %v1924, %v2021
      %v2043 = vmul.f32 %v1926, %v2022
      %v2044 = vmul.f32 %v1928, %v2022
      %v2045 = vmul.f32 %v1930, %v2023
      %v2046 = vmul.f32 %v1932, %v2023
      %v2047 = vmul.f32 %v1934, %v2024
      %v2048 = vmul.f32 %v1936, %v2024
      %v2049 = vmul.f32 %v1938, %v2025
      %v2050 = vmul.f32 %v1940, %v2025
      %v2051 = vmul.f32 %v1942, %v2026
      %v2052 = vmul.f32 %v1944, %v2026
      %v2053 = vmul.f32 %v1946, %v2027
      %v2054 = vmul.f32 %v1948, %v2027
      %v2055 = vmul.f32 %v1950, %v2028
      %v2056 = vmul.f32 %v1952, %v2028
      %v2057 = vmul.f32 %v1954, %v2029
      %v2058 = vmul.f32 %v1956, %v2029
      %v2059 = vmul.f32 %v1958, %v2030
      %v2060 = vmul.f32 %v1960, %v2030
      %v2061 = vmul.f32 %v1962, %v2031
      %v2062 = vmul.f32 %v1964, %v2031
      %v2063 = vmul.f32 %v1966, %v2032
      %v2064 = vmul.f32 %v1968, %v2032
      %v2065 = vpack.c.bf16 %v2035, %v2033
      %v2066 = vpack.c.bf16 %v2036, %v2034
      %v2067 = vpack.c.bf16 %v2039, %v2037
      %v2068 = vpack.c.bf16 %v2040, %v2038
      %v2069 = vpack.c.bf16 %v2043, %v2041
      %v2070 = vpack.c.bf16 %v2044, %v2042
      %v2071 = vpack.c.bf16 %v2047, %v2045
      %v2072 = vpack.c.bf16 %v2048, %v2046
      %v2073 = vpack.c.bf16 %v2051, %v2049
      %v2074 = vpack.c.bf16 %v2052, %v2050
      %v2075 = vpack.c.bf16 %v2055, %v2053
      %v2076 = vpack.c.bf16 %v2056, %v2054
      %v2077 = vpack.c.bf16 %v2059, %v2057
      %v2078 = vpack.c.bf16 %v2060, %v2058
      %v2079 = vpack.c.bf16 %v2063, %v2061
      %v2080 = vpack.c.bf16 %v2064, %v2062
      %2097 = vrot.lane.b32.xlu0 %v597, 112
      %v2098 = vpop.permute.xlu0 %2097
      %2099 = vrot.lane.b32.xlu0 %v598, 112
      %v2100 = vpop.permute.xlu0 %2099
      %2101 = vrot.lane.b32.xlu0 %v599, 112
      %v2102 = vpop.permute.xlu0 %2101
      %2103 = vrot.lane.b32.xlu0 %v600, 112
      %v2104 = vpop.permute.xlu0 %2103
      %2105 = vrot.lane.b32.xlu0 %v601, 112
      %v2106 = vpop.permute.xlu0 %2105
      %2107 = vrot.lane.b32.xlu0 %v602, 112
      %v2108 = vpop.permute.xlu0 %2107
      %2109 = vrot.lane.b32.xlu0 %v603, 112
      %v2110 = vpop.permute.xlu0 %2109
      %2111 = vrot.lane.b32.xlu0 %v604, 112
      %v2112 = vpop.permute.xlu0 %2111
      %2113 = vrot.lane.b32.xlu0 %v605, 112
      %v2114 = vpop.permute.xlu0 %2113
      %2115 = vrot.lane.b32.xlu0 %v606, 112
      %v2116 = vpop.permute.xlu0 %2115
      %2117 = vrot.lane.b32.xlu0 %v607, 112
      %v2118 = vpop.permute.xlu0 %2117
      %2119 = vrot.lane.b32.xlu0 %v608, 112
      %v2120 = vpop.permute.xlu0 %2119
      %2121 = vrot.lane.b32.xlu0 %v609, 112
      %v2122 = vpop.permute.xlu0 %2121
      %2123 = vrot.lane.b32.xlu0 %v610, 112
      %v2124 = vpop.permute.xlu0 %2123
      %2125 = vrot.lane.b32.xlu0 %v611, 112
      %v2126 = vpop.permute.xlu0 %2125
      %2127 = vrot.lane.b32.xlu0 %v612, 112
      %v2128 = vpop.permute.xlu0 %2127
      %2145 = vmatprep.subr.bf16.mxu0 0
      %2146 = vmatpush1.bf16.msra.mxu0 %v2098
      %2147 = vmatprep.subr.bf16.mxu0 0
      %2148 = vmatpush1.bf16.msra.mxu0 %v2100
      %2149 = vmatprep.subr.bf16.mxu0 0
      %2150 = vmatpush1.bf16.msra.mxu0 %v2102
      %2151 = vmatprep.subr.bf16.mxu0 0
      %2152 = vmatpush1.bf16.msra.mxu0 %v2104
      %2153 = vmatprep.subr.bf16.mxu0 0
      %2154 = vmatpush1.bf16.msra.mxu0 %v2106
      %2155 = vmatprep.subr.bf16.mxu0 0
      %2156 = vmatpush1.bf16.msra.mxu0 %v2108
      %2157 = vmatprep.subr.bf16.mxu0 0
      %2158 = vmatpush1.bf16.msra.mxu0 %v2110
      %2159 = vmatprep.subr.bf16.mxu0 0
      %2160 = vmatpush1.bf16.msra.mxu0 %v2112
      %2161 = vmatprep.subr.bf16.mxu0 0
      %2162 = vmatpush1.bf16.msra.mxu0 %v2114
      %2163 = vmatprep.subr.bf16.mxu0 0
      %2164 = vmatpush1.bf16.msra.mxu0 %v2116
      %2165 = vmatprep.subr.bf16.mxu0 0
      %2166 = vmatpush1.bf16.msra.mxu0 %v2118
      %2167 = vmatprep.subr.bf16.mxu0 0
      %2168 = vmatpush1.bf16.msra.mxu0 %v2120
      %2169 = vmatprep.subr.bf16.mxu0 0
      %2170 = vmatpush1.bf16.msra.mxu0 %v2122
      %2171 = vmatprep.subr.bf16.mxu0 0
      %2172 = vmatpush1.bf16.msra.mxu0 %v2124
      %2173 = vmatprep.subr.bf16.mxu0 0
      %2174 = vmatpush1.bf16.msra.mxu0 %v2126
      %2175 = vmatprep.subr.bf16.mxu0 0
      %2176 = vmatpush1.bf16.msra.mxu0 %v2128
      %2177 = vmatprep.mubr.bf16.mxu0 %v2066
      %2178 = vmatmul.mubr.bf16.gmra.mrb[0].mxu0 %v2065
      %v2179 = vpop.f32.mrb[0].mxu0
      %v2180 = vadd.f32 0.0, %v2179
      %v2181 = vpop.f32.mrb[0].mxu0
      %v2182 = vpop.f32.mrb[0].mxu0
      %v2183 = vadd.f32 0.0, %v2182
      %v2184 = vpop.f32.mrb[0].mxu0
      %2185 = vmatprep.mubr.bf16.mxu0 %v2068
      %2186 = vmatmul.mubr.bf16.gmra.mrb[0].mxu0 %v2067
      %v2187 = vpop.f32.mrb[0].mxu0
      %v2188 = vadd.f32 0.0, %v2187
      %v2189 = vpop.f32.mrb[0].mxu0
      %v2190 = vpop.f32.mrb[0].mxu0
      %v2191 = vadd.f32 0.0, %v2190
      %v2192 = vpop.f32.mrb[0].mxu0
      %2193 = vmatprep.mubr.bf16.mxu0 %v2070
      %2194 = vmatmul.mubr.bf16.gmra.mrb[0].mxu0 %v2069
      %v2195 = vpop.f32.mrb[0].mxu0
      %v2196 = vadd.f32 0.0, %v2195
      %v2197 = vpop.f32.mrb[0].mxu0
      %v2198 = vpop.f32.mrb[0].mxu0
      %v2199 = vadd.f32 0.0, %v2198
      %v2200 = vpop.f32.mrb[0].mxu0
      %2201 = vmatprep.mubr.bf16.mxu0 %v2072
      %2202 = vmatmul.mubr.bf16.gmra.mrb[0].mxu0 %v2071
      %v2203 = vpop.f32.mrb[0].mxu0
      %v2204 = vadd.f32 0.0, %v2203
      %v2205 = vpop.f32.mrb[0].mxu0
      %v2206 = vpop.f32.mrb[0].mxu0
      %v2207 = vadd.f32 0.0, %v2206
      %v2208 = vpop.f32.mrb[0].mxu0
      %2209 = vmatprep.mubr.bf16.mxu0 %v2074
      %2210 = vmatmul.mubr.bf16.gmra.mrb[0].mxu0 %v2073
      %v2211 = vpop.f32.mrb[0].mxu0
      %v2212 = vadd.f32 0.0, %v2211
      %v2213 = vpop.f32.mrb[0].mxu0
      %v2214 = vpop.f32.mrb[0].mxu0
      %v2215 = vadd.f32 0.0, %v2214
      %v2216 = vpop.f32.mrb[0].mxu0
      %2217 = vmatprep.mubr.bf16.mxu0 %v2076
      %2218 = vmatmul.mubr.bf16.gmra.mrb[0].mxu0 %v2075
      %v2219 = vpop.f32.mrb[0].mxu0
      %v2220 = vadd.f32 0.0, %v2219
      %v2221 = vpop.f32.mrb[0].mxu0
      %v2222 = vpop.f32.mrb[0].mxu0
      %v2223 = vadd.f32 0.0, %v2222
      %v2224 = vpop.f32.mrb[0].mxu0
      %2225 = vmatprep.mubr.bf16.mxu0 %v2078
      %2226 = vmatmul.mubr.bf16.gmra.mrb[0].mxu0 %v2077
      %v2227 = vpop.f32.mrb[0].mxu0
      %v2228 = vadd.f32 0.0, %v2227
      %v2229 = vpop.f32.mrb[0].mxu0
      %v2230 = vpop.f32.mrb[0].mxu0
      %v2231 = vadd.f32 0.0, %v2230
      %v2232 = vpop.f32.mrb[0].mxu0
      %2233 = vmatprep.mubr.bf16.mxu0 %v2080
      %2234 = vmatmul.mubr.bf16.gmra.mrb[0].mxu0 %v2079
      %v2235 = vpop.f32.mrb[0].mxu0
      %v2236 = vadd.f32 0.0, %v2235
      %v2237 = vpop.f32.mrb[0].mxu0
      %v2238 = vpop.f32.mrb[0].mxu0
      %v2239 = vadd.f32 0.0, %v2238
      %v2240 = vpop.f32.mrb[0].mxu0
      %2241 = vdwg.mxu0
      %2242 = vset.pattern.permute.xlu0 2
      %2243 = vperm.xlu0 %2242, %v794
      %v2244 = vpop.permute.xlu0 %2243
      %2246 = vset.pattern.permute.xlu0 2
      %2247 = vperm.xlu0 %2246, %v797
      %v2248 = vpop.permute.xlu0 %2247
      %2250 = vset.pattern.permute.xlu0 2
      %2251 = vperm.xlu0 %2250, %v802
      %v2252 = vpop.permute.xlu0 %2251
      %2254 = vset.pattern.permute.xlu0 2
      %2255 = vperm.xlu0 %2254, %v805
      %v2256 = vpop.permute.xlu0 %2255
      %2258 = vset.pattern.permute.xlu0 2
      %2259 = vperm.xlu0 %2258, %v810
      %v2260 = vpop.permute.xlu0 %2259
      %2262 = vset.pattern.permute.xlu0 2
      %2263 = vperm.xlu0 %2262, %v813
      %v2264 = vpop.permute.xlu0 %2263
      %2266 = vset.pattern.permute.xlu0 2
      %2267 = vperm.xlu0 %2266, %v818
      %v2268 = vpop.permute.xlu0 %2267
      %2270 = vset.pattern.permute.xlu0 2
      %2271 = vperm.xlu0 %2270, %v821
      %v2272 = vpop.permute.xlu0 %2271
      %2274 = vset.pattern.permute.xlu0 2
      %2275 = vperm.xlu0 %2274, %v826
      %v2276 = vpop.permute.xlu0 %2275
      %2278 = vset.pattern.permute.xlu0 2
      %2279 = vperm.xlu0 %2278, %v829
      %v2280 = vpop.permute.xlu0 %2279
      %2282 = vset.pattern.permute.xlu0 2
      %2283 = vperm.xlu0 %2282, %v834
      %v2284 = vpop.permute.xlu0 %2283
      %2286 = vset.pattern.permute.xlu0 2
      %2287 = vperm.xlu0 %2286, %v837
      %v2288 = vpop.permute.xlu0 %2287
      %2290 = vset.pattern.permute.xlu0 2
      %2291 = vperm.xlu0 %2290, %v842
      %v2292 = vpop.permute.xlu0 %2291
      %2294 = vset.pattern.permute.xlu0 2
      %2295 = vperm.xlu0 %2294, %v845
      %v2296 = vpop.permute.xlu0 %2295
      %2298 = vset.pattern.permute.xlu0 2
      %2299 = vperm.xlu0 %2298, %v850
      %v2300 = vpop.permute.xlu0 %2299
      %2302 = vset.pattern.permute.xlu0 2
      %2303 = vperm.xlu0 %2302, %v853
      %v2304 = vpop.permute.xlu0 %2303
      %v2306 = vlaneseq
      %v2307 = vshrl.u32 %v2306, 7
      %v2308 = vsub.s32 2, %v2307
      %v2309 = vrot.slane %v652, %v2308
      %v2310 = vlaneseq
      %v2311 = vshrl.u32 %v2310, 7
      %v2312 = vsub.s32 2, %v2311
      %v2313 = vrot.slane %v654, %v2312
      %v2314 = vadd.f32 %v2244, %v2309
      %v2315 = vadd.f32 %v2244, %v2313
      %v2316 = vadd.f32 %v2248, %v2309
      %v2317 = vadd.f32 %v2248, %v2313
      %v2318 = vadd.f32 %v2252, %v2309
      %v2319 = vadd.f32 %v2252, %v2313
      %v2320 = vadd.f32 %v2256, %v2309
      %v2321 = vadd.f32 %v2256, %v2313
      %v2322 = vadd.f32 %v2260, %v2309
      %v2323 = vadd.f32 %v2260, %v2313
      %v2324 = vadd.f32 %v2264, %v2309
      %v2325 = vadd.f32 %v2264, %v2313
      %v2326 = vadd.f32 %v2268, %v2309
      %v2327 = vadd.f32 %v2268, %v2313
      %v2328 = vadd.f32 %v2272, %v2309
      %v2329 = vadd.f32 %v2272, %v2313
      %v2330 = vadd.f32 %v2276, %v2309
      %v2331 = vadd.f32 %v2276, %v2313
      %v2332 = vadd.f32 %v2280, %v2309
      %v2333 = vadd.f32 %v2280, %v2313
      %v2334 = vadd.f32 %v2284, %v2309
      %v2335 = vadd.f32 %v2284, %v2313
      %v2336 = vadd.f32 %v2288, %v2309
      %v2337 = vadd.f32 %v2288, %v2313
      %v2338 = vadd.f32 %v2292, %v2309
      %v2339 = vadd.f32 %v2292, %v2313
      %v2340 = vadd.f32 %v2296, %v2309
      %v2341 = vadd.f32 %v2296, %v2313
      %v2342 = vadd.f32 %v2300, %v2309
      %v2343 = vadd.f32 %v2300, %v2313
      %v2344 = vadd.f32 %v2304, %v2309
      %v2345 = vadd.f32 %v2304, %v2313
      %vm2346 = vcmp.gt.f32.partialorder %v2314, 0.0
      %vm2347 = vcmp.gt.f32.partialorder %v2315, 0.0
      %vm2348 = vcmp.gt.f32.partialorder %v2316, 0.0
      %vm2349 = vcmp.gt.f32.partialorder %v2317, 0.0
      %vm2350 = vcmp.gt.f32.partialorder %v2318, 0.0
      %vm2351 = vcmp.gt.f32.partialorder %v2319, 0.0
      %vm2352 = vcmp.gt.f32.partialorder %v2320, 0.0
      %vm2353 = vcmp.gt.f32.partialorder %v2321, 0.0
      %vm2354 = vcmp.gt.f32.partialorder %v2322, 0.0
      %vm2355 = vcmp.gt.f32.partialorder %v2323, 0.0
      %vm2356 = vcmp.gt.f32.partialorder %v2324, 0.0
      %vm2357 = vcmp.gt.f32.partialorder %v2325, 0.0
      %vm2358 = vcmp.gt.f32.partialorder %v2326, 0.0
      %vm2359 = vcmp.gt.f32.partialorder %v2327, 0.0
      %vm2360 = vcmp.gt.f32.partialorder %v2328, 0.0
      %vm2361 = vcmp.gt.f32.partialorder %v2329, 0.0
      %vm2362 = vcmp.gt.f32.partialorder %v2330, 0.0
      %vm2363 = vcmp.gt.f32.partialorder %v2331, 0.0
      %vm2364 = vcmp.gt.f32.partialorder %v2332, 0.0
      %vm2365 = vcmp.gt.f32.partialorder %v2333, 0.0
      %vm2366 = vcmp.gt.f32.partialorder %v2334, 0.0
      %vm2367 = vcmp.gt.f32.partialorder %v2335, 0.0
      %vm2368 = vcmp.gt.f32.partialorder %v2336, 0.0
      %vm2369 = vcmp.gt.f32.partialorder %v2337, 0.0
      %vm2370 = vcmp.gt.f32.partialorder %v2338, 0.0
      %vm2371 = vcmp.gt.f32.partialorder %v2339, 0.0
      %vm2372 = vcmp.gt.f32.partialorder %v2340, 0.0
      %vm2373 = vcmp.gt.f32.partialorder %v2341, 0.0
      %vm2374 = vcmp.gt.f32.partialorder %v2342, 0.0
      %vm2375 = vcmp.gt.f32.partialorder %v2343, 0.0
      %vm2376 = vcmp.gt.f32.partialorder %v2344, 0.0
      %vm2377 = vcmp.gt.f32.partialorder %v2345, 0.0
      %v2378 = vmul.f32 %v2314, 0.2
      %v2379 = vmul.f32 %v2315, 0.2
      %v2380 = vmul.f32 %v2316, 0.2
      %v2381 = vmul.f32 %v2317, 0.2
      %v2382 = vmul.f32 %v2318, 0.2
      %v2383 = vmul.f32 %v2319, 0.2
      %v2384 = vmul.f32 %v2320, 0.2
      %v2385 = vmul.f32 %v2321, 0.2
      %v2386 = vmul.f32 %v2322, 0.2
      %v2387 = vmul.f32 %v2323, 0.2
      %v2388 = vmul.f32 %v2324, 0.2
      %v2389 = vmul.f32 %v2325, 0.2
      %v2390 = vmul.f32 %v2326, 0.2
      %v2391 = vmul.f32 %v2327, 0.2
      %v2392 = vmul.f32 %v2328, 0.2
      %v2393 = vmul.f32 %v2329, 0.2
      %v2394 = vmul.f32 %v2330, 0.2
      %v2395 = vmul.f32 %v2331, 0.2
      %v2396 = vmul.f32 %v2332, 0.2
      %v2397 = vmul.f32 %v2333, 0.2
      %v2398 = vmul.f32 %v2334, 0.2
      %v2399 = vmul.f32 %v2335, 0.2
      %v2400 = vmul.f32 %v2336, 0.2
      %v2401 = vmul.f32 %v2337, 0.2
      %v2402 = vmul.f32 %v2338, 0.2
      %v2403 = vmul.f32 %v2339, 0.2
      %v2404 = vmul.f32 %v2340, 0.2
      %v2405 = vmul.f32 %v2341, 0.2
      %v2406 = vmul.f32 %v2342, 0.2
      %v2407 = vmul.f32 %v2343, 0.2
      %v2408 = vmul.f32 %v2344, 0.2
      %v2409 = vmul.f32 %v2345, 0.2
      %v2410 = vsel %vm2346, %v2314, %v2378
      %v2411 = vsel %vm2347, %v2315, %v2379
      %v2412 = vsel %vm2348, %v2316, %v2380
      %v2413 = vsel %vm2349, %v2317, %v2381
      %v2414 = vsel %vm2350, %v2318, %v2382
      %v2415 = vsel %vm2351, %v2319, %v2383
      %v2416 = vsel %vm2352, %v2320, %v2384
      %v2417 = vsel %vm2353, %v2321, %v2385
      %v2418 = vsel %vm2354, %v2322, %v2386
      %v2419 = vsel %vm2355, %v2323, %v2387
      %v2420 = vsel %vm2356, %v2324, %v2388
      %v2421 = vsel %vm2357, %v2325, %v2389
      %v2422 = vsel %vm2358, %v2326, %v2390
      %v2423 = vsel %vm2359, %v2327, %v2391
      %v2424 = vsel %vm2360, %v2328, %v2392
      %v2425 = vsel %vm2361, %v2329, %v2393
      %v2426 = vsel %vm2362, %v2330, %v2394
      %v2427 = vsel %vm2363, %v2331, %v2395
      %v2428 = vsel %vm2364, %v2332, %v2396
      %v2429 = vsel %vm2365, %v2333, %v2397
      %v2430 = vsel %vm2366, %v2334, %v2398
      %v2431 = vsel %vm2367, %v2335, %v2399
      %v2432 = vsel %vm2368, %v2336, %v2400
      %v2433 = vsel %vm2369, %v2337, %v2401
      %v2434 = vsel %vm2370, %v2338, %v2402
      %v2435 = vsel %vm2371, %v2339, %v2403
      %v2436 = vsel %vm2372, %v2340, %v2404
      %v2437 = vsel %vm2373, %v2341, %v2405
      %v2438 = vsel %vm2374, %v2342, %v2406
      %v2439 = vsel %vm2375, %v2343, %v2407
      %v2440 = vsel %vm2376, %v2344, %v2408
      %v2441 = vsel %vm2377, %v2345, %v2409
      %v2442 = vadd.f32 %v2410, %v960
      %v2443 = vadd.f32 %v2411, %v961
      %v2444 = vadd.f32 %v2412, %v962
      %v2445 = vadd.f32 %v2413, %v963
      %v2446 = vadd.f32 %v2414, %v964
      %v2447 = vadd.f32 %v2415, %v965
      %v2448 = vadd.f32 %v2416, %v966
      %v2449 = vadd.f32 %v2417, %v967
      %v2450 = vadd.f32 %v2418, %v968
      %v2451 = vadd.f32 %v2419, %v969
      %v2452 = vadd.f32 %v2420, %v970
      %v2453 = vadd.f32 %v2421, %v971
      %v2454 = vadd.f32 %v2422, %v972
      %v2455 = vadd.f32 %v2423, %v973
      %v2456 = vadd.f32 %v2424, %v974
      %v2457 = vadd.f32 %v2425, %v975
      %v2458 = vadd.f32 %v2426, %v976
      %v2459 = vadd.f32 %v2427, %v977
      %v2460 = vadd.f32 %v2428, %v978
      %v2461 = vadd.f32 %v2429, %v979
      %v2462 = vadd.f32 %v2430, %v980
      %v2463 = vadd.f32 %v2431, %v981
      %v2464 = vadd.f32 %v2432, %v982
      %v2465 = vadd.f32 %v2433, %v983
      %v2466 = vadd.f32 %v2434, %v984
      %v2467 = vadd.f32 %v2435, %v985
      %v2468 = vadd.f32 %v2436, %v986
      %v2469 = vadd.f32 %v2437, %v987
      %v2470 = vadd.f32 %v2438, %v988
      %v2471 = vadd.f32 %v2439, %v989
      %v2472 = vadd.f32 %v2440, %v990
      %v2473 = vadd.f32 %v2441, %v991
      %v2474 = vmax.f32 %v2442, %v2443
      %2475 = vmax.xlane.f32.xlu0 %v2474
      %v2476 = vpop.xlane.xlu0 %2475
      %v2477 = vmax.f32 %v2444, %v2445
      %2478 = vmax.xlane.f32.xlu0 %v2477
      %v2479 = vpop.xlane.xlu0 %2478
      %v2480 = vmax.f32 %v2446, %v2447
      %2481 = vmax.xlane.f32.xlu0 %v2480
      %v2482 = vpop.xlane.xlu0 %2481
      %v2483 = vmax.f32 %v2448, %v2449
      %2484 = vmax.xlane.f32.xlu0 %v2483
      %v2485 = vpop.xlane.xlu0 %2484
      %v2486 = vmax.f32 %v2450, %v2451
      %2487 = vmax.xlane.f32.xlu0 %v2486
      %v2488 = vpop.xlane.xlu0 %2487
      %v2489 = vmax.f32 %v2452, %v2453
      %2490 = vmax.xlane.f32.xlu0 %v2489
      %v2491 = vpop.xlane.xlu0 %2490
      %v2492 = vmax.f32 %v2454, %v2455
      %2493 = vmax.xlane.f32.xlu0 %v2492
      %v2494 = vpop.xlane.xlu0 %2493
      %v2495 = vmax.f32 %v2456, %v2457
      %2496 = vmax.xlane.f32.xlu0 %v2495
      %v2497 = vpop.xlane.xlu0 %2496
      %v2498 = vmax.f32 %v2458, %v2459
      %2499 = vmax.xlane.f32.xlu0 %v2498
      %v2500 = vpop.xlane.xlu0 %2499
      %v2501 = vmax.f32 %v2460, %v2461
      %2502 = vmax.xlane.f32.xlu0 %v2501
      %v2503 = vpop.xlane.xlu0 %2502
      %v2504 = vmax.f32 %v2462, %v2463
      %2505 = vmax.xlane.f32.xlu0 %v2504
      %v2506 = vpop.xlane.xlu0 %2505
      %v2507 = vmax.f32 %v2464, %v2465
      %2508 = vmax.xlane.f32.xlu0 %v2507
      %v2509 = vpop.xlane.xlu0 %2508
      %v2510 = vmax.f32 %v2466, %v2467
      %2511 = vmax.xlane.f32.xlu0 %v2510
      %v2512 = vpop.xlane.xlu0 %2511
      %v2513 = vmax.f32 %v2468, %v2469
      %2514 = vmax.xlane.f32.xlu0 %v2513
      %v2515 = vpop.xlane.xlu0 %2514
      %v2516 = vmax.f32 %v2470, %v2471
      %2517 = vmax.xlane.f32.xlu0 %v2516
      %v2518 = vpop.xlane.xlu0 %2517
      %v2519 = vmax.f32 %v2472, %v2473
      %2520 = vmax.xlane.f32.xlu0 %v2519
      %v2521 = vpop.xlane.xlu0 %2520
      %v2522 = vsub.f32 %v2442, %v2476
      %v2523 = vsub.f32 %v2443, %v2476
      %v2524 = vsub.f32 %v2444, %v2479
      %v2525 = vsub.f32 %v2445, %v2479
      %v2526 = vsub.f32 %v2446, %v2482
      %v2527 = vsub.f32 %v2447, %v2482
      %v2528 = vsub.f32 %v2448, %v2485
      %v2529 = vsub.f32 %v2449, %v2485
      %v2530 = vsub.f32 %v2450, %v2488
      %v2531 = vsub.f32 %v2451, %v2488
      %v2532 = vsub.f32 %v2452, %v2491
      %v2533 = vsub.f32 %v2453, %v2491
      %v2534 = vsub.f32 %v2454, %v2494
      %v2535 = vsub.f32 %v2455, %v2494
      %v2536 = vsub.f32 %v2456, %v2497
      %v2537 = vsub.f32 %v2457, %v2497
      %v2538 = vsub.f32 %v2458, %v2500
      %v2539 = vsub.f32 %v2459, %v2500
      %v2540 = vsub.f32 %v2460, %v2503
      %v2541 = vsub.f32 %v2461, %v2503
      %v2542 = vsub.f32 %v2462, %v2506
      %v2543 = vsub.f32 %v2463, %v2506
      %v2544 = vsub.f32 %v2464, %v2509
      %v2545 = vsub.f32 %v2465, %v2509
      %v2546 = vsub.f32 %v2466, %v2512
      %v2547 = vsub.f32 %v2467, %v2512
      %v2548 = vsub.f32 %v2468, %v2515
      %v2549 = vsub.f32 %v2469, %v2515
      %v2550 = vsub.f32 %v2470, %v2518
      %v2551 = vsub.f32 %v2471, %v2518
      %v2552 = vsub.f32 %v2472, %v2521
      %v2553 = vsub.f32 %v2473, %v2521
      %v2554 = vmul.f32 %v2522, 1.442695
      %v2555 = vpow.pop %v2554
      %v2556 = vmul.f32 %v2523, 1.442695
      %v2557 = vpow.pop %v2556
      %v2558 = vmul.f32 %v2524, 1.442695
      %v2559 = vpow.pop %v2558
      %v2560 = vmul.f32 %v2525, 1.442695
      %v2561 = vpow.pop %v2560
      %v2562 = vmul.f32 %v2526, 1.442695
      %v2563 = vpow.pop %v2562
      %v2564 = vmul.f32 %v2527, 1.442695
      %v2565 = vpow.pop %v2564
      %v2566 = vmul.f32 %v2528, 1.442695
      %v2567 = vpow.pop %v2566
      %v2568 = vmul.f32 %v2529, 1.442695
      %v2569 = vpow.pop %v2568
      %v2570 = vmul.f32 %v2530, 1.442695
      %v2571 = vpow.pop %v2570
      %v2572 = vmul.f32 %v2531, 1.442695
      %v2573 = vpow.pop %v2572
      %v2574 = vmul.f32 %v2532, 1.442695
      %v2575 = vpow.pop %v2574
      %v2576 = vmul.f32 %v2533, 1.442695
      %v2577 = vpow.pop %v2576
      %v2578 = vmul.f32 %v2534, 1.442695
      %v2579 = vpow.pop %v2578
      %v2580 = vmul.f32 %v2535, 1.442695
      %v2581 = vpow.pop %v2580
      %v2582 = vmul.f32 %v2536, 1.442695
      %v2583 = vpow.pop %v2582
      %v2584 = vmul.f32 %v2537, 1.442695
      %v2585 = vpow.pop %v2584
      %v2586 = vmul.f32 %v2538, 1.442695
      %v2587 = vpow.pop %v2586
      %v2588 = vmul.f32 %v2539, 1.442695
      %v2589 = vpow.pop %v2588
      %v2590 = vmul.f32 %v2540, 1.442695
      %v2591 = vpow.pop %v2590
      %v2592 = vmul.f32 %v2541, 1.442695
      %v2593 = vpow.pop %v2592
      %v2594 = vmul.f32 %v2542, 1.442695
      %v2595 = vpow.pop %v2594
      %v2596 = vmul.f32 %v2543, 1.442695
      %v2597 = vpow.pop %v2596
      %v2598 = vmul.f32 %v2544, 1.442695
      %v2599 = vpow.pop %v2598
      %v2600 = vmul.f32 %v2545, 1.442695
      %v2601 = vpow.pop %v2600
      %v2602 = vmul.f32 %v2546, 1.442695
      %v2603 = vpow.pop %v2602
      %v2604 = vmul.f32 %v2547, 1.442695
      %v2605 = vpow.pop %v2604
      %v2606 = vmul.f32 %v2548, 1.442695
      %v2607 = vpow.pop %v2606
      %v2608 = vmul.f32 %v2549, 1.442695
      %v2609 = vpow.pop %v2608
      %v2610 = vmul.f32 %v2550, 1.442695
      %v2611 = vpow.pop %v2610
      %v2612 = vmul.f32 %v2551, 1.442695
      %v2613 = vpow.pop %v2612
      %v2614 = vmul.f32 %v2552, 1.442695
      %v2615 = vpow.pop %v2614
      %v2616 = vmul.f32 %v2553, 1.442695
      %v2617 = vpow.pop %v2616
      %v2618 = vadd.f32 %v2555, %v2557
      %2619 = vadd.xlane.f32.xlu0 %v2618
      %v2620 = vpop.xlane.xlu0 %2619
      %v2621 = vadd.f32 %v2559, %v2561
      %2622 = vadd.xlane.f32.xlu0 %v2621
      %v2623 = vpop.xlane.xlu0 %2622
      %v2624 = vadd.f32 %v2563, %v2565
      %2625 = vadd.xlane.f32.xlu0 %v2624
      %v2626 = vpop.xlane.xlu0 %2625
      %v2627 = vadd.f32 %v2567, %v2569
      %2628 = vadd.xlane.f32.xlu0 %v2627
      %v2629 = vpop.xlane.xlu0 %2628
      %v2630 = vadd.f32 %v2571, %v2573
      %2631 = vadd.xlane.f32.xlu0 %v2630
      %v2632 = vpop.xlane.xlu0 %2631
      %v2633 = vadd.f32 %v2575, %v2577
      %2634 = vadd.xlane.f32.xlu0 %v2633
      %v2635 = vpop.xlane.xlu0 %2634
      %v2636 = vadd.f32 %v2579, %v2581
      %2637 = vadd.xlane.f32.xlu0 %v2636
      %v2638 = vpop.xlane.xlu0 %2637
      %v2639 = vadd.f32 %v2583, %v2585
      %2640 = vadd.xlane.f32.xlu0 %v2639
      %v2641 = vpop.xlane.xlu0 %2640
      %v2642 = vadd.f32 %v2587, %v2589
      %2643 = vadd.xlane.f32.xlu0 %v2642
      %v2644 = vpop.xlane.xlu0 %2643
      %v2645 = vadd.f32 %v2591, %v2593
      %2646 = vadd.xlane.f32.xlu0 %v2645
      %v2647 = vpop.xlane.xlu0 %2646
      %v2648 = vadd.f32 %v2595, %v2597
      %2649 = vadd.xlane.f32.xlu0 %v2648
      %v2650 = vpop.xlane.xlu0 %2649
      %v2651 = vadd.f32 %v2599, %v2601
      %2652 = vadd.xlane.f32.xlu0 %v2651
      %v2653 = vpop.xlane.xlu0 %2652
      %v2654 = vadd.f32 %v2603, %v2605
      %2655 = vadd.xlane.f32.xlu0 %v2654
      %v2656 = vpop.xlane.xlu0 %2655
      %v2657 = vadd.f32 %v2607, %v2609
      %2658 = vadd.xlane.f32.xlu0 %v2657
      %v2659 = vpop.xlane.xlu0 %2658
      %v2660 = vadd.f32 %v2611, %v2613
      %2661 = vadd.xlane.f32.xlu0 %v2660
      %v2662 = vpop.xlane.xlu0 %2661
      %v2663 = vadd.f32 %v2615, %v2617
      %2664 = vadd.xlane.f32.xlu0 %v2663
      %v2665 = vpop.xlane.xlu0 %2664
      %v2666 = vrcp.pop %v2620
      %v2667 = vrcp.pop %v2623
      %v2668 = vrcp.pop %v2626
      %v2669 = vrcp.pop %v2629
      %v2670 = vrcp.pop %v2632
      %v2671 = vrcp.pop %v2635
      %v2672 = vrcp.pop %v2638
      %v2673 = vrcp.pop %v2641
      %v2674 = vrcp.pop %v2644
      %v2675 = vrcp.pop %v2647
      %v2676 = vrcp.pop %v2650
      %v2677 = vrcp.pop %v2653
      %v2678 = vrcp.pop %v2656
      %v2679 = vrcp.pop %v2659
      %v2680 = vrcp.pop %v2662
      %v2681 = vrcp.pop %v2665
      %v2682 = vmul.f32 %v2555, %v2666
      %v2683 = vmul.f32 %v2557, %v2666
      %v2684 = vmul.f32 %v2559, %v2667
      %v2685 = vmul.f32 %v2561, %v2667
      %v2686 = vmul.f32 %v2563, %v2668
      %v2687 = vmul.f32 %v2565, %v2668
      %v2688 = vmul.f32 %v2567, %v2669
      %v2689 = vmul.f32 %v2569, %v2669
      %v2690 = vmul.f32 %v2571, %v2670
      %v2691 = vmul.f32 %v2573, %v2670
      %v2692 = vmul.f32 %v2575, %v2671
      %v2693 = vmul.f32 %v2577, %v2671
      %v2694 = vmul.f32 %v2579, %v2672
      %v2695 = vmul.f32 %v2581, %v2672
      %v2696 = vmul.f32 %v2583, %v2673
      %v2697 = vmul.f32 %v2585, %v2673
      %v2698 = vmul.f32 %v2587, %v2674
      %v2699 = vmul.f32 %v2589, %v2674
      %v2700 = vmul.f32 %v2591, %v2675
      %v2701 = vmul.f32 %v2593, %v2675
      %v2702 = vmul.f32 %v2595, %v2676
      %v2703 = vmul.f32 %v2597, %v2676
      %v2704 = vmul.f32 %v2599, %v2677
      %v2705 = vmul.f32 %v2601, %v2677
      %v2706 = vmul.f32 %v2603, %v2678
      %v2707 = vmul.f32 %v2605, %v2678
      %v2708 = vmul.f32 %v2607, %v2679
      %v2709 = vmul.f32 %v2609, %v2679
      %v2710 = vmul.f32 %v2611, %v2680
      %v2711 = vmul.f32 %v2613, %v2680
      %v2712 = vmul.f32 %v2615, %v2681
      %v2713 = vmul.f32 %v2617, %v2681
      %v2714 = vpack.c.bf16 %v2684, %v2682
      %v2715 = vpack.c.bf16 %v2685, %v2683
      %v2716 = vpack.c.bf16 %v2688, %v2686
      %v2717 = vpack.c.bf16 %v2689, %v2687
      %v2718 = vpack.c.bf16 %v2692, %v2690
      %v2719 = vpack.c.bf16 %v2693, %v2691
      %v2720 = vpack.c.bf16 %v2696, %v2694
      %v2721 = vpack.c.bf16 %v2697, %v2695
      %v2722 = vpack.c.bf16 %v2700, %v2698
      %v2723 = vpack.c.bf16 %v2701, %v2699
      %v2724 = vpack.c.bf16 %v2704, %v2702
      %v2725 = vpack.c.bf16 %v2705, %v2703
      %v2726 = vpack.c.bf16 %v2708, %v2706
      %v2727 = vpack.c.bf16 %v2709, %v2707
      %v2728 = vpack.c.bf16 %v2712, %v2710
      %v2729 = vpack.c.bf16 %v2713, %v2711
      %2730 = vrot.lane.b32.xlu0 %v597, 96
      %v2731 = vpop.permute.xlu0 %2730
      %2732 = vrot.lane.b32.xlu0 %v598, 96
      %v2733 = vpop.permute.xlu0 %2732
      %2734 = vrot.lane.b32.xlu0 %v599, 96
      %v2735 = vpop.permute.xlu0 %2734
      %2736 = vrot.lane.b32.xlu0 %v600, 96
      %v2737 = vpop.permute.xlu0 %2736
      %2738 = vrot.lane.b32.xlu0 %v601, 96
      %v2739 = vpop.permute.xlu0 %2738
      %2740 = vrot.lane.b32.xlu0 %v602, 96
      %v2741 = vpop.permute.xlu0 %2740
      %2742 = vrot.lane.b32.xlu0 %v603, 96
      %v2743 = vpop.permute.xlu0 %2742
      %2744 = vrot.lane.b32.xlu0 %v604, 96
      %v2745 = vpop.permute.xlu0 %2744
      %2746 = vrot.lane.b32.xlu0 %v605, 96
      %v2747 = vpop.permute.xlu0 %2746
      %2748 = vrot.lane.b32.xlu0 %v606, 96
      %v2749 = vpop.permute.xlu0 %2748
      %2750 = vrot.lane.b32.xlu0 %v607, 96
      %v2751 = vpop.permute.xlu0 %2750
      %2752 = vrot.lane.b32.xlu0 %v608, 96
      %v2753 = vpop.permute.xlu0 %2752
      %2754 = vrot.lane.b32.xlu0 %v609, 96
      %v2755 = vpop.permute.xlu0 %2754
      %2756 = vrot.lane.b32.xlu0 %v610, 96
      %v2757 = vpop.permute.xlu0 %2756
      %2758 = vrot.lane.b32.xlu0 %v611, 96
      %v2759 = vpop.permute.xlu0 %2758
      %2760 = vrot.lane.b32.xlu0 %v612, 96
      %v2761 = vpop.permute.xlu0 %2760
      %2778 = vmatprep.subr.bf16.mxu0 0
      %2779 = vmatpush1.bf16.msra.mxu0 %v2731
      %2780 = vmatprep.subr.bf16.mxu0 0
      %2781 = vmatpush1.bf16.msra.mxu0 %v2733
      %2782 = vmatprep.subr.bf16.mxu0 0
      %2783 = vmatpush1.bf16.msra.mxu0 %v2735
      %2784 = vmatprep.subr.bf16.mxu0 0
      %2785 = vmatpush1.bf16.msra.mxu0 %v2737
      %2786 = vmatprep.subr.bf16.mxu0 0
      %2787 = vmatpush1.bf16.msra.mxu0 %v2739
      %2788 = vmatprep.subr.bf16.mxu0 0
      %2789 = vmatpush1.bf16.msra.mxu0 %v2741
      %2790 = vmatprep.subr.bf16.mxu0 0
      %2791 = vmatpush1.bf16.msra.mxu0 %v2743
      %2792 = vmatprep.subr.bf16.mxu0 0
      %2793 = vmatpush1.bf16.msra.mxu0 %v2745
      %2794 = vmatprep.subr.bf16.mxu0 0
      %2795 = vmatpush1.bf16.msra.mxu0 %v2747
      %2796 = vmatprep.subr.bf16.mxu0 0
      %2797 = vmatpush1.bf16.msra.mxu0 %v2749
      %2798 = vmatprep.subr.bf16.mxu0 0
      %2799 = vmatpush1.bf16.msra.mxu0 %v2751
      %2800 = vmatprep.subr.bf16.mxu0 0
      %2801 = vmatpush1.bf16.msra.mxu0 %v2753
      %2802 = vmatprep.subr.bf16.mxu0 0
      %2803 = vmatpush1.bf16.msra.mxu0 %v2755
      %2804 = vmatprep.subr.bf16.mxu0 0
      %2805 = vmatpush1.bf16.msra.mxu0 %v2757
      %2806 = vmatprep.subr.bf16.mxu0 0
      %2807 = vmatpush1.bf16.msra.mxu0 %v2759
      %2808 = vmatprep.subr.bf16.mxu0 0
      %2809 = vmatpush1.bf16.msra.mxu0 %v2761
      %2810 = vmatprep.mubr.bf16.mxu0 %v2715
      %2811 = vmatmul.mubr.bf16.gmra.mrb[0].mxu0 %v2714
      %v2812 = vpop.f32.mrb[0].mxu0
      %v2813 = vadd.f32 0.0, %v2812
      %v2814 = vpop.f32.mrb[0].mxu0
      %v2815 = vpop.f32.mrb[0].mxu0
      %v2816 = vadd.f32 0.0, %v2815
      %v2817 = vpop.f32.mrb[0].mxu0
      %2818 = vmatprep.mubr.bf16.mxu0 %v2717
      %2819 = vmatmul.mubr.bf16.gmra.mrb[0].mxu0 %v2716
      %v2820 = vpop.f32.mrb[0].mxu0
      %v2821 = vadd.f32 0.0, %v2820
      %v2822 = vpop.f32.mrb[0].mxu0
      %v2823 = vpop.f32.mrb[0].mxu0
      %v2824 = vadd.f32 0.0, %v2823
      %v2825 = vpop.f32.mrb[0].mxu0
      %2826 = vmatprep.mubr.bf16.mxu0 %v2719
      %2827 = vmatmul.mubr.bf16.gmra.mrb[0].mxu0 %v2718
      %v2828 = vpop.f32.mrb[0].mxu0
      %v2829 = vadd.f32 0.0, %v2828
      %v2830 = vpop.f32.mrb[0].mxu0
      %v2831 = vpop.f32.mrb[0].mxu0
      %v2832 = vadd.f32 0.0, %v2831
      %v2833 = vpop.f32.mrb[0].mxu0
      %2834 = vmatprep.mubr.bf16.mxu0 %v2721
      %2835 = vmatmul.mubr.bf16.gmra.mrb[0].mxu0 %v2720
      %v2836 = vpop.f32.mrb[0].mxu0
      %v2837 = vadd.f32 0.0, %v2836
      %v2838 = vpop.f32.mrb[0].mxu0
      %v2839 = vpop.f32.mrb[0].mxu0
      %v2840 = vadd.f32 0.0, %v2839
      %v2841 = vpop.f32.mrb[0].mxu0
      %2842 = vmatprep.mubr.bf16.mxu0 %v2723
      %2843 = vmatmul.mubr.bf16.gmra.mrb[0].mxu0 %v2722
      %v2844 = vpop.f32.mrb[0].mxu0
      %v2845 = vadd.f32 0.0, %v2844
      %v2846 = vpop.f32.mrb[0].mxu0
      %v2847 = vpop.f32.mrb[0].mxu0
      %v2848 = vadd.f32 0.0, %v2847
      %v2849 = vpop.f32.mrb[0].mxu0
      %2850 = vmatprep.mubr.bf16.mxu0 %v2725
      %2851 = vmatmul.mubr.bf16.gmra.mrb[0].mxu0 %v2724
      %v2852 = vpop.f32.mrb[0].mxu0
      %v2853 = vadd.f32 0.0, %v2852
      %v2854 = vpop.f32.mrb[0].mxu0
      %v2855 = vpop.f32.mrb[0].mxu0
      %v2856 = vadd.f32 0.0, %v2855
      %v2857 = vpop.f32.mrb[0].mxu0
      %2858 = vmatprep.mubr.bf16.mxu0 %v2727
      %2859 = vmatmul.mubr.bf16.gmra.mrb[0].mxu0 %v2726
      %v2860 = vpop.f32.mrb[0].mxu0
      %v2861 = vadd.f32 0.0, %v2860
      %v2862 = vpop.f32.mrb[0].mxu0
      %v2863 = vpop.f32.mrb[0].mxu0
      %v2864 = vadd.f32 0.0, %v2863
      %v2865 = vpop.f32.mrb[0].mxu0
      %2866 = vmatprep.mubr.bf16.mxu0 %v2729
      %2867 = vmatmul.mubr.bf16.gmra.mrb[0].mxu0 %v2728
      %v2868 = vpop.f32.mrb[0].mxu0
      %v2869 = vadd.f32 0.0, %v2868
      %v2870 = vpop.f32.mrb[0].mxu0
      %v2871 = vpop.f32.mrb[0].mxu0
      %v2872 = vadd.f32 0.0, %v2871
      %v2873 = vpop.f32.mrb[0].mxu0
      %2874 = vdwg.mxu0
      %2875 = vset.pattern.permute.xlu0 3
      %2876 = vperm.xlu0 %2875, %v794
      %v2877 = vpop.permute.xlu0 %2876
      %2879 = vset.pattern.permute.xlu0 3
      %2880 = vperm.xlu0 %2879, %v797
      %v2881 = vpop.permute.xlu0 %2880
      %2883 = vset.pattern.permute.xlu0 3
      %2884 = vperm.xlu0 %2883, %v802
      %v2885 = vpop.permute.xlu0 %2884
      %2887 = vset.pattern.permute.xlu0 3
      %2888 = vperm.xlu0 %2887, %v805
      %v2889 = vpop.permute.xlu0 %2888
      %2891 = vset.pattern.permute.xlu0 3
      %2892 = vperm.xlu0 %2891, %v810
      %v2893 = vpop.permute.xlu0 %2892
      %2895 = vset.pattern.permute.xlu0 3
      %2896 = vperm.xlu0 %2895, %v813
      %v2897 = vpop.permute.xlu0 %2896
      %2899 = vset.pattern.permute.xlu0 3
      %2900 = vperm.xlu0 %2899, %v818
      %v2901 = vpop.permute.xlu0 %2900
      %2903 = vset.pattern.permute.xlu0 3
      %2904 = vperm.xlu0 %2903, %v821
      %v2905 = vpop.permute.xlu0 %2904
      %2907 = vset.pattern.permute.xlu0 3
      %2908 = vperm.xlu0 %2907, %v826
      %v2909 = vpop.permute.xlu0 %2908
      %2911 = vset.pattern.permute.xlu0 3
      %2912 = vperm.xlu0 %2911, %v829
      %v2913 = vpop.permute.xlu0 %2912
      %2915 = vset.pattern.permute.xlu0 3
      %2916 = vperm.xlu0 %2915, %v834
      %v2917 = vpop.permute.xlu0 %2916
      %2919 = vset.pattern.permute.xlu0 3
      %2920 = vperm.xlu0 %2919, %v837
      %v2921 = vpop.permute.xlu0 %2920
      %2923 = vset.pattern.permute.xlu0 3
      %2924 = vperm.xlu0 %2923, %v842
      %v2925 = vpop.permute.xlu0 %2924
      %2927 = vset.pattern.permute.xlu0 3
      %2928 = vperm.xlu0 %2927, %v845
      %v2929 = vpop.permute.xlu0 %2928
      %2931 = vset.pattern.permute.xlu0 3
      %2932 = vperm.xlu0 %2931, %v850
      %v2933 = vpop.permute.xlu0 %2932
      %2935 = vset.pattern.permute.xlu0 3
      %2936 = vperm.xlu0 %2935, %v853
      %v2937 = vpop.permute.xlu0 %2936
      %v2939 = vlaneseq
      %v2940 = vshrl.u32 %v2939, 7
      %v2941 = vsub.s32 3, %v2940
      %v2942 = vrot.slane %v652, %v2941
      %v2943 = vlaneseq
      %v2944 = vshrl.u32 %v2943, 7
      %v2945 = vsub.s32 3, %v2944
      %v2946 = vrot.slane %v654, %v2945
      %v2947 = vadd.f32 %v2877, %v2942
      %v2948 = vadd.f32 %v2877, %v2946
      %v2949 = vadd.f32 %v2881, %v2942
      %v2950 = vadd.f32 %v2881, %v2946
      %v2951 = vadd.f32 %v2885, %v2942
      %v2952 = vadd.f32 %v2885, %v2946
      %v2953 = vadd.f32 %v2889, %v2942
      %v2954 = vadd.f32 %v2889, %v2946
      %v2955 = vadd.f32 %v2893, %v2942
      %v2956 = vadd.f32 %v2893, %v2946
      %v2957 = vadd.f32 %v2897, %v2942
      %v2958 = vadd.f32 %v2897, %v2946
      %v2959 = vadd.f32 %v2901, %v2942
      %v2960 = vadd.f32 %v2901, %v2946
      %v2961 = vadd.f32 %v2905, %v2942
      %v2962 = vadd.f32 %v2905, %v2946
      %v2963 = vadd.f32 %v2909, %v2942
      %v2964 = vadd.f32 %v2909, %v2946
      %v2965 = vadd.f32 %v2913, %v2942
      %v2966 = vadd.f32 %v2913, %v2946
      %v2967 = vadd.f32 %v2917, %v2942
      %v2968 = vadd.f32 %v2917, %v2946
      %v2969 = vadd.f32 %v2921, %v2942
      %v2970 = vadd.f32 %v2921, %v2946
      %v2971 = vadd.f32 %v2925, %v2942
      %v2972 = vadd.f32 %v2925, %v2946
      %v2973 = vadd.f32 %v2929, %v2942
      %v2974 = vadd.f32 %v2929, %v2946
      %v2975 = vadd.f32 %v2933, %v2942
      %v2976 = vadd.f32 %v2933, %v2946
      %v2977 = vadd.f32 %v2937, %v2942
      %v2978 = vadd.f32 %v2937, %v2946
      %vm2979 = vcmp.gt.f32.partialorder %v2947, 0.0
      %vm2980 = vcmp.gt.f32.partialorder %v2948, 0.0
      %vm2981 = vcmp.gt.f32.partialorder %v2949, 0.0
      %vm2982 = vcmp.gt.f32.partialorder %v2950, 0.0
      %vm2983 = vcmp.gt.f32.partialorder %v2951, 0.0
      %vm2984 = vcmp.gt.f32.partialorder %v2952, 0.0
      %vm2985 = vcmp.gt.f32.partialorder %v2953, 0.0
      %vm2986 = vcmp.gt.f32.partialorder %v2954, 0.0
      %vm2987 = vcmp.gt.f32.partialorder %v2955, 0.0
      %vm2988 = vcmp.gt.f32.partialorder %v2956, 0.0
      %vm2989 = vcmp.gt.f32.partialorder %v2957, 0.0
      %vm2990 = vcmp.gt.f32.partialorder %v2958, 0.0
      %vm2991 = vcmp.gt.f32.partialorder %v2959, 0.0
      %vm2992 = vcmp.gt.f32.partialorder %v2960, 0.0
      %vm2993 = vcmp.gt.f32.partialorder %v2961, 0.0
      %vm2994 = vcmp.gt.f32.partialorder %v2962, 0.0
      %vm2995 = vcmp.gt.f32.partialorder %v2963, 0.0
      %vm2996 = vcmp.gt.f32.partialorder %v2964, 0.0
      %vm2997 = vcmp.gt.f32.partialorder %v2965, 0.0
      %vm2998 = vcmp.gt.f32.partialorder %v2966, 0.0
      %vm2999 = vcmp.gt.f32.partialorder %v2967, 0.0
      %vm3000 = vcmp.gt.f32.partialorder %v2968, 0.0
      %vm3001 = vcmp.gt.f32.partialorder %v2969, 0.0
      %vm3002 = vcmp.gt.f32.partialorder %v2970, 0.0
      %vm3003 = vcmp.gt.f32.partialorder %v2971, 0.0
      %vm3004 = vcmp.gt.f32.partialorder %v2972, 0.0
      %vm3005 = vcmp.gt.f32.partialorder %v2973, 0.0
      %vm3006 = vcmp.gt.f32.partialorder %v2974, 0.0
      %vm3007 = vcmp.gt.f32.partialorder %v2975, 0.0
      %vm3008 = vcmp.gt.f32.partialorder %v2976, 0.0
      %vm3009 = vcmp.gt.f32.partialorder %v2977, 0.0
      %vm3010 = vcmp.gt.f32.partialorder %v2978, 0.0
      %v3011 = vmul.f32 %v2947, 0.2
      %v3012 = vmul.f32 %v2948, 0.2
      %v3013 = vmul.f32 %v2949, 0.2
      %v3014 = vmul.f32 %v2950, 0.2
      %v3015 = vmul.f32 %v2951, 0.2
      %v3016 = vmul.f32 %v2952, 0.2
      %v3017 = vmul.f32 %v2953, 0.2
      %v3018 = vmul.f32 %v2954, 0.2
      %v3019 = vmul.f32 %v2955, 0.2
      %v3020 = vmul.f32 %v2956, 0.2
      %v3021 = vmul.f32 %v2957, 0.2
      %v3022 = vmul.f32 %v2958, 0.2
      %v3023 = vmul.f32 %v2959, 0.2
      %v3024 = vmul.f32 %v2960, 0.2
      %v3025 = vmul.f32 %v2961, 0.2
      %v3026 = vmul.f32 %v2962, 0.2
      %v3027 = vmul.f32 %v2963, 0.2
      %v3028 = vmul.f32 %v2964, 0.2
      %v3029 = vmul.f32 %v2965, 0.2
      %v3030 = vmul.f32 %v2966, 0.2
      %v3031 = vmul.f32 %v2967, 0.2
      %v3032 = vmul.f32 %v2968, 0.2
      %v3033 = vmul.f32 %v2969, 0.2
      %v3034 = vmul.f32 %v2970, 0.2
      %v3035 = vmul.f32 %v2971, 0.2
      %v3036 = vmul.f32 %v2972, 0.2
      %v3037 = vmul.f32 %v2973, 0.2
      %v3038 = vmul.f32 %v2974, 0.2
      %v3039 = vmul.f32 %v2975, 0.2
      %v3040 = vmul.f32 %v2976, 0.2
      %v3041 = vmul.f32 %v2977, 0.2
      %v3042 = vmul.f32 %v2978, 0.2
      %v3043 = vsel %vm2979, %v2947, %v3011
      %v3044 = vsel %vm2980, %v2948, %v3012
      %v3045 = vsel %vm2981, %v2949, %v3013
      %v3046 = vsel %vm2982, %v2950, %v3014
      %v3047 = vsel %vm2983, %v2951, %v3015
      %v3048 = vsel %vm2984, %v2952, %v3016
      %v3049 = vsel %vm2985, %v2953, %v3017
      %v3050 = vsel %vm2986, %v2954, %v3018
      %v3051 = vsel %vm2987, %v2955, %v3019
      %v3052 = vsel %vm2988, %v2956, %v3020
      %v3053 = vsel %vm2989, %v2957, %v3021
      %v3054 = vsel %vm2990, %v2958, %v3022
      %v3055 = vsel %vm2991, %v2959, %v3023
      %v3056 = vsel %vm2992, %v2960, %v3024
      %v3057 = vsel %vm2993, %v2961, %v3025
      %v3058 = vsel %vm2994, %v2962, %v3026
      %v3059 = vsel %vm2995, %v2963, %v3027
      %v3060 = vsel %vm2996, %v2964, %v3028
      %v3061 = vsel %vm2997, %v2965, %v3029
      %v3062 = vsel %vm2998, %v2966, %v3030
      %v3063 = vsel %vm2999, %v2967, %v3031
      %v3064 = vsel %vm3000, %v2968, %v3032
      %v3065 = vsel %vm3001, %v2969, %v3033
      %v3066 = vsel %vm3002, %v2970, %v3034
      %v3067 = vsel %vm3003, %v2971, %v3035
      %v3068 = vsel %vm3004, %v2972, %v3036
      %v3069 = vsel %vm3005, %v2973, %v3037
      %v3070 = vsel %vm3006, %v2974, %v3038
      %v3071 = vsel %vm3007, %v2975, %v3039
      %v3072 = vsel %vm3008, %v2976, %v3040
      %v3073 = vsel %vm3009, %v2977, %v3041
      %v3074 = vsel %vm3010, %v2978, %v3042
      %v3075 = vadd.f32 %v3043, %v960
      %v3076 = vadd.f32 %v3044, %v961
      %v3077 = vadd.f32 %v3045, %v962
      %v3078 = vadd.f32 %v3046, %v963
      %v3079 = vadd.f32 %v3047, %v964
      %v3080 = vadd.f32 %v3048, %v965
      %v3081 = vadd.f32 %v3049, %v966
      %v3082 = vadd.f32 %v3050, %v967
      %v3083 = vadd.f32 %v3051, %v968
      %v3084 = vadd.f32 %v3052, %v969
      %v3085 = vadd.f32 %v3053, %v970
      %v3086 = vadd.f32 %v3054, %v971
      %v3087 = vadd.f32 %v3055, %v972
      %v3088 = vadd.f32 %v3056, %v973
      %v3089 = vadd.f32 %v3057, %v974
      %v3090 = vadd.f32 %v3058, %v975
      %v3091 = vadd.f32 %v3059, %v976
      %v3092 = vadd.f32 %v3060, %v977
      %v3093 = vadd.f32 %v3061, %v978
      %v3094 = vadd.f32 %v3062, %v979
      %v3095 = vadd.f32 %v3063, %v980
      %v3096 = vadd.f32 %v3064, %v981
      %v3097 = vadd.f32 %v3065, %v982
      %v3098 = vadd.f32 %v3066, %v983
      %v3099 = vadd.f32 %v3067, %v984
      %v3100 = vadd.f32 %v3068, %v985
      %v3101 = vadd.f32 %v3069, %v986
      %v3102 = vadd.f32 %v3070, %v987
      %v3103 = vadd.f32 %v3071, %v988
      %v3104 = vadd.f32 %v3072, %v989
      %v3105 = vadd.f32 %v3073, %v990
      %v3106 = vadd.f32 %v3074, %v991
      %v3107 = vmax.f32 %v3075, %v3076
      %3108 = vmax.xlane.f32.xlu0 %v3107
      %v3109 = vpop.xlane.xlu0 %3108
      %v3110 = vmax.f32 %v3077, %v3078
      %3111 = vmax.xlane.f32.xlu0 %v3110
      %v3112 = vpop.xlane.xlu0 %3111
      %v3113 = vmax.f32 %v3079, %v3080
      %3114 = vmax.xlane.f32.xlu0 %v3113
      %v3115 = vpop.xlane.xlu0 %3114
      %v3116 = vmax.f32 %v3081, %v3082
      %3117 = vmax.xlane.f32.xlu0 %v3116
      %v3118 = vpop.xlane.xlu0 %3117
      %v3119 = vmax.f32 %v3083, %v3084
      %3120 = vmax.xlane.f32.xlu0 %v3119
      %v3121 = vpop.xlane.xlu0 %3120
      %v3122 = vmax.f32 %v3085, %v3086
      %3123 = vmax.xlane.f32.xlu0 %v3122
      %v3124 = vpop.xlane.xlu0 %3123
      %v3125 = vmax.f32 %v3087, %v3088
      %3126 = vmax.xlane.f32.xlu0 %v3125
      %v3127 = vpop.xlane.xlu0 %3126
      %v3128 = vmax.f32 %v3089, %v3090
      %3129 = vmax.xlane.f32.xlu0 %v3128
      %v3130 = vpop.xlane.xlu0 %3129
      %v3131 = vmax.f32 %v3091, %v3092
      %3132 = vmax.xlane.f32.xlu0 %v3131
      %v3133 = vpop.xlane.xlu0 %3132
      %v3134 = vmax.f32 %v3093, %v3094
      %3135 = vmax.xlane.f32.xlu0 %v3134
      %v3136 = vpop.xlane.xlu0 %3135
      %v3137 = vmax.f32 %v3095, %v3096
      %3138 = vmax.xlane.f32.xlu0 %v3137
      %v3139 = vpop.xlane.xlu0 %3138
      %v3140 = vmax.f32 %v3097, %v3098
      %3141 = vmax.xlane.f32.xlu0 %v3140
      %v3142 = vpop.xlane.xlu0 %3141
      %v3143 = vmax.f32 %v3099, %v3100
      %3144 = vmax.xlane.f32.xlu0 %v3143
      %v3145 = vpop.xlane.xlu0 %3144
      %v3146 = vmax.f32 %v3101, %v3102
      %3147 = vmax.xlane.f32.xlu0 %v3146
      %v3148 = vpop.xlane.xlu0 %3147
      %v3149 = vmax.f32 %v3103, %v3104
      %3150 = vmax.xlane.f32.xlu0 %v3149
      %v3151 = vpop.xlane.xlu0 %3150
      %v3152 = vmax.f32 %v3105, %v3106
      %3153 = vmax.xlane.f32.xlu0 %v3152
      %v3154 = vpop.xlane.xlu0 %3153
      %v3155 = vsub.f32 %v3075, %v3109
      %v3156 = vsub.f32 %v3076, %v3109
      %v3157 = vsub.f32 %v3077, %v3112
      %v3158 = vsub.f32 %v3078, %v3112
      %v3159 = vsub.f32 %v3079, %v3115
      %v3160 = vsub.f32 %v3080, %v3115
      %v3161 = vsub.f32 %v3081, %v3118
      %v3162 = vsub.f32 %v3082, %v3118
      %v3163 = vsub.f32 %v3083, %v3121
      %v3164 = vsub.f32 %v3084, %v3121
      %v3165 = vsub.f32 %v3085, %v3124
      %v3166 = vsub.f32 %v3086, %v3124
      %v3167 = vsub.f32 %v3087, %v3127
      %v3168 = vsub.f32 %v3088, %v3127
      %v3169 = vsub.f32 %v3089, %v3130
      %v3170 = vsub.f32 %v3090, %v3130
      %v3171 = vsub.f32 %v3091, %v3133
      %v3172 = vsub.f32 %v3092, %v3133
      %v3173 = vsub.f32 %v3093, %v3136
      %v3174 = vsub.f32 %v3094, %v3136
      %v3175 = vsub.f32 %v3095, %v3139
      %v3176 = vsub.f32 %v3096, %v3139
      %v3177 = vsub.f32 %v3097, %v3142
      %v3178 = vsub.f32 %v3098, %v3142
      %v3179 = vsub.f32 %v3099, %v3145
      %v3180 = vsub.f32 %v3100, %v3145
      %v3181 = vsub.f32 %v3101, %v3148
      %v3182 = vsub.f32 %v3102, %v3148
      %v3183 = vsub.f32 %v3103, %v3151
      %v3184 = vsub.f32 %v3104, %v3151
      %v3185 = vsub.f32 %v3105, %v3154
      %v3186 = vsub.f32 %v3106, %v3154
      %v3187 = vmul.f32 %v3155, 1.442695
      %v3188 = vpow.pop %v3187
      %v3189 = vmul.f32 %v3156, 1.442695
      %v3190 = vpow.pop %v3189
      %v3191 = vmul.f32 %v3157, 1.442695
      %v3192 = vpow.pop %v3191
      %v3193 = vmul.f32 %v3158, 1.442695
      %v3194 = vpow.pop %v3193
      %v3195 = vmul.f32 %v3159, 1.442695
      %v3196 = vpow.pop %v3195
      %v3197 = vmul.f32 %v3160, 1.442695
      %v3198 = vpow.pop %v3197
      %v3199 = vmul.f32 %v3161, 1.442695
      %v3200 = vpow.pop %v3199
      %v3201 = vmul.f32 %v3162, 1.442695
      %v3202 = vpow.pop %v3201
      %v3203 = vmul.f32 %v3163, 1.442695
      %v3204 = vpow.pop %v3203
      %v3205 = vmul.f32 %v3164, 1.442695
      %v3206 = vpow.pop %v3205
      %v3207 = vmul.f32 %v3165, 1.442695
      %v3208 = vpow.pop %v3207
      %v3209 = vmul.f32 %v3166, 1.442695
      %v3210 = vpow.pop %v3209
      %v3211 = vmul.f32 %v3167, 1.442695
      %v3212 = vpow.pop %v3211
      %v3213 = vmul.f32 %v3168, 1.442695
      %v3214 = vpow.pop %v3213
      %v3215 = vmul.f32 %v3169, 1.442695
      %v3216 = vpow.pop %v3215
      %v3217 = vmul.f32 %v3170, 1.442695
      %v3218 = vpow.pop %v3217
      %v3219 = vmul.f32 %v3171, 1.442695
      %v3220 = vpow.pop %v3219
      %v3221 = vmul.f32 %v3172, 1.442695
      %v3222 = vpow.pop %v3221
      %v3223 = vmul.f32 %v3173, 1.442695
      %v3224 = vpow.pop %v3223
      %v3225 = vmul.f32 %v3174, 1.442695
      %v3226 = vpow.pop %v3225
      %v3227 = vmul.f32 %v3175, 1.442695
      %v3228 = vpow.pop %v3227
      %v3229 = vmul.f32 %v3176, 1.442695
      %v3230 = vpow.pop %v3229
      %v3231 = vmul.f32 %v3177, 1.442695
      %v3232 = vpow.pop %v3231
      %v3233 = vmul.f32 %v3178, 1.442695
      %v3234 = vpow.pop %v3233
      %v3235 = vmul.f32 %v3179, 1.442695
      %v3236 = vpow.pop %v3235
      %v3237 = vmul.f32 %v3180, 1.442695
      %v3238 = vpow.pop %v3237
      %v3239 = vmul.f32 %v3181, 1.442695
      %v3240 = vpow.pop %v3239
      %v3241 = vmul.f32 %v3182, 1.442695
      %v3242 = vpow.pop %v3241
      %v3243 = vmul.f32 %v3183, 1.442695
      %v3244 = vpow.pop %v3243
      %v3245 = vmul.f32 %v3184, 1.442695
      %v3246 = vpow.pop %v3245
      %v3247 = vmul.f32 %v3185, 1.442695
      %v3248 = vpow.pop %v3247
      %v3249 = vmul.f32 %v3186, 1.442695
      %v3250 = vpow.pop %v3249
      %v3251 = vadd.f32 %v3188, %v3190
      %3252 = vadd.xlane.f32.xlu0 %v3251
      %v3253 = vpop.xlane.xlu0 %3252
      %v3254 = vadd.f32 %v3192, %v3194
      %3255 = vadd.xlane.f32.xlu0 %v3254
      %v3256 = vpop.xlane.xlu0 %3255
      %v3257 = vadd.f32 %v3196, %v3198
      %3258 = vadd.xlane.f32.xlu0 %v3257
      %v3259 = vpop.xlane.xlu0 %3258
      %v3260 = vadd.f32 %v3200, %v3202
      %3261 = vadd.xlane.f32.xlu0 %v3260
      %v3262 = vpop.xlane.xlu0 %3261
      %v3263 = vadd.f32 %v3204, %v3206
      %3264 = vadd.xlane.f32.xlu0 %v3263
      %v3265 = vpop.xlane.xlu0 %3264
      %v3266 = vadd.f32 %v3208, %v3210
      %3267 = vadd.xlane.f32.xlu0 %v3266
      %v3268 = vpop.xlane.xlu0 %3267
      %v3269 = vadd.f32 %v3212, %v3214
      %3270 = vadd.xlane.f32.xlu0 %v3269
      %v3271 = vpop.xlane.xlu0 %3270
      %v3272 = vadd.f32 %v3216, %v3218
      %3273 = vadd.xlane.f32.xlu0 %v3272
      %v3274 = vpop.xlane.xlu0 %3273
      %v3275 = vadd.f32 %v3220, %v3222
      %3276 = vadd.xlane.f32.xlu0 %v3275
      %v3277 = vpop.xlane.xlu0 %3276
      %v3278 = vadd.f32 %v3224, %v3226
      %3279 = vadd.xlane.f32.xlu0 %v3278
      %v3280 = vpop.xlane.xlu0 %3279
      %v3281 = vadd.f32 %v3228, %v3230
      %3282 = vadd.xlane.f32.xlu0 %v3281
      %v3283 = vpop.xlane.xlu0 %3282
      %v3284 = vadd.f32 %v3232, %v3234
      %3285 = vadd.xlane.f32.xlu0 %v3284
      %v3286 = vpop.xlane.xlu0 %3285
      %v3287 = vadd.f32 %v3236, %v3238
      %3288 = vadd.xlane.f32.xlu0 %v3287
      %v3289 = vpop.xlane.xlu0 %3288
      %v3290 = vadd.f32 %v3240, %v3242
      %3291 = vadd.xlane.f32.xlu0 %v3290
      %v3292 = vpop.xlane.xlu0 %3291
      %v3293 = vadd.f32 %v3244, %v3246
      %3294 = vadd.xlane.f32.xlu0 %v3293
      %v3295 = vpop.xlane.xlu0 %3294
      %v3296 = vadd.f32 %v3248, %v3250
      %3297 = vadd.xlane.f32.xlu0 %v3296
      %v3298 = vpop.xlane.xlu0 %3297
      %v3299 = vrcp.pop %v3253
      %v3300 = vrcp.pop %v3256
      %v3301 = vrcp.pop %v3259
      %v3302 = vrcp.pop %v3262
      %v3303 = vrcp.pop %v3265
      %v3304 = vrcp.pop %v3268
      %v3305 = vrcp.pop %v3271
      %v3306 = vrcp.pop %v3274
      %v3307 = vrcp.pop %v3277
      %v3308 = vrcp.pop %v3280
      %v3309 = vrcp.pop %v3283
      %v3310 = vrcp.pop %v3286
      %v3311 = vrcp.pop %v3289
      %v3312 = vrcp.pop %v3292
      %v3313 = vrcp.pop %v3295
      %v3314 = vrcp.pop %v3298
      %v3315 = vmul.f32 %v3188, %v3299
      %v3316 = vmul.f32 %v3190, %v3299
      %v3317 = vmul.f32 %v3192, %v3300
      %v3318 = vmul.f32 %v3194, %v3300
      %v3319 = vmul.f32 %v3196, %v3301
      %v3320 = vmul.f32 %v3198, %v3301
      %v3321 = vmul.f32 %v3200, %v3302
      %v3322 = vmul.f32 %v3202, %v3302
      %v3323 = vmul.f32 %v3204, %v3303
      %v3324 = vmul.f32 %v3206, %v3303
      %v3325 = vmul.f32 %v3208, %v3304
      %v3326 = vmul.f32 %v3210, %v3304
      %v3327 = vmul.f32 %v3212, %v3305
      %v3328 = vmul.f32 %v3214, %v3305
      %v3329 = vmul.f32 %v3216, %v3306
      %v3330 = vmul.f32 %v3218, %v3306
      %v3331 = vmul.f32 %v3220, %v3307
      %v3332 = vmul.f32 %v3222, %v3307
      %v3333 = vmul.f32 %v3224, %v3308
      %v3334 = vmul.f32 %v3226, %v3308
      %v3335 = vmul.f32 %v3228, %v3309
      %v3336 = vmul.f32 %v3230, %v3309
      %v3337 = vmul.f32 %v3232, %v3310
      %v3338 = vmul.f32 %v3234, %v3310
      %v3339 = vmul.f32 %v3236, %v3311
      %v3340 = vmul.f32 %v3238, %v3311
      %v3341 = vmul.f32 %v3240, %v3312
      %v3342 = vmul.f32 %v3242, %v3312
      %v3343 = vmul.f32 %v3244, %v3313
      %v3344 = vmul.f32 %v3246, %v3313
      %v3345 = vmul.f32 %v3248, %v3314
      %v3346 = vmul.f32 %v3250, %v3314
      %v3347 = vpack.c.bf16 %v3317, %v3315
      %v3348 = vpack.c.bf16 %v3318, %v3316
      %v3349 = vpack.c.bf16 %v3321, %v3319
      %v3350 = vpack.c.bf16 %v3322, %v3320
      %v3351 = vpack.c.bf16 %v3325, %v3323
      %v3352 = vpack.c.bf16 %v3326, %v3324
      %v3353 = vpack.c.bf16 %v3329, %v3327
      %v3354 = vpack.c.bf16 %v3330, %v3328
      %v3355 = vpack.c.bf16 %v3333, %v3331
      %v3356 = vpack.c.bf16 %v3334, %v3332
      %v3357 = vpack.c.bf16 %v3337, %v3335
      %v3358 = vpack.c.bf16 %v3338, %v3336
      %v3359 = vpack.c.bf16 %v3341, %v3339
      %v3360 = vpack.c.bf16 %v3342, %v3340
      %v3361 = vpack.c.bf16 %v3345, %v3343
      %v3362 = vpack.c.bf16 %v3346, %v3344
      %3363 = vrot.lane.b32.xlu0 %v597, 80
      %v3364 = vpop.permute.xlu0 %3363
      %3365 = vrot.lane.b32.xlu0 %v598, 80
      %v3366 = vpop.permute.xlu0 %3365
      %3367 = vrot.lane.b32.xlu0 %v599, 80
      %v3368 = vpop.permute.xlu0 %3367
      %3369 = vrot.lane.b32.xlu0 %v600, 80
      %v3370 = vpop.permute.xlu0 %3369
      %3371 = vrot.lane.b32.xlu0 %v601, 80
      %v3372 = vpop.permute.xlu0 %3371
      %3373 = vrot.lane.b32.xlu0 %v602, 80
      %v3374 = vpop.permute.xlu0 %3373
      %3375 = vrot.lane.b32.xlu0 %v603, 80
      %v3376 = vpop.permute.xlu0 %3375
      %3377 = vrot.lane.b32.xlu0 %v604, 80
      %v3378 = vpop.permute.xlu0 %3377
      %3379 = vrot.lane.b32.xlu0 %v605, 80
      %v3380 = vpop.permute.xlu0 %3379
      %3381 = vrot.lane.b32.xlu0 %v606, 80
      %v3382 = vpop.permute.xlu0 %3381
      %3383 = vrot.lane.b32.xlu0 %v607, 80
      %v3384 = vpop.permute.xlu0 %3383
      %3385 = vrot.lane.b32.xlu0 %v608, 80
      %v3386 = vpop.permute.xlu0 %3385
      %3387 = vrot.lane.b32.xlu0 %v609, 80
      %v3388 = vpop.permute.xlu0 %3387
      %3389 = vrot.lane.b32.xlu0 %v610, 80
      %v3390 = vpop.permute.xlu0 %3389
      %3391 = vrot.lane.b32.xlu0 %v611, 80
      %v3392 = vpop.permute.xlu0 %3391
      %3393 = vrot.lane.b32.xlu0 %v612, 80
      %v3394 = vpop.permute.xlu0 %3393
      %3411 = vmatprep.subr.bf16.mxu0 0
      %3412 = vmatpush1.bf16.msra.mxu0 %v3364
      %3413 = vmatprep.subr.bf16.mxu0 0
      %3414 = vmatpush1.bf16.msra.mxu0 %v3366
      %3415 = vmatprep.subr.bf16.mxu0 0
      %3416 = vmatpush1.bf16.msra.mxu0 %v3368
      %3417 = vmatprep.subr.bf16.mxu0 0
      %3418 = vmatpush1.bf16.msra.mxu0 %v3370
      %3419 = vmatprep.subr.bf16.mxu0 0
      %3420 = vmatpush1.bf16.msra.mxu0 %v3372
      %3421 = vmatprep.subr.bf16.mxu0 0
      %3422 = vmatpush1.bf16.msra.mxu0 %v3374
      %3423 = vmatprep.subr.bf16.mxu0 0
      %3424 = vmatpush1.bf16.msra.mxu0 %v3376
      %3425 = vmatprep.subr.bf16.mxu0 0
      %3426 = vmatpush1.bf16.msra.mxu0 %v3378
      %3427 = vmatprep.subr.bf16.mxu0 0
      %3428 = vmatpush1.bf16.msra.mxu0 %v3380
      %3429 = vmatprep.subr.bf16.mxu0 0
      %3430 = vmatpush1.bf16.msra.mxu0 %v3382
      %3431 = vmatprep.subr.bf16.mxu0 0
      %3432 = vmatpush1.bf16.msra.mxu0 %v3384
      %3433 = vmatprep.subr.bf16.mxu0 0
      %3434 = vmatpush1.bf16.msra.mxu0 %v3386
      %3435 = vmatprep.subr.bf16.mxu0 0
      %3436 = vmatpush1.bf16.msra.mxu0 %v3388
      %3437 = vmatprep.subr.bf16.mxu0 0
      %3438 = vmatpush1.bf16.msra.mxu0 %v3390
      %3439 = vmatprep.subr.bf16.mxu0 0
      %3440 = vmatpush1.bf16.msra.mxu0 %v3392
      %3441 = vmatprep.subr.bf16.mxu0 0
      %3442 = vmatpush1.bf16.msra.mxu0 %v3394
      %3443 = vmatprep.mubr.bf16.mxu0 %v3348
      %3444 = vmatmul.mubr.bf16.gmra.mrb[0].mxu0 %v3347
      %v3445 = vpop.f32.mrb[0].mxu0
      %v3446 = vadd.f32 0.0, %v3445
      %v3447 = vpop.f32.mrb[0].mxu0
      %v3448 = vpop.f32.mrb[0].mxu0
      %v3449 = vadd.f32 0.0, %v3448
      %v3450 = vpop.f32.mrb[0].mxu0
      %3451 = vmatprep.mubr.bf16.mxu0 %v3350
      %3452 = vmatmul.mubr.bf16.gmra.mrb[0].mxu0 %v3349
      %v3453 = vpop.f32.mrb[0].mxu0
      %v3454 = vadd.f32 0.0, %v3453
      %v3455 = vpop.f32.mrb[0].mxu0
      %v3456 = vpop.f32.mrb[0].mxu0
      %v3457 = vadd.f32 0.0, %v3456
      %v3458 = vpop.f32.mrb[0].mxu0
      %3459 = vmatprep.mubr.bf16.mxu0 %v3352
      %3460 = vmatmul.mubr.bf16.gmra.mrb[0].mxu0 %v3351
      %v3461 = vpop.f32.mrb[0].mxu0
      %v3462 = vadd.f32 0.0, %v3461
      %v3463 = vpop.f32.mrb[0].mxu0
      %v3464 = vpop.f32.mrb[0].mxu0
      %v3465 = vadd.f32 0.0, %v3464
      %v3466 = vpop.f32.mrb[0].mxu0
      %3467 = vmatprep.mubr.bf16.mxu0 %v3354
      %3468 = vmatmul.mubr.bf16.gmra.mrb[0].mxu0 %v3353
      %v3469 = vpop.f32.mrb[0].mxu0
      %v3470 = vadd.f32 0.0, %v3469
      %v3471 = vpop.f32.mrb[0].mxu0
      %v3472 = vpop.f32.mrb[0].mxu0
      %v3473 = vadd.f32 0.0, %v3472
      %v3474 = vpop.f32.mrb[0].mxu0
      %3475 = vmatprep.mubr.bf16.mxu0 %v3356
      %3476 = vmatmul.mubr.bf16.gmra.mrb[0].mxu0 %v3355
      %v3477 = vpop.f32.mrb[0].mxu0
      %v3478 = vadd.f32 0.0, %v3477
      %v3479 = vpop.f32.mrb[0].mxu0
      %v3480 = vpop.f32.mrb[0].mxu0
      %v3481 = vadd.f32 0.0, %v3480
      %v3482 = vpop.f32.mrb[0].mxu0
      %3483 = vmatprep.mubr.bf16.mxu0 %v3358
      %3484 = vmatmul.mubr.bf16.gmra.mrb[0].mxu0 %v3357
      %v3485 = vpop.f32.mrb[0].mxu0
      %v3486 = vadd.f32 0.0, %v3485
      %v3487 = vpop.f32.mrb[0].mxu0
      %v3488 = vpop.f32.mrb[0].mxu0
      %v3489 = vadd.f32 0.0, %v3488
      %v3490 = vpop.f32.mrb[0].mxu0
      %3491 = vmatprep.mubr.bf16.mxu0 %v3360
      %3492 = vmatmul.mubr.bf16.gmra.mrb[0].mxu0 %v3359
      %v3493 = vpop.f32.mrb[0].mxu0
      %v3494 = vadd.f32 0.0, %v3493
      %v3495 = vpop.f32.mrb[0].mxu0
      %v3496 = vpop.f32.mrb[0].mxu0
      %v3497 = vadd.f32 0.0, %v3496
      %v3498 = vpop.f32.mrb[0].mxu0
      %3499 = vmatprep.mubr.bf16.mxu0 %v3362
      %3500 = vmatmul.mubr.bf16.gmra.mrb[0].mxu0 %v3361
      %v3501 = vpop.f32.mrb[0].mxu0
      %v3502 = vadd.f32 0.0, %v3501
      %v3503 = vpop.f32.mrb[0].mxu0
      %v3504 = vpop.f32.mrb[0].mxu0
      %v3505 = vadd.f32 0.0, %v3504
      %v3506 = vpop.f32.mrb[0].mxu0
      %3507 = vdwg.mxu0
      %3524 = vrot.lane.b32.xlu0 %v2180, 16
      %v3525 = vpop.permute.xlu0 %3524
      %3526 = vrot.lane.b32.xlu0 %v2183, 16
      %v3527 = vpop.permute.xlu0 %3526
      %3528 = vrot.lane.b32.xlu0 %v2188, 16
      %v3529 = vpop.permute.xlu0 %3528
      %3530 = vrot.lane.b32.xlu0 %v2191, 16
      %v3531 = vpop.permute.xlu0 %3530
      %3532 = vrot.lane.b32.xlu0 %v2196, 16
      %v3533 = vpop.permute.xlu0 %3532
      %3534 = vrot.lane.b32.xlu0 %v2199, 16
      %v3535 = vpop.permute.xlu0 %3534
      %3536 = vrot.lane.b32.xlu0 %v2204, 16
      %v3537 = vpop.permute.xlu0 %3536
      %3538 = vrot.lane.b32.xlu0 %v2207, 16
      %v3539 = vpop.permute.xlu0 %3538
      %3540 = vrot.lane.b32.xlu0 %v2212, 16
      %v3541 = vpop.permute.xlu0 %3540
      %3542 = vrot.lane.b32.xlu0 %v2215, 16
      %v3543 = vpop.permute.xlu0 %3542
      %3544 = vrot.lane.b32.xlu0 %v2220, 16
      %v3545 = vpop.permute.xlu0 %3544
      %3546 = vrot.lane.b32.xlu0 %v2223, 16
      %v3547 = vpop.permute.xlu0 %3546
      %3548 = vrot.lane.b32.xlu0 %v2228, 16
      %v3549 = vpop.permute.xlu0 %3548
      %3550 = vrot.lane.b32.xlu0 %v2231, 16
      %v3551 = vpop.permute.xlu0 %3550
      %3552 = vrot.lane.b32.xlu0 %v2236, 16
      %v3553 = vpop.permute.xlu0 %3552
      %3554 = vrot.lane.b32.xlu0 %v2239, 16
      %v3555 = vpop.permute.xlu0 %3554
      %3588 = vrot.lane.b32.xlu0 %v2813, 32
      %v3589 = vpop.permute.xlu0 %3588
      %3590 = vrot.lane.b32.xlu0 %v2816, 32
      %v3591 = vpop.permute.xlu0 %3590
      %3592 = vrot.lane.b32.xlu0 %v2821, 32
      %v3593 = vpop.permute.xlu0 %3592
      %3594 = vrot.lane.b32.xlu0 %v2824, 32
      %v3595 = vpop.permute.xlu0 %3594
      %3596 = vrot.lane.b32.xlu0 %v2829, 32
      %v3597 = vpop.permute.xlu0 %3596
      %3598 = vrot.lane.b32.xlu0 %v2832, 32
      %v3599 = vpop.permute.xlu0 %3598
      %3600 = vrot.lane.b32.xlu0 %v2837, 32
      %v3601 = vpop.permute.xlu0 %3600
      %3602 = vrot.lane.b32.xlu0 %v2840, 32
      %v3603 = vpop.permute.xlu0 %3602
      %3604 = vrot.lane.b32.xlu0 %v2845, 32
      %v3605 = vpop.permute.xlu0 %3604
      %3606 = vrot.lane.b32.xlu0 %v2848, 32
      %v3607 = vpop.permute.xlu0 %3606
      %3608 = vrot.lane.b32.xlu0 %v2853, 32
      %v3609 = vpop.permute.xlu0 %3608
      %3610 = vrot.lane.b32.xlu0 %v2856, 32
      %v3611 = vpop.permute.xlu0 %3610
      %3612 = vrot.lane.b32.xlu0 %v2861, 32
      %v3613 = vpop.permute.xlu0 %3612
      %3614 = vrot.lane.b32.xlu0 %v2864, 32
      %v3615 = vpop.permute.xlu0 %3614
      %3616 = vrot.lane.b32.xlu0 %v2869, 32
      %v3617 = vpop.permute.xlu0 %3616
      %3618 = vrot.lane.b32.xlu0 %v2872, 32
      %v3619 = vpop.permute.xlu0 %3618
      %3652 = vrot.lane.b32.xlu0 %v3446, 48
      %v3653 = vpop.permute.xlu0 %3652
      %3654 = vrot.lane.b32.xlu0 %v3449, 48
      %v3655 = vpop.permute.xlu0 %3654
      %3656 = vrot.lane.b32.xlu0 %v3454, 48
      %v3657 = vpop.permute.xlu0 %3656
      %3658 = vrot.lane.b32.xlu0 %v3457, 48
      %v3659 = vpop.permute.xlu0 %3658
      %3660 = vrot.lane.b32.xlu0 %v3462, 48
      %v3661 = vpop.permute.xlu0 %3660
      %3662 = vrot.lane.b32.xlu0 %v3465, 48
      %v3663 = vpop.permute.xlu0 %3662
      %3664 = vrot.lane.b32.xlu0 %v3470, 48
      %v3665 = vpop.permute.xlu0 %3664
      %3666 = vrot.lane.b32.xlu0 %v3473, 48
      %v3667 = vpop.permute.xlu0 %3666
      %3668 = vrot.lane.b32.xlu0 %v3478, 48
      %v3669 = vpop.permute.xlu0 %3668
      %3670 = vrot.lane.b32.xlu0 %v3481, 48
      %v3671 = vpop.permute.xlu0 %3670
      %3672 = vrot.lane.b32.xlu0 %v3486, 48
      %v3673 = vpop.permute.xlu0 %3672
      %3674 = vrot.lane.b32.xlu0 %v3489, 48
      %v3675 = vpop.permute.xlu0 %3674
      %3676 = vrot.lane.b32.xlu0 %v3494, 48
      %v3677 = vpop.permute.xlu0 %3676
      %3678 = vrot.lane.b32.xlu0 %v3497, 48
      %v3679 = vpop.permute.xlu0 %3678
      %3680 = vrot.lane.b32.xlu0 %v3502, 48
      %v3681 = vpop.permute.xlu0 %3680
      %3682 = vrot.lane.b32.xlu0 %v3505, 48
      %v3683 = vpop.permute.xlu0 %3682
      %vm3700 = vcmask 130048
      %v3701 = vsel %vm3700, %v1531, %v3525
      %v3702 = vsel %vm3700, %v1534, %v3527
      %v3703 = vsel %vm3700, %v1539, %v3529
      %v3704 = vsel %vm3700, %v1542, %v3531
      %v3705 = vsel %vm3700, %v1547, %v3533
      %v3706 = vsel %vm3700, %v1550, %v3535
      %v3707 = vsel %vm3700, %v1555, %v3537
      %v3708 = vsel %vm3700, %v1558, %v3539
      %v3709 = vsel %vm3700, %v1563, %v3541
      %v3710 = vsel %vm3700, %v1566, %v3543
      %v3711 = vsel %vm3700, %v1571, %v3545
      %v3712 = vsel %vm3700, %v1574, %v3547
      %v3713 = vsel %vm3700, %v1579, %v3549
      %v3714 = vsel %vm3700, %v1582, %v3551
      %v3715 = vsel %vm3700, %v1587, %v3553
      %v3716 = vsel %vm3700, %v1590, %v3555
      %v3717 = vsel %vm387, %v3701, %v3589
      %v3718 = vsel %vm387, %v3702, %v3591
      %v3719 = vsel %vm387, %v3703, %v3593
      %v3720 = vsel %vm387, %v3704, %v3595
      %v3721 = vsel %vm387, %v3705, %v3597
      %v3722 = vsel %vm387, %v3706, %v3599
      %v3723 = vsel %vm387, %v3707, %v3601
      %v3724 = vsel %vm387, %v3708, %v3603
      %v3725 = vsel %vm387, %v3709, %v3605
      %v3726 = vsel %vm387, %v3710, %v3607
      %v3727 = vsel %vm387, %v3711, %v3609
      %v3728 = vsel %vm387, %v3712, %v3611
      %v3729 = vsel %vm387, %v3713, %v3613
      %v3730 = vsel %vm387, %v3714, %v3615
      %v3731 = vsel %vm387, %v3715, %v3617
      %v3732 = vsel %vm387, %v3716, %v3619
      %vm3733 = vcmask 392192
      %v3734 = vsel %vm3733, %v3717, %v3653
      %v3735 = vsel %vm3733, %v3718, %v3655
      %v3736 = vsel %vm3733, %v3719, %v3657
      %v3737 = vsel %vm3733, %v3720, %v3659
      %v3738 = vsel %vm3733, %v3721, %v3661
      %v3739 = vsel %vm3733, %v3722, %v3663
      %v3740 = vsel %vm3733, %v3723, %v3665
      %v3741 = vsel %vm3733, %v3724, %v3667
      %v3742 = vsel %vm3733, %v3725, %v3669
      %v3743 = vsel %vm3733, %v3726, %v3671
      %v3744 = vsel %vm3733, %v3727, %v3673
      %v3745 = vsel %vm3733, %v3728, %v3675
      %v3746 = vsel %vm3733, %v3729, %v3677
      %v3747 = vsel %vm3733, %v3730, %v3679
      %v3748 = vsel %vm3733, %v3731, %v3681
      %v3749 = vsel %vm3733, %v3732, %v3683
      %v3750 = vld [vmem:[%s4] sm:$0x1]
      %v3752 = vlaneseq
      %v3753 = vshrl.u32 %v3752, 7
      %v3754 = vsub.s32 0, %v3753
      %v3755 = vrot.slane %v3750, %v3754
      %v3757 = vadd.f32 %v3734, %v3755
      %v3758 = vadd.f32 %v3735, %v3755
      %v3759 = vadd.f32 %v3736, %v3755
      %v3760 = vadd.f32 %v3737, %v3755
      %v3761 = vadd.f32 %v3738, %v3755
      %v3762 = vadd.f32 %v3739, %v3755
      %v3763 = vadd.f32 %v3740, %v3755
      %v3764 = vadd.f32 %v3741, %v3755
      %v3765 = vadd.f32 %v3742, %v3755
      %v3766 = vadd.f32 %v3743, %v3755
      %v3767 = vadd.f32 %v3744, %v3755
      %v3768 = vadd.f32 %v3745, %v3755
      %v3769 = vadd.f32 %v3746, %v3755
      %v3770 = vadd.f32 %v3747, %v3755
      %v3771 = vadd.f32 %v3748, %v3755
      %v3772 = vadd.f32 %v3749, %v3755
      %v3773 = vmax.f32 %v3757, 0.0
      %v3774 = vmax.f32 %v3758, 0.0
      %v3775 = vmax.f32 %v3759, 0.0
      %v3776 = vmax.f32 %v3760, 0.0
      %v3777 = vmax.f32 %v3761, 0.0
      %v3778 = vmax.f32 %v3762, 0.0
      %v3779 = vmax.f32 %v3763, 0.0
      %v3780 = vmax.f32 %v3764, 0.0
      %v3781 = vmax.f32 %v3765, 0.0
      %v3782 = vmax.f32 %v3766, 0.0
      %v3783 = vmax.f32 %v3767, 0.0
      %v3784 = vmax.f32 %v3768, 0.0
      %v3785 = vmax.f32 %v3769, 0.0
      %v3786 = vmax.f32 %v3770, 0.0
      %v3787 = vmax.f32 %v3771, 0.0
      %v3788 = vmax.f32 %v3772, 0.0
      %v3789 = vpack.c.bf16 %v3774, %v3773
      %v3790 = vpack.c.bf16 %v3776, %v3775
      %v3791 = vpack.c.bf16 %v3778, %v3777
      %v3792 = vpack.c.bf16 %v3780, %v3779
      %v3793 = vpack.c.bf16 %v3782, %v3781
      %v3794 = vpack.c.bf16 %v3784, %v3783
      %v3795 = vpack.c.bf16 %v3786, %v3785
      %v3796 = vpack.c.bf16 %v3788, %v3787
      %v3805 = vunpack.c.l.b16 %v3789
      %v3806 = vunpack.c.h.b16 %v3789
      %v3807 = vunpack.c.l.b16 %v3790
      %v3808 = vunpack.c.h.b16 %v3790
      %v3809 = vunpack.c.l.b16 %v3791
      %v3810 = vunpack.c.h.b16 %v3791
      %v3811 = vunpack.c.l.b16 %v3792
      %v3812 = vunpack.c.h.b16 %v3792
      %v3813 = vunpack.c.l.b16 %v3793
      %v3814 = vunpack.c.h.b16 %v3793
      %v3815 = vunpack.c.l.b16 %v3794
      %v3816 = vunpack.c.h.b16 %v3794
      %v3817 = vunpack.c.l.b16 %v3795
      %v3818 = vunpack.c.h.b16 %v3795
      %v3819 = vunpack.c.l.b16 %v3796
      %v3820 = vunpack.c.h.b16 %v3796
      %v3821 = vpack.c.b16 %v3805, %v3805
      %v3822 = vpack.c.b16 %v3806, %v3806
      %v3823 = vpack.c.b16 %v3807, %v3807
      %v3824 = vpack.c.b16 %v3808, %v3808
      %v3825 = vpack.c.b16 %v3809, %v3809
      %v3826 = vpack.c.b16 %v3810, %v3810
      %v3827 = vpack.c.b16 %v3811, %v3811
      %v3828 = vpack.c.b16 %v3812, %v3812
      %v3829 = vpack.c.b16 %v3813, %v3813
      %v3830 = vpack.c.b16 %v3814, %v3814
      %v3831 = vpack.c.b16 %v3815, %v3815
      %v3832 = vpack.c.b16 %v3816, %v3816
      %v3833 = vpack.c.b16 %v3817, %v3817
      %v3834 = vpack.c.b16 %v3818, %v3818
      %v3835 = vpack.c.b16 %v3819, %v3819
      %v3836 = vpack.c.b16 %v3820, %v3820
      %vm3853 = vcmask 519168
      %3854 = vst.msk [vmem:[%s256] sm:$0xf] %vm3853, %v3821
      %3855 = vst.msk [vmem:[%s256 + $0x4] sm:$0xf] %vm3853, %v3822
      %3856 = vst.msk [vmem:[%s256 + $0x8] sm:$0xf] %vm3853, %v3823
      %3857 = vst.msk [vmem:[%s256 + $0xc] sm:$0xf] %vm3853, %v3824
      %3858 = vst.msk [vmem:[%s256 + $0x10] sm:$0xf] %vm3853, %v3825
      %3859 = vst.msk [vmem:[%s256 + $0x14] sm:$0xf] %vm3853, %v3826
      %3860 = vst.msk [vmem:[%s256 + $0x18] sm:$0xf] %vm3853, %v3827
      %3861 = vst.msk [vmem:[%s256 + $0x1c] sm:$0xf] %vm3853, %v3828
      %3862 = vst.msk [vmem:[%s256 + $0x20] sm:$0xf] %vm3853, %v3829
      %3863 = vst.msk [vmem:[%s256 + $0x24] sm:$0xf] %vm3853, %v3830
      %3864 = vst.msk [vmem:[%s256 + $0x28] sm:$0xf] %vm3853, %v3831
      %3865 = vst.msk [vmem:[%s256 + $0x2c] sm:$0xf] %vm3853, %v3832
      %3866 = vst.msk [vmem:[%s256 + $0x30] sm:$0xf] %vm3853, %v3833
      %3867 = vst.msk [vmem:[%s256 + $0x34] sm:$0xf] %vm3853, %v3834
      %3868 = vst.msk [vmem:[%s256 + $0x38] sm:$0xf] %vm3853, %v3835
      %3869 = vst.msk [vmem:[%s256 + $0x3c] sm:$0xf] %vm3853, %v3836
      %s3870 = smul.u32 16, %s17
      %p3871 = scmp.lt.s32.totalorder %s3870, 31
      %s3872 = scalar_select %p3871, %s3870, 31
      %s3873 = smul.addr %s3872, 4
      %s3874 = scalar_lea.vmem %s6, %s3873
      // Predicated region
      $region45: #{gat_2l_forward.2} parent=43 // pred_check
        %p3875 = pneg %p166
      $region46: #{gat_2l_forward.2} parent=43 // pred_check_branch
        %3877 = sbr.rel (%p3875) target = $region48
      $region47: #{gat_2l_forward.2} parent=43 // pred_region
        %s3878 = smul.u32 16, %s17
      $region48: #{gat_2l_forward.2} parent=43 // pred_fallthru
        _
    $region44: #{gat_2l_forward.2} parent=5 // pred_fallthru
      _
    %p3879 = scmp.le.s32.totalorder 2, %s12
    // Predicated region
    $region49: #{gat_2l_forward.2} parent=5 // pred_check
      %p3880 = pneg %p3879
    $region50: #{gat_2l_forward.2} parent=5 // pred_check_branch
      %3882 = sbr.rel (%p3880) target = $region52
    $region51: #{gat_2l_forward.2} parent=5 // pred_region
      %s3883 = ssub.s32 %s12, 2
      // Predicated region
      $region53: #{gat_2l_forward.2} parent=51 // pred_check
        %p3884 = pneg %p172
      $region54: #{gat_2l_forward.2} parent=51 // pred_check_branch
        %3886 = sbr.rel (%p3884) target = $region56
      $region55: #{gat_2l_forward.2} parent=51 // pred_region
        %s3887 = smul.u32 16, %s18
        %p3888 = scmp.lt.s32.totalorder %s3887, 31
        %s3889 = scalar_select %p3888, %s3887, 31
        %s3890 = smul.addr %s3889, 4
        %s3891 = scalar_lea.vmem %s6, %s3890
      $region56: #{gat_2l_forward.2} parent=51 // pred_fallthru
        _
    $region52: #{gat_2l_forward.2} parent=5 // pred_fallthru
      _
  $region6: #{gat_2l_forward.2} parent=0 // loop_footer
    %s16 = sadd.s32 1, %s12
  $region7: #{gat_2l_forward.2} parent=0 // loop_footer_branch
    %11 = sbr.rel target = $region3
  $region8: #{gat_2l_forward.2} parent=0 // loop_exit
    _

</llo_original>
